<compile_context>
chip_gen: v7x
topology: tpu7x:2x2x1
jax: 0.10.0
libtpu: 0.0.40
codegen_flags: <defaults>
</compile_context>

<pallas_src>
import jax
import jax.numpy as jnp
from jax.experimental import pallas as pl
from jax.experimental.pallas import tpu as pltpu

INPUT_SIZE = 7
HIDDEN_SIZE = 16
OUTPUT_SIZE = 4

TILE_QUANT = 512          # batch-tile quantum (multiple of 8 sublanes)
MAX_TILE_B = 8192         # row-major blocks lane-pad 7/4 -> 128 in VMEM (~4 MiB/buffer @ 8192)
MIN_STEPS = 4             # >= 2 grid steps for v7x megacore + pipelining; 4 for balance
MIN_PALLAS_BATCH = 1024   # below this a fused jnp path beats the pallas_call launch cost
VMEM_LIMIT_BYTES = 48 * 1024 * 1024   # covers worst-case tiles; below v7x 64 MiB physical
MATMUL_PRECISION = jax.lax.Precision.HIGHEST


def _cdiv(a, b):
    return -(-a // b)


def _round_up(a, m):
    return _cdiv(a, m) * m


def _choose_tiling(batch):
    """Pick (tile_b, padded_batch): >=MIN_STEPS grid steps, tile capped by VMEM."""
    bp0 = _round_up(max(batch, 1), TILE_QUANT)
    n_steps = max(MIN_STEPS, _cdiv(bp0, MAX_TILE_B))
    tile_b = min(MAX_TILE_B, _round_up(_cdiv(bp0, n_steps), TILE_QUANT))
    bp = _round_up(bp0, tile_b)
    return tile_b, bp


def _mlp_kernel(x_ref, w1_ref, b1_ref, w2_ref, b2_ref, o_ref):
    # x_ref : (tile_b, 7)   w1_ref: (7, 16)   b1_ref: (1, 16)
    # w2_ref: (16, 4)       b2_ref: (1, 4)    o_ref : (tile_b, 4)
    x = x_ref[...]
    h = jnp.dot(x, w1_ref[...], preferred_element_type=jnp.float32,
                precision=MATMUL_PRECISION) + b1_ref[...]
    h = jnp.maximum(h, 0.0)  # ReLU
    o = jnp.dot(h, w2_ref[...], preferred_element_type=jnp.float32,
                precision=MATMUL_PRECISION) + b2_ref[...]
    o_ref[...] = o.astype(o_ref.dtype)


def init_params(key):
    """Deterministic init mimicking PyTorch nn.Linear defaults (U(-1/sqrt(fan_in), +))."""
    k1, k2, k3, k4 = jax.random.split(key, 4)
    bound1 = 1.0 / jnp.sqrt(INPUT_SIZE)
    bound2 = 1.0 / jnp.sqrt(HIDDEN_SIZE)
    w1 = jax.random.uniform(k1, (INPUT_SIZE, HIDDEN_SIZE), jnp.float32, -bound1, bound1)
    b1 = jax.random.uniform(k2, (HIDDEN_SIZE,), jnp.float32, -bound1, bound1)
    w2 = jax.random.uniform(k3, (HIDDEN_SIZE, OUTPUT_SIZE), jnp.float32, -bound2, bound2)
    b2 = jax.random.uniform(k4, (OUTPUT_SIZE,), jnp.float32, -bound2, bound2)
    return (w1, b1, w2, b2)


def prepare_params(params):
    """One-time preprocessing: f32 cast, biases as (1, n) rows for in-kernel broadcast."""
    w1, b1, w2, b2 = params
    return (w1.astype(jnp.float32),
            b1.astype(jnp.float32).reshape(1, HIDDEN_SIZE),
            w2.astype(jnp.float32),
            b2.astype(jnp.float32).reshape(1, OUTPUT_SIZE))


def _forward_reference(x, prepared_params, precision=MATMUL_PRECISION):
    """Pure-JAX reference / small-batch fallback (fused by XLA)."""
    w1, b1, w2, b2 = prepared_params
    h = jnp.maximum(jnp.dot(x.astype(jnp.float32), w1, precision=precision) + b1, 0.0)
    return jnp.dot(h, w2, precision=precision) + b2


def _forward_pallas(x, prepared_params):
    w1, b1, w2, b2 = prepared_params
    batch = x.shape[0]
    tile_b, bp = _choose_tiling(batch)

    x_in = x.astype(jnp.float32)
    if bp != batch:  # only when batch is not a tile multiple; zero rows are sliced off below
        x_in = jnp.pad(x_in, ((0, bp - batch), (0, 0)))

    grid = (bp // tile_b,)

    cost = pl.CostEstimate(
        flops=2 * bp * (INPUT_SIZE * HIDDEN_SIZE + HIDDEN_SIZE * OUTPUT_SIZE),
        transcendentals=0,
        bytes_accessed=4 * bp * (INPUT_SIZE + OUTPUT_SIZE)
        + 4 * (w1.size + b1.size + w2.size + b2.size),
    )

    out = pl.pallas_call(
        _mlp_kernel,
        out_shape=jax.ShapeDtypeStruct((bp, OUTPUT_SIZE), jnp.float32),
        grid=grid,
        in_specs=[
            pl.BlockSpec((tile_b, INPUT_SIZE), lambda i: (i, 0)),        # x tile (row-major)
            pl.BlockSpec((INPUT_SIZE, HIDDEN_SIZE), lambda i: (0, 0)),   # w1 (resident)
            pl.BlockSpec((1, HIDDEN_SIZE), lambda i: (0, 0)),            # b1 (resident)
            pl.BlockSpec((HIDDEN_SIZE, OUTPUT_SIZE), lambda i: (0, 0)),  # w2 (resident)
            pl.BlockSpec((1, OUTPUT_SIZE), lambda i: (0, 0)),            # b2 (resident)
        ],
        out_specs=pl.BlockSpec((tile_b, OUTPUT_SIZE), lambda i: (i, 0)),
        compiler_params=pltpu.CompilerParams(
            dimension_semantics=("parallel",),       # batch-parallel -> megacore on v7x
            vmem_limit_bytes=VMEM_LIMIT_BYTES,       # lane-padded row-major blocks need >16 MiB
        ),
        cost_estimate=cost,
    )(x_in, w1, b1, w2, b2)

    if bp != batch:
        out = out[:batch]
    return out


def chipmunk_slice_nn_forward(x, prepared_params, *, use_pallas=None):
    """x: (batch, 7) float32 -> (batch, 4) float32. Matches SimpleNN.forward."""
    batch = x.shape[0]
    if use_pallas is None:
        use_pallas = batch >= MIN_PALLAS_BATCH
    if not use_pallas:
        return _forward_reference(x, prepared_params)
    return _forward_pallas(x, prepared_params)


if __name__ == "__main__":
    key = jax.random.PRNGKey(0)
    pkey, xkey1, xkey2 = jax.random.split(key, 3)
    params = prepare_params(init_params(pkey))

    fwd = jax.jit(chipmunk_slice_nn_forward, static_argnames=("use_pallas",))

    # Batch large enough to exercise the Pallas kernel path (grid of 4 steps, tile 512).
    batch = 2048
    x = jax.random.normal(xkey1, (batch, INPUT_SIZE), jnp.float32)
    out = jax.block_until_ready(fwd(x, params, use_pallas=True))
    ref = _forward_reference(x, params)
    assert out.shape == (batch, OUTPUT_SIZE)
    assert jnp.allclose(out, ref, atol=1e-5, rtol=1e-5)

    # Tiny batch like the original demo -> fused jnp fallback path.
    x_small = jax.random.normal(xkey2, (8, INPUT_SIZE), jnp.float32)
    out_small = jax.block_until_ready(fwd(x_small, params))
    ref_small = _forward_reference(x_small, params)
    assert out_small.shape == (8, OUTPUT_SIZE)
    assert jnp.allclose(out_small, ref_small, atol=1e-5, rtol=1e-5)

    print("KERNEL_OK")
</pallas_src>

<mosaic_0001>
module attributes {stable_mosaic.version = 11 : i64} {
  func.func @_mlp_kernel(%arg0: i32, %arg1: memref<512x7xf32, #tpu.memory_space<vmem>>, %arg2: memref<7x16xf32, #tpu.memory_space<vmem>>, %arg3: memref<1x16xf32, #tpu.memory_space<vmem>>, %arg4: memref<16x4xf32, #tpu.memory_space<vmem>>, %arg5: memref<1x4xf32, #tpu.memory_space<vmem>>, %arg6: memref<512x4xf32, #tpu.memory_space<vmem>>) attributes {dimension_semantics = [#tpu.dimension_semantics<parallel>], iteration_bounds = array<i64: 4>, scalar_prefetch = 0 : i64, scratch_operands = 0 : i64, tpu.core_type = #tpu.core_type<tc>, window_params = [{transform_indices = @transform_0, window_bounds = array<i64: 512, 7>}, {pipeline_mode = #tpu.pipeline_mode<synchronous>, transform_indices = @transform_1, window_bounds = array<i64: 7, 16>}, {pipeline_mode = #tpu.pipeline_mode<synchronous>, transform_indices = @transform_2, window_bounds = array<i64: 1, 16>}, {pipeline_mode = #tpu.pipeline_mode<synchronous>, transform_indices = @transform_3, window_bounds = array<i64: 16, 4>}, {pipeline_mode = #tpu.pipeline_mode<synchronous>, transform_indices = @transform_4, window_bounds = array<i64: 1, 4>}, {transform_indices = @transform_5, window_bounds = array<i64: 512, 4>}]} {
    %c0 = arith.constant 0 : index
    %c0_0 = arith.constant 0 : index
    %0 = vector.load %arg1[%c0, %c0_0] : memref<512x7xf32, #tpu.memory_space<vmem>>, vector<512x7xf32>
    %c0_1 = arith.constant 0 : index
    %c0_2 = arith.constant 0 : index
    %1 = vector.load %arg2[%c0_1, %c0_2] : memref<7x16xf32, #tpu.memory_space<vmem>>, vector<7x16xf32>
    %cst = arith.constant dense<0.000000e+00> : vector<512x16xf32>
    %2 = tpu.matmul %0, %1, %cst {dimension_numbers = #tpu.dot_dimension_numbers<[1], [0], [0], [1], [0, 0, 1, 1], [], []>, precision = #tpu.contract_precision<fp32>} : vector<512x7xf32>, vector<7x16xf32>, vector<512x16xf32> -> vector<512x16xf32>
    %c0_3 = arith.constant 0 : index
    %c0_4 = arith.constant 0 : index
    %3 = vector.load %arg3[%c0_3, %c0_4] : memref<1x16xf32, #tpu.memory_space<vmem>>, vector<1x16xf32>
    %4 = vector.broadcast %3 : vector<1x16xf32> to vector<512x16xf32>
    %5 = arith.addf %2, %4 : vector<512x16xf32>
    %cst_5 = arith.constant 0.000000e+00 : f32
    %6 = vector.broadcast %cst_5 : f32 to vector<512x16xf32>
    %7 = arith.maximumf %5, %6 : vector<512x16xf32>
    %c0_6 = arith.constant 0 : index
    %c0_7 = arith.constant 0 : index
    %8 = vector.load %arg4[%c0_6, %c0_7] : memref<16x4xf32, #tpu.memory_space<vmem>>, vector<16x4xf32>
    %cst_8 = arith.constant dense<0.000000e+00> : vector<512x4xf32>
    %9 = tpu.matmul %7, %8, %cst_8 {dimension_numbers = #tpu.dot_dimension_numbers<[1], [0], [0], [1], [0, 0, 1, 1], [], []>, precision = #tpu.contract_precision<fp32>} : vector<512x16xf32>, vector<16x4xf32>, vector<512x4xf32> -> vector<512x4xf32>
    %c0_9 = arith.constant 0 : index
    %c0_10 = arith.constant 0 : index
    %10 = vector.load %arg5[%c0_9, %c0_10] : memref<1x4xf32, #tpu.memory_space<vmem>>, vector<1x4xf32>
    %11 = vector.broadcast %10 : vector<1x4xf32> to vector<512x4xf32>
    %12 = arith.addf %9, %11 : vector<512x4xf32>
    %c0_11 = arith.constant 0 : index
    %c0_12 = arith.constant 0 : index
    %13 = vector.load %arg6[%c0_11, %c0_12] : memref<512x4xf32, #tpu.memory_space<vmem>>, vector<512x4xf32>
    tpu.vector_store %arg6[%c0_11, %c0_12], %12 {strides = array<i32>} : memref<512x4xf32, #tpu.memory_space<vmem>>, vector<512x4xf32>,
    return
  }
  func.func @transform_0(%arg0: i32) -> (i32, i32) {
    %c0_i32 = arith.constant 0 : i32
    %c0_i32_0 = arith.constant 0 : i32
    return %arg0, %c0_i32 : i32, i32
  }
  func.func @transform_1(%arg0: i32) -> (i32, i32) {
    %c0_i32 = arith.constant 0 : i32
    %c0_i32_0 = arith.constant 0 : i32
    %c0_i32_1 = arith.constant 0 : i32
    return %c0_i32, %c0_i32_0 : i32, i32
  }
  func.func @transform_2(%arg0: i32) -> (i32, i32) {
    %c0_i32 = arith.constant 0 : i32
    %c0_i32_0 = arith.constant 0 : i32
    %c0_i32_1 = arith.constant 0 : i32
    return %c0_i32, %c0_i32_0 : i32, i32
  }
  func.func @transform_3(%arg0: i32) -> (i32, i32) {
    %c0_i32 = arith.constant 0 : i32
    %c0_i32_0 = arith.constant 0 : i32
    %c0_i32_1 = arith.constant 0 : i32
    return %c0_i32, %c0_i32_0 : i32, i32
  }
  func.func @transform_4(%arg0: i32) -> (i32, i32) {
    %c0_i32 = arith.constant 0 : i32
    %c0_i32_0 = arith.constant 0 : i32
    %c0_i32_1 = arith.constant 0 : i32
    return %c0_i32, %c0_i32_0 : i32, i32
  }
  func.func @transform_5(%arg0: i32) -> (i32, i32) {
    %c0_i32 = arith.constant 0 : i32
    %c0_i32_0 = arith.constant 0 : i32
    return %arg0, %c0_i32 : i32, i32
  }
}

</mosaic_0001>

<llo_original>
// kernel: chipmunk_slice_nn_forward.1
$region0: #{chipmunk_slice_nn_forward.1}
  #allocation0 [shape = 'u32[]', space=smem, size = 0x4, offset = 0x4, fixed_abs, tag = 'smem constant byte address 0x4 - core index']
  #allocation1 [shape = 'u32[144,128]{1,0:T(1,128)}', space=vmem, size = 0x12000, scoped, tag = 'internal scratch']
  %s0 = inlined_call_operand.vmem [shape: f32[2048,7], index: 0, kind: input, shape index: {}]
  %s1 = inlined_call_operand.vmem [shape: f32[7,16], index: 1, kind: input, shape index: {}]
  %s2 = inlined_call_operand.vmem [shape: f32[1,16], index: 2, kind: input, shape index: {}]
  %s3 = inlined_call_operand.vmem [shape: f32[16,4], index: 3, kind: input, shape index: {}]
  %s4 = inlined_call_operand.vmem [shape: f32[1,4], index: 4, kind: input, shape index: {}]
  %s5 = inlined_call_operand.vmem [shape: f32[2048,4], index: 5, kind: output, shape index: {}]
  %s6 = sld [smem:[#allocation0]]
  $region53: #{chipmunk_slice_nn_forward.1} parent=0
    _
  %s8 = ssub.s32 1, %s6
  %s9 = scalar_select 0, %s8, %s6
  loop: start=0, step=1, limit=6
  $region2: #{chipmunk_slice_nn_forward.1} parent=0 // loop_pre_header
    _
  $region3: #{chipmunk_slice_nn_forward.1} parent=0 // loop_header
    %s11 = sphi 0, %s15
    %p12 = scmp.ge.s32.totalorder %s11, 6
    %s21 = sphi 0, %s23
    %s24 = sphi 0, %s21
    %s25 = sphi 0, %s24
    %s41 = sphi 0, %s25
    %s45 = sphi 0, %s45
    %s47 = sphi 0, %s45
    %s48 = sphi 0, %s47
    %s62 = sphi 0, %s48
    %s66 = sphi 0, %s66
    %s68 = sphi 0, %s66
    %s69 = sphi 0, %s68
    %s83 = sphi 0, %s69
    %s87 = sphi 0, %s87
    %s89 = sphi 0, %s87
    %s90 = sphi 0, %s89
    %s104 = sphi 0, %s90
    %s108 = sphi 0, %s108
    %s110 = sphi 0, %s108
    %s111 = sphi 0, %s110
    %s125 = sphi 0, %s111
    %s131 = sphi 0, %s133
    %s134 = sphi 0, %s131
    %s135 = sphi 0, %s134
    %s151 = sphi 0, %s135
  $region4: #{chipmunk_slice_nn_forward.1} parent=0 // loop_header_branch
    %14 = sbr.rel (%p12) target = $region8
  $region5: #{chipmunk_slice_nn_forward.1} parent=0 // loop_body
    %s16 = ssub.s32 %s11, 1
    %s17 = ssub.s32 %s11, 2
    %s18 = sadd.s32 %s11, 1
    %s19 = ssub.s32 %s11, %s18
    %p20 = scmp.eq.s32.totalorder %s19, 0
    %s22 = sadd.s32 %s21, 1
    %s23 = scalar_select %p20, %s21, %s22
    %p26 = pneg %p20
    %p27 = scmp.eq.s32.totalorder %s11, 3
    %p28 = por %p26, %p27
    %p29 = scmp.ne.s32.totalorder %s21, %s24
    %p30 = scmp.eq.s32.totalorder %s11, 0
    %p31 = por %p29, %p30
    %p32 = scmp.ne.s32.totalorder %s21, %s24
    %p33 = scmp.eq.s32.totalorder %s16, 3
    %p34 = por %p32, %p33
    %p35 = scmp.ne.s32.totalorder %s24, %s25
    %p36 = scmp.eq.s32.totalorder %s16, 0
    %p37 = por %p35, %p36
    %p38 = scmp.ne.s32.totalorder %s24, %s25
    %p39 = scmp.eq.s32.totalorder %s17, 3
    %p40 = por %p38, %p39
    %p42 = scmp.ne.s32.totalorder %s25, %s41
    %p43 = scmp.eq.s32.totalorder %s17, 0
    %p44 = por %p42, %p43
    %s46 = sadd.s32 %s45, 1
    %p49 = scmp.eq.s32.totalorder %s11, 3
    %p50 = scmp.ne.s32.totalorder %s45, %s47
    %p51 = scmp.eq.s32.totalorder %s11, 0
    %p52 = por %p50, %p51
    %p53 = scmp.ne.s32.totalorder %s45, %s47
    %p54 = scmp.eq.s32.totalorder %s16, 3
    %p55 = por %p53, %p54
    %p56 = scmp.ne.s32.totalorder %s47, %s48
    %p57 = scmp.eq.s32.totalorder %s16, 0
    %p58 = por %p56, %p57
    %p59 = scmp.ne.s32.totalorder %s47, %s48
    %p60 = scmp.eq.s32.totalorder %s17, 3
    %p61 = por %p59, %p60
    %p63 = scmp.ne.s32.totalorder %s48, %s62
    %p64 = scmp.eq.s32.totalorder %s17, 0
    %p65 = por %p63, %p64
    %s67 = sadd.s32 %s66, 1
    %p70 = scmp.eq.s32.totalorder %s11, 3
    %p71 = scmp.ne.s32.totalorder %s66, %s68
    %p72 = scmp.eq.s32.totalorder %s11, 0
    %p73 = por %p71, %p72
    %p74 = scmp.ne.s32.totalorder %s66, %s68
    %p75 = scmp.eq.s32.totalorder %s16, 3
    %p76 = por %p74, %p75
    %p77 = scmp.ne.s32.totalorder %s68, %s69
    %p78 = scmp.eq.s32.totalorder %s16, 0
    %p79 = por %p77, %p78
    %p80 = scmp.ne.s32.totalorder %s68, %s69
    %p81 = scmp.eq.s32.totalorder %s17, 3
    %p82 = por %p80, %p81
    %p84 = scmp.ne.s32.totalorder %s69, %s83
    %p85 = scmp.eq.s32.totalorder %s17, 0
    %p86 = por %p84, %p85
    %s88 = sadd.s32 %s87, 1
    %p91 = scmp.eq.s32.totalorder %s11, 3
    %p92 = scmp.ne.s32.totalorder %s87, %s89
    %p93 = scmp.eq.s32.totalorder %s11, 0
    %p94 = por %p92, %p93
    %p95 = scmp.ne.s32.totalorder %s87, %s89
    %p96 = scmp.eq.s32.totalorder %s16, 3
    %p97 = por %p95, %p96
    %p98 = scmp.ne.s32.totalorder %s89, %s90
    %p99 = scmp.eq.s32.totalorder %s16, 0
    %p100 = por %p98, %p99
    %p101 = scmp.ne.s32.totalorder %s89, %s90
    %p102 = scmp.eq.s32.totalorder %s17, 3
    %p103 = por %p101, %p102
    %p105 = scmp.ne.s32.totalorder %s90, %s104
    %p106 = scmp.eq.s32.totalorder %s17, 0
    %p107 = por %p105, %p106
    %s109 = sadd.s32 %s108, 1
    %p112 = scmp.eq.s32.totalorder %s11, 3
    %p113 = scmp.ne.s32.totalorder %s108, %s110
    %p114 = scmp.eq.s32.totalorder %s11, 0
    %p115 = por %p113, %p114
    %p116 = scmp.ne.s32.totalorder %s108, %s110
    %p117 = scmp.eq.s32.totalorder %s16, 3
    %p118 = por %p116, %p117
    %p119 = scmp.ne.s32.totalorder %s110, %s111
    %p120 = scmp.eq.s32.totalorder %s16, 0
    %p121 = por %p119, %p120
    %p122 = scmp.ne.s32.totalorder %s110, %s111
    %p123 = scmp.eq.s32.totalorder %s17, 3
    %p124 = por %p122, %p123
    %p126 = scmp.ne.s32.totalorder %s111, %s125
    %p127 = scmp.eq.s32.totalorder %s17, 0
    %p128 = por %p126, %p127
    %s129 = ssub.s32 %s11, %s18
    %p130 = scmp.eq.s32.totalorder %s129, 0
    %s132 = sadd.s32 %s131, 1
    %s133 = scalar_select %p130, %s131, %s132
    %p136 = pneg %p130
    %p137 = scmp.eq.s32.totalorder %s11, 3
    %p138 = por %p136, %p137
    %p139 = scmp.ne.s32.totalorder %s131, %s134
    %p140 = scmp.eq.s32.totalorder %s11, 0
    %p141 = por %p139, %p140
    %p142 = scmp.ne.s32.totalorder %s131, %s134
    %p143 = scmp.eq.s32.totalorder %s16, 3
    %p144 = por %p142, %p143
    %p145 = scmp.ne.s32.totalorder %s134, %s135
    %p146 = scmp.eq.s32.totalorder %s16, 0
    %p147 = por %p145, %p146
    %p148 = scmp.ne.s32.totalorder %s134, %s135
    %p149 = scmp.eq.s32.totalorder %s17, 3
    %p150 = por %p148, %p149
    %p152 = scmp.ne.s32.totalorder %s135, %s151
    %p153 = scmp.eq.s32.totalorder %s17, 0
    %p154 = por %p152, %p153
    %p155 = scmp.le.s32.totalorder 1, %s11
    %p156 = scmp.lt.s32.totalorder %s11, 5
    %p157 = pnand %p155, %p156
    %p158 = pneg %p157
    // Predicated region
    $region9: #{chipmunk_slice_nn_forward.1} parent=5 // pred_check
      _
    $region10: #{chipmunk_slice_nn_forward.1} parent=5 // pred_check_branch
      %160 = sbr.rel (%p157) target = $region12
    $region11: #{chipmunk_slice_nn_forward.1} parent=5 // pred_region
      %s161 = ssub.s32 %s11, 1
      // Predicated region
      $region13: #{chipmunk_slice_nn_forward.1} parent=11 // pred_check
        %p162 = pneg %p58
      $region14: #{chipmunk_slice_nn_forward.1} parent=11 // pred_check_branch
        %164 = sbr.rel (%p162) target = $region16
      $region15: #{chipmunk_slice_nn_forward.1} parent=11 // pred_region
        _
      $region16: #{chipmunk_slice_nn_forward.1} parent=11 // pred_fallthru
        _
      // Predicated region
      $region17: #{chipmunk_slice_nn_forward.1} parent=11 // pred_check
        %p165 = pneg %p79
      $region18: #{chipmunk_slice_nn_forward.1} parent=11 // pred_check_branch
        %167 = sbr.rel (%p165) target = $region20
      $region19: #{chipmunk_slice_nn_forward.1} parent=11 // pred_region
        _
      $region20: #{chipmunk_slice_nn_forward.1} parent=11 // pred_fallthru
        _
      // Predicated region
      $region21: #{chipmunk_slice_nn_forward.1} parent=11 // pred_check
        %p168 = pneg %p100
      $region22: #{chipmunk_slice_nn_forward.1} parent=11 // pred_check_branch
        %170 = sbr.rel (%p168) target = $region24
      $region23: #{chipmunk_slice_nn_forward.1} parent=11 // pred_region
        _
      $region24: #{chipmunk_slice_nn_forward.1} parent=11 // pred_fallthru
        _
      // Predicated region
      $region25: #{chipmunk_slice_nn_forward.1} parent=11 // pred_check
        %p171 = pneg %p121
      $region26: #{chipmunk_slice_nn_forward.1} parent=11 // pred_check_branch
        %173 = sbr.rel (%p171) target = $region28
      $region27: #{chipmunk_slice_nn_forward.1} parent=11 // pred_region
        _
      $region28: #{chipmunk_slice_nn_forward.1} parent=11 // pred_fallthru
        _
    $region12: #{chipmunk_slice_nn_forward.1} parent=5 // pred_fallthru
      _
    %p174 = scmp.lt.s32.totalorder %s11, 4
    // Predicated region
    $region29: #{chipmunk_slice_nn_forward.1} parent=5 // pred_check
      %p175 = pneg %p174
    $region30: #{chipmunk_slice_nn_forward.1} parent=5 // pred_check_branch
      %177 = sbr.rel (%p175) target = $region32
    $region31: #{chipmunk_slice_nn_forward.1} parent=5 // pred_region
      // Predicated region
      $region33: #{chipmunk_slice_nn_forward.1} parent=31 // pred_check
        %p178 = pneg %p31
      $region34: #{chipmunk_slice_nn_forward.1} parent=31 // pred_check_branch
        %180 = sbr.rel (%p178) target = $region36
      $region35: #{chipmunk_slice_nn_forward.1} parent=31 // pred_region
        %s181 = smul.u32 64, %s11
        %p182 = scmp.lt.s32.totalorder %s181, 255
        %s183 = scalar_select %p182, %s181, 255
        %s184 = smul.addr %s183, 8
        %s185 = scalar_lea.vmem %s0, %s184
        %s186 = smul.u32 64, %s11
      $region36: #{chipmunk_slice_nn_forward.1} parent=31 // pred_fallthru
        _
    $region32: #{chipmunk_slice_nn_forward.1} parent=5 // pred_fallthru
      _
    %p187 = scmp.le.s32.totalorder 1, %s11
    %p188 = scmp.lt.s32.totalorder %s11, 5
    %p189 = pnand %p187, %p188
    %p190 = pneg %p189
    // Predicated region
    $region37: #{chipmunk_slice_nn_forward.1} parent=5 // pred_check
      _
    $region38: #{chipmunk_slice_nn_forward.1} parent=5 // pred_check_branch
      %192 = sbr.rel (%p189) target = $region40
    $region39: #{chipmunk_slice_nn_forward.1} parent=5 // pred_region
      %s193 = ssub.s32 %s11, 1
      %s194 = smul.u32 64, %s16
      %p195 = scmp.lt.s32.totalorder %s194, 255
      %s196 = scalar_select %p195, %s194, 255
      %s197 = smul.addr %s196, 8
      %s198 = scalar_lea.vmem %s0, %s197
      %p199 = pneg %p37
      %p200 = pneg %p34
      %p201 = pneg %p58
      %p202 = pneg %p55
      %p203 = pneg %p79
      %p204 = pneg %p76
      %p205 = pneg %p100
      %p206 = pneg %p97
      %p207 = pneg %p121
      %p208 = pneg %p118
      %p209 = pneg %p147
      %p210 = pneg %p144
      %s211 = smul.u32 64, %s16
      %p212 = scmp.lt.s32.totalorder %s211, 255
      %s213 = scalar_select %p212, %s211, 255
      %s214 = smul.addr %s213, 8
      %s215 = scalar_lea.vmem %s5, %s214
      %s216 = smul.u32 64, %s16
      %p217 = scmp.lt.s32.totalorder %s216, 255
      %s218 = scalar_select %p217, %s216, 255
      %s219 = smul.addr %s218, 8
      %s220 = scalar_lea.vmem %s0, %s219
      %s221 = smul.u32 64, %s16
      %s222 = smul.u32 64, %s16
      %p223 = scmp.lt.s32.totalorder %s222, 255
      %s224 = scalar_select %p223, %s222, 255
      %s225 = smul.addr %s224, 8
      %s226 = scalar_lea.vmem %s5, %s225
      %s227 = smul.u32 64, %s16
      %v228 = vld [vmem:[%s220] sm:$0xff]
      %v229 = vld [vmem:[%s220 + $0x8] sm:$0xff]
      %v230 = vld [vmem:[%s220 + $0x10] sm:$0xff]
      %v231 = vld [vmem:[%s220 + $0x18] sm:$0xff]
      %v232 = vld [vmem:[%s220 + $0x20] sm:$0xff]
      %v233 = vld [vmem:[%s220 + $0x28] sm:$0xff]
      %v234 = vld [vmem:[%s220 + $0x30] sm:$0xff]
      %v235 = vld [vmem:[%s220 + $0x38] sm:$0xff]
      %v236 = vld [vmem:[%s220 + $0x40] sm:$0xff]
      %v237 = vld [vmem:[%s220 + $0x48] sm:$0xff]
      %v238 = vld [vmem:[%s220 + $0x50] sm:$0xff]
      %v239 = vld [vmem:[%s220 + $0x58] sm:$0xff]
      %v240 = vld [vmem:[%s220 + $0x60] sm:$0xff]
      %v241 = vld [vmem:[%s220 + $0x68] sm:$0xff]
      %v242 = vld [vmem:[%s220 + $0x70] sm:$0xff]
      %v243 = vld [vmem:[%s220 + $0x78] sm:$0xff]
      %v244 = vld [vmem:[%s220 + $0x80] sm:$0xff]
      %v245 = vld [vmem:[%s220 + $0x88] sm:$0xff]
      %v246 = vld [vmem:[%s220 + $0x90] sm:$0xff]
      %v247 = vld [vmem:[%s220 + $0x98] sm:$0xff]
      %v248 = vld [vmem:[%s220 + $0xa0] sm:$0xff]
      %v249 = vld [vmem:[%s220 + $0xa8] sm:$0xff]
      %v250 = vld [vmem:[%s220 + $0xb0] sm:$0xff]
      %v251 = vld [vmem:[%s220 + $0xb8] sm:$0xff]
      %v252 = vld [vmem:[%s220 + $0xc0] sm:$0xff]
      %v253 = vld [vmem:[%s220 + $0xc8] sm:$0xff]
      %v254 = vld [vmem:[%s220 + $0xd0] sm:$0xff]
      %v255 = vld [vmem:[%s220 + $0xd8] sm:$0xff]
      %v256 = vld [vmem:[%s220 + $0xe0] sm:$0xff]
      %v257 = vld [vmem:[%s220 + $0xe8] sm:$0xff]
      %v258 = vld [vmem:[%s220 + $0xf0] sm:$0xff]
      %v259 = vld [vmem:[%s220 + $0xf8] sm:$0xff]
      %v260 = vld [vmem:[%s220 + $0x100] sm:$0xff]
      %v261 = vld [vmem:[%s220 + $0x108] sm:$0xff]
      %v262 = vld [vmem:[%s220 + $0x110] sm:$0xff]
      %v263 = vld [vmem:[%s220 + $0x118] sm:$0xff]
      %v264 = vld [vmem:[%s220 + $0x120] sm:$0xff]
      %v265 = vld [vmem:[%s220 + $0x128] sm:$0xff]
      %v266 = vld [vmem:[%s220 + $0x130] sm:$0xff]
      %v267 = vld [vmem:[%s220 + $0x138] sm:$0xff]
      %v268 = vld [vmem:[%s220 + $0x140] sm:$0xff]
      %v269 = vld [vmem:[%s220 + $0x148] sm:$0xff]
      %v270 = vld [vmem:[%s220 + $0x150] sm:$0xff]
      %v271 = vld [vmem:[%s220 + $0x158] sm:$0xff]
      %v272 = vld [vmem:[%s220 + $0x160] sm:$0xff]
      %v273 = vld [vmem:[%s220 + $0x168] sm:$0xff]
      %v274 = vld [vmem:[%s220 + $0x170] sm:$0xff]
      %v275 = vld [vmem:[%s220 + $0x178] sm:$0xff]
      %v276 = vld [vmem:[%s220 + $0x180] sm:$0xff]
      %v277 = vld [vmem:[%s220 + $0x188] sm:$0xff]
      %v278 = vld [vmem:[%s220 + $0x190] sm:$0xff]
      %v279 = vld [vmem:[%s220 + $0x198] sm:$0xff]
      %v280 = vld [vmem:[%s220 + $0x1a0] sm:$0xff]
      %v281 = vld [vmem:[%s220 + $0x1a8] sm:$0xff]
      %v282 = vld [vmem:[%s220 + $0x1b0] sm:$0xff]
      %v283 = vld [vmem:[%s220 + $0x1b8] sm:$0xff]
      %v284 = vld [vmem:[%s220 + $0x1c0] sm:$0xff]
      %v285 = vld [vmem:[%s220 + $0x1c8] sm:$0xff]
      %v286 = vld [vmem:[%s220 + $0x1d0] sm:$0xff]
      %v287 = vld [vmem:[%s220 + $0x1d8] sm:$0xff]
      %v288 = vld [vmem:[%s220 + $0x1e0] sm:$0xff]
      %v289 = vld [vmem:[%s220 + $0x1e8] sm:$0xff]
      %v290 = vld [vmem:[%s220 + $0x1f0] sm:$0xff]
      %v291 = vld [vmem:[%s220 + $0x1f8] sm:$0xff]
      %v292 = vld [vmem:[%s1] sm:$0x7f]
      %v293 = vld [vmem:[%s2] sm:$0x1]
      %v295 = vlaneseq
      %v296 = vshrl.u32 %v295, 7
      %v297 = vsub.s32 0, %v296
      %v298 = vrot.slane %v293, %v297
      %vm300 = vcmask 56320
      %v302 = vsel %vm300, %v228, 0
      %v305 = vsel %vm300, %v229, 0
      %v308 = vsel %vm300, %v230, 0
      %v311 = vsel %vm300, %v231, 0
      %v314 = vsel %vm300, %v232, 0
      %v317 = vsel %vm300, %v233, 0
      %v320 = vsel %vm300, %v234, 0
      %v323 = vsel %vm300, %v235, 0
      %v326 = vsel %vm300, %v236, 0
      %v329 = vsel %vm300, %v237, 0
      %v332 = vsel %vm300, %v238, 0
      %v335 = vsel %vm300, %v239, 0
      %v338 = vsel %vm300, %v240, 0
      %v341 = vsel %vm300, %v241, 0
      %v344 = vsel %vm300, %v242, 0
      %v347 = vsel %vm300, %v243, 0
      %v350 = vsel %vm300, %v244, 0
      %v353 = vsel %vm300, %v245, 0
      %v356 = vsel %vm300, %v246, 0
      %v359 = vsel %vm300, %v247, 0
      %v362 = vsel %vm300, %v248, 0
      %v365 = vsel %vm300, %v249, 0
      %v368 = vsel %vm300, %v250, 0
      %v371 = vsel %vm300, %v251, 0
      %v374 = vsel %vm300, %v252, 0
      %v377 = vsel %vm300, %v253, 0
      %v380 = vsel %vm300, %v254, 0
      %v383 = vsel %vm300, %v255, 0
      %v386 = vsel %vm300, %v256, 0
      %v389 = vsel %vm300, %v257, 0
      %v392 = vsel %vm300, %v258, 0
      %v395 = vsel %vm300, %v259, 0
      %v398 = vsel %vm300, %v260, 0
      %v401 = vsel %vm300, %v261, 0
      %v404 = vsel %vm300, %v262, 0
      %v407 = vsel %vm300, %v263, 0
      %v410 = vsel %vm300, %v264, 0
      %v413 = vsel %vm300, %v265, 0
      %v416 = vsel %vm300, %v266, 0
      %v419 = vsel %vm300, %v267, 0
      %v422 = vsel %vm300, %v268, 0
      %v425 = vsel %vm300, %v269, 0
      %v428 = vsel %vm300, %v270, 0
      %v431 = vsel %vm300, %v271, 0
      %v434 = vsel %vm300, %v272, 0
      %v437 = vsel %vm300, %v273, 0
      %v440 = vsel %vm300, %v274, 0
      %v443 = vsel %vm300, %v275, 0
      %v446 = vsel %vm300, %v276, 0
      %v449 = vsel %vm300, %v277, 0
      %v452 = vsel %vm300, %v278, 0
      %v455 = vsel %vm300, %v279, 0
      %v458 = vsel %vm300, %v280, 0
      %v461 = vsel %vm300, %v281, 0
      %v464 = vsel %vm300, %v282, 0
      %v467 = vsel %vm300, %v283, 0
      %v470 = vsel %vm300, %v284, 0
      %v473 = vsel %vm300, %v285, 0
      %v476 = vsel %vm300, %v286, 0
      %v479 = vsel %vm300, %v287, 0
      %v482 = vsel %vm300, %v288, 0
      %v485 = vsel %vm300, %v289, 0
      %v488 = vsel %vm300, %v290, 0
      %v491 = vsel %vm300, %v291, 0
      %vm493 = vcmask 1046528
      %v495 = vsel %vm493, %v292, 0
      %497 = vmatprep.subr.mxu0 0.0
      %v498 = vand.u32 %v495, 4294901760
      %499 = vmatpush1.msra.mxu0 %v498
      %500 = vmatprep.subr.mxu0 0.0
      %501 = vmatpush1.msra.mxu0 0.0
      %502 = vmatprep.subr.mxu0 0.0
      %503 = vmatpush1.msra.mxu0 0.0
      %504 = vmatprep.subr.mxu0 0.0
      %505 = vmatpush1.msra.mxu0 0.0
      %506 = vmatprep.subr.mxu0 0.0
      %507 = vmatpush1.msra.mxu0 0.0
      %508 = vmatprep.subr.mxu0 0.0
      %509 = vmatpush1.msra.mxu0 0.0
      %510 = vmatprep.subr.mxu0 0.0
      %511 = vmatpush1.msra.mxu0 0.0
      %512 = vmatprep.subr.mxu0 0.0
      %513 = vmatpush1.msra.mxu0 0.0
      %514 = vmatprep.subr.mxu0 0.0
      %515 = vmatpush1.msra.mxu0 0.0
      %516 = vmatprep.subr.mxu0 0.0
      %517 = vmatpush1.msra.mxu0 0.0
      %518 = vmatprep.subr.mxu0 0.0
      %519 = vmatpush1.msra.mxu0 0.0
      %520 = vmatprep.subr.mxu0 0.0
      %521 = vmatpush1.msra.mxu0 0.0
      %522 = vmatprep.subr.mxu0 0.0
      %523 = vmatpush1.msra.mxu0 0.0
      %524 = vmatprep.subr.mxu0 0.0
      %525 = vmatpush1.msra.mxu0 0.0
      %526 = vmatprep.subr.mxu0 0.0
      %527 = vmatpush1.msra.mxu0 0.0
      %528 = vmatprep.subr.mxu0 0.0
      %529 = vmatpush1.msra.mxu0 0.0
      %530 = vmatprep.subr.mxu0 0.0
      %531 = vmatpush1.msra.mxu0 0.0
      %532 = vmatprep.subr.mxu0 0.0
      %533 = vmatpush1.msra.mxu0 0.0
      %534 = vmatprep.subr.mxu0 0.0
      %535 = vmatpush1.msra.mxu0 0.0
      %536 = vmatprep.subr.mxu0 0.0
      %537 = vmatpush1.msra.mxu0 0.0
      %538 = vmatprep.subr.mxu0 0.0
      %539 = vmatpush1.msra.mxu0 0.0
      %540 = vmatprep.subr.mxu0 0.0
      %541 = vmatpush1.msra.mxu0 0.0
      %542 = vmatprep.subr.mxu0 0.0
      %543 = vmatpush1.msra.mxu0 0.0
      %544 = vmatprep.subr.mxu0 0.0
      %545 = vmatpush1.msra.mxu0 0.0
      %546 = vmatprep.subr.mxu0 0.0
      %547 = vmatpush1.msra.mxu0 0.0
      %548 = vmatprep.subr.mxu0 0.0
      %549 = vmatpush1.msra.mxu0 0.0
      %550 = vmatprep.subr.mxu0 0.0
      %551 = vmatpush1.msra.mxu0 0.0
      %552 = vmatprep.subr.mxu0 0.0
      %553 = vmatpush1.msra.mxu0 0.0
      %554 = vmatprep.subr.mxu0 0.0
      %555 = vmatpush1.msra.mxu0 0.0
      %556 = vmatprep.subr.mxu0 0.0
      %557 = vmatpush1.msra.mxu0 0.0
      %558 = vmatprep.subr.mxu0 0.0
      %559 = vmatpush1.msra.mxu0 0.0
      %560 = vmatprep.subr.mxu0 0.0
      %561 = vmatpush1.msra.mxu0 0.0
      %562 = vmatprep.mubr.f32.mxu0 0.0
      %v563 = vand.u32 %v302, 4294901760
      %v564 = vsub.f32 %v302, %v563
      %v565 = vand.u32 %v564, 4294901760
      %v566 = vsub.f32 %v564, %v565
      %v567 = vand.u32 %v566, 4294901760
      %568 = vmatmul.mubr.f32.gmra.mrb[0].mxu0 %v567
      %v569 = vpop.f32.mrb[0].mxu0
      %v570 = vadd.f32 %v298, %v569
      %v571 = vpop.f32.mrb[0].mxu0
      %572 = vmatprep.mubr.f32.mxu0 0.0
      %v573 = vand.u32 %v305, 4294901760
      %v574 = vsub.f32 %v305, %v573
      %v575 = vand.u32 %v574, 4294901760
      %v576 = vsub.f32 %v574, %v575
      %v577 = vand.u32 %v576, 4294901760
      %578 = vmatmul.mubr.f32.gmra.mrb[0].mxu0 %v577
      %v579 = vpop.f32.mrb[0].mxu0
      %v580 = vadd.f32 %v298, %v579
      %v581 = vpop.f32.mrb[0].mxu0
      %582 = vmatprep.mubr.f32.mxu0 0.0
      %v583 = vand.u32 %v308, 4294901760
      %v584 = vsub.f32 %v308, %v583
      %v585 = vand.u32 %v584, 4294901760
      %v586 = vsub.f32 %v584, %v585
      %v587 = vand.u32 %v586, 4294901760
      %588 = vmatmul.mubr.f32.gmra.mrb[0].mxu0 %v587
      %v589 = vpop.f32.mrb[0].mxu0
      %v590 = vadd.f32 %v298, %v589
      %v591 = vpop.f32.mrb[0].mxu0
      %592 = vmatprep.mubr.f32.mxu0 0.0
      %v593 = vand.u32 %v311, 4294901760
      %v594 = vsub.f32 %v311, %v593
      %v595 = vand.u32 %v594, 4294901760
      %v596 = vsub.f32 %v594, %v595
      %v597 = vand.u32 %v596, 4294901760
      %598 = vmatmul.mubr.f32.gmra.mrb[0].mxu0 %v597
      %v599 = vpop.f32.mrb[0].mxu0
      %v600 = vadd.f32 %v298, %v599
      %v601 = vpop.f32.mrb[0].mxu0
      %602 = vmatprep.mubr.f32.mxu0 0.0
      %v603 = vand.u32 %v314, 4294901760
      %v604 = vsub.f32 %v314, %v603
      %v605 = vand.u32 %v604, 4294901760
      %v606 = vsub.f32 %v604, %v605
      %v607 = vand.u32 %v606, 4294901760
      %608 = vmatmul.mubr.f32.gmra.mrb[0].mxu0 %v607
      %v609 = vpop.f32.mrb[0].mxu0
      %v610 = vadd.f32 %v298, %v609
      %v611 = vpop.f32.mrb[0].mxu0
      %612 = vmatprep.mubr.f32.mxu0 0.0
      %v613 = vand.u32 %v317, 4294901760
      %v614 = vsub.f32 %v317, %v613
      %v615 = vand.u32 %v614, 4294901760
      %v616 = vsub.f32 %v614, %v615
      %v617 = vand.u32 %v616, 4294901760
      %618 = vmatmul.mubr.f32.gmra.mrb[0].mxu0 %v617
      %v619 = vpop.f32.mrb[0].mxu0
      %v620 = vadd.f32 %v298, %v619
      %v621 = vpop.f32.mrb[0].mxu0
      %622 = vmatprep.mubr.f32.mxu0 0.0
      %v623 = vand.u32 %v320, 4294901760
      %v624 = vsub.f32 %v320, %v623
      %v625 = vand.u32 %v624, 4294901760
      %v626 = vsub.f32 %v624, %v625
      %v627 = vand.u32 %v626, 4294901760
      %628 = vmatmul.mubr.f32.gmra.mrb[0].mxu0 %v627
      %v629 = vpop.f32.mrb[0].mxu0
      %v630 = vadd.f32 %v298, %v629
      %v631 = vpop.f32.mrb[0].mxu0
      %632 = vmatprep.mubr.f32.mxu0 0.0
      %v633 = vand.u32 %v323, 4294901760
      %v634 = vsub.f32 %v323, %v633
      %v635 = vand.u32 %v634, 4294901760
      %v636 = vsub.f32 %v634, %v635
      %v637 = vand.u32 %v636, 4294901760
      %638 = vmatmul.mubr.f32.gmra.mrb[0].mxu0 %v637
      %v639 = vpop.f32.mrb[0].mxu0
      %v640 = vadd.f32 %v298, %v639
      %v641 = vpop.f32.mrb[0].mxu0
      %642 = vmatprep.mubr.f32.mxu0 0.0
      %v643 = vand.u32 %v326, 4294901760
      %v644 = vsub.f32 %v326, %v643
      %v645 = vand.u32 %v644, 4294901760
      %v646 = vsub.f32 %v644, %v645
      %v647 = vand.u32 %v646, 4294901760
      %648 = vmatmul.mubr.f32.gmra.mrb[0].mxu0 %v647
      %v649 = vpop.f32.mrb[0].mxu0
      %v650 = vadd.f32 %v298, %v649
      %v651 = vpop.f32.mrb[0].mxu0
      %652 = vmatprep.mubr.f32.mxu0 0.0
      %v653 = vand.u32 %v329, 4294901760
      %v654 = vsub.f32 %v329, %v653
      %v655 = vand.u32 %v654, 4294901760
      %v656 = vsub.f32 %v654, %v655
      %v657 = vand.u32 %v656, 4294901760
      %658 = vmatmul.mubr.f32.gmra.mrb[0].mxu0 %v657
      %v659 = vpop.f32.mrb[0].mxu0
      %v660 = vadd.f32 %v298, %v659
      %v661 = vpop.f32.mrb[0].mxu0
      %662 = vmatprep.mubr.f32.mxu0 0.0
      %v663 = vand.u32 %v332, 4294901760
      %v664 = vsub.f32 %v332, %v663
      %v665 = vand.u32 %v664, 4294901760
      %v666 = vsub.f32 %v664, %v665
      %v667 = vand.u32 %v666, 4294901760
      %668 = vmatmul.mubr.f32.gmra.mrb[0].mxu0 %v667
      %v669 = vpop.f32.mrb[0].mxu0
      %v670 = vadd.f32 %v298, %v669
      %v671 = vpop.f32.mrb[0].mxu0
      %672 = vmatprep.mubr.f32.mxu0 0.0
      %v673 = vand.u32 %v335, 4294901760
      %v674 = vsub.f32 %v335, %v673
      %v675 = vand.u32 %v674, 4294901760
      %v676 = vsub.f32 %v674, %v675
      %v677 = vand.u32 %v676, 4294901760
      %678 = vmatmul.mubr.f32.gmra.mrb[0].mxu0 %v677
      %v679 = vpop.f32.mrb[0].mxu0
      %v680 = vadd.f32 %v298, %v679
      %v681 = vpop.f32.mrb[0].mxu0
      %682 = vmatprep.mubr.f32.mxu0 0.0
      %v683 = vand.u32 %v338, 4294901760
      %v684 = vsub.f32 %v338, %v683
      %v685 = vand.u32 %v684, 4294901760
      %v686 = vsub.f32 %v684, %v685
      %v687 = vand.u32 %v686, 4294901760
      %688 = vmatmul.mubr.f32.gmra.mrb[0].mxu0 %v687
      %v689 = vpop.f32.mrb[0].mxu0
      %v690 = vadd.f32 %v298, %v689
      %v691 = vpop.f32.mrb[0].mxu0
      %692 = vmatprep.mubr.f32.mxu0 0.0
      %v693 = vand.u32 %v341, 4294901760
      %v694 = vsub.f32 %v341, %v693
      %v695 = vand.u32 %v694, 4294901760
      %v696 = vsub.f32 %v694, %v695
      %v697 = vand.u32 %v696, 4294901760
      %698 = vmatmul.mubr.f32.gmra.mrb[0].mxu0 %v697
      %v699 = vpop.f32.mrb[0].mxu0
      %v700 = vadd.f32 %v298, %v699
      %v701 = vpop.f32.mrb[0].mxu0
      %702 = vmatprep.mubr.f32.mxu0 0.0
      %v703 = vand.u32 %v344, 4294901760
      %v704 = vsub.f32 %v344, %v703
      %v705 = vand.u32 %v704, 4294901760
      %v706 = vsub.f32 %v704, %v705
      %v707 = vand.u32 %v706, 4294901760
      %708 = vmatmul.mubr.f32.gmra.mrb[0].mxu0 %v707
      %v709 = vpop.f32.mrb[0].mxu0
      %v710 = vadd.f32 %v298, %v709
      %v711 = vpop.f32.mrb[0].mxu0
      %712 = vmatprep.mubr.f32.mxu0 0.0
      %v713 = vand.u32 %v347, 4294901760
      %v714 = vsub.f32 %v347, %v713
      %v715 = vand.u32 %v714, 4294901760
      %v716 = vsub.f32 %v714, %v715
      %v717 = vand.u32 %v716, 4294901760
      %718 = vmatmul.mubr.f32.gmra.mrb[0].mxu0 %v717
      %v719 = vpop.f32.mrb[0].mxu0
      %v720 = vadd.f32 %v298, %v719
      %v721 = vpop.f32.mrb[0].mxu0
      %722 = vmatprep.mubr.f32.mxu0 0.0
      %v723 = vand.u32 %v350, 4294901760
      %v724 = vsub.f32 %v350, %v723
      %v725 = vand.u32 %v724, 4294901760
      %v726 = vsub.f32 %v724, %v725
      %v727 = vand.u32 %v726, 4294901760
      %728 = vmatmul.mubr.f32.gmra.mrb[0].mxu0 %v727
      %v729 = vpop.f32.mrb[0].mxu0
      %v730 = vadd.f32 %v298, %v729
      %v731 = vpop.f32.mrb[0].mxu0
      %732 = vmatprep.mubr.f32.mxu0 0.0
      %v733 = vand.u32 %v353, 4294901760
      %v734 = vsub.f32 %v353, %v733
      %v735 = vand.u32 %v734, 4294901760
      %v736 = vsub.f32 %v734, %v735
      %v737 = vand.u32 %v736, 4294901760
      %738 = vmatmul.mubr.f32.gmra.mrb[0].mxu0 %v737
      %v739 = vpop.f32.mrb[0].mxu0
      %v740 = vadd.f32 %v298, %v739
      %v741 = vpop.f32.mrb[0].mxu0
      %742 = vmatprep.mubr.f32.mxu0 0.0
      %v743 = vand.u32 %v356, 4294901760
      %v744 = vsub.f32 %v356, %v743
      %v745 = vand.u32 %v744, 4294901760
      %v746 = vsub.f32 %v744, %v745
      %v747 = vand.u32 %v746, 4294901760
      %748 = vmatmul.mubr.f32.gmra.mrb[0].mxu0 %v747
      %v749 = vpop.f32.mrb[0].mxu0
      %v750 = vadd.f32 %v298, %v749
      %v751 = vpop.f32.mrb[0].mxu0
      %752 = vmatprep.mubr.f32.mxu0 0.0
      %v753 = vand.u32 %v359, 4294901760
      %v754 = vsub.f32 %v359, %v753
      %v755 = vand.u32 %v754, 4294901760
      %v756 = vsub.f32 %v754, %v755
      %v757 = vand.u32 %v756, 4294901760
      %758 = vmatmul.mubr.f32.gmra.mrb[0].mxu0 %v757
      %v759 = vpop.f32.mrb[0].mxu0
      %v760 = vadd.f32 %v298, %v759
      %v761 = vpop.f32.mrb[0].mxu0
      %762 = vmatprep.mubr.f32.mxu0 0.0
      %v763 = vand.u32 %v362, 4294901760
      %v764 = vsub.f32 %v362, %v763
      %v765 = vand.u32 %v764, 4294901760
      %v766 = vsub.f32 %v764, %v765
      %v767 = vand.u32 %v766, 4294901760
      %768 = vmatmul.mubr.f32.gmra.mrb[0].mxu0 %v767
      %v769 = vpop.f32.mrb[0].mxu0
      %v770 = vadd.f32 %v298, %v769
      %v771 = vpop.f32.mrb[0].mxu0
      %772 = vmatprep.mubr.f32.mxu0 0.0
      %v773 = vand.u32 %v365, 4294901760
      %v774 = vsub.f32 %v365, %v773
      %v775 = vand.u32 %v774, 4294901760
      %v776 = vsub.f32 %v774, %v775
      %v777 = vand.u32 %v776, 4294901760
      %778 = vmatmul.mubr.f32.gmra.mrb[0].mxu0 %v777
      %v779 = vpop.f32.mrb[0].mxu0
      %v780 = vadd.f32 %v298, %v779
      %v781 = vpop.f32.mrb[0].mxu0
      %782 = vmatprep.mubr.f32.mxu0 0.0
      %v783 = vand.u32 %v368, 4294901760
      %v784 = vsub.f32 %v368, %v783
      %v785 = vand.u32 %v784, 4294901760
      %v786 = vsub.f32 %v784, %v785
      %v787 = vand.u32 %v786, 4294901760
      %788 = vmatmul.mubr.f32.gmra.mrb[0].mxu0 %v787
      %v789 = vpop.f32.mrb[0].mxu0
      %v790 = vadd.f32 %v298, %v789
      %v791 = vpop.f32.mrb[0].mxu0
      %792 = vmatprep.mubr.f32.mxu0 0.0
      %v793 = vand.u32 %v371, 4294901760
      %v794 = vsub.f32 %v371, %v793
      %v795 = vand.u32 %v794, 4294901760
      %v796 = vsub.f32 %v794, %v795
      %v797 = vand.u32 %v796, 4294901760
      %798 = vmatmul.mubr.f32.gmra.mrb[0].mxu0 %v797
      %v799 = vpop.f32.mrb[0].mxu0
      %v800 = vadd.f32 %v298, %v799
      %v801 = vpop.f32.mrb[0].mxu0
      %802 = vmatprep.mubr.f32.mxu0 0.0
      %v803 = vand.u32 %v374, 4294901760
      %v804 = vsub.f32 %v374, %v803
      %v805 = vand.u32 %v804, 4294901760
      %v806 = vsub.f32 %v804, %v805
      %v807 = vand.u32 %v806, 4294901760
      %808 = vmatmul.mubr.f32.gmra.mrb[0].mxu0 %v807
      %v809 = vpop.f32.mrb[0].mxu0
      %v810 = vadd.f32 %v298, %v809
      %v811 = vpop.f32.mrb[0].mxu0
      %812 = vmatprep.mubr.f32.mxu0 0.0
      %v813 = vand.u32 %v377, 4294901760
      %v814 = vsub.f32 %v377, %v813
      %v815 = vand.u32 %v814, 4294901760
      %v816 = vsub.f32 %v814, %v815
      %v817 = vand.u32 %v816, 4294901760
      %818 = vmatmul.mubr.f32.gmra.mrb[0].mxu0 %v817
      %v819 = vpop.f32.mrb[0].mxu0
      %v820 = vadd.f32 %v298, %v819
      %v821 = vpop.f32.mrb[0].mxu0
      %822 = vmatprep.mubr.f32.mxu0 0.0
      %v823 = vand.u32 %v380, 4294901760
      %v824 = vsub.f32 %v380, %v823
      %v825 = vand.u32 %v824, 4294901760
      %v826 = vsub.f32 %v824, %v825
      %v827 = vand.u32 %v826, 4294901760
      %828 = vmatmul.mubr.f32.gmra.mrb[0].mxu0 %v827
      %v829 = vpop.f32.mrb[0].mxu0
      %v830 = vadd.f32 %v298, %v829
      %v831 = vpop.f32.mrb[0].mxu0
      %832 = vmatprep.mubr.f32.mxu0 0.0
      %v833 = vand.u32 %v383, 4294901760
      %v834 = vsub.f32 %v383, %v833
      %v835 = vand.u32 %v834, 4294901760
      %v836 = vsub.f32 %v834, %v835
      %v837 = vand.u32 %v836, 4294901760
      %838 = vmatmul.mubr.f32.gmra.mrb[0].mxu0 %v837
      %v839 = vpop.f32.mrb[0].mxu0
      %v840 = vadd.f32 %v298, %v839
      %v841 = vpop.f32.mrb[0].mxu0
      %842 = vmatprep.mubr.f32.mxu0 0.0
      %v843 = vand.u32 %v386, 4294901760
      %v844 = vsub.f32 %v386, %v843
      %v845 = vand.u32 %v844, 4294901760
      %v846 = vsub.f32 %v844, %v845
      %v847 = vand.u32 %v846, 4294901760
      %848 = vmatmul.mubr.f32.gmra.mrb[0].mxu0 %v847
      %v849 = vpop.f32.mrb[0].mxu0
      %v850 = vadd.f32 %v298, %v849
      %v851 = vpop.f32.mrb[0].mxu0
      %852 = vmatprep.mubr.f32.mxu0 0.0
      %v853 = vand.u32 %v389, 4294901760
      %v854 = vsub.f32 %v389, %v853
      %v855 = vand.u32 %v854, 4294901760
      %v856 = vsub.f32 %v854, %v855
      %v857 = vand.u32 %v856, 4294901760
      %858 = vmatmul.mubr.f32.gmra.mrb[0].mxu0 %v857
      %v859 = vpop.f32.mrb[0].mxu0
      %v860 = vadd.f32 %v298, %v859
      %v861 = vpop.f32.mrb[0].mxu0
      %862 = vmatprep.mubr.f32.mxu0 0.0
      %v863 = vand.u32 %v392, 4294901760
      %v864 = vsub.f32 %v392, %v863
      %v865 = vand.u32 %v864, 4294901760
      %v866 = vsub.f32 %v864, %v865
      %v867 = vand.u32 %v866, 4294901760
      %868 = vmatmul.mubr.f32.gmra.mrb[0].mxu0 %v867
      %v869 = vpop.f32.mrb[0].mxu0
      %v870 = vadd.f32 %v298, %v869
      %v871 = vpop.f32.mrb[0].mxu0
      %872 = vmatprep.mubr.f32.mxu0 0.0
      %v873 = vand.u32 %v395, 4294901760
      %v874 = vsub.f32 %v395, %v873
      %v875 = vand.u32 %v874, 4294901760
      %v876 = vsub.f32 %v874, %v875
      %v877 = vand.u32 %v876, 4294901760
      %878 = vmatmul.mubr.f32.gmra.mrb[0].mxu0 %v877
      %v879 = vpop.f32.mrb[0].mxu0
      %v880 = vadd.f32 %v298, %v879
      %v881 = vpop.f32.mrb[0].mxu0
      %882 = vmatprep.mubr.f32.mxu0 0.0
      %v883 = vand.u32 %v398, 4294901760
      %v884 = vsub.f32 %v398, %v883
      %v885 = vand.u32 %v884, 4294901760
      %v886 = vsub.f32 %v884, %v885
      %v887 = vand.u32 %v886, 4294901760
      %888 = vmatmul.mubr.f32.gmra.mrb[0].mxu0 %v887
      %v889 = vpop.f32.mrb[0].mxu0
      %v890 = vadd.f32 %v298, %v889
      %v891 = vpop.f32.mrb[0].mxu0
      %892 = vmatprep.mubr.f32.mxu0 0.0
      %v893 = vand.u32 %v401, 4294901760
      %v894 = vsub.f32 %v401, %v893
      %v895 = vand.u32 %v894, 4294901760
      %v896 = vsub.f32 %v894, %v895
      %v897 = vand.u32 %v896, 4294901760
      %898 = vmatmul.mubr.f32.gmra.mrb[0].mxu0 %v897
      %v899 = vpop.f32.mrb[0].mxu0
      %v900 = vadd.f32 %v298, %v899
      %v901 = vpop.f32.mrb[0].mxu0
      %902 = vmatprep.mubr.f32.mxu0 0.0
      %v903 = vand.u32 %v404, 4294901760
      %v904 = vsub.f32 %v404, %v903
      %v905 = vand.u32 %v904, 4294901760
      %v906 = vsub.f32 %v904, %v905
      %v907 = vand.u32 %v906, 4294901760
      %908 = vmatmul.mubr.f32.gmra.mrb[0].mxu0 %v907
      %v909 = vpop.f32.mrb[0].mxu0
      %v910 = vadd.f32 %v298, %v909
      %v911 = vpop.f32.mrb[0].mxu0
      %912 = vmatprep.mubr.f32.mxu0 0.0
      %v913 = vand.u32 %v407, 4294901760
      %v914 = vsub.f32 %v407, %v913
      %v915 = vand.u32 %v914, 4294901760
      %v916 = vsub.f32 %v914, %v915
      %v917 = vand.u32 %v916, 4294901760
      %918 = vmatmul.mubr.f32.gmra.mrb[0].mxu0 %v917
      %v919 = vpop.f32.mrb[0].mxu0
      %v920 = vadd.f32 %v298, %v919
      %v921 = vpop.f32.mrb[0].mxu0
      %922 = vmatprep.mubr.f32.mxu0 0.0
      %v923 = vand.u32 %v410, 4294901760
      %v924 = vsub.f32 %v410, %v923
      %v925 = vand.u32 %v924, 4294901760
      %v926 = vsub.f32 %v924, %v925
      %v927 = vand.u32 %v926, 4294901760
      %928 = vmatmul.mubr.f32.gmra.mrb[0].mxu0 %v927
      %v929 = vpop.f32.mrb[0].mxu0
      %v930 = vadd.f32 %v298, %v929
      %v931 = vpop.f32.mrb[0].mxu0
      %932 = vmatprep.mubr.f32.mxu0 0.0
      %v933 = vand.u32 %v413, 4294901760
      %v934 = vsub.f32 %v413, %v933
      %v935 = vand.u32 %v934, 4294901760
      %v936 = vsub.f32 %v934, %v935
      %v937 = vand.u32 %v936, 4294901760
      %938 = vmatmul.mubr.f32.gmra.mrb[0].mxu0 %v937
      %v939 = vpop.f32.mrb[0].mxu0
      %v940 = vadd.f32 %v298, %v939
      %v941 = vpop.f32.mrb[0].mxu0
      %942 = vmatprep.mubr.f32.mxu0 0.0
      %v943 = vand.u32 %v416, 4294901760
      %v944 = vsub.f32 %v416, %v943
      %v945 = vand.u32 %v944, 4294901760
      %v946 = vsub.f32 %v944, %v945
      %v947 = vand.u32 %v946, 4294901760
      %948 = vmatmul.mubr.f32.gmra.mrb[0].mxu0 %v947
      %v949 = vpop.f32.mrb[0].mxu0
      %v950 = vadd.f32 %v298, %v949
      %v951 = vpop.f32.mrb[0].mxu0
      %952 = vmatprep.mubr.f32.mxu0 0.0
      %v953 = vand.u32 %v419, 4294901760
      %v954 = vsub.f32 %v419, %v953
      %v955 = vand.u32 %v954, 4294901760
      %v956 = vsub.f32 %v954, %v955
      %v957 = vand.u32 %v956, 4294901760
      %958 = vmatmul.mubr.f32.gmra.mrb[0].mxu0 %v957
      %v959 = vpop.f32.mrb[0].mxu0
      %v960 = vadd.f32 %v298, %v959
      %v961 = vpop.f32.mrb[0].mxu0
      %962 = vmatprep.mubr.f32.mxu0 0.0
      %v963 = vand.u32 %v422, 4294901760
      %v964 = vsub.f32 %v422, %v963
      %v965 = vand.u32 %v964, 4294901760
      %v966 = vsub.f32 %v964, %v965
      %v967 = vand.u32 %v966, 4294901760
      %968 = vmatmul.mubr.f32.gmra.mrb[0].mxu0 %v967
      %v969 = vpop.f32.mrb[0].mxu0
      %v970 = vadd.f32 %v298, %v969
      %v971 = vpop.f32.mrb[0].mxu0
      %972 = vmatprep.mubr.f32.mxu0 0.0
      %v973 = vand.u32 %v425, 4294901760
      %v974 = vsub.f32 %v425, %v973
      %v975 = vand.u32 %v974, 4294901760
      %v976 = vsub.f32 %v974, %v975
      %v977 = vand.u32 %v976, 4294901760
      %978 = vmatmul.mubr.f32.gmra.mrb[0].mxu0 %v977
      %v979 = vpop.f32.mrb[0].mxu0
      %v980 = vadd.f32 %v298, %v979
      %v981 = vpop.f32.mrb[0].mxu0
      %982 = vmatprep.mubr.f32.mxu0 0.0
      %v983 = vand.u32 %v428, 4294901760
      %v984 = vsub.f32 %v428, %v983
      %v985 = vand.u32 %v984, 4294901760
      %v986 = vsub.f32 %v984, %v985
      %v987 = vand.u32 %v986, 4294901760
      %988 = vmatmul.mubr.f32.gmra.mrb[0].mxu0 %v987
      %v989 = vpop.f32.mrb[0].mxu0
      %v990 = vadd.f32 %v298, %v989
      %v991 = vpop.f32.mrb[0].mxu0
      %992 = vmatprep.mubr.f32.mxu0 0.0
      %v993 = vand.u32 %v431, 4294901760
      %v994 = vsub.f32 %v431, %v993
      %v995 = vand.u32 %v994, 4294901760
      %v996 = vsub.f32 %v994, %v995
      %v997 = vand.u32 %v996, 4294901760
      %998 = vmatmul.mubr.f32.gmra.mrb[0].mxu0 %v997
      %v999 = vpop.f32.mrb[0].mxu0
      %v1000 = vadd.f32 %v298, %v999
      %v1001 = vpop.f32.mrb[0].mxu0
      %1002 = vmatprep.mubr.f32.mxu0 0.0
      %v1003 = vand.u32 %v434, 4294901760
      %v1004 = vsub.f32 %v434, %v1003
      %v1005 = vand.u32 %v1004, 4294901760
      %v1006 = vsub.f32 %v1004, %v1005
      %v1007 = vand.u32 %v1006, 4294901760
      %1008 = vmatmul.mubr.f32.gmra.mrb[0].mxu0 %v1007
      %v1009 = vpop.f32.mrb[0].mxu0
      %v1010 = vadd.f32 %v298, %v1009
      %v1011 = vpop.f32.mrb[0].mxu0
      %1012 = vmatprep.mubr.f32.mxu0 0.0
      %v1013 = vand.u32 %v437, 4294901760
      %v1014 = vsub.f32 %v437, %v1013
      %v1015 = vand.u32 %v1014, 4294901760
      %v1016 = vsub.f32 %v1014, %v1015
      %v1017 = vand.u32 %v1016, 4294901760
      %1018 = vmatmul.mubr.f32.gmra.mrb[0].mxu0 %v1017
      %v1019 = vpop.f32.mrb[0].mxu0
      %v1020 = vadd.f32 %v298, %v1019
      %v1021 = vpop.f32.mrb[0].mxu0
      %1022 = vmatprep.mubr.f32.mxu0 0.0
      %v1023 = vand.u32 %v440, 4294901760
      %v1024 = vsub.f32 %v440, %v1023
      %v1025 = vand.u32 %v1024, 4294901760
      %v1026 = vsub.f32 %v1024, %v1025
      %v1027 = vand.u32 %v1026, 4294901760
      %1028 = vmatmul.mubr.f32.gmra.mrb[0].mxu0 %v1027
      %v1029 = vpop.f32.mrb[0].mxu0
      %v1030 = vadd.f32 %v298, %v1029
      %v1031 = vpop.f32.mrb[0].mxu0
      %1032 = vmatprep.mubr.f32.mxu0 0.0
      %v1033 = vand.u32 %v443, 4294901760
      %v1034 = vsub.f32 %v443, %v1033
      %v1035 = vand.u32 %v1034, 4294901760
      %v1036 = vsub.f32 %v1034, %v1035
      %v1037 = vand.u32 %v1036, 4294901760
      %1038 = vmatmul.mubr.f32.gmra.mrb[0].mxu0 %v1037
      %v1039 = vpop.f32.mrb[0].mxu0
      %v1040 = vadd.f32 %v298, %v1039
      %v1041 = vpop.f32.mrb[0].mxu0
      %1042 = vmatprep.mubr.f32.mxu0 0.0
      %v1043 = vand.u32 %v446, 4294901760
      %v1044 = vsub.f32 %v446, %v1043
      %v1045 = vand.u32 %v1044, 4294901760
      %v1046 = vsub.f32 %v1044, %v1045
      %v1047 = vand.u32 %v1046, 4294901760
      %1048 = vmatmul.mubr.f32.gmra.mrb[0].mxu0 %v1047
      %v1049 = vpop.f32.mrb[0].mxu0
      %v1050 = vadd.f32 %v298, %v1049
      %v1051 = vpop.f32.mrb[0].mxu0
      %1052 = vmatprep.mubr.f32.mxu0 0.0
      %v1053 = vand.u32 %v449, 4294901760
      %v1054 = vsub.f32 %v449, %v1053
      %v1055 = vand.u32 %v1054, 4294901760
      %v1056 = vsub.f32 %v1054, %v1055
      %v1057 = vand.u32 %v1056, 4294901760
      %1058 = vmatmul.mubr.f32.gmra.mrb[0].mxu0 %v1057
      %v1059 = vpop.f32.mrb[0].mxu0
      %v1060 = vadd.f32 %v298, %v1059
      %v1061 = vpop.f32.mrb[0].mxu0
      %1062 = vmatprep.mubr.f32.mxu0 0.0
      %v1063 = vand.u32 %v452, 4294901760
      %v1064 = vsub.f32 %v452, %v1063
      %v1065 = vand.u32 %v1064, 4294901760
      %v1066 = vsub.f32 %v1064, %v1065
      %v1067 = vand.u32 %v1066, 4294901760
      %1068 = vmatmul.mubr.f32.gmra.mrb[0].mxu0 %v1067
      %v1069 = vpop.f32.mrb[0].mxu0
      %v1070 = vadd.f32 %v298, %v1069
      %v1071 = vpop.f32.mrb[0].mxu0
      %1072 = vmatprep.mubr.f32.mxu0 0.0
      %v1073 = vand.u32 %v455, 4294901760
      %v1074 = vsub.f32 %v455, %v1073
      %v1075 = vand.u32 %v1074, 4294901760
      %v1076 = vsub.f32 %v1074, %v1075
      %v1077 = vand.u32 %v1076, 4294901760
      %1078 = vmatmul.mubr.f32.gmra.mrb[0].mxu0 %v1077
      %v1079 = vpop.f32.mrb[0].mxu0
      %v1080 = vadd.f32 %v298, %v1079
      %v1081 = vpop.f32.mrb[0].mxu0
      %1082 = vmatprep.mubr.f32.mxu0 0.0
      %v1083 = vand.u32 %v458, 4294901760
      %v1084 = vsub.f32 %v458, %v1083
      %v1085 = vand.u32 %v1084, 4294901760
      %v1086 = vsub.f32 %v1084, %v1085
      %v1087 = vand.u32 %v1086, 4294901760
      %1088 = vmatmul.mubr.f32.gmra.mrb[0].mxu0 %v1087
      %v1089 = vpop.f32.mrb[0].mxu0
      %v1090 = vadd.f32 %v298, %v1089
      %v1091 = vpop.f32.mrb[0].mxu0
      %1092 = vmatprep.mubr.f32.mxu0 0.0
      %v1093 = vand.u32 %v461, 4294901760
      %v1094 = vsub.f32 %v461, %v1093
      %v1095 = vand.u32 %v1094, 4294901760
      %v1096 = vsub.f32 %v1094, %v1095
      %v1097 = vand.u32 %v1096, 4294901760
      %1098 = vmatmul.mubr.f32.gmra.mrb[0].mxu0 %v1097
      %v1099 = vpop.f32.mrb[0].mxu0
      %v1100 = vadd.f32 %v298, %v1099
      %v1101 = vpop.f32.mrb[0].mxu0
      %1102 = vmatprep.mubr.f32.mxu0 0.0
      %v1103 = vand.u32 %v464, 4294901760
      %v1104 = vsub.f32 %v464, %v1103
      %v1105 = vand.u32 %v1104, 4294901760
      %v1106 = vsub.f32 %v1104, %v1105
      %v1107 = vand.u32 %v1106, 4294901760
      %1108 = vmatmul.mubr.f32.gmra.mrb[0].mxu0 %v1107
      %v1109 = vpop.f32.mrb[0].mxu0
      %v1110 = vadd.f32 %v298, %v1109
      %v1111 = vpop.f32.mrb[0].mxu0
      %1112 = vmatprep.mubr.f32.mxu0 0.0
      %v1113 = vand.u32 %v467, 4294901760
      %v1114 = vsub.f32 %v467, %v1113
      %v1115 = vand.u32 %v1114, 4294901760
      %v1116 = vsub.f32 %v1114, %v1115
      %v1117 = vand.u32 %v1116, 4294901760
      %1118 = vmatmul.mubr.f32.gmra.mrb[0].mxu0 %v1117
      %v1119 = vpop.f32.mrb[0].mxu0
      %v1120 = vadd.f32 %v298, %v1119
      %v1121 = vpop.f32.mrb[0].mxu0
      %1122 = vmatprep.mubr.f32.mxu0 0.0
      %v1123 = vand.u32 %v470, 4294901760
      %v1124 = vsub.f32 %v470, %v1123
      %v1125 = vand.u32 %v1124, 4294901760
      %v1126 = vsub.f32 %v1124, %v1125
      %v1127 = vand.u32 %v1126, 4294901760
      %1128 = vmatmul.mubr.f32.gmra.mrb[0].mxu0 %v1127
      %v1129 = vpop.f32.mrb[0].mxu0
      %v1130 = vadd.f32 %v298, %v1129
      %v1131 = vpop.f32.mrb[0].mxu0
      %1132 = vmatprep.mubr.f32.mxu0 0.0
      %v1133 = vand.u32 %v473, 4294901760
      %v1134 = vsub.f32 %v473, %v1133
      %v1135 = vand.u32 %v1134, 4294901760
      %v1136 = vsub.f32 %v1134, %v1135
      %v1137 = vand.u32 %v1136, 4294901760
      %1138 = vmatmul.mubr.f32.gmra.mrb[0].mxu0 %v1137
      %v1139 = vpop.f32.mrb[0].mxu0
      %v1140 = vadd.f32 %v298, %v1139
      %v1141 = vpop.f32.mrb[0].mxu0
      %1142 = vmatprep.mubr.f32.mxu0 0.0
      %v1143 = vand.u32 %v476, 4294901760
      %v1144 = vsub.f32 %v476, %v1143
      %v1145 = vand.u32 %v1144, 4294901760
      %v1146 = vsub.f32 %v1144, %v1145
      %v1147 = vand.u32 %v1146, 4294901760
      %1148 = vmatmul.mubr.f32.gmra.mrb[0].mxu0 %v1147
      %v1149 = vpop.f32.mrb[0].mxu0
      %v1150 = vadd.f32 %v298, %v1149
      %v1151 = vpop.f32.mrb[0].mxu0
      %1152 = vmatprep.mubr.f32.mxu0 0.0
      %v1153 = vand.u32 %v479, 4294901760
      %v1154 = vsub.f32 %v479, %v1153
      %v1155 = vand.u32 %v1154, 4294901760
      %v1156 = vsub.f32 %v1154, %v1155
      %v1157 = vand.u32 %v1156, 4294901760
      %1158 = vmatmul.mubr.f32.gmra.mrb[0].mxu0 %v1157
      %v1159 = vpop.f32.mrb[0].mxu0
      %v1160 = vadd.f32 %v298, %v1159
      %v1161 = vpop.f32.mrb[0].mxu0
      %1162 = vmatprep.mubr.f32.mxu0 0.0
      %v1163 = vand.u32 %v482, 4294901760
      %v1164 = vsub.f32 %v482, %v1163
      %v1165 = vand.u32 %v1164, 4294901760
      %v1166 = vsub.f32 %v1164, %v1165
      %v1167 = vand.u32 %v1166, 4294901760
      %1168 = vmatmul.mubr.f32.gmra.mrb[0].mxu0 %v1167
      %v1169 = vpop.f32.mrb[0].mxu0
      %v1170 = vadd.f32 %v298, %v1169
      %v1171 = vpop.f32.mrb[0].mxu0
      %1172 = vmatprep.mubr.f32.mxu0 0.0
      %v1173 = vand.u32 %v485, 4294901760
      %v1174 = vsub.f32 %v485, %v1173
      %v1175 = vand.u32 %v1174, 4294901760
      %v1176 = vsub.f32 %v1174, %v1175
      %v1177 = vand.u32 %v1176, 4294901760
      %1178 = vmatmul.mubr.f32.gmra.mrb[0].mxu0 %v1177
      %v1179 = vpop.f32.mrb[0].mxu0
      %v1180 = vadd.f32 %v298, %v1179
      %v1181 = vpop.f32.mrb[0].mxu0
      %1182 = vmatprep.mubr.f32.mxu0 0.0
      %v1183 = vand.u32 %v488, 4294901760
      %v1184 = vsub.f32 %v488, %v1183
      %v1185 = vand.u32 %v1184, 4294901760
      %v1186 = vsub.f32 %v1184, %v1185
      %v1187 = vand.u32 %v1186, 4294901760
      %1188 = vmatmul.mubr.f32.gmra.mrb[0].mxu0 %v1187
      %v1189 = vpop.f32.mrb[0].mxu0
      %v1190 = vadd.f32 %v298, %v1189
      %v1191 = vpop.f32.mrb[0].mxu0
      %1192 = vmatprep.mubr.f32.mxu0 0.0
      %v1193 = vand.u32 %v491, 4294901760
      %v1194 = vsub.f32 %v491, %v1193
      %v1195 = vand.u32 %v1194, 4294901760
      %v1196 = vsub.f32 %v1194, %v1195
      %v1197 = vand.u32 %v1196, 4294901760
      %1198 = vmatmul.mubr.f32.gmra.mrb[0].mxu0 %v1197
      %v1199 = vpop.f32.mrb[0].mxu0
      %v1200 = vadd.f32 %v298, %v1199
      %v1201 = vpop.f32.mrb[0].mxu0
      %1202 = vdwg.mxu0
      %1203 = vmatprep.subr.mxu0 0.0
      %v1204 = vand.u32 %v495, 4294901760
      %v1205 = vsub.f32 %v495, %v1204
      %v1206 = vand.u32 %v1205, 4294901760
      %v1207 = vsub.f32 %v1205, %v1206
      %v1208 = vand.u32 %v1207, 4294901760
      %1209 = vmatpush1.msra.mxu0 %v1208
      %1210 = vmatprep.subr.mxu0 0.0
      %1211 = vmatpush1.msra.mxu0 0.0
      %1212 = vmatprep.subr.mxu0 0.0
      %1213 = vmatpush1.msra.mxu0 0.0
      %1214 = vmatprep.subr.mxu0 0.0
      %1215 = vmatpush1.msra.mxu0 0.0
      %1216 = vmatprep.subr.mxu0 0.0
      %1217 = vmatpush1.msra.mxu0 0.0
      %1218 = vmatprep.subr.mxu0 0.0
      %1219 = vmatpush1.msra.mxu0 0.0
      %1220 = vmatprep.subr.mxu0 0.0
      %1221 = vmatpush1.msra.mxu0 0.0
      %1222 = vmatprep.subr.mxu0 0.0
      %1223 = vmatpush1.msra.mxu0 0.0
      %1224 = vmatprep.subr.mxu0 0.0
      %1225 = vmatpush1.msra.mxu0 0.0
      %1226 = vmatprep.subr.mxu0 0.0
      %1227 = vmatpush1.msra.mxu0 0.0
      %1228 = vmatprep.subr.mxu0 0.0
      %1229 = vmatpush1.msra.mxu0 0.0
      %1230 = vmatprep.subr.mxu0 0.0
      %1231 = vmatpush1.msra.mxu0 0.0
      %1232 = vmatprep.subr.mxu0 0.0
      %1233 = vmatpush1.msra.mxu0 0.0
      %1234 = vmatprep.subr.mxu0 0.0
      %1235 = vmatpush1.msra.mxu0 0.0
      %1236 = vmatprep.subr.mxu0 0.0
      %1237 = vmatpush1.msra.mxu0 0.0
      %1238 = vmatprep.subr.mxu0 0.0
      %1239 = vmatpush1.msra.mxu0 0.0
      %1240 = vmatprep.subr.mxu0 0.0
      %1241 = vmatpush1.msra.mxu0 0.0
      %1242 = vmatprep.subr.mxu0 0.0
      %1243 = vmatpush1.msra.mxu0 0.0
      %1244 = vmatprep.subr.mxu0 0.0
      %1245 = vmatpush1.msra.mxu0 0.0
      %1246 = vmatprep.subr.mxu0 0.0
      %1247 = vmatpush1.msra.mxu0 0.0
      %1248 = vmatprep.subr.mxu0 0.0
      %1249 = vmatpush1.msra.mxu0 0.0
      %1250 = vmatprep.subr.mxu0 0.0
      %1251 = vmatpush1.msra.mxu0 0.0
      %1252 = vmatprep.subr.mxu0 0.0
      %1253 = vmatpush1.msra.mxu0 0.0
      %1254 = vmatprep.subr.mxu0 0.0
      %1255 = vmatpush1.msra.mxu0 0.0
      %1256 = vmatprep.subr.mxu0 0.0
      %1257 = vmatpush1.msra.mxu0 0.0
      %1258 = vmatprep.subr.mxu0 0.0
      %1259 = vmatpush1.msra.mxu0 0.0
      %1260 = vmatprep.subr.mxu0 0.0
      %1261 = vmatpush1.msra.mxu0 0.0
      %1262 = vmatprep.subr.mxu0 0.0
      %1263 = vmatpush1.msra.mxu0 0.0
      %1264 = vmatprep.subr.mxu0 0.0
      %1265 = vmatpush1.msra.mxu0 0.0
      %1266 = vmatprep.subr.mxu0 0.0
      %1267 = vmatpush1.msra.mxu0 0.0
      %1268 = vmatprep.subr.mxu0 0.0
      %1269 = vmatpush1.msra.mxu0 0.0
      %1270 = vmatprep.subr.mxu0 0.0
      %1271 = vmatpush1.msra.mxu0 0.0
      %1272 = vmatprep.mubr.f32.mxu0 0.0
      %v1273 = vand.u32 %v302, 4294901760
      %1274 = vmatmul.mubr.f32.gmra.mrb[0].mxu0 %v1273
      %v1275 = vpop.f32.mrb[0].mxu0
      %v1276 = vadd.f32 %v570, %v1275
      %v1277 = vpop.f32.mrb[0].mxu0
      %1278 = vmatprep.mubr.f32.mxu0 0.0
      %v1279 = vand.u32 %v305, 4294901760
      %1280 = vmatmul.mubr.f32.gmra.mrb[0].mxu0 %v1279
      %v1281 = vpop.f32.mrb[0].mxu0
      %v1282 = vadd.f32 %v580, %v1281
      %v1283 = vpop.f32.mrb[0].mxu0
      %1284 = vmatprep.mubr.f32.mxu0 0.0
      %v1285 = vand.u32 %v308, 4294901760
      %1286 = vmatmul.mubr.f32.gmra.mrb[0].mxu0 %v1285
      %v1287 = vpop.f32.mrb[0].mxu0
      %v1288 = vadd.f32 %v590, %v1287
      %v1289 = vpop.f32.mrb[0].mxu0
      %1290 = vmatprep.mubr.f32.mxu0 0.0
      %v1291 = vand.u32 %v311, 4294901760
      %1292 = vmatmul.mubr.f32.gmra.mrb[0].mxu0 %v1291
      %v1293 = vpop.f32.mrb[0].mxu0
      %v1294 = vadd.f32 %v600, %v1293
      %v1295 = vpop.f32.mrb[0].mxu0
      %1296 = vmatprep.mubr.f32.mxu0 0.0
      %v1297 = vand.u32 %v314, 4294901760
      %1298 = vmatmul.mubr.f32.gmra.mrb[0].mxu0 %v1297
      %v1299 = vpop.f32.mrb[0].mxu0
      %v1300 = vadd.f32 %v610, %v1299
      %v1301 = vpop.f32.mrb[0].mxu0
      %1302 = vmatprep.mubr.f32.mxu0 0.0
      %v1303 = vand.u32 %v317, 4294901760
      %1304 = vmatmul.mubr.f32.gmra.mrb[0].mxu0 %v1303
      %v1305 = vpop.f32.mrb[0].mxu0
      %v1306 = vadd.f32 %v620, %v1305
      %v1307 = vpop.f32.mrb[0].mxu0
      %1308 = vmatprep.mubr.f32.mxu0 0.0
      %v1309 = vand.u32 %v320, 4294901760
      %1310 = vmatmul.mubr.f32.gmra.mrb[0].mxu0 %v1309
      %v1311 = vpop.f32.mrb[0].mxu0
      %v1312 = vadd.f32 %v630, %v1311
      %v1313 = vpop.f32.mrb[0].mxu0
      %1314 = vmatprep.mubr.f32.mxu0 0.0
      %v1315 = vand.u32 %v323, 4294901760
      %1316 = vmatmul.mubr.f32.gmra.mrb[0].mxu0 %v1315
      %v1317 = vpop.f32.mrb[0].mxu0
      %v1318 = vadd.f32 %v640, %v1317
      %v1319 = vpop.f32.mrb[0].mxu0
      %1320 = vmatprep.mubr.f32.mxu0 0.0
      %v1321 = vand.u32 %v326, 4294901760
      %1322 = vmatmul.mubr.f32.gmra.mrb[0].mxu0 %v1321
      %v1323 = vpop.f32.mrb[0].mxu0
      %v1324 = vadd.f32 %v650, %v1323
      %v1325 = vpop.f32.mrb[0].mxu0
      %1326 = vmatprep.mubr.f32.mxu0 0.0
      %v1327 = vand.u32 %v329, 4294901760
      %1328 = vmatmul.mubr.f32.gmra.mrb[0].mxu0 %v1327
      %v1329 = vpop.f32.mrb[0].mxu0
      %v1330 = vadd.f32 %v660, %v1329
      %v1331 = vpop.f32.mrb[0].mxu0
      %1332 = vmatprep.mubr.f32.mxu0 0.0
      %v1333 = vand.u32 %v332, 4294901760
      %1334 = vmatmul.mubr.f32.gmra.mrb[0].mxu0 %v1333
      %v1335 = vpop.f32.mrb[0].mxu0
      %v1336 = vadd.f32 %v670, %v1335
      %v1337 = vpop.f32.mrb[0].mxu0
      %1338 = vmatprep.mubr.f32.mxu0 0.0
      %v1339 = vand.u32 %v335, 4294901760
      %1340 = vmatmul.mubr.f32.gmra.mrb[0].mxu0 %v1339
      %v1341 = vpop.f32.mrb[0].mxu0
      %v1342 = vadd.f32 %v680, %v1341
      %v1343 = vpop.f32.mrb[0].mxu0
      %1344 = vmatprep.mubr.f32.mxu0 0.0
      %v1345 = vand.u32 %v338, 4294901760
      %1346 = vmatmul.mubr.f32.gmra.mrb[0].mxu0 %v1345
      %v1347 = vpop.f32.mrb[0].mxu0
      %v1348 = vadd.f32 %v690, %v1347
      %v1349 = vpop.f32.mrb[0].mxu0
      %1350 = vmatprep.mubr.f32.mxu0 0.0
      %v1351 = vand.u32 %v341, 4294901760
      %1352 = vmatmul.mubr.f32.gmra.mrb[0].mxu0 %v1351
      %v1353 = vpop.f32.mrb[0].mxu0
      %v1354 = vadd.f32 %v700, %v1353
      %v1355 = vpop.f32.mrb[0].mxu0
      %1356 = vmatprep.mubr.f32.mxu0 0.0
      %v1357 = vand.u32 %v344, 4294901760
      %1358 = vmatmul.mubr.f32.gmra.mrb[0].mxu0 %v1357
      %v1359 = vpop.f32.mrb[0].mxu0
      %v1360 = vadd.f32 %v710, %v1359
      %v1361 = vpop.f32.mrb[0].mxu0
      %1362 = vmatprep.mubr.f32.mxu0 0.0
      %v1363 = vand.u32 %v347, 4294901760
      %1364 = vmatmul.mubr.f32.gmra.mrb[0].mxu0 %v1363
      %v1365 = vpop.f32.mrb[0].mxu0
      %v1366 = vadd.f32 %v720, %v1365
      %v1367 = vpop.f32.mrb[0].mxu0
      %1368 = vmatprep.mubr.f32.mxu0 0.0
      %v1369 = vand.u32 %v350, 4294901760
      %1370 = vmatmul.mubr.f32.gmra.mrb[0].mxu0 %v1369
      %v1371 = vpop.f32.mrb[0].mxu0
      %v1372 = vadd.f32 %v730, %v1371
      %v1373 = vpop.f32.mrb[0].mxu0
      %1374 = vmatprep.mubr.f32.mxu0 0.0
      %v1375 = vand.u32 %v353, 4294901760
      %1376 = vmatmul.mubr.f32.gmra.mrb[0].mxu0 %v1375
      %v1377 = vpop.f32.mrb[0].mxu0
      %v1378 = vadd.f32 %v740, %v1377
      %v1379 = vpop.f32.mrb[0].mxu0
      %1380 = vmatprep.mubr.f32.mxu0 0.0
      %v1381 = vand.u32 %v356, 4294901760
      %1382 = vmatmul.mubr.f32.gmra.mrb[0].mxu0 %v1381
      %v1383 = vpop.f32.mrb[0].mxu0
      %v1384 = vadd.f32 %v750, %v1383
      %v1385 = vpop.f32.mrb[0].mxu0
      %1386 = vmatprep.mubr.f32.mxu0 0.0
      %v1387 = vand.u32 %v359, 4294901760
      %1388 = vmatmul.mubr.f32.gmra.mrb[0].mxu0 %v1387
      %v1389 = vpop.f32.mrb[0].mxu0
      %v1390 = vadd.f32 %v760, %v1389
      %v1391 = vpop.f32.mrb[0].mxu0
      %1392 = vmatprep.mubr.f32.mxu0 0.0
      %v1393 = vand.u32 %v362, 4294901760
      %1394 = vmatmul.mubr.f32.gmra.mrb[0].mxu0 %v1393
      %v1395 = vpop.f32.mrb[0].mxu0
      %v1396 = vadd.f32 %v770, %v1395
      %v1397 = vpop.f32.mrb[0].mxu0
      %1398 = vmatprep.mubr.f32.mxu0 0.0
      %v1399 = vand.u32 %v365, 4294901760
      %1400 = vmatmul.mubr.f32.gmra.mrb[0].mxu0 %v1399
      %v1401 = vpop.f32.mrb[0].mxu0
      %v1402 = vadd.f32 %v780, %v1401
      %v1403 = vpop.f32.mrb[0].mxu0
      %1404 = vmatprep.mubr.f32.mxu0 0.0
      %v1405 = vand.u32 %v368, 4294901760
      %1406 = vmatmul.mubr.f32.gmra.mrb[0].mxu0 %v1405
      %v1407 = vpop.f32.mrb[0].mxu0
      %v1408 = vadd.f32 %v790, %v1407
      %v1409 = vpop.f32.mrb[0].mxu0
      %1410 = vmatprep.mubr.f32.mxu0 0.0
      %v1411 = vand.u32 %v371, 4294901760
      %1412 = vmatmul.mubr.f32.gmra.mrb[0].mxu0 %v1411
      %v1413 = vpop.f32.mrb[0].mxu0
      %v1414 = vadd.f32 %v800, %v1413
      %v1415 = vpop.f32.mrb[0].mxu0
      %1416 = vmatprep.mubr.f32.mxu0 0.0
      %v1417 = vand.u32 %v374, 4294901760
      %1418 = vmatmul.mubr.f32.gmra.mrb[0].mxu0 %v1417
      %v1419 = vpop.f32.mrb[0].mxu0
      %v1420 = vadd.f32 %v810, %v1419
      %v1421 = vpop.f32.mrb[0].mxu0
      %1422 = vmatprep.mubr.f32.mxu0 0.0
      %v1423 = vand.u32 %v377, 4294901760
      %1424 = vmatmul.mubr.f32.gmra.mrb[0].mxu0 %v1423
      %v1425 = vpop.f32.mrb[0].mxu0
      %v1426 = vadd.f32 %v820, %v1425
      %v1427 = vpop.f32.mrb[0].mxu0
      %1428 = vmatprep.mubr.f32.mxu0 0.0
      %v1429 = vand.u32 %v380, 4294901760
      %1430 = vmatmul.mubr.f32.gmra.mrb[0].mxu0 %v1429
      %v1431 = vpop.f32.mrb[0].mxu0
      %v1432 = vadd.f32 %v830, %v1431
      %v1433 = vpop.f32.mrb[0].mxu0
      %1434 = vmatprep.mubr.f32.mxu0 0.0
      %v1435 = vand.u32 %v383, 4294901760
      %1436 = vmatmul.mubr.f32.gmra.mrb[0].mxu0 %v1435
      %v1437 = vpop.f32.mrb[0].mxu0
      %v1438 = vadd.f32 %v840, %v1437
      %v1439 = vpop.f32.mrb[0].mxu0
      %1440 = vmatprep.mubr.f32.mxu0 0.0
      %v1441 = vand.u32 %v386, 4294901760
      %1442 = vmatmul.mubr.f32.gmra.mrb[0].mxu0 %v1441
      %v1443 = vpop.f32.mrb[0].mxu0
      %v1444 = vadd.f32 %v850, %v1443
      %v1445 = vpop.f32.mrb[0].mxu0
      %1446 = vmatprep.mubr.f32.mxu0 0.0
      %v1447 = vand.u32 %v389, 4294901760
      %1448 = vmatmul.mubr.f32.gmra.mrb[0].mxu0 %v1447
      %v1449 = vpop.f32.mrb[0].mxu0
      %v1450 = vadd.f32 %v860, %v1449
      %v1451 = vpop.f32.mrb[0].mxu0
      %1452 = vmatprep.mubr.f32.mxu0 0.0
      %v1453 = vand.u32 %v392, 4294901760
      %1454 = vmatmul.mubr.f32.gmra.mrb[0].mxu0 %v1453
      %v1455 = vpop.f32.mrb[0].mxu0
      %v1456 = vadd.f32 %v870, %v1455
      %v1457 = vpop.f32.mrb[0].mxu0
      %1458 = vmatprep.mubr.f32.mxu0 0.0
      %v1459 = vand.u32 %v395, 4294901760
      %1460 = vmatmul.mubr.f32.gmra.mrb[0].mxu0 %v1459
      %v1461 = vpop.f32.mrb[0].mxu0
      %v1462 = vadd.f32 %v880, %v1461
      %v1463 = vpop.f32.mrb[0].mxu0
      %1464 = vmatprep.mubr.f32.mxu0 0.0
      %v1465 = vand.u32 %v398, 4294901760
      %1466 = vmatmul.mubr.f32.gmra.mrb[0].mxu0 %v1465
      %v1467 = vpop.f32.mrb[0].mxu0
      %v1468 = vadd.f32 %v890, %v1467
      %v1469 = vpop.f32.mrb[0].mxu0
      %1470 = vmatprep.mubr.f32.mxu0 0.0
      %v1471 = vand.u32 %v401, 4294901760
      %1472 = vmatmul.mubr.f32.gmra.mrb[0].mxu0 %v1471
      %v1473 = vpop.f32.mrb[0].mxu0
      %v1474 = vadd.f32 %v900, %v1473
      %v1475 = vpop.f32.mrb[0].mxu0
      %1476 = vmatprep.mubr.f32.mxu0 0.0
      %v1477 = vand.u32 %v404, 4294901760
      %1478 = vmatmul.mubr.f32.gmra.mrb[0].mxu0 %v1477
      %v1479 = vpop.f32.mrb[0].mxu0
      %v1480 = vadd.f32 %v910, %v1479
      %v1481 = vpop.f32.mrb[0].mxu0
      %1482 = vmatprep.mubr.f32.mxu0 0.0
      %v1483 = vand.u32 %v407, 4294901760
      %1484 = vmatmul.mubr.f32.gmra.mrb[0].mxu0 %v1483
      %v1485 = vpop.f32.mrb[0].mxu0
      %v1486 = vadd.f32 %v920, %v1485
      %v1487 = vpop.f32.mrb[0].mxu0
      %1488 = vmatprep.mubr.f32.mxu0 0.0
      %v1489 = vand.u32 %v410, 4294901760
      %1490 = vmatmul.mubr.f32.gmra.mrb[0].mxu0 %v1489
      %v1491 = vpop.f32.mrb[0].mxu0
      %v1492 = vadd.f32 %v930, %v1491
      %v1493 = vpop.f32.mrb[0].mxu0
      %1494 = vmatprep.mubr.f32.mxu0 0.0
      %v1495 = vand.u32 %v413, 4294901760
      %1496 = vmatmul.mubr.f32.gmra.mrb[0].mxu0 %v1495
      %v1497 = vpop.f32.mrb[0].mxu0
      %v1498 = vadd.f32 %v940, %v1497
      %v1499 = vpop.f32.mrb[0].mxu0
      %1500 = vmatprep.mubr.f32.mxu0 0.0
      %v1501 = vand.u32 %v416, 4294901760
      %1502 = vmatmul.mubr.f32.gmra.mrb[0].mxu0 %v1501
      %v1503 = vpop.f32.mrb[0].mxu0
      %v1504 = vadd.f32 %v950, %v1503
      %v1505 = vpop.f32.mrb[0].mxu0
      %1506 = vmatprep.mubr.f32.mxu0 0.0
      %v1507 = vand.u32 %v419, 4294901760
      %1508 = vmatmul.mubr.f32.gmra.mrb[0].mxu0 %v1507
      %v1509 = vpop.f32.mrb[0].mxu0
      %v1510 = vadd.f32 %v960, %v1509
      %v1511 = vpop.f32.mrb[0].mxu0
      %1512 = vmatprep.mubr.f32.mxu0 0.0
      %v1513 = vand.u32 %v422, 4294901760
      %1514 = vmatmul.mubr.f32.gmra.mrb[0].mxu0 %v1513
      %v1515 = vpop.f32.mrb[0].mxu0
      %v1516 = vadd.f32 %v970, %v1515
      %v1517 = vpop.f32.mrb[0].mxu0
      %1518 = vmatprep.mubr.f32.mxu0 0.0
      %v1519 = vand.u32 %v425, 4294901760
      %1520 = vmatmul.mubr.f32.gmra.mrb[0].mxu0 %v1519
      %v1521 = vpop.f32.mrb[0].mxu0
      %v1522 = vadd.f32 %v980, %v1521
      %v1523 = vpop.f32.mrb[0].mxu0
      %1524 = vmatprep.mubr.f32.mxu0 0.0
      %v1525 = vand.u32 %v428, 4294901760
      %1526 = vmatmul.mubr.f32.gmra.mrb[0].mxu0 %v1525
      %v1527 = vpop.f32.mrb[0].mxu0
      %v1528 = vadd.f32 %v990, %v1527
      %v1529 = vpop.f32.mrb[0].mxu0
      %1530 = vmatprep.mubr.f32.mxu0 0.0
      %v1531 = vand.u32 %v431, 4294901760
      %1532 = vmatmul.mubr.f32.gmra.mrb[0].mxu0 %v1531
      %v1533 = vpop.f32.mrb[0].mxu0
      %v1534 = vadd.f32 %v1000, %v1533
      %v1535 = vpop.f32.mrb[0].mxu0
      %1536 = vmatprep.mubr.f32.mxu0 0.0
      %v1537 = vand.u32 %v434, 4294901760
      %1538 = vmatmul.mubr.f32.gmra.mrb[0].mxu0 %v1537
      %v1539 = vpop.f32.mrb[0].mxu0
      %v1540 = vadd.f32 %v1010, %v1539
      %v1541 = vpop.f32.mrb[0].mxu0
      %1542 = vmatprep.mubr.f32.mxu0 0.0
      %v1543 = vand.u32 %v437, 4294901760
      %1544 = vmatmul.mubr.f32.gmra.mrb[0].mxu0 %v1543
      %v1545 = vpop.f32.mrb[0].mxu0
      %v1546 = vadd.f32 %v1020, %v1545
      %v1547 = vpop.f32.mrb[0].mxu0
      %1548 = vmatprep.mubr.f32.mxu0 0.0
      %v1549 = vand.u32 %v440, 4294901760
      %1550 = vmatmul.mubr.f32.gmra.mrb[0].mxu0 %v1549
      %v1551 = vpop.f32.mrb[0].mxu0
      %v1552 = vadd.f32 %v1030, %v1551
      %v1553 = vpop.f32.mrb[0].mxu0
      %1554 = vmatprep.mubr.f32.mxu0 0.0
      %v1555 = vand.u32 %v443, 4294901760
      %1556 = vmatmul.mubr.f32.gmra.mrb[0].mxu0 %v1555
      %v1557 = vpop.f32.mrb[0].mxu0
      %v1558 = vadd.f32 %v1040, %v1557
      %v1559 = vpop.f32.mrb[0].mxu0
      %1560 = vmatprep.mubr.f32.mxu0 0.0
      %v1561 = vand.u32 %v446, 4294901760
      %1562 = vmatmul.mubr.f32.gmra.mrb[0].mxu0 %v1561
      %v1563 = vpop.f32.mrb[0].mxu0
      %v1564 = vadd.f32 %v1050, %v1563
      %v1565 = vpop.f32.mrb[0].mxu0
      %1566 = vmatprep.mubr.f32.mxu0 0.0
      %v1567 = vand.u32 %v449, 4294901760
      %1568 = vmatmul.mubr.f32.gmra.mrb[0].mxu0 %v1567
      %v1569 = vpop.f32.mrb[0].mxu0
      %v1570 = vadd.f32 %v1060, %v1569
      %v1571 = vpop.f32.mrb[0].mxu0
      %1572 = vmatprep.mubr.f32.mxu0 0.0
      %v1573 = vand.u32 %v452, 4294901760
      %1574 = vmatmul.mubr.f32.gmra.mrb[0].mxu0 %v1573
      %v1575 = vpop.f32.mrb[0].mxu0
      %v1576 = vadd.f32 %v1070, %v1575
      %v1577 = vpop.f32.mrb[0].mxu0
      %1578 = vmatprep.mubr.f32.mxu0 0.0
      %v1579 = vand.u32 %v455, 4294901760
      %1580 = vmatmul.mubr.f32.gmra.mrb[0].mxu0 %v1579
      %v1581 = vpop.f32.mrb[0].mxu0
      %v1582 = vadd.f32 %v1080, %v1581
      %v1583 = vpop.f32.mrb[0].mxu0
      %1584 = vmatprep.mubr.f32.mxu0 0.0
      %v1585 = vand.u32 %v458, 4294901760
      %1586 = vmatmul.mubr.f32.gmra.mrb[0].mxu0 %v1585
      %v1587 = vpop.f32.mrb[0].mxu0
      %v1588 = vadd.f32 %v1090, %v1587
      %v1589 = vpop.f32.mrb[0].mxu0
      %1590 = vmatprep.mubr.f32.mxu0 0.0
      %v1591 = vand.u32 %v461, 4294901760
      %1592 = vmatmul.mubr.f32.gmra.mrb[0].mxu0 %v1591
      %v1593 = vpop.f32.mrb[0].mxu0
      %v1594 = vadd.f32 %v1100, %v1593
      %v1595 = vpop.f32.mrb[0].mxu0
      %1596 = vmatprep.mubr.f32.mxu0 0.0
      %v1597 = vand.u32 %v464, 4294901760
      %1598 = vmatmul.mubr.f32.gmra.mrb[0].mxu0 %v1597
      %v1599 = vpop.f32.mrb[0].mxu0
      %v1600 = vadd.f32 %v1110, %v1599
      %v1601 = vpop.f32.mrb[0].mxu0
      %1602 = vmatprep.mubr.f32.mxu0 0.0
      %v1603 = vand.u32 %v467, 4294901760
      %1604 = vmatmul.mubr.f32.gmra.mrb[0].mxu0 %v1603
      %v1605 = vpop.f32.mrb[0].mxu0
      %v1606 = vadd.f32 %v1120, %v1605
      %v1607 = vpop.f32.mrb[0].mxu0
      %1608 = vmatprep.mubr.f32.mxu0 0.0
      %v1609 = vand.u32 %v470, 4294901760
      %1610 = vmatmul.mubr.f32.gmra.mrb[0].mxu0 %v1609
      %v1611 = vpop.f32.mrb[0].mxu0
      %v1612 = vadd.f32 %v1130, %v1611
      %v1613 = vpop.f32.mrb[0].mxu0
      %1614 = vmatprep.mubr.f32.mxu0 0.0
      %v1615 = vand.u32 %v473, 4294901760
      %1616 = vmatmul.mubr.f32.gmra.mrb[0].mxu0 %v1615
      %v1617 = vpop.f32.mrb[0].mxu0
      %v1618 = vadd.f32 %v1140, %v1617
      %v1619 = vpop.f32.mrb[0].mxu0
      %1620 = vmatprep.mubr.f32.mxu0 0.0
      %v1621 = vand.u32 %v476, 4294901760
      %1622 = vmatmul.mubr.f32.gmra.mrb[0].mxu0 %v1621
      %v1623 = vpop.f32.mrb[0].mxu0
      %v1624 = vadd.f32 %v1150, %v1623
      %v1625 = vpop.f32.mrb[0].mxu0
      %1626 = vmatprep.mubr.f32.mxu0 0.0
      %v1627 = vand.u32 %v479, 4294901760
      %1628 = vmatmul.mubr.f32.gmra.mrb[0].mxu0 %v1627
      %v1629 = vpop.f32.mrb[0].mxu0
      %v1630 = vadd.f32 %v1160, %v1629
      %v1631 = vpop.f32.mrb[0].mxu0
      %1632 = vmatprep.mubr.f32.mxu0 0.0
      %v1633 = vand.u32 %v482, 4294901760
      %1634 = vmatmul.mubr.f32.gmra.mrb[0].mxu0 %v1633
      %v1635 = vpop.f32.mrb[0].mxu0
      %v1636 = vadd.f32 %v1170, %v1635
      %v1637 = vpop.f32.mrb[0].mxu0
      %1638 = vmatprep.mubr.f32.mxu0 0.0
      %v1639 = vand.u32 %v485, 4294901760
      %1640 = vmatmul.mubr.f32.gmra.mrb[0].mxu0 %v1639
      %v1641 = vpop.f32.mrb[0].mxu0
      %v1642 = vadd.f32 %v1180, %v1641
      %v1643 = vpop.f32.mrb[0].mxu0
      %1644 = vmatprep.mubr.f32.mxu0 0.0
      %v1645 = vand.u32 %v488, 4294901760
      %1646 = vmatmul.mubr.f32.gmra.mrb[0].mxu0 %v1645
      %v1647 = vpop.f32.mrb[0].mxu0
      %v1648 = vadd.f32 %v1190, %v1647
      %v1649 = vpop.f32.mrb[0].mxu0
      %1650 = vmatprep.mubr.f32.mxu0 0.0
      %v1651 = vand.u32 %v491, 4294901760
      %1652 = vmatmul.mubr.f32.gmra.mrb[0].mxu0 %v1651
      %v1653 = vpop.f32.mrb[0].mxu0
      %v1654 = vadd.f32 %v1200, %v1653
      %v1655 = vpop.f32.mrb[0].mxu0
      %1656 = vdwg.mxu0
      %1657 = vmatprep.subr.mxu0 0.0
      %v1658 = vand.u32 %v495, 4294901760
      %v1659 = vsub.f32 %v495, %v1658
      %1660 = vmatpush1.msra.mxu0 %v1659
      %1661 = vmatprep.subr.mxu0 0.0
      %1662 = vmatpush1.msra.mxu0 0.0
      %1663 = vmatprep.subr.mxu0 0.0
      %1664 = vmatpush1.msra.mxu0 0.0
      %1665 = vmatprep.subr.mxu0 0.0
      %1666 = vmatpush1.msra.mxu0 0.0
      %1667 = vmatprep.subr.mxu0 0.0
      %1668 = vmatpush1.msra.mxu0 0.0
      %1669 = vmatprep.subr.mxu0 0.0
      %1670 = vmatpush1.msra.mxu0 0.0
      %1671 = vmatprep.subr.mxu0 0.0
      %1672 = vmatpush1.msra.mxu0 0.0
      %1673 = vmatprep.subr.mxu0 0.0
      %1674 = vmatpush1.msra.mxu0 0.0
      %1675 = vmatprep.subr.mxu0 0.0
      %1676 = vmatpush1.msra.mxu0 0.0
      %1677 = vmatprep.subr.mxu0 0.0
      %1678 = vmatpush1.msra.mxu0 0.0
      %1679 = vmatprep.subr.mxu0 0.0
      %1680 = vmatpush1.msra.mxu0 0.0
      %1681 = vmatprep.subr.mxu0 0.0
      %1682 = vmatpush1.msra.mxu0 0.0
      %1683 = vmatprep.subr.mxu0 0.0
      %1684 = vmatpush1.msra.mxu0 0.0
      %1685 = vmatprep.subr.mxu0 0.0
      %1686 = vmatpush1.msra.mxu0 0.0
      %1687 = vmatprep.subr.mxu0 0.0
      %1688 = vmatpush1.msra.mxu0 0.0
      %1689 = vmatprep.subr.mxu0 0.0
      %1690 = vmatpush1.msra.mxu0 0.0
      %1691 = vmatprep.subr.mxu0 0.0
      %1692 = vmatpush1.msra.mxu0 0.0
      %1693 = vmatprep.subr.mxu0 0.0
      %1694 = vmatpush1.msra.mxu0 0.0
      %1695 = vmatprep.subr.mxu0 0.0
      %1696 = vmatpush1.msra.mxu0 0.0
      %1697 = vmatprep.subr.mxu0 0.0
      %1698 = vmatpush1.msra.mxu0 0.0
      %1699 = vmatprep.subr.mxu0 0.0
      %1700 = vmatpush1.msra.mxu0 0.0
      %1701 = vmatprep.subr.mxu0 0.0
      %1702 = vmatpush1.msra.mxu0 0.0
      %1703 = vmatprep.subr.mxu0 0.0
      %1704 = vmatpush1.msra.mxu0 0.0
      %1705 = vmatprep.subr.mxu0 0.0
      %1706 = vmatpush1.msra.mxu0 0.0
      %1707 = vmatprep.subr.mxu0 0.0
      %1708 = vmatpush1.msra.mxu0 0.0
      %1709 = vmatprep.subr.mxu0 0.0
      %1710 = vmatpush1.msra.mxu0 0.0
      %1711 = vmatprep.subr.mxu0 0.0
      %1712 = vmatpush1.msra.mxu0 0.0
      %1713 = vmatprep.subr.mxu0 0.0
      %1714 = vmatpush1.msra.mxu0 0.0
      %1715 = vmatprep.subr.mxu0 0.0
      %1716 = vmatpush1.msra.mxu0 0.0
      %1717 = vmatprep.subr.mxu0 0.0
      %1718 = vmatpush1.msra.mxu0 0.0
      %1719 = vmatprep.subr.mxu0 0.0
      %1720 = vmatpush1.msra.mxu0 0.0
      %1721 = vmatprep.subr.mxu0 0.0
      %1722 = vmatpush1.msra.mxu0 0.0
      %1723 = vmatprep.mubr.f32.mxu0 0.0
      %v1724 = vand.u32 %v302, 4294901760
      %v1725 = vsub.f32 %v302, %v1724
      %1726 = vmatmul.mubr.f32.gmra.mrb[0].mxu0 %v1725
      %v1727 = vpop.f32.mrb[0].mxu0
      %v1728 = vadd.f32 %v1276, %v1727
      %v1729 = vpop.f32.mrb[0].mxu0
      %1730 = vmatprep.mubr.f32.mxu0 0.0
      %v1731 = vand.u32 %v305, 4294901760
      %v1732 = vsub.f32 %v305, %v1731
      %1733 = vmatmul.mubr.f32.gmra.mrb[0].mxu0 %v1732
      %v1734 = vpop.f32.mrb[0].mxu0
      %v1735 = vadd.f32 %v1282, %v1734
      %v1736 = vpop.f32.mrb[0].mxu0
      %1737 = vmatprep.mubr.f32.mxu0 0.0
      %v1738 = vand.u32 %v308, 4294901760
      %v1739 = vsub.f32 %v308, %v1738
      %1740 = vmatmul.mubr.f32.gmra.mrb[0].mxu0 %v1739
      %v1741 = vpop.f32.mrb[0].mxu0
      %v1742 = vadd.f32 %v1288, %v1741
      %v1743 = vpop.f32.mrb[0].mxu0
      %1744 = vmatprep.mubr.f32.mxu0 0.0
      %v1745 = vand.u32 %v311, 4294901760
      %v1746 = vsub.f32 %v311, %v1745
      %1747 = vmatmul.mubr.f32.gmra.mrb[0].mxu0 %v1746
      %v1748 = vpop.f32.mrb[0].mxu0
      %v1749 = vadd.f32 %v1294, %v1748
      %v1750 = vpop.f32.mrb[0].mxu0
      %1751 = vmatprep.mubr.f32.mxu0 0.0
      %v1752 = vand.u32 %v314, 4294901760
      %v1753 = vsub.f32 %v314, %v1752
      %1754 = vmatmul.mubr.f32.gmra.mrb[0].mxu0 %v1753
      %v1755 = vpop.f32.mrb[0].mxu0
      %v1756 = vadd.f32 %v1300, %v1755
      %v1757 = vpop.f32.mrb[0].mxu0
      %1758 = vmatprep.mubr.f32.mxu0 0.0
      %v1759 = vand.u32 %v317, 4294901760
      %v1760 = vsub.f32 %v317, %v1759
      %1761 = vmatmul.mubr.f32.gmra.mrb[0].mxu0 %v1760
      %v1762 = vpop.f32.mrb[0].mxu0
      %v1763 = vadd.f32 %v1306, %v1762
      %v1764 = vpop.f32.mrb[0].mxu0
      %1765 = vmatprep.mubr.f32.mxu0 0.0
      %v1766 = vand.u32 %v320, 4294901760
      %v1767 = vsub.f32 %v320, %v1766
      %1768 = vmatmul.mubr.f32.gmra.mrb[0].mxu0 %v1767
      %v1769 = vpop.f32.mrb[0].mxu0
      %v1770 = vadd.f32 %v1312, %v1769
      %v1771 = vpop.f32.mrb[0].mxu0
      %1772 = vmatprep.mubr.f32.mxu0 0.0
      %v1773 = vand.u32 %v323, 4294901760
      %v1774 = vsub.f32 %v323, %v1773
      %1775 = vmatmul.mubr.f32.gmra.mrb[0].mxu0 %v1774
      %v1776 = vpop.f32.mrb[0].mxu0
      %v1777 = vadd.f32 %v1318, %v1776
      %v1778 = vpop.f32.mrb[0].mxu0
      %1779 = vmatprep.mubr.f32.mxu0 0.0
      %v1780 = vand.u32 %v326, 4294901760
      %v1781 = vsub.f32 %v326, %v1780
      %1782 = vmatmul.mubr.f32.gmra.mrb[0].mxu0 %v1781
      %v1783 = vpop.f32.mrb[0].mxu0
      %v1784 = vadd.f32 %v1324, %v1783
      %v1785 = vpop.f32.mrb[0].mxu0
      %1786 = vmatprep.mubr.f32.mxu0 0.0
      %v1787 = vand.u32 %v329, 4294901760
      %v1788 = vsub.f32 %v329, %v1787
      %1789 = vmatmul.mubr.f32.gmra.mrb[0].mxu0 %v1788
      %v1790 = vpop.f32.mrb[0].mxu0
      %v1791 = vadd.f32 %v1330, %v1790
      %v1792 = vpop.f32.mrb[0].mxu0
      %1793 = vmatprep.mubr.f32.mxu0 0.0
      %v1794 = vand.u32 %v332, 4294901760
      %v1795 = vsub.f32 %v332, %v1794
      %1796 = vmatmul.mubr.f32.gmra.mrb[0].mxu0 %v1795
      %v1797 = vpop.f32.mrb[0].mxu0
      %v1798 = vadd.f32 %v1336, %v1797
      %v1799 = vpop.f32.mrb[0].mxu0
      %1800 = vmatprep.mubr.f32.mxu0 0.0
      %v1801 = vand.u32 %v335, 4294901760
      %v1802 = vsub.f32 %v335, %v1801
      %1803 = vmatmul.mubr.f32.gmra.mrb[0].mxu0 %v1802
      %v1804 = vpop.f32.mrb[0].mxu0
      %v1805 = vadd.f32 %v1342, %v1804
      %v1806 = vpop.f32.mrb[0].mxu0
      %1807 = vmatprep.mubr.f32.mxu0 0.0
      %v1808 = vand.u32 %v338, 4294901760
      %v1809 = vsub.f32 %v338, %v1808
      %1810 = vmatmul.mubr.f32.gmra.mrb[0].mxu0 %v1809
      %v1811 = vpop.f32.mrb[0].mxu0
      %v1812 = vadd.f32 %v1348, %v1811
      %v1813 = vpop.f32.mrb[0].mxu0
      %1814 = vmatprep.mubr.f32.mxu0 0.0
      %v1815 = vand.u32 %v341, 4294901760
      %v1816 = vsub.f32 %v341, %v1815
      %1817 = vmatmul.mubr.f32.gmra.mrb[0].mxu0 %v1816
      %v1818 = vpop.f32.mrb[0].mxu0
      %v1819 = vadd.f32 %v1354, %v1818
      %v1820 = vpop.f32.mrb[0].mxu0
      %1821 = vmatprep.mubr.f32.mxu0 0.0
      %v1822 = vand.u32 %v344, 4294901760
      %v1823 = vsub.f32 %v344, %v1822
      %1824 = vmatmul.mubr.f32.gmra.mrb[0].mxu0 %v1823
      %v1825 = vpop.f32.mrb[0].mxu0
      %v1826 = vadd.f32 %v1360, %v1825
      %v1827 = vpop.f32.mrb[0].mxu0
      %1828 = vmatprep.mubr.f32.mxu0 0.0
      %v1829 = vand.u32 %v347, 4294901760
      %v1830 = vsub.f32 %v347, %v1829
      %1831 = vmatmul.mubr.f32.gmra.mrb[0].mxu0 %v1830
      %v1832 = vpop.f32.mrb[0].mxu0
      %v1833 = vadd.f32 %v1366, %v1832
      %v1834 = vpop.f32.mrb[0].mxu0
      %1835 = vmatprep.mubr.f32.mxu0 0.0
      %v1836 = vand.u32 %v350, 4294901760
      %v1837 = vsub.f32 %v350, %v1836
      %1838 = vmatmul.mubr.f32.gmra.mrb[0].mxu0 %v1837
      %v1839 = vpop.f32.mrb[0].mxu0
      %v1840 = vadd.f32 %v1372, %v1839
      %v1841 = vpop.f32.mrb[0].mxu0
      %1842 = vmatprep.mubr.f32.mxu0 0.0
      %v1843 = vand.u32 %v353, 4294901760
      %v1844 = vsub.f32 %v353, %v1843
      %1845 = vmatmul.mubr.f32.gmra.mrb[0].mxu0 %v1844
      %v1846 = vpop.f32.mrb[0].mxu0
      %v1847 = vadd.f32 %v1378, %v1846
      %v1848 = vpop.f32.mrb[0].mxu0
      %1849 = vmatprep.mubr.f32.mxu0 0.0
      %v1850 = vand.u32 %v356, 4294901760
      %v1851 = vsub.f32 %v356, %v1850
      %1852 = vmatmul.mubr.f32.gmra.mrb[0].mxu0 %v1851
      %v1853 = vpop.f32.mrb[0].mxu0
      %v1854 = vadd.f32 %v1384, %v1853
      %v1855 = vpop.f32.mrb[0].mxu0
      %1856 = vmatprep.mubr.f32.mxu0 0.0
      %v1857 = vand.u32 %v359, 4294901760
      %v1858 = vsub.f32 %v359, %v1857
      %1859 = vmatmul.mubr.f32.gmra.mrb[0].mxu0 %v1858
      %v1860 = vpop.f32.mrb[0].mxu0
      %v1861 = vadd.f32 %v1390, %v1860
      %v1862 = vpop.f32.mrb[0].mxu0
      %1863 = vmatprep.mubr.f32.mxu0 0.0
      %v1864 = vand.u32 %v362, 4294901760
      %v1865 = vsub.f32 %v362, %v1864
      %1866 = vmatmul.mubr.f32.gmra.mrb[0].mxu0 %v1865
      %v1867 = vpop.f32.mrb[0].mxu0
      %v1868 = vadd.f32 %v1396, %v1867
      %v1869 = vpop.f32.mrb[0].mxu0
      %1870 = vmatprep.mubr.f32.mxu0 0.0
      %v1871 = vand.u32 %v365, 4294901760
      %v1872 = vsub.f32 %v365, %v1871
      %1873 = vmatmul.mubr.f32.gmra.mrb[0].mxu0 %v1872
      %v1874 = vpop.f32.mrb[0].mxu0
      %v1875 = vadd.f32 %v1402, %v1874
      %v1876 = vpop.f32.mrb[0].mxu0
      %1877 = vmatprep.mubr.f32.mxu0 0.0
      %v1878 = vand.u32 %v368, 4294901760
      %v1879 = vsub.f32 %v368, %v1878
      %1880 = vmatmul.mubr.f32.gmra.mrb[0].mxu0 %v1879
      %v1881 = vpop.f32.mrb[0].mxu0
      %v1882 = vadd.f32 %v1408, %v1881
      %v1883 = vpop.f32.mrb[0].mxu0
      %1884 = vmatprep.mubr.f32.mxu0 0.0
      %v1885 = vand.u32 %v371, 4294901760
      %v1886 = vsub.f32 %v371, %v1885
      %1887 = vmatmul.mubr.f32.gmra.mrb[0].mxu0 %v1886
      %v1888 = vpop.f32.mrb[0].mxu0
      %v1889 = vadd.f32 %v1414, %v1888
      %v1890 = vpop.f32.mrb[0].mxu0
      %1891 = vmatprep.mubr.f32.mxu0 0.0
      %v1892 = vand.u32 %v374, 4294901760
      %v1893 = vsub.f32 %v374, %v1892
      %1894 = vmatmul.mubr.f32.gmra.mrb[0].mxu0 %v1893
      %v1895 = vpop.f32.mrb[0].mxu0
      %v1896 = vadd.f32 %v1420, %v1895
      %v1897 = vpop.f32.mrb[0].mxu0
      %1898 = vmatprep.mubr.f32.mxu0 0.0
      %v1899 = vand.u32 %v377, 4294901760
      %v1900 = vsub.f32 %v377, %v1899
      %1901 = vmatmul.mubr.f32.gmra.mrb[0].mxu0 %v1900
      %v1902 = vpop.f32.mrb[0].mxu0
      %v1903 = vadd.f32 %v1426, %v1902
      %v1904 = vpop.f32.mrb[0].mxu0
      %1905 = vmatprep.mubr.f32.mxu0 0.0
      %v1906 = vand.u32 %v380, 4294901760
      %v1907 = vsub.f32 %v380, %v1906
      %1908 = vmatmul.mubr.f32.gmra.mrb[0].mxu0 %v1907
      %v1909 = vpop.f32.mrb[0].mxu0
      %v1910 = vadd.f32 %v1432, %v1909
      %v1911 = vpop.f32.mrb[0].mxu0
      %1912 = vmatprep.mubr.f32.mxu0 0.0
      %v1913 = vand.u32 %v383, 4294901760
      %v1914 = vsub.f32 %v383, %v1913
      %1915 = vmatmul.mubr.f32.gmra.mrb[0].mxu0 %v1914
      %v1916 = vpop.f32.mrb[0].mxu0
      %v1917 = vadd.f32 %v1438, %v1916
      %v1918 = vpop.f32.mrb[0].mxu0
      %1919 = vmatprep.mubr.f32.mxu0 0.0
      %v1920 = vand.u32 %v386, 4294901760
      %v1921 = vsub.f32 %v386, %v1920
      %1922 = vmatmul.mubr.f32.gmra.mrb[0].mxu0 %v1921
      %v1923 = vpop.f32.mrb[0].mxu0
      %v1924 = vadd.f32 %v1444, %v1923
      %v1925 = vpop.f32.mrb[0].mxu0
      %1926 = vmatprep.mubr.f32.mxu0 0.0
      %v1927 = vand.u32 %v389, 4294901760
      %v1928 = vsub.f32 %v389, %v1927
      %1929 = vmatmul.mubr.f32.gmra.mrb[0].mxu0 %v1928
      %v1930 = vpop.f32.mrb[0].mxu0
      %v1931 = vadd.f32 %v1450, %v1930
      %v1932 = vpop.f32.mrb[0].mxu0
      %1933 = vmatprep.mubr.f32.mxu0 0.0
      %v1934 = vand.u32 %v392, 4294901760
      %v1935 = vsub.f32 %v392, %v1934
      %1936 = vmatmul.mubr.f32.gmra.mrb[0].mxu0 %v1935
      %v1937 = vpop.f32.mrb[0].mxu0
      %v1938 = vadd.f32 %v1456, %v1937
      %v1939 = vpop.f32.mrb[0].mxu0
      %1940 = vmatprep.mubr.f32.mxu0 0.0
      %v1941 = vand.u32 %v395, 4294901760
      %v1942 = vsub.f32 %v395, %v1941
      %1943 = vmatmul.mubr.f32.gmra.mrb[0].mxu0 %v1942
      %v1944 = vpop.f32.mrb[0].mxu0
      %v1945 = vadd.f32 %v1462, %v1944
      %v1946 = vpop.f32.mrb[0].mxu0
      %1947 = vmatprep.mubr.f32.mxu0 0.0
      %v1948 = vand.u32 %v398, 4294901760
      %v1949 = vsub.f32 %v398, %v1948
      %1950 = vmatmul.mubr.f32.gmra.mrb[0].mxu0 %v1949
      %v1951 = vpop.f32.mrb[0].mxu0
      %v1952 = vadd.f32 %v1468, %v1951
      %v1953 = vpop.f32.mrb[0].mxu0
      %1954 = vmatprep.mubr.f32.mxu0 0.0
      %v1955 = vand.u32 %v401, 4294901760
      %v1956 = vsub.f32 %v401, %v1955
      %1957 = vmatmul.mubr.f32.gmra.mrb[0].mxu0 %v1956
      %v1958 = vpop.f32.mrb[0].mxu0
      %v1959 = vadd.f32 %v1474, %v1958
      %v1960 = vpop.f32.mrb[0].mxu0
      %1961 = vmatprep.mubr.f32.mxu0 0.0
      %v1962 = vand.u32 %v404, 4294901760
      %v1963 = vsub.f32 %v404, %v1962
      %1964 = vmatmul.mubr.f32.gmra.mrb[0].mxu0 %v1963
      %v1965 = vpop.f32.mrb[0].mxu0
      %v1966 = vadd.f32 %v1480, %v1965
      %v1967 = vpop.f32.mrb[0].mxu0
      %1968 = vmatprep.mubr.f32.mxu0 0.0
      %v1969 = vand.u32 %v407, 4294901760
      %v1970 = vsub.f32 %v407, %v1969
      %1971 = vmatmul.mubr.f32.gmra.mrb[0].mxu0 %v1970
      %v1972 = vpop.f32.mrb[0].mxu0
      %v1973 = vadd.f32 %v1486, %v1972
      %v1974 = vpop.f32.mrb[0].mxu0
      %1975 = vmatprep.mubr.f32.mxu0 0.0
      %v1976 = vand.u32 %v410, 4294901760
      %v1977 = vsub.f32 %v410, %v1976
      %1978 = vmatmul.mubr.f32.gmra.mrb[0].mxu0 %v1977
      %v1979 = vpop.f32.mrb[0].mxu0
      %v1980 = vadd.f32 %v1492, %v1979
      %v1981 = vpop.f32.mrb[0].mxu0
      %1982 = vmatprep.mubr.f32.mxu0 0.0
      %v1983 = vand.u32 %v413, 4294901760
      %v1984 = vsub.f32 %v413, %v1983
      %1985 = vmatmul.mubr.f32.gmra.mrb[0].mxu0 %v1984
      %v1986 = vpop.f32.mrb[0].mxu0
      %v1987 = vadd.f32 %v1498, %v1986
      %v1988 = vpop.f32.mrb[0].mxu0
      %1989 = vmatprep.mubr.f32.mxu0 0.0
      %v1990 = vand.u32 %v416, 4294901760
      %v1991 = vsub.f32 %v416, %v1990
      %1992 = vmatmul.mubr.f32.gmra.mrb[0].mxu0 %v1991
      %v1993 = vpop.f32.mrb[0].mxu0
      %v1994 = vadd.f32 %v1504, %v1993
      %v1995 = vpop.f32.mrb[0].mxu0
      %1996 = vmatprep.mubr.f32.mxu0 0.0
      %v1997 = vand.u32 %v419, 4294901760
      %v1998 = vsub.f32 %v419, %v1997
      %1999 = vmatmul.mubr.f32.gmra.mrb[0].mxu0 %v1998
      %v2000 = vpop.f32.mrb[0].mxu0
      %v2001 = vadd.f32 %v1510, %v2000
      %v2002 = vpop.f32.mrb[0].mxu0
      %2003 = vmatprep.mubr.f32.mxu0 0.0
      %v2004 = vand.u32 %v422, 4294901760
      %v2005 = vsub.f32 %v422, %v2004
      %2006 = vmatmul.mubr.f32.gmra.mrb[0].mxu0 %v2005
      %v2007 = vpop.f32.mrb[0].mxu0
      %v2008 = vadd.f32 %v1516, %v2007
      %v2009 = vpop.f32.mrb[0].mxu0
      %2010 = vmatprep.mubr.f32.mxu0 0.0
      %v2011 = vand.u32 %v425, 4294901760
      %v2012 = vsub.f32 %v425, %v2011
      %2013 = vmatmul.mubr.f32.gmra.mrb[0].mxu0 %v2012
      %v2014 = vpop.f32.mrb[0].mxu0
      %v2015 = vadd.f32 %v1522, %v2014
      %v2016 = vpop.f32.mrb[0].mxu0
      %2017 = vmatprep.mubr.f32.mxu0 0.0
      %v2018 = vand.u32 %v428, 4294901760
      %v2019 = vsub.f32 %v428, %v2018
      %2020 = vmatmul.mubr.f32.gmra.mrb[0].mxu0 %v2019
      %v2021 = vpop.f32.mrb[0].mxu0
      %v2022 = vadd.f32 %v1528, %v2021
      %v2023 = vpop.f32.mrb[0].mxu0
      %2024 = vmatprep.mubr.f32.mxu0 0.0
      %v2025 = vand.u32 %v431, 4294901760
      %v2026 = vsub.f32 %v431, %v2025
      %2027 = vmatmul.mubr.f32.gmra.mrb[0].mxu0 %v2026
      %v2028 = vpop.f32.mrb[0].mxu0
      %v2029 = vadd.f32 %v1534, %v2028
      %v2030 = vpop.f32.mrb[0].mxu0
      %2031 = vmatprep.mubr.f32.mxu0 0.0
      %v2032 = vand.u32 %v434, 4294901760
      %v2033 = vsub.f32 %v434, %v2032
      %2034 = vmatmul.mubr.f32.gmra.mrb[0].mxu0 %v2033
      %v2035 = vpop.f32.mrb[0].mxu0
      %v2036 = vadd.f32 %v1540, %v2035
      %v2037 = vpop.f32.mrb[0].mxu0
      %2038 = vmatprep.mubr.f32.mxu0 0.0
      %v2039 = vand.u32 %v437, 4294901760
      %v2040 = vsub.f32 %v437, %v2039
      %2041 = vmatmul.mubr.f32.gmra.mrb[0].mxu0 %v2040
      %v2042 = vpop.f32.mrb[0].mxu0
      %v2043 = vadd.f32 %v1546, %v2042
      %v2044 = vpop.f32.mrb[0].mxu0
      %2045 = vmatprep.mubr.f32.mxu0 0.0
      %v2046 = vand.u32 %v440, 4294901760
      %v2047 = vsub.f32 %v440, %v2046
      %2048 = vmatmul.mubr.f32.gmra.mrb[0].mxu0 %v2047
      %v2049 = vpop.f32.mrb[0].mxu0
      %v2050 = vadd.f32 %v1552, %v2049
      %v2051 = vpop.f32.mrb[0].mxu0
      %2052 = vmatprep.mubr.f32.mxu0 0.0
      %v2053 = vand.u32 %v443, 4294901760
      %v2054 = vsub.f32 %v443, %v2053
      %2055 = vmatmul.mubr.f32.gmra.mrb[0].mxu0 %v2054
      %v2056 = vpop.f32.mrb[0].mxu0
      %v2057 = vadd.f32 %v1558, %v2056
      %v2058 = vpop.f32.mrb[0].mxu0
      %2059 = vmatprep.mubr.f32.mxu0 0.0
      %v2060 = vand.u32 %v446, 4294901760
      %v2061 = vsub.f32 %v446, %v2060
      %2062 = vmatmul.mubr.f32.gmra.mrb[0].mxu0 %v2061
      %v2063 = vpop.f32.mrb[0].mxu0
      %v2064 = vadd.f32 %v1564, %v2063
      %v2065 = vpop.f32.mrb[0].mxu0
      %2066 = vmatprep.mubr.f32.mxu0 0.0
      %v2067 = vand.u32 %v449, 4294901760
      %v2068 = vsub.f32 %v449, %v2067
      %2069 = vmatmul.mubr.f32.gmra.mrb[0].mxu0 %v2068
      %v2070 = vpop.f32.mrb[0].mxu0
      %v2071 = vadd.f32 %v1570, %v2070
      %v2072 = vpop.f32.mrb[0].mxu0
      %2073 = vmatprep.mubr.f32.mxu0 0.0
      %v2074 = vand.u32 %v452, 4294901760
      %v2075 = vsub.f32 %v452, %v2074
      %2076 = vmatmul.mubr.f32.gmra.mrb[0].mxu0 %v2075
      %v2077 = vpop.f32.mrb[0].mxu0
      %v2078 = vadd.f32 %v1576, %v2077
      %v2079 = vpop.f32.mrb[0].mxu0
      %2080 = vmatprep.mubr.f32.mxu0 0.0
      %v2081 = vand.u32 %v455, 4294901760
      %v2082 = vsub.f32 %v455, %v2081
      %2083 = vmatmul.mubr.f32.gmra.mrb[0].mxu0 %v2082
      %v2084 = vpop.f32.mrb[0].mxu0
      %v2085 = vadd.f32 %v1582, %v2084
      %v2086 = vpop.f32.mrb[0].mxu0
      %2087 = vmatprep.mubr.f32.mxu0 0.0
      %v2088 = vand.u32 %v458, 4294901760
      %v2089 = vsub.f32 %v458, %v2088
      %2090 = vmatmul.mubr.f32.gmra.mrb[0].mxu0 %v2089
      %v2091 = vpop.f32.mrb[0].mxu0
      %v2092 = vadd.f32 %v1588, %v2091
      %v2093 = vpop.f32.mrb[0].mxu0
      %2094 = vmatprep.mubr.f32.mxu0 0.0
      %v2095 = vand.u32 %v461, 4294901760
      %v2096 = vsub.f32 %v461, %v2095
      %2097 = vmatmul.mubr.f32.gmra.mrb[0].mxu0 %v2096
      %v2098 = vpop.f32.mrb[0].mxu0
      %v2099 = vadd.f32 %v1594, %v2098
      %v2100 = vpop.f32.mrb[0].mxu0
      %2101 = vmatprep.mubr.f32.mxu0 0.0
      %v2102 = vand.u32 %v464, 4294901760
      %v2103 = vsub.f32 %v464, %v2102
      %2104 = vmatmul.mubr.f32.gmra.mrb[0].mxu0 %v2103
      %v2105 = vpop.f32.mrb[0].mxu0
      %v2106 = vadd.f32 %v1600, %v2105
      %v2107 = vpop.f32.mrb[0].mxu0
      %2108 = vmatprep.mubr.f32.mxu0 0.0
      %v2109 = vand.u32 %v467, 4294901760
      %v2110 = vsub.f32 %v467, %v2109
      %2111 = vmatmul.mubr.f32.gmra.mrb[0].mxu0 %v2110
      %v2112 = vpop.f32.mrb[0].mxu0
      %v2113 = vadd.f32 %v1606, %v2112
      %v2114 = vpop.f32.mrb[0].mxu0
      %2115 = vmatprep.mubr.f32.mxu0 0.0
      %v2116 = vand.u32 %v470, 4294901760
      %v2117 = vsub.f32 %v470, %v2116
      %2118 = vmatmul.mubr.f32.gmra.mrb[0].mxu0 %v2117
      %v2119 = vpop.f32.mrb[0].mxu0
      %v2120 = vadd.f32 %v1612, %v2119
      %v2121 = vpop.f32.mrb[0].mxu0
      %2122 = vmatprep.mubr.f32.mxu0 0.0
      %v2123 = vand.u32 %v473, 4294901760
      %v2124 = vsub.f32 %v473, %v2123
      %2125 = vmatmul.mubr.f32.gmra.mrb[0].mxu0 %v2124
      %v2126 = vpop.f32.mrb[0].mxu0
      %v2127 = vadd.f32 %v1618, %v2126
      %v2128 = vpop.f32.mrb[0].mxu0
      %2129 = vmatprep.mubr.f32.mxu0 0.0
      %v2130 = vand.u32 %v476, 4294901760
      %v2131 = vsub.f32 %v476, %v2130
      %2132 = vmatmul.mubr.f32.gmra.mrb[0].mxu0 %v2131
      %v2133 = vpop.f32.mrb[0].mxu0
      %v2134 = vadd.f32 %v1624, %v2133
      %v2135 = vpop.f32.mrb[0].mxu0
      %2136 = vmatprep.mubr.f32.mxu0 0.0
      %v2137 = vand.u32 %v479, 4294901760
      %v2138 = vsub.f32 %v479, %v2137
      %2139 = vmatmul.mubr.f32.gmra.mrb[0].mxu0 %v2138
      %v2140 = vpop.f32.mrb[0].mxu0
      %v2141 = vadd.f32 %v1630, %v2140
      %v2142 = vpop.f32.mrb[0].mxu0
      %2143 = vmatprep.mubr.f32.mxu0 0.0
      %v2144 = vand.u32 %v482, 4294901760
      %v2145 = vsub.f32 %v482, %v2144
      %2146 = vmatmul.mubr.f32.gmra.mrb[0].mxu0 %v2145
      %v2147 = vpop.f32.mrb[0].mxu0
      %v2148 = vadd.f32 %v1636, %v2147
      %v2149 = vpop.f32.mrb[0].mxu0
      %2150 = vmatprep.mubr.f32.mxu0 0.0
      %v2151 = vand.u32 %v485, 4294901760
      %v2152 = vsub.f32 %v485, %v2151
      %2153 = vmatmul.mubr.f32.gmra.mrb[0].mxu0 %v2152
      %v2154 = vpop.f32.mrb[0].mxu0
      %v2155 = vadd.f32 %v1642, %v2154
      %v2156 = vpop.f32.mrb[0].mxu0
      %2157 = vmatprep.mubr.f32.mxu0 0.0
      %v2158 = vand.u32 %v488, 4294901760
      %v2159 = vsub.f32 %v488, %v2158
      %2160 = vmatmul.mubr.f32.gmra.mrb[0].mxu0 %v2159
      %v2161 = vpop.f32.mrb[0].mxu0
      %v2162 = vadd.f32 %v1648, %v2161
      %v2163 = vpop.f32.mrb[0].mxu0
      %2164 = vmatprep.mubr.f32.mxu0 0.0
      %v2165 = vand.u32 %v491, 4294901760
      %v2166 = vsub.f32 %v491, %v2165
      %2167 = vmatmul.mubr.f32.gmra.mrb[0].mxu0 %v2166
      %v2168 = vpop.f32.mrb[0].mxu0
      %v2169 = vadd.f32 %v1654, %v2168
      %v2170 = vpop.f32.mrb[0].mxu0
      %2171 = vdwg.mxu0
      %2172 = vmatprep.subr.mxu0 0.0
      %v2173 = vand.u32 %v495, 4294901760
      %2174 = vmatpush1.msra.mxu0 %v2173
      %2175 = vmatprep.subr.mxu0 0.0
      %2176 = vmatpush1.msra.mxu0 0.0
      %2177 = vmatprep.subr.mxu0 0.0
      %2178 = vmatpush1.msra.mxu0 0.0
      %2179 = vmatprep.subr.mxu0 0.0
      %2180 = vmatpush1.msra.mxu0 0.0
      %2181 = vmatprep.subr.mxu0 0.0
      %2182 = vmatpush1.msra.mxu0 0.0
      %2183 = vmatprep.subr.mxu0 0.0
      %2184 = vmatpush1.msra.mxu0 0.0
      %2185 = vmatprep.subr.mxu0 0.0
      %2186 = vmatpush1.msra.mxu0 0.0
      %2187 = vmatprep.subr.mxu0 0.0
      %2188 = vmatpush1.msra.mxu0 0.0
      %2189 = vmatprep.subr.mxu0 0.0
      %2190 = vmatpush1.msra.mxu0 0.0
      %2191 = vmatprep.subr.mxu0 0.0
      %2192 = vmatpush1.msra.mxu0 0.0
      %2193 = vmatprep.subr.mxu0 0.0
      %2194 = vmatpush1.msra.mxu0 0.0
      %2195 = vmatprep.subr.mxu0 0.0
      %2196 = vmatpush1.msra.mxu0 0.0
      %2197 = vmatprep.subr.mxu0 0.0
      %2198 = vmatpush1.msra.mxu0 0.0
      %2199 = vmatprep.subr.mxu0 0.0
      %2200 = vmatpush1.msra.mxu0 0.0
      %2201 = vmatprep.subr.mxu0 0.0
      %2202 = vmatpush1.msra.mxu0 0.0
      %2203 = vmatprep.subr.mxu0 0.0
      %2204 = vmatpush1.msra.mxu0 0.0
      %2205 = vmatprep.subr.mxu0 0.0
      %2206 = vmatpush1.msra.mxu0 0.0
      %2207 = vmatprep.subr.mxu0 0.0
      %2208 = vmatpush1.msra.mxu0 0.0
      %2209 = vmatprep.subr.mxu0 0.0
      %2210 = vmatpush1.msra.mxu0 0.0
      %2211 = vmatprep.subr.mxu0 0.0
      %2212 = vmatpush1.msra.mxu0 0.0
      %2213 = vmatprep.subr.mxu0 0.0
      %2214 = vmatpush1.msra.mxu0 0.0
      %2215 = vmatprep.subr.mxu0 0.0
      %2216 = vmatpush1.msra.mxu0 0.0
      %2217 = vmatprep.subr.mxu0 0.0
      %2218 = vmatpush1.msra.mxu0 0.0
      %2219 = vmatprep.subr.mxu0 0.0
      %2220 = vmatpush1.msra.mxu0 0.0
      %2221 = vmatprep.subr.mxu0 0.0
      %2222 = vmatpush1.msra.mxu0 0.0
      %2223 = vmatprep.subr.mxu0 0.0
      %2224 = vmatpush1.msra.mxu0 0.0
      %2225 = vmatprep.subr.mxu0 0.0
      %2226 = vmatpush1.msra.mxu0 0.0
      %2227 = vmatprep.subr.mxu0 0.0
      %2228 = vmatpush1.msra.mxu0 0.0
      %2229 = vmatprep.subr.mxu0 0.0
      %2230 = vmatpush1.msra.mxu0 0.0
      %2231 = vmatprep.subr.mxu0 0.0
      %2232 = vmatpush1.msra.mxu0 0.0
      %2233 = vmatprep.subr.mxu0 0.0
      %2234 = vmatpush1.msra.mxu0 0.0
      %2235 = vmatprep.subr.mxu0 0.0
      %2236 = vmatpush1.msra.mxu0 0.0
      %2237 = vmatprep.mubr.f32.mxu0 0.0
      %v2238 = vand.u32 %v302, 4294901760
      %v2239 = vsub.f32 %v302, %v2238
      %v2240 = vand.u32 %v2239, 4294901760
      %2241 = vmatmul.mubr.f32.gmra.mrb[0].mxu0 %v2240
      %v2242 = vpop.f32.mrb[0].mxu0
      %v2243 = vadd.f32 %v1728, %v2242
      %v2244 = vpop.f32.mrb[0].mxu0
      %2245 = vmatprep.mubr.f32.mxu0 0.0
      %v2246 = vand.u32 %v305, 4294901760
      %v2247 = vsub.f32 %v305, %v2246
      %v2248 = vand.u32 %v2247, 4294901760
      %2249 = vmatmul.mubr.f32.gmra.mrb[0].mxu0 %v2248
      %v2250 = vpop.f32.mrb[0].mxu0
      %v2251 = vadd.f32 %v1735, %v2250
      %v2252 = vpop.f32.mrb[0].mxu0
      %2253 = vmatprep.mubr.f32.mxu0 0.0
      %v2254 = vand.u32 %v308, 4294901760
      %v2255 = vsub.f32 %v308, %v2254
      %v2256 = vand.u32 %v2255, 4294901760
      %2257 = vmatmul.mubr.f32.gmra.mrb[0].mxu0 %v2256
      %v2258 = vpop.f32.mrb[0].mxu0
      %v2259 = vadd.f32 %v1742, %v2258
      %v2260 = vpop.f32.mrb[0].mxu0
      %2261 = vmatprep.mubr.f32.mxu0 0.0
      %v2262 = vand.u32 %v311, 4294901760
      %v2263 = vsub.f32 %v311, %v2262
      %v2264 = vand.u32 %v2263, 4294901760
      %2265 = vmatmul.mubr.f32.gmra.mrb[0].mxu0 %v2264
      %v2266 = vpop.f32.mrb[0].mxu0
      %v2267 = vadd.f32 %v1749, %v2266
      %v2268 = vpop.f32.mrb[0].mxu0
      %2269 = vmatprep.mubr.f32.mxu0 0.0
      %v2270 = vand.u32 %v314, 4294901760
      %v2271 = vsub.f32 %v314, %v2270
      %v2272 = vand.u32 %v2271, 4294901760
      %2273 = vmatmul.mubr.f32.gmra.mrb[0].mxu0 %v2272
      %v2274 = vpop.f32.mrb[0].mxu0
      %v2275 = vadd.f32 %v1756, %v2274
      %v2276 = vpop.f32.mrb[0].mxu0
      %2277 = vmatprep.mubr.f32.mxu0 0.0
      %v2278 = vand.u32 %v317, 4294901760
      %v2279 = vsub.f32 %v317, %v2278
      %v2280 = vand.u32 %v2279, 4294901760
      %2281 = vmatmul.mubr.f32.gmra.mrb[0].mxu0 %v2280
      %v2282 = vpop.f32.mrb[0].mxu0
      %v2283 = vadd.f32 %v1763, %v2282
      %v2284 = vpop.f32.mrb[0].mxu0
      %2285 = vmatprep.mubr.f32.mxu0 0.0
      %v2286 = vand.u32 %v320, 4294901760
      %v2287 = vsub.f32 %v320, %v2286
      %v2288 = vand.u32 %v2287, 4294901760
      %2289 = vmatmul.mubr.f32.gmra.mrb[0].mxu0 %v2288
      %v2290 = vpop.f32.mrb[0].mxu0
      %v2291 = vadd.f32 %v1770, %v2290
      %v2292 = vpop.f32.mrb[0].mxu0
      %2293 = vmatprep.mubr.f32.mxu0 0.0
      %v2294 = vand.u32 %v323, 4294901760
      %v2295 = vsub.f32 %v323, %v2294
      %v2296 = vand.u32 %v2295, 4294901760
      %2297 = vmatmul.mubr.f32.gmra.mrb[0].mxu0 %v2296
      %v2298 = vpop.f32.mrb[0].mxu0
      %v2299 = vadd.f32 %v1777, %v2298
      %v2300 = vpop.f32.mrb[0].mxu0
      %2301 = vmatprep.mubr.f32.mxu0 0.0
      %v2302 = vand.u32 %v326, 4294901760
      %v2303 = vsub.f32 %v326, %v2302
      %v2304 = vand.u32 %v2303, 4294901760
      %2305 = vmatmul.mubr.f32.gmra.mrb[0].mxu0 %v2304
      %v2306 = vpop.f32.mrb[0].mxu0
      %v2307 = vadd.f32 %v1784, %v2306
      %v2308 = vpop.f32.mrb[0].mxu0
      %2309 = vmatprep.mubr.f32.mxu0 0.0
      %v2310 = vand.u32 %v329, 4294901760
      %v2311 = vsub.f32 %v329, %v2310
      %v2312 = vand.u32 %v2311, 4294901760
      %2313 = vmatmul.mubr.f32.gmra.mrb[0].mxu0 %v2312
      %v2314 = vpop.f32.mrb[0].mxu0
      %v2315 = vadd.f32 %v1791, %v2314
      %v2316 = vpop.f32.mrb[0].mxu0
      %2317 = vmatprep.mubr.f32.mxu0 0.0
      %v2318 = vand.u32 %v332, 4294901760
      %v2319 = vsub.f32 %v332, %v2318
      %v2320 = vand.u32 %v2319, 4294901760
      %2321 = vmatmul.mubr.f32.gmra.mrb[0].mxu0 %v2320
      %v2322 = vpop.f32.mrb[0].mxu0
      %v2323 = vadd.f32 %v1798, %v2322
      %v2324 = vpop.f32.mrb[0].mxu0
      %2325 = vmatprep.mubr.f32.mxu0 0.0
      %v2326 = vand.u32 %v335, 4294901760
      %v2327 = vsub.f32 %v335, %v2326
      %v2328 = vand.u32 %v2327, 4294901760
      %2329 = vmatmul.mubr.f32.gmra.mrb[0].mxu0 %v2328
      %v2330 = vpop.f32.mrb[0].mxu0
      %v2331 = vadd.f32 %v1805, %v2330
      %v2332 = vpop.f32.mrb[0].mxu0
      %2333 = vmatprep.mubr.f32.mxu0 0.0
      %v2334 = vand.u32 %v338, 4294901760
      %v2335 = vsub.f32 %v338, %v2334
      %v2336 = vand.u32 %v2335, 4294901760
      %2337 = vmatmul.mubr.f32.gmra.mrb[0].mxu0 %v2336
      %v2338 = vpop.f32.mrb[0].mxu0
      %v2339 = vadd.f32 %v1812, %v2338
      %v2340 = vpop.f32.mrb[0].mxu0
      %2341 = vmatprep.mubr.f32.mxu0 0.0
      %v2342 = vand.u32 %v341, 4294901760
      %v2343 = vsub.f32 %v341, %v2342
      %v2344 = vand.u32 %v2343, 4294901760
      %2345 = vmatmul.mubr.f32.gmra.mrb[0].mxu0 %v2344
      %v2346 = vpop.f32.mrb[0].mxu0
      %v2347 = vadd.f32 %v1819, %v2346
      %v2348 = vpop.f32.mrb[0].mxu0
      %2349 = vmatprep.mubr.f32.mxu0 0.0
      %v2350 = vand.u32 %v344, 4294901760
      %v2351 = vsub.f32 %v344, %v2350
      %v2352 = vand.u32 %v2351, 4294901760
      %2353 = vmatmul.mubr.f32.gmra.mrb[0].mxu0 %v2352
      %v2354 = vpop.f32.mrb[0].mxu0
      %v2355 = vadd.f32 %v1826, %v2354
      %v2356 = vpop.f32.mrb[0].mxu0
      %2357 = vmatprep.mubr.f32.mxu0 0.0
      %v2358 = vand.u32 %v347, 4294901760
      %v2359 = vsub.f32 %v347, %v2358
      %v2360 = vand.u32 %v2359, 4294901760
      %2361 = vmatmul.mubr.f32.gmra.mrb[0].mxu0 %v2360
      %v2362 = vpop.f32.mrb[0].mxu0
      %v2363 = vadd.f32 %v1833, %v2362
      %v2364 = vpop.f32.mrb[0].mxu0
      %2365 = vmatprep.mubr.f32.mxu0 0.0
      %v2366 = vand.u32 %v350, 4294901760
      %v2367 = vsub.f32 %v350, %v2366
      %v2368 = vand.u32 %v2367, 4294901760
      %2369 = vmatmul.mubr.f32.gmra.mrb[0].mxu0 %v2368
      %v2370 = vpop.f32.mrb[0].mxu0
      %v2371 = vadd.f32 %v1840, %v2370
      %v2372 = vpop.f32.mrb[0].mxu0
      %2373 = vmatprep.mubr.f32.mxu0 0.0
      %v2374 = vand.u32 %v353, 4294901760
      %v2375 = vsub.f32 %v353, %v2374
      %v2376 = vand.u32 %v2375, 4294901760
      %2377 = vmatmul.mubr.f32.gmra.mrb[0].mxu0 %v2376
      %v2378 = vpop.f32.mrb[0].mxu0
      %v2379 = vadd.f32 %v1847, %v2378
      %v2380 = vpop.f32.mrb[0].mxu0
      %2381 = vmatprep.mubr.f32.mxu0 0.0
      %v2382 = vand.u32 %v356, 4294901760
      %v2383 = vsub.f32 %v356, %v2382
      %v2384 = vand.u32 %v2383, 4294901760
      %2385 = vmatmul.mubr.f32.gmra.mrb[0].mxu0 %v2384
      %v2386 = vpop.f32.mrb[0].mxu0
      %v2387 = vadd.f32 %v1854, %v2386
      %v2388 = vpop.f32.mrb[0].mxu0
      %2389 = vmatprep.mubr.f32.mxu0 0.0
      %v2390 = vand.u32 %v359, 4294901760
      %v2391 = vsub.f32 %v359, %v2390
      %v2392 = vand.u32 %v2391, 4294901760
      %2393 = vmatmul.mubr.f32.gmra.mrb[0].mxu0 %v2392
      %v2394 = vpop.f32.mrb[0].mxu0
      %v2395 = vadd.f32 %v1861, %v2394
      %v2396 = vpop.f32.mrb[0].mxu0
      %2397 = vmatprep.mubr.f32.mxu0 0.0
      %v2398 = vand.u32 %v362, 4294901760
      %v2399 = vsub.f32 %v362, %v2398
      %v2400 = vand.u32 %v2399, 4294901760
      %2401 = vmatmul.mubr.f32.gmra.mrb[0].mxu0 %v2400
      %v2402 = vpop.f32.mrb[0].mxu0
      %v2403 = vadd.f32 %v1868, %v2402
      %v2404 = vpop.f32.mrb[0].mxu0
      %2405 = vmatprep.mubr.f32.mxu0 0.0
      %v2406 = vand.u32 %v365, 4294901760
      %v2407 = vsub.f32 %v365, %v2406
      %v2408 = vand.u32 %v2407, 4294901760
      %2409 = vmatmul.mubr.f32.gmra.mrb[0].mxu0 %v2408
      %v2410 = vpop.f32.mrb[0].mxu0
      %v2411 = vadd.f32 %v1875, %v2410
      %v2412 = vpop.f32.mrb[0].mxu0
      %2413 = vmatprep.mubr.f32.mxu0 0.0
      %v2414 = vand.u32 %v368, 4294901760
      %v2415 = vsub.f32 %v368, %v2414
      %v2416 = vand.u32 %v2415, 4294901760
      %2417 = vmatmul.mubr.f32.gmra.mrb[0].mxu0 %v2416
      %v2418 = vpop.f32.mrb[0].mxu0
      %v2419 = vadd.f32 %v1882, %v2418
      %v2420 = vpop.f32.mrb[0].mxu0
      %2421 = vmatprep.mubr.f32.mxu0 0.0
      %v2422 = vand.u32 %v371, 4294901760
      %v2423 = vsub.f32 %v371, %v2422
      %v2424 = vand.u32 %v2423, 4294901760
      %2425 = vmatmul.mubr.f32.gmra.mrb[0].mxu0 %v2424
      %v2426 = vpop.f32.mrb[0].mxu0
      %v2427 = vadd.f32 %v1889, %v2426
      %v2428 = vpop.f32.mrb[0].mxu0
      %2429 = vmatprep.mubr.f32.mxu0 0.0
      %v2430 = vand.u32 %v374, 4294901760
      %v2431 = vsub.f32 %v374, %v2430
      %v2432 = vand.u32 %v2431, 4294901760
      %2433 = vmatmul.mubr.f32.gmra.mrb[0].mxu0 %v2432
      %v2434 = vpop.f32.mrb[0].mxu0
      %v2435 = vadd.f32 %v1896, %v2434
      %v2436 = vpop.f32.mrb[0].mxu0
      %2437 = vmatprep.mubr.f32.mxu0 0.0
      %v2438 = vand.u32 %v377, 4294901760
      %v2439 = vsub.f32 %v377, %v2438
      %v2440 = vand.u32 %v2439, 4294901760
      %2441 = vmatmul.mubr.f32.gmra.mrb[0].mxu0 %v2440
      %v2442 = vpop.f32.mrb[0].mxu0
      %v2443 = vadd.f32 %v1903, %v2442
      %v2444 = vpop.f32.mrb[0].mxu0
      %2445 = vmatprep.mubr.f32.mxu0 0.0
      %v2446 = vand.u32 %v380, 4294901760
      %v2447 = vsub.f32 %v380, %v2446
      %v2448 = vand.u32 %v2447, 4294901760
      %2449 = vmatmul.mubr.f32.gmra.mrb[0].mxu0 %v2448
      %v2450 = vpop.f32.mrb[0].mxu0
      %v2451 = vadd.f32 %v1910, %v2450
      %v2452 = vpop.f32.mrb[0].mxu0
      %2453 = vmatprep.mubr.f32.mxu0 0.0
      %v2454 = vand.u32 %v383, 4294901760
      %v2455 = vsub.f32 %v383, %v2454
      %v2456 = vand.u32 %v2455, 4294901760
      %2457 = vmatmul.mubr.f32.gmra.mrb[0].mxu0 %v2456
      %v2458 = vpop.f32.mrb[0].mxu0
      %v2459 = vadd.f32 %v1917, %v2458
      %v2460 = vpop.f32.mrb[0].mxu0
      %2461 = vmatprep.mubr.f32.mxu0 0.0
      %v2462 = vand.u32 %v386, 4294901760
      %v2463 = vsub.f32 %v386, %v2462
      %v2464 = vand.u32 %v2463, 4294901760
      %2465 = vmatmul.mubr.f32.gmra.mrb[0].mxu0 %v2464
      %v2466 = vpop.f32.mrb[0].mxu0
      %v2467 = vadd.f32 %v1924, %v2466
      %v2468 = vpop.f32.mrb[0].mxu0
      %2469 = vmatprep.mubr.f32.mxu0 0.0
      %v2470 = vand.u32 %v389, 4294901760
      %v2471 = vsub.f32 %v389, %v2470
      %v2472 = vand.u32 %v2471, 4294901760
      %2473 = vmatmul.mubr.f32.gmra.mrb[0].mxu0 %v2472
      %v2474 = vpop.f32.mrb[0].mxu0
      %v2475 = vadd.f32 %v1931, %v2474
      %v2476 = vpop.f32.mrb[0].mxu0
      %2477 = vmatprep.mubr.f32.mxu0 0.0
      %v2478 = vand.u32 %v392, 4294901760
      %v2479 = vsub.f32 %v392, %v2478
      %v2480 = vand.u32 %v2479, 4294901760
      %2481 = vmatmul.mubr.f32.gmra.mrb[0].mxu0 %v2480
      %v2482 = vpop.f32.mrb[0].mxu0
      %v2483 = vadd.f32 %v1938, %v2482
      %v2484 = vpop.f32.mrb[0].mxu0
      %2485 = vmatprep.mubr.f32.mxu0 0.0
      %v2486 = vand.u32 %v395, 4294901760
      %v2487 = vsub.f32 %v395, %v2486
      %v2488 = vand.u32 %v2487, 4294901760
      %2489 = vmatmul.mubr.f32.gmra.mrb[0].mxu0 %v2488
      %v2490 = vpop.f32.mrb[0].mxu0
      %v2491 = vadd.f32 %v1945, %v2490
      %v2492 = vpop.f32.mrb[0].mxu0
      %2493 = vmatprep.mubr.f32.mxu0 0.0
      %v2494 = vand.u32 %v398, 4294901760
      %v2495 = vsub.f32 %v398, %v2494
      %v2496 = vand.u32 %v2495, 4294901760
      %2497 = vmatmul.mubr.f32.gmra.mrb[0].mxu0 %v2496
      %v2498 = vpop.f32.mrb[0].mxu0
      %v2499 = vadd.f32 %v1952, %v2498
      %v2500 = vpop.f32.mrb[0].mxu0
      %2501 = vmatprep.mubr.f32.mxu0 0.0
      %v2502 = vand.u32 %v401, 4294901760
      %v2503 = vsub.f32 %v401, %v2502
      %v2504 = vand.u32 %v2503, 4294901760
      %2505 = vmatmul.mubr.f32.gmra.mrb[0].mxu0 %v2504
      %v2506 = vpop.f32.mrb[0].mxu0
      %v2507 = vadd.f32 %v1959, %v2506
      %v2508 = vpop.f32.mrb[0].mxu0
      %2509 = vmatprep.mubr.f32.mxu0 0.0
      %v2510 = vand.u32 %v404, 4294901760
      %v2511 = vsub.f32 %v404, %v2510
      %v2512 = vand.u32 %v2511, 4294901760
      %2513 = vmatmul.mubr.f32.gmra.mrb[0].mxu0 %v2512
      %v2514 = vpop.f32.mrb[0].mxu0
      %v2515 = vadd.f32 %v1966, %v2514
      %v2516 = vpop.f32.mrb[0].mxu0
      %2517 = vmatprep.mubr.f32.mxu0 0.0
      %v2518 = vand.u32 %v407, 4294901760
      %v2519 = vsub.f32 %v407, %v2518
      %v2520 = vand.u32 %v2519, 4294901760
      %2521 = vmatmul.mubr.f32.gmra.mrb[0].mxu0 %v2520
      %v2522 = vpop.f32.mrb[0].mxu0
      %v2523 = vadd.f32 %v1973, %v2522
      %v2524 = vpop.f32.mrb[0].mxu0
      %2525 = vmatprep.mubr.f32.mxu0 0.0
      %v2526 = vand.u32 %v410, 4294901760
      %v2527 = vsub.f32 %v410, %v2526
      %v2528 = vand.u32 %v2527, 4294901760
      %2529 = vmatmul.mubr.f32.gmra.mrb[0].mxu0 %v2528
      %v2530 = vpop.f32.mrb[0].mxu0
      %v2531 = vadd.f32 %v1980, %v2530
      %v2532 = vpop.f32.mrb[0].mxu0
      %2533 = vmatprep.mubr.f32.mxu0 0.0
      %v2534 = vand.u32 %v413, 4294901760
      %v2535 = vsub.f32 %v413, %v2534
      %v2536 = vand.u32 %v2535, 4294901760
      %2537 = vmatmul.mubr.f32.gmra.mrb[0].mxu0 %v2536
      %v2538 = vpop.f32.mrb[0].mxu0
      %v2539 = vadd.f32 %v1987, %v2538
      %v2540 = vpop.f32.mrb[0].mxu0
      %2541 = vmatprep.mubr.f32.mxu0 0.0
      %v2542 = vand.u32 %v416, 4294901760
      %v2543 = vsub.f32 %v416, %v2542
      %v2544 = vand.u32 %v2543, 4294901760
      %2545 = vmatmul.mubr.f32.gmra.mrb[0].mxu0 %v2544
      %v2546 = vpop.f32.mrb[0].mxu0
      %v2547 = vadd.f32 %v1994, %v2546
      %v2548 = vpop.f32.mrb[0].mxu0
      %2549 = vmatprep.mubr.f32.mxu0 0.0
      %v2550 = vand.u32 %v419, 4294901760
      %v2551 = vsub.f32 %v419, %v2550
      %v2552 = vand.u32 %v2551, 4294901760
      %2553 = vmatmul.mubr.f32.gmra.mrb[0].mxu0 %v2552
      %v2554 = vpop.f32.mrb[0].mxu0
      %v2555 = vadd.f32 %v2001, %v2554
      %v2556 = vpop.f32.mrb[0].mxu0
      %2557 = vmatprep.mubr.f32.mxu0 0.0
      %v2558 = vand.u32 %v422, 4294901760
      %v2559 = vsub.f32 %v422, %v2558
      %v2560 = vand.u32 %v2559, 4294901760
      %2561 = vmatmul.mubr.f32.gmra.mrb[0].mxu0 %v2560
      %v2562 = vpop.f32.mrb[0].mxu0
      %v2563 = vadd.f32 %v2008, %v2562
      %v2564 = vpop.f32.mrb[0].mxu0
      %2565 = vmatprep.mubr.f32.mxu0 0.0
      %v2566 = vand.u32 %v425, 4294901760
      %v2567 = vsub.f32 %v425, %v2566
      %v2568 = vand.u32 %v2567, 4294901760
      %2569 = vmatmul.mubr.f32.gmra.mrb[0].mxu0 %v2568
      %v2570 = vpop.f32.mrb[0].mxu0
      %v2571 = vadd.f32 %v2015, %v2570
      %v2572 = vpop.f32.mrb[0].mxu0
      %2573 = vmatprep.mubr.f32.mxu0 0.0
      %v2574 = vand.u32 %v428, 4294901760
      %v2575 = vsub.f32 %v428, %v2574
      %v2576 = vand.u32 %v2575, 4294901760
      %2577 = vmatmul.mubr.f32.gmra.mrb[0].mxu0 %v2576
      %v2578 = vpop.f32.mrb[0].mxu0
      %v2579 = vadd.f32 %v2022, %v2578
      %v2580 = vpop.f32.mrb[0].mxu0
      %2581 = vmatprep.mubr.f32.mxu0 0.0
      %v2582 = vand.u32 %v431, 4294901760
      %v2583 = vsub.f32 %v431, %v2582
      %v2584 = vand.u32 %v2583, 4294901760
      %2585 = vmatmul.mubr.f32.gmra.mrb[0].mxu0 %v2584
      %v2586 = vpop.f32.mrb[0].mxu0
      %v2587 = vadd.f32 %v2029, %v2586
      %v2588 = vpop.f32.mrb[0].mxu0
      %2589 = vmatprep.mubr.f32.mxu0 0.0
      %v2590 = vand.u32 %v434, 4294901760
      %v2591 = vsub.f32 %v434, %v2590
      %v2592 = vand.u32 %v2591, 4294901760
      %2593 = vmatmul.mubr.f32.gmra.mrb[0].mxu0 %v2592
      %v2594 = vpop.f32.mrb[0].mxu0
      %v2595 = vadd.f32 %v2036, %v2594
      %v2596 = vpop.f32.mrb[0].mxu0
      %2597 = vmatprep.mubr.f32.mxu0 0.0
      %v2598 = vand.u32 %v437, 4294901760
      %v2599 = vsub.f32 %v437, %v2598
      %v2600 = vand.u32 %v2599, 4294901760
      %2601 = vmatmul.mubr.f32.gmra.mrb[0].mxu0 %v2600
      %v2602 = vpop.f32.mrb[0].mxu0
      %v2603 = vadd.f32 %v2043, %v2602
      %v2604 = vpop.f32.mrb[0].mxu0
      %2605 = vmatprep.mubr.f32.mxu0 0.0
      %v2606 = vand.u32 %v440, 4294901760
      %v2607 = vsub.f32 %v440, %v2606
      %v2608 = vand.u32 %v2607, 4294901760
      %2609 = vmatmul.mubr.f32.gmra.mrb[0].mxu0 %v2608
      %v2610 = vpop.f32.mrb[0].mxu0
      %v2611 = vadd.f32 %v2050, %v2610
      %v2612 = vpop.f32.mrb[0].mxu0
      %2613 = vmatprep.mubr.f32.mxu0 0.0
      %v2614 = vand.u32 %v443, 4294901760
      %v2615 = vsub.f32 %v443, %v2614
      %v2616 = vand.u32 %v2615, 4294901760
      %2617 = vmatmul.mubr.f32.gmra.mrb[0].mxu0 %v2616
      %v2618 = vpop.f32.mrb[0].mxu0
      %v2619 = vadd.f32 %v2057, %v2618
      %v2620 = vpop.f32.mrb[0].mxu0
      %2621 = vmatprep.mubr.f32.mxu0 0.0
      %v2622 = vand.u32 %v446, 4294901760
      %v2623 = vsub.f32 %v446, %v2622
      %v2624 = vand.u32 %v2623, 4294901760
      %2625 = vmatmul.mubr.f32.gmra.mrb[0].mxu0 %v2624
      %v2626 = vpop.f32.mrb[0].mxu0
      %v2627 = vadd.f32 %v2064, %v2626
      %v2628 = vpop.f32.mrb[0].mxu0
      %2629 = vmatprep.mubr.f32.mxu0 0.0
      %v2630 = vand.u32 %v449, 4294901760
      %v2631 = vsub.f32 %v449, %v2630
      %v2632 = vand.u32 %v2631, 4294901760
      %2633 = vmatmul.mubr.f32.gmra.mrb[0].mxu0 %v2632
      %v2634 = vpop.f32.mrb[0].mxu0
      %v2635 = vadd.f32 %v2071, %v2634
      %v2636 = vpop.f32.mrb[0].mxu0
      %2637 = vmatprep.mubr.f32.mxu0 0.0
      %v2638 = vand.u32 %v452, 4294901760
      %v2639 = vsub.f32 %v452, %v2638
      %v2640 = vand.u32 %v2639, 4294901760
      %2641 = vmatmul.mubr.f32.gmra.mrb[0].mxu0 %v2640
      %v2642 = vpop.f32.mrb[0].mxu0
      %v2643 = vadd.f32 %v2078, %v2642
      %v2644 = vpop.f32.mrb[0].mxu0
      %2645 = vmatprep.mubr.f32.mxu0 0.0
      %v2646 = vand.u32 %v455, 4294901760
      %v2647 = vsub.f32 %v455, %v2646
      %v2648 = vand.u32 %v2647, 4294901760
      %2649 = vmatmul.mubr.f32.gmra.mrb[0].mxu0 %v2648
      %v2650 = vpop.f32.mrb[0].mxu0
      %v2651 = vadd.f32 %v2085, %v2650
      %v2652 = vpop.f32.mrb[0].mxu0
      %2653 = vmatprep.mubr.f32.mxu0 0.0
      %v2654 = vand.u32 %v458, 4294901760
      %v2655 = vsub.f32 %v458, %v2654
      %v2656 = vand.u32 %v2655, 4294901760
      %2657 = vmatmul.mubr.f32.gmra.mrb[0].mxu0 %v2656
      %v2658 = vpop.f32.mrb[0].mxu0
      %v2659 = vadd.f32 %v2092, %v2658
      %v2660 = vpop.f32.mrb[0].mxu0
      %2661 = vmatprep.mubr.f32.mxu0 0.0
      %v2662 = vand.u32 %v461, 4294901760
      %v2663 = vsub.f32 %v461, %v2662
      %v2664 = vand.u32 %v2663, 4294901760
      %2665 = vmatmul.mubr.f32.gmra.mrb[0].mxu0 %v2664
      %v2666 = vpop.f32.mrb[0].mxu0
      %v2667 = vadd.f32 %v2099, %v2666
      %v2668 = vpop.f32.mrb[0].mxu0
      %2669 = vmatprep.mubr.f32.mxu0 0.0
      %v2670 = vand.u32 %v464, 4294901760
      %v2671 = vsub.f32 %v464, %v2670
      %v2672 = vand.u32 %v2671, 4294901760
      %2673 = vmatmul.mubr.f32.gmra.mrb[0].mxu0 %v2672
      %v2674 = vpop.f32.mrb[0].mxu0
      %v2675 = vadd.f32 %v2106, %v2674
      %v2676 = vpop.f32.mrb[0].mxu0
      %2677 = vmatprep.mubr.f32.mxu0 0.0
      %v2678 = vand.u32 %v467, 4294901760
      %v2679 = vsub.f32 %v467, %v2678
      %v2680 = vand.u32 %v2679, 4294901760
      %2681 = vmatmul.mubr.f32.gmra.mrb[0].mxu0 %v2680
      %v2682 = vpop.f32.mrb[0].mxu0
      %v2683 = vadd.f32 %v2113, %v2682
      %v2684 = vpop.f32.mrb[0].mxu0
      %2685 = vmatprep.mubr.f32.mxu0 0.0
      %v2686 = vand.u32 %v470, 4294901760
      %v2687 = vsub.f32 %v470, %v2686
      %v2688 = vand.u32 %v2687, 4294901760
      %2689 = vmatmul.mubr.f32.gmra.mrb[0].mxu0 %v2688
      %v2690 = vpop.f32.mrb[0].mxu0
      %v2691 = vadd.f32 %v2120, %v2690
      %v2692 = vpop.f32.mrb[0].mxu0
      %2693 = vmatprep.mubr.f32.mxu0 0.0
      %v2694 = vand.u32 %v473, 4294901760
      %v2695 = vsub.f32 %v473, %v2694
      %v2696 = vand.u32 %v2695, 4294901760
      %2697 = vmatmul.mubr.f32.gmra.mrb[0].mxu0 %v2696
      %v2698 = vpop.f32.mrb[0].mxu0
      %v2699 = vadd.f32 %v2127, %v2698
      %v2700 = vpop.f32.mrb[0].mxu0
      %2701 = vmatprep.mubr.f32.mxu0 0.0
      %v2702 = vand.u32 %v476, 4294901760
      %v2703 = vsub.f32 %v476, %v2702
      %v2704 = vand.u32 %v2703, 4294901760
      %2705 = vmatmul.mubr.f32.gmra.mrb[0].mxu0 %v2704
      %v2706 = vpop.f32.mrb[0].mxu0
      %v2707 = vadd.f32 %v2134, %v2706
      %v2708 = vpop.f32.mrb[0].mxu0
      %2709 = vmatprep.mubr.f32.mxu0 0.0
      %v2710 = vand.u32 %v479, 4294901760
      %v2711 = vsub.f32 %v479, %v2710
      %v2712 = vand.u32 %v2711, 4294901760
      %2713 = vmatmul.mubr.f32.gmra.mrb[0].mxu0 %v2712
      %v2714 = vpop.f32.mrb[0].mxu0
      %v2715 = vadd.f32 %v2141, %v2714
      %v2716 = vpop.f32.mrb[0].mxu0
      %2717 = vmatprep.mubr.f32.mxu0 0.0
      %v2718 = vand.u32 %v482, 4294901760
      %v2719 = vsub.f32 %v482, %v2718
      %v2720 = vand.u32 %v2719, 4294901760
      %2721 = vmatmul.mubr.f32.gmra.mrb[0].mxu0 %v2720
      %v2722 = vpop.f32.mrb[0].mxu0
      %v2723 = vadd.f32 %v2148, %v2722
      %v2724 = vpop.f32.mrb[0].mxu0
      %2725 = vmatprep.mubr.f32.mxu0 0.0
      %v2726 = vand.u32 %v485, 4294901760
      %v2727 = vsub.f32 %v485, %v2726
      %v2728 = vand.u32 %v2727, 4294901760
      %2729 = vmatmul.mubr.f32.gmra.mrb[0].mxu0 %v2728
      %v2730 = vpop.f32.mrb[0].mxu0
      %v2731 = vadd.f32 %v2155, %v2730
      %v2732 = vpop.f32.mrb[0].mxu0
      %2733 = vmatprep.mubr.f32.mxu0 0.0
      %v2734 = vand.u32 %v488, 4294901760
      %v2735 = vsub.f32 %v488, %v2734
      %v2736 = vand.u32 %v2735, 4294901760
      %2737 = vmatmul.mubr.f32.gmra.mrb[0].mxu0 %v2736
      %v2738 = vpop.f32.mrb[0].mxu0
      %v2739 = vadd.f32 %v2162, %v2738
      %v2740 = vpop.f32.mrb[0].mxu0
      %2741 = vmatprep.mubr.f32.mxu0 0.0
      %v2742 = vand.u32 %v491, 4294901760
      %v2743 = vsub.f32 %v491, %v2742
      %v2744 = vand.u32 %v2743, 4294901760
      %2745 = vmatmul.mubr.f32.gmra.mrb[0].mxu0 %v2744
      %v2746 = vpop.f32.mrb[0].mxu0
      %v2747 = vadd.f32 %v2169, %v2746
      %v2748 = vpop.f32.mrb[0].mxu0
      %2749 = vdwg.mxu0
      %2750 = vmatprep.subr.mxu0 0.0
      %v2751 = vand.u32 %v495, 4294901760
      %v2752 = vsub.f32 %v495, %v2751
      %v2753 = vand.u32 %v2752, 4294901760
      %2754 = vmatpush1.msra.mxu0 %v2753
      %2755 = vmatprep.subr.mxu0 0.0
      %2756 = vmatpush1.msra.mxu0 0.0
      %2757 = vmatprep.subr.mxu0 0.0
      %2758 = vmatpush1.msra.mxu0 0.0
      %2759 = vmatprep.subr.mxu0 0.0
      %2760 = vmatpush1.msra.mxu0 0.0
      %2761 = vmatprep.subr.mxu0 0.0
      %2762 = vmatpush1.msra.mxu0 0.0
      %2763 = vmatprep.subr.mxu0 0.0
      %2764 = vmatpush1.msra.mxu0 0.0
      %2765 = vmatprep.subr.mxu0 0.0
      %2766 = vmatpush1.msra.mxu0 0.0
      %2767 = vmatprep.subr.mxu0 0.0
      %2768 = vmatpush1.msra.mxu0 0.0
      %2769 = vmatprep.subr.mxu0 0.0
      %2770 = vmatpush1.msra.mxu0 0.0
      %2771 = vmatprep.subr.mxu0 0.0
      %2772 = vmatpush1.msra.mxu0 0.0
      %2773 = vmatprep.subr.mxu0 0.0
      %2774 = vmatpush1.msra.mxu0 0.0
      %2775 = vmatprep.subr.mxu0 0.0
      %2776 = vmatpush1.msra.mxu0 0.0
      %2777 = vmatprep.subr.mxu0 0.0
      %2778 = vmatpush1.msra.mxu0 0.0
      %2779 = vmatprep.subr.mxu0 0.0
      %2780 = vmatpush1.msra.mxu0 0.0
      %2781 = vmatprep.subr.mxu0 0.0
      %2782 = vmatpush1.msra.mxu0 0.0
      %2783 = vmatprep.subr.mxu0 0.0
      %2784 = vmatpush1.msra.mxu0 0.0
      %2785 = vmatprep.subr.mxu0 0.0
      %2786 = vmatpush1.msra.mxu0 0.0
      %2787 = vmatprep.subr.mxu0 0.0
      %2788 = vmatpush1.msra.mxu0 0.0
      %2789 = vmatprep.subr.mxu0 0.0
      %2790 = vmatpush1.msra.mxu0 0.0
      %2791 = vmatprep.subr.mxu0 0.0
      %2792 = vmatpush1.msra.mxu0 0.0
      %2793 = vmatprep.subr.mxu0 0.0
      %2794 = vmatpush1.msra.mxu0 0.0
      %2795 = vmatprep.subr.mxu0 0.0
      %2796 = vmatpush1.msra.mxu0 0.0
      %2797 = vmatprep.subr.mxu0 0.0
      %2798 = vmatpush1.msra.mxu0 0.0
      %2799 = vmatprep.subr.mxu0 0.0
      %2800 = vmatpush1.msra.mxu0 0.0
      %2801 = vmatprep.subr.mxu0 0.0
      %2802 = vmatpush1.msra.mxu0 0.0
      %2803 = vmatprep.subr.mxu0 0.0
      %2804 = vmatpush1.msra.mxu0 0.0
      %2805 = vmatprep.subr.mxu0 0.0
      %2806 = vmatpush1.msra.mxu0 0.0
      %2807 = vmatprep.subr.mxu0 0.0
      %2808 = vmatpush1.msra.mxu0 0.0
      %2809 = vmatprep.subr.mxu0 0.0
      %2810 = vmatpush1.msra.mxu0 0.0
      %2811 = vmatprep.subr.mxu0 0.0
      %2812 = vmatpush1.msra.mxu0 0.0
      %2813 = vmatprep.subr.mxu0 0.0
      %2814 = vmatpush1.msra.mxu0 0.0
      %2815 = vmatprep.subr.mxu0 0.0
      %2816 = vmatpush1.msra.mxu0 0.0
      %2817 = vmatprep.mubr.f32.mxu0 0.0
      %v2818 = vand.u32 %v302, 4294901760
      %2819 = vmatmul.mubr.f32.gmra.mrb[0].mxu0 %v2818
      %v2820 = vpop.f32.mrb[0].mxu0
      %v2821 = vadd.f32 %v2243, %v2820
      %v2822 = vpop.f32.mrb[0].mxu0
      %2823 = vmatprep.mubr.f32.mxu0 0.0
      %v2824 = vand.u32 %v305, 4294901760
      %2825 = vmatmul.mubr.f32.gmra.mrb[0].mxu0 %v2824
      %v2826 = vpop.f32.mrb[0].mxu0
      %v2827 = vadd.f32 %v2251, %v2826
      %v2828 = vpop.f32.mrb[0].mxu0
      %2829 = vmatprep.mubr.f32.mxu0 0.0
      %v2830 = vand.u32 %v308, 4294901760
      %2831 = vmatmul.mubr.f32.gmra.mrb[0].mxu0 %v2830
      %v2832 = vpop.f32.mrb[0].mxu0
      %v2833 = vadd.f32 %v2259, %v2832
      %v2834 = vpop.f32.mrb[0].mxu0
      %2835 = vmatprep.mubr.f32.mxu0 0.0
      %v2836 = vand.u32 %v311, 4294901760
      %2837 = vmatmul.mubr.f32.gmra.mrb[0].mxu0 %v2836
      %v2838 = vpop.f32.mrb[0].mxu0
      %v2839 = vadd.f32 %v2267, %v2838
      %v2840 = vpop.f32.mrb[0].mxu0
      %2841 = vmatprep.mubr.f32.mxu0 0.0
      %v2842 = vand.u32 %v314, 4294901760
      %2843 = vmatmul.mubr.f32.gmra.mrb[0].mxu0 %v2842
      %v2844 = vpop.f32.mrb[0].mxu0
      %v2845 = vadd.f32 %v2275, %v2844
      %v2846 = vpop.f32.mrb[0].mxu0
      %2847 = vmatprep.mubr.f32.mxu0 0.0
      %v2848 = vand.u32 %v317, 4294901760
      %2849 = vmatmul.mubr.f32.gmra.mrb[0].mxu0 %v2848
      %v2850 = vpop.f32.mrb[0].mxu0
      %v2851 = vadd.f32 %v2283, %v2850
      %v2852 = vpop.f32.mrb[0].mxu0
      %2853 = vmatprep.mubr.f32.mxu0 0.0
      %v2854 = vand.u32 %v320, 4294901760
      %2855 = vmatmul.mubr.f32.gmra.mrb[0].mxu0 %v2854
      %v2856 = vpop.f32.mrb[0].mxu0
      %v2857 = vadd.f32 %v2291, %v2856
      %v2858 = vpop.f32.mrb[0].mxu0
      %2859 = vmatprep.mubr.f32.mxu0 0.0
      %v2860 = vand.u32 %v323, 4294901760
      %2861 = vmatmul.mubr.f32.gmra.mrb[0].mxu0 %v2860
      %v2862 = vpop.f32.mrb[0].mxu0
      %v2863 = vadd.f32 %v2299, %v2862
      %v2864 = vpop.f32.mrb[0].mxu0
      %2865 = vmatprep.mubr.f32.mxu0 0.0
      %v2866 = vand.u32 %v326, 4294901760
      %2867 = vmatmul.mubr.f32.gmra.mrb[0].mxu0 %v2866
      %v2868 = vpop.f32.mrb[0].mxu0
      %v2869 = vadd.f32 %v2307, %v2868
      %v2870 = vpop.f32.mrb[0].mxu0
      %2871 = vmatprep.mubr.f32.mxu0 0.0
      %v2872 = vand.u32 %v329, 4294901760
      %2873 = vmatmul.mubr.f32.gmra.mrb[0].mxu0 %v2872
      %v2874 = vpop.f32.mrb[0].mxu0
      %v2875 = vadd.f32 %v2315, %v2874
      %v2876 = vpop.f32.mrb[0].mxu0
      %2877 = vmatprep.mubr.f32.mxu0 0.0
      %v2878 = vand.u32 %v332, 4294901760
      %2879 = vmatmul.mubr.f32.gmra.mrb[0].mxu0 %v2878
      %v2880 = vpop.f32.mrb[0].mxu0
      %v2881 = vadd.f32 %v2323, %v2880
      %v2882 = vpop.f32.mrb[0].mxu0
      %2883 = vmatprep.mubr.f32.mxu0 0.0
      %v2884 = vand.u32 %v335, 4294901760
      %2885 = vmatmul.mubr.f32.gmra.mrb[0].mxu0 %v2884
      %v2886 = vpop.f32.mrb[0].mxu0
      %v2887 = vadd.f32 %v2331, %v2886
      %v2888 = vpop.f32.mrb[0].mxu0
      %2889 = vmatprep.mubr.f32.mxu0 0.0
      %v2890 = vand.u32 %v338, 4294901760
      %2891 = vmatmul.mubr.f32.gmra.mrb[0].mxu0 %v2890
      %v2892 = vpop.f32.mrb[0].mxu0
      %v2893 = vadd.f32 %v2339, %v2892
      %v2894 = vpop.f32.mrb[0].mxu0
      %2895 = vmatprep.mubr.f32.mxu0 0.0
      %v2896 = vand.u32 %v341, 4294901760
      %2897 = vmatmul.mubr.f32.gmra.mrb[0].mxu0 %v2896
      %v2898 = vpop.f32.mrb[0].mxu0
      %v2899 = vadd.f32 %v2347, %v2898
      %v2900 = vpop.f32.mrb[0].mxu0
      %2901 = vmatprep.mubr.f32.mxu0 0.0
      %v2902 = vand.u32 %v344, 4294901760
      %2903 = vmatmul.mubr.f32.gmra.mrb[0].mxu0 %v2902
      %v2904 = vpop.f32.mrb[0].mxu0
      %v2905 = vadd.f32 %v2355, %v2904
      %v2906 = vpop.f32.mrb[0].mxu0
      %2907 = vmatprep.mubr.f32.mxu0 0.0
      %v2908 = vand.u32 %v347, 4294901760
      %2909 = vmatmul.mubr.f32.gmra.mrb[0].mxu0 %v2908
      %v2910 = vpop.f32.mrb[0].mxu0
      %v2911 = vadd.f32 %v2363, %v2910
      %v2912 = vpop.f32.mrb[0].mxu0
      %2913 = vmatprep.mubr.f32.mxu0 0.0
      %v2914 = vand.u32 %v350, 4294901760
      %2915 = vmatmul.mubr.f32.gmra.mrb[0].mxu0 %v2914
      %v2916 = vpop.f32.mrb[0].mxu0
      %v2917 = vadd.f32 %v2371, %v2916
      %v2918 = vpop.f32.mrb[0].mxu0
      %2919 = vmatprep.mubr.f32.mxu0 0.0
      %v2920 = vand.u32 %v353, 4294901760
      %2921 = vmatmul.mubr.f32.gmra.mrb[0].mxu0 %v2920
      %v2922 = vpop.f32.mrb[0].mxu0
      %v2923 = vadd.f32 %v2379, %v2922
      %v2924 = vpop.f32.mrb[0].mxu0
      %2925 = vmatprep.mubr.f32.mxu0 0.0
      %v2926 = vand.u32 %v356, 4294901760
      %2927 = vmatmul.mubr.f32.gmra.mrb[0].mxu0 %v2926
      %v2928 = vpop.f32.mrb[0].mxu0
      %v2929 = vadd.f32 %v2387, %v2928
      %v2930 = vpop.f32.mrb[0].mxu0
      %2931 = vmatprep.mubr.f32.mxu0 0.0
      %v2932 = vand.u32 %v359, 4294901760
      %2933 = vmatmul.mubr.f32.gmra.mrb[0].mxu0 %v2932
      %v2934 = vpop.f32.mrb[0].mxu0
      %v2935 = vadd.f32 %v2395, %v2934
      %v2936 = vpop.f32.mrb[0].mxu0
      %2937 = vmatprep.mubr.f32.mxu0 0.0
      %v2938 = vand.u32 %v362, 4294901760
      %2939 = vmatmul.mubr.f32.gmra.mrb[0].mxu0 %v2938
      %v2940 = vpop.f32.mrb[0].mxu0
      %v2941 = vadd.f32 %v2403, %v2940
      %v2942 = vpop.f32.mrb[0].mxu0
      %2943 = vmatprep.mubr.f32.mxu0 0.0
      %v2944 = vand.u32 %v365, 4294901760
      %2945 = vmatmul.mubr.f32.gmra.mrb[0].mxu0 %v2944
      %v2946 = vpop.f32.mrb[0].mxu0
      %v2947 = vadd.f32 %v2411, %v2946
      %v2948 = vpop.f32.mrb[0].mxu0
      %2949 = vmatprep.mubr.f32.mxu0 0.0
      %v2950 = vand.u32 %v368, 4294901760
      %2951 = vmatmul.mubr.f32.gmra.mrb[0].mxu0 %v2950
      %v2952 = vpop.f32.mrb[0].mxu0
      %v2953 = vadd.f32 %v2419, %v2952
      %v2954 = vpop.f32.mrb[0].mxu0
      %2955 = vmatprep.mubr.f32.mxu0 0.0
      %v2956 = vand.u32 %v371, 4294901760
      %2957 = vmatmul.mubr.f32.gmra.mrb[0].mxu0 %v2956
      %v2958 = vpop.f32.mrb[0].mxu0
      %v2959 = vadd.f32 %v2427, %v2958
      %v2960 = vpop.f32.mrb[0].mxu0
      %2961 = vmatprep.mubr.f32.mxu0 0.0
      %v2962 = vand.u32 %v374, 4294901760
      %2963 = vmatmul.mubr.f32.gmra.mrb[0].mxu0 %v2962
      %v2964 = vpop.f32.mrb[0].mxu0
      %v2965 = vadd.f32 %v2435, %v2964
      %v2966 = vpop.f32.mrb[0].mxu0
      %2967 = vmatprep.mubr.f32.mxu0 0.0
      %v2968 = vand.u32 %v377, 4294901760
      %2969 = vmatmul.mubr.f32.gmra.mrb[0].mxu0 %v2968
      %v2970 = vpop.f32.mrb[0].mxu0
      %v2971 = vadd.f32 %v2443, %v2970
      %v2972 = vpop.f32.mrb[0].mxu0
      %2973 = vmatprep.mubr.f32.mxu0 0.0
      %v2974 = vand.u32 %v380, 4294901760
      %2975 = vmatmul.mubr.f32.gmra.mrb[0].mxu0 %v2974
      %v2976 = vpop.f32.mrb[0].mxu0
      %v2977 = vadd.f32 %v2451, %v2976
      %v2978 = vpop.f32.mrb[0].mxu0
      %2979 = vmatprep.mubr.f32.mxu0 0.0
      %v2980 = vand.u32 %v383, 4294901760
      %2981 = vmatmul.mubr.f32.gmra.mrb[0].mxu0 %v2980
      %v2982 = vpop.f32.mrb[0].mxu0
      %v2983 = vadd.f32 %v2459, %v2982
      %v2984 = vpop.f32.mrb[0].mxu0
      %2985 = vmatprep.mubr.f32.mxu0 0.0
      %v2986 = vand.u32 %v386, 4294901760
      %2987 = vmatmul.mubr.f32.gmra.mrb[0].mxu0 %v2986
      %v2988 = vpop.f32.mrb[0].mxu0
      %v2989 = vadd.f32 %v2467, %v2988
      %v2990 = vpop.f32.mrb[0].mxu0
      %2991 = vmatprep.mubr.f32.mxu0 0.0
      %v2992 = vand.u32 %v389, 4294901760
      %2993 = vmatmul.mubr.f32.gmra.mrb[0].mxu0 %v2992
      %v2994 = vpop.f32.mrb[0].mxu0
      %v2995 = vadd.f32 %v2475, %v2994
      %v2996 = vpop.f32.mrb[0].mxu0
      %2997 = vmatprep.mubr.f32.mxu0 0.0
      %v2998 = vand.u32 %v392, 4294901760
      %2999 = vmatmul.mubr.f32.gmra.mrb[0].mxu0 %v2998
      %v3000 = vpop.f32.mrb[0].mxu0
      %v3001 = vadd.f32 %v2483, %v3000
      %v3002 = vpop.f32.mrb[0].mxu0
      %3003 = vmatprep.mubr.f32.mxu0 0.0
      %v3004 = vand.u32 %v395, 4294901760
      %3005 = vmatmul.mubr.f32.gmra.mrb[0].mxu0 %v3004
      %v3006 = vpop.f32.mrb[0].mxu0
      %v3007 = vadd.f32 %v2491, %v3006
      %v3008 = vpop.f32.mrb[0].mxu0
      %3009 = vmatprep.mubr.f32.mxu0 0.0
      %v3010 = vand.u32 %v398, 4294901760
      %3011 = vmatmul.mubr.f32.gmra.mrb[0].mxu0 %v3010
      %v3012 = vpop.f32.mrb[0].mxu0
      %v3013 = vadd.f32 %v2499, %v3012
      %v3014 = vpop.f32.mrb[0].mxu0
      %3015 = vmatprep.mubr.f32.mxu0 0.0
      %v3016 = vand.u32 %v401, 4294901760
      %3017 = vmatmul.mubr.f32.gmra.mrb[0].mxu0 %v3016
      %v3018 = vpop.f32.mrb[0].mxu0
      %v3019 = vadd.f32 %v2507, %v3018
      %v3020 = vpop.f32.mrb[0].mxu0
      %3021 = vmatprep.mubr.f32.mxu0 0.0
      %v3022 = vand.u32 %v404, 4294901760
      %3023 = vmatmul.mubr.f32.gmra.mrb[0].mxu0 %v3022
      %v3024 = vpop.f32.mrb[0].mxu0
      %v3025 = vadd.f32 %v2515, %v3024
      %v3026 = vpop.f32.mrb[0].mxu0
      %3027 = vmatprep.mubr.f32.mxu0 0.0
      %v3028 = vand.u32 %v407, 4294901760
      %3029 = vmatmul.mubr.f32.gmra.mrb[0].mxu0 %v3028
      %v3030 = vpop.f32.mrb[0].mxu0
      %v3031 = vadd.f32 %v2523, %v3030
      %v3032 = vpop.f32.mrb[0].mxu0
      %3033 = vmatprep.mubr.f32.mxu0 0.0
      %v3034 = vand.u32 %v410, 4294901760
      %3035 = vmatmul.mubr.f32.gmra.mrb[0].mxu0 %v3034
      %v3036 = vpop.f32.mrb[0].mxu0
      %v3037 = vadd.f32 %v2531, %v3036
      %v3038 = vpop.f32.mrb[0].mxu0
      %3039 = vmatprep.mubr.f32.mxu0 0.0
      %v3040 = vand.u32 %v413, 4294901760
      %3041 = vmatmul.mubr.f32.gmra.mrb[0].mxu0 %v3040
      %v3042 = vpop.f32.mrb[0].mxu0
      %v3043 = vadd.f32 %v2539, %v3042
      %v3044 = vpop.f32.mrb[0].mxu0
      %3045 = vmatprep.mubr.f32.mxu0 0.0
      %v3046 = vand.u32 %v416, 4294901760
      %3047 = vmatmul.mubr.f32.gmra.mrb[0].mxu0 %v3046
      %v3048 = vpop.f32.mrb[0].mxu0
      %v3049 = vadd.f32 %v2547, %v3048
      %v3050 = vpop.f32.mrb[0].mxu0
      %3051 = vmatprep.mubr.f32.mxu0 0.0
      %v3052 = vand.u32 %v419, 4294901760
      %3053 = vmatmul.mubr.f32.gmra.mrb[0].mxu0 %v3052
      %v3054 = vpop.f32.mrb[0].mxu0
      %v3055 = vadd.f32 %v2555, %v3054
      %v3056 = vpop.f32.mrb[0].mxu0
      %3057 = vmatprep.mubr.f32.mxu0 0.0
      %v3058 = vand.u32 %v422, 4294901760
      %3059 = vmatmul.mubr.f32.gmra.mrb[0].mxu0 %v3058
      %v3060 = vpop.f32.mrb[0].mxu0
      %v3061 = vadd.f32 %v2563, %v3060
      %v3062 = vpop.f32.mrb[0].mxu0
      %3063 = vmatprep.mubr.f32.mxu0 0.0
      %v3064 = vand.u32 %v425, 4294901760
      %3065 = vmatmul.mubr.f32.gmra.mrb[0].mxu0 %v3064
      %v3066 = vpop.f32.mrb[0].mxu0
      %v3067 = vadd.f32 %v2571, %v3066
      %v3068 = vpop.f32.mrb[0].mxu0
      %3069 = vmatprep.mubr.f32.mxu0 0.0
      %v3070 = vand.u32 %v428, 4294901760
      %3071 = vmatmul.mubr.f32.gmra.mrb[0].mxu0 %v3070
      %v3072 = vpop.f32.mrb[0].mxu0
      %v3073 = vadd.f32 %v2579, %v3072
      %v3074 = vpop.f32.mrb[0].mxu0
      %3075 = vmatprep.mubr.f32.mxu0 0.0
      %v3076 = vand.u32 %v431, 4294901760
      %3077 = vmatmul.mubr.f32.gmra.mrb[0].mxu0 %v3076
      %v3078 = vpop.f32.mrb[0].mxu0
      %v3079 = vadd.f32 %v2587, %v3078
      %v3080 = vpop.f32.mrb[0].mxu0
      %3081 = vmatprep.mubr.f32.mxu0 0.0
      %v3082 = vand.u32 %v434, 4294901760
      %3083 = vmatmul.mubr.f32.gmra.mrb[0].mxu0 %v3082
      %v3084 = vpop.f32.mrb[0].mxu0
      %v3085 = vadd.f32 %v2595, %v3084
      %v3086 = vpop.f32.mrb[0].mxu0
      %3087 = vmatprep.mubr.f32.mxu0 0.0
      %v3088 = vand.u32 %v437, 4294901760
      %3089 = vmatmul.mubr.f32.gmra.mrb[0].mxu0 %v3088
      %v3090 = vpop.f32.mrb[0].mxu0
      %v3091 = vadd.f32 %v2603, %v3090
      %v3092 = vpop.f32.mrb[0].mxu0
      %3093 = vmatprep.mubr.f32.mxu0 0.0
      %v3094 = vand.u32 %v440, 4294901760
      %3095 = vmatmul.mubr.f32.gmra.mrb[0].mxu0 %v3094
      %v3096 = vpop.f32.mrb[0].mxu0
      %v3097 = vadd.f32 %v2611, %v3096
      %v3098 = vpop.f32.mrb[0].mxu0
      %3099 = vmatprep.mubr.f32.mxu0 0.0
      %v3100 = vand.u32 %v443, 4294901760
      %3101 = vmatmul.mubr.f32.gmra.mrb[0].mxu0 %v3100
      %v3102 = vpop.f32.mrb[0].mxu0
      %v3103 = vadd.f32 %v2619, %v3102
      %v3104 = vpop.f32.mrb[0].mxu0
      %3105 = vmatprep.mubr.f32.mxu0 0.0
      %v3106 = vand.u32 %v446, 4294901760
      %3107 = vmatmul.mubr.f32.gmra.mrb[0].mxu0 %v3106
      %v3108 = vpop.f32.mrb[0].mxu0
      %v3109 = vadd.f32 %v2627, %v3108
      %v3110 = vpop.f32.mrb[0].mxu0
      %3111 = vmatprep.mubr.f32.mxu0 0.0
      %v3112 = vand.u32 %v449, 4294901760
      %3113 = vmatmul.mubr.f32.gmra.mrb[0].mxu0 %v3112
      %v3114 = vpop.f32.mrb[0].mxu0
      %v3115 = vadd.f32 %v2635, %v3114
      %v3116 = vpop.f32.mrb[0].mxu0
      %3117 = vmatprep.mubr.f32.mxu0 0.0
      %v3118 = vand.u32 %v452, 4294901760
      %3119 = vmatmul.mubr.f32.gmra.mrb[0].mxu0 %v3118
      %v3120 = vpop.f32.mrb[0].mxu0
      %v3121 = vadd.f32 %v2643, %v3120
      %v3122 = vpop.f32.mrb[0].mxu0
      %3123 = vmatprep.mubr.f32.mxu0 0.0
      %v3124 = vand.u32 %v455, 4294901760
      %3125 = vmatmul.mubr.f32.gmra.mrb[0].mxu0 %v3124
      %v3126 = vpop.f32.mrb[0].mxu0
      %v3127 = vadd.f32 %v2651, %v3126
      %v3128 = vpop.f32.mrb[0].mxu0
      %3129 = vmatprep.mubr.f32.mxu0 0.0
      %v3130 = vand.u32 %v458, 4294901760
      %3131 = vmatmul.mubr.f32.gmra.mrb[0].mxu0 %v3130
      %v3132 = vpop.f32.mrb[0].mxu0
      %v3133 = vadd.f32 %v2659, %v3132
      %v3134 = vpop.f32.mrb[0].mxu0
      %3135 = vmatprep.mubr.f32.mxu0 0.0
      %v3136 = vand.u32 %v461, 4294901760
      %3137 = vmatmul.mubr.f32.gmra.mrb[0].mxu0 %v3136
      %v3138 = vpop.f32.mrb[0].mxu0
      %v3139 = vadd.f32 %v2667, %v3138
      %v3140 = vpop.f32.mrb[0].mxu0
      %3141 = vmatprep.mubr.f32.mxu0 0.0
      %v3142 = vand.u32 %v464, 4294901760
      %3143 = vmatmul.mubr.f32.gmra.mrb[0].mxu0 %v3142
      %v3144 = vpop.f32.mrb[0].mxu0
      %v3145 = vadd.f32 %v2675, %v3144
      %v3146 = vpop.f32.mrb[0].mxu0
      %3147 = vmatprep.mubr.f32.mxu0 0.0
      %v3148 = vand.u32 %v467, 4294901760
      %3149 = vmatmul.mubr.f32.gmra.mrb[0].mxu0 %v3148
      %v3150 = vpop.f32.mrb[0].mxu0
      %v3151 = vadd.f32 %v2683, %v3150
      %v3152 = vpop.f32.mrb[0].mxu0
      %3153 = vmatprep.mubr.f32.mxu0 0.0
      %v3154 = vand.u32 %v470, 4294901760
      %3155 = vmatmul.mubr.f32.gmra.mrb[0].mxu0 %v3154
      %v3156 = vpop.f32.mrb[0].mxu0
      %v3157 = vadd.f32 %v2691, %v3156
      %v3158 = vpop.f32.mrb[0].mxu0
      %3159 = vmatprep.mubr.f32.mxu0 0.0
      %v3160 = vand.u32 %v473, 4294901760
      %3161 = vmatmul.mubr.f32.gmra.mrb[0].mxu0 %v3160
      %v3162 = vpop.f32.mrb[0].mxu0
      %v3163 = vadd.f32 %v2699, %v3162
      %v3164 = vpop.f32.mrb[0].mxu0
      %3165 = vmatprep.mubr.f32.mxu0 0.0
      %v3166 = vand.u32 %v476, 4294901760
      %3167 = vmatmul.mubr.f32.gmra.mrb[0].mxu0 %v3166
      %v3168 = vpop.f32.mrb[0].mxu0
      %v3169 = vadd.f32 %v2707, %v3168
      %v3170 = vpop.f32.mrb[0].mxu0
      %3171 = vmatprep.mubr.f32.mxu0 0.0
      %v3172 = vand.u32 %v479, 4294901760
      %3173 = vmatmul.mubr.f32.gmra.mrb[0].mxu0 %v3172
      %v3174 = vpop.f32.mrb[0].mxu0
      %v3175 = vadd.f32 %v2715, %v3174
      %v3176 = vpop.f32.mrb[0].mxu0
      %3177 = vmatprep.mubr.f32.mxu0 0.0
      %v3178 = vand.u32 %v482, 4294901760
      %3179 = vmatmul.mubr.f32.gmra.mrb[0].mxu0 %v3178
      %v3180 = vpop.f32.mrb[0].mxu0
      %v3181 = vadd.f32 %v2723, %v3180
      %v3182 = vpop.f32.mrb[0].mxu0
      %3183 = vmatprep.mubr.f32.mxu0 0.0
      %v3184 = vand.u32 %v485, 4294901760
      %3185 = vmatmul.mubr.f32.gmra.mrb[0].mxu0 %v3184
      %v3186 = vpop.f32.mrb[0].mxu0
      %v3187 = vadd.f32 %v2731, %v3186
      %v3188 = vpop.f32.mrb[0].mxu0
      %3189 = vmatprep.mubr.f32.mxu0 0.0
      %v3190 = vand.u32 %v488, 4294901760
      %3191 = vmatmul.mubr.f32.gmra.mrb[0].mxu0 %v3190
      %v3192 = vpop.f32.mrb[0].mxu0
      %v3193 = vadd.f32 %v2739, %v3192
      %v3194 = vpop.f32.mrb[0].mxu0
      %3195 = vmatprep.mubr.f32.mxu0 0.0
      %v3196 = vand.u32 %v491, 4294901760
      %3197 = vmatmul.mubr.f32.gmra.mrb[0].mxu0 %v3196
      %v3198 = vpop.f32.mrb[0].mxu0
      %v3199 = vadd.f32 %v2747, %v3198
      %v3200 = vpop.f32.mrb[0].mxu0
      %3201 = vdwg.mxu0
      %3202 = vmatprep.subr.mxu0 0.0
      %v3203 = vand.u32 %v495, 4294901760
      %3204 = vmatpush1.msra.mxu0 %v3203
      %3205 = vmatprep.subr.mxu0 0.0
      %3206 = vmatpush1.msra.mxu0 0.0
      %3207 = vmatprep.subr.mxu0 0.0
      %3208 = vmatpush1.msra.mxu0 0.0
      %3209 = vmatprep.subr.mxu0 0.0
      %3210 = vmatpush1.msra.mxu0 0.0
      %3211 = vmatprep.subr.mxu0 0.0
      %3212 = vmatpush1.msra.mxu0 0.0
      %3213 = vmatprep.subr.mxu0 0.0
      %3214 = vmatpush1.msra.mxu0 0.0
      %3215 = vmatprep.subr.mxu0 0.0
      %3216 = vmatpush1.msra.mxu0 0.0
      %3217 = vmatprep.subr.mxu0 0.0
      %3218 = vmatpush1.msra.mxu0 0.0
      %3219 = vmatprep.subr.mxu0 0.0
      %3220 = vmatpush1.msra.mxu0 0.0
      %3221 = vmatprep.subr.mxu0 0.0
      %3222 = vmatpush1.msra.mxu0 0.0
      %3223 = vmatprep.subr.mxu0 0.0
      %3224 = vmatpush1.msra.mxu0 0.0
      %3225 = vmatprep.subr.mxu0 0.0
      %3226 = vmatpush1.msra.mxu0 0.0
      %3227 = vmatprep.subr.mxu0 0.0
      %3228 = vmatpush1.msra.mxu0 0.0
      %3229 = vmatprep.subr.mxu0 0.0
      %3230 = vmatpush1.msra.mxu0 0.0
      %3231 = vmatprep.subr.mxu0 0.0
      %3232 = vmatpush1.msra.mxu0 0.0
      %3233 = vmatprep.subr.mxu0 0.0
      %3234 = vmatpush1.msra.mxu0 0.0
      %3235 = vmatprep.subr.mxu0 0.0
      %3236 = vmatpush1.msra.mxu0 0.0
      %3237 = vmatprep.subr.mxu0 0.0
      %3238 = vmatpush1.msra.mxu0 0.0
      %3239 = vmatprep.subr.mxu0 0.0
      %3240 = vmatpush1.msra.mxu0 0.0
      %3241 = vmatprep.subr.mxu0 0.0
      %3242 = vmatpush1.msra.mxu0 0.0
      %3243 = vmatprep.subr.mxu0 0.0
      %3244 = vmatpush1.msra.mxu0 0.0
      %3245 = vmatprep.subr.mxu0 0.0
      %3246 = vmatpush1.msra.mxu0 0.0
      %3247 = vmatprep.subr.mxu0 0.0
      %3248 = vmatpush1.msra.mxu0 0.0
      %3249 = vmatprep.subr.mxu0 0.0
      %3250 = vmatpush1.msra.mxu0 0.0
      %3251 = vmatprep.subr.mxu0 0.0
      %3252 = vmatpush1.msra.mxu0 0.0
      %3253 = vmatprep.subr.mxu0 0.0
      %3254 = vmatpush1.msra.mxu0 0.0
      %3255 = vmatprep.subr.mxu0 0.0
      %3256 = vmatpush1.msra.mxu0 0.0
      %3257 = vmatprep.subr.mxu0 0.0
      %3258 = vmatpush1.msra.mxu0 0.0
      %3259 = vmatprep.subr.mxu0 0.0
      %3260 = vmatpush1.msra.mxu0 0.0
      %3261 = vmatprep.subr.mxu0 0.0
      %3262 = vmatpush1.msra.mxu0 0.0
      %3263 = vmatprep.subr.mxu0 0.0
      %3264 = vmatpush1.msra.mxu0 0.0
      %3265 = vmatprep.subr.mxu0 0.0
      %3266 = vmatpush1.msra.mxu0 0.0
      %3267 = vmatprep.mubr.f32.mxu0 0.0
      %v3268 = vand.u32 %v302, 4294901760
      %3269 = vmatmul.mubr.f32.gmra.mrb[0].mxu0 %v3268
      %v3270 = vpop.f32.mrb[0].mxu0
      %v3271 = vadd.f32 %v2821, %v3270
      %v3272 = vpop.f32.mrb[0].mxu0
      %3273 = vmatprep.mubr.f32.mxu0 0.0
      %v3274 = vand.u32 %v305, 4294901760
      %3275 = vmatmul.mubr.f32.gmra.mrb[0].mxu0 %v3274
      %v3276 = vpop.f32.mrb[0].mxu0
      %v3277 = vadd.f32 %v2827, %v3276
      %v3278 = vpop.f32.mrb[0].mxu0
      %3279 = vmatprep.mubr.f32.mxu0 0.0
      %v3280 = vand.u32 %v308, 4294901760
      %3281 = vmatmul.mubr.f32.gmra.mrb[0].mxu0 %v3280
      %v3282 = vpop.f32.mrb[0].mxu0
      %v3283 = vadd.f32 %v2833, %v3282
      %v3284 = vpop.f32.mrb[0].mxu0
      %3285 = vmatprep.mubr.f32.mxu0 0.0
      %v3286 = vand.u32 %v311, 4294901760
      %3287 = vmatmul.mubr.f32.gmra.mrb[0].mxu0 %v3286
      %v3288 = vpop.f32.mrb[0].mxu0
      %v3289 = vadd.f32 %v2839, %v3288
      %v3290 = vpop.f32.mrb[0].mxu0
      %3291 = vmatprep.mubr.f32.mxu0 0.0
      %v3292 = vand.u32 %v314, 4294901760
      %3293 = vmatmul.mubr.f32.gmra.mrb[0].mxu0 %v3292
      %v3294 = vpop.f32.mrb[0].mxu0
      %v3295 = vadd.f32 %v2845, %v3294
      %v3296 = vpop.f32.mrb[0].mxu0
      %3297 = vmatprep.mubr.f32.mxu0 0.0
      %v3298 = vand.u32 %v317, 4294901760
      %3299 = vmatmul.mubr.f32.gmra.mrb[0].mxu0 %v3298
      %v3300 = vpop.f32.mrb[0].mxu0
      %v3301 = vadd.f32 %v2851, %v3300
      %v3302 = vpop.f32.mrb[0].mxu0
      %3303 = vmatprep.mubr.f32.mxu0 0.0
      %v3304 = vand.u32 %v320, 4294901760
      %3305 = vmatmul.mubr.f32.gmra.mrb[0].mxu0 %v3304
      %v3306 = vpop.f32.mrb[0].mxu0
      %v3307 = vadd.f32 %v2857, %v3306
      %v3308 = vpop.f32.mrb[0].mxu0
      %3309 = vmatprep.mubr.f32.mxu0 0.0
      %v3310 = vand.u32 %v323, 4294901760
      %3311 = vmatmul.mubr.f32.gmra.mrb[0].mxu0 %v3310
      %v3312 = vpop.f32.mrb[0].mxu0
      %v3313 = vadd.f32 %v2863, %v3312
      %v3314 = vpop.f32.mrb[0].mxu0
      %3315 = vmatprep.mubr.f32.mxu0 0.0
      %v3316 = vand.u32 %v326, 4294901760
      %3317 = vmatmul.mubr.f32.gmra.mrb[0].mxu0 %v3316
      %v3318 = vpop.f32.mrb[0].mxu0
      %v3319 = vadd.f32 %v2869, %v3318
      %v3320 = vpop.f32.mrb[0].mxu0
      %3321 = vmatprep.mubr.f32.mxu0 0.0
      %v3322 = vand.u32 %v329, 4294901760
      %3323 = vmatmul.mubr.f32.gmra.mrb[0].mxu0 %v3322
      %v3324 = vpop.f32.mrb[0].mxu0
      %v3325 = vadd.f32 %v2875, %v3324
      %v3326 = vpop.f32.mrb[0].mxu0
      %3327 = vmatprep.mubr.f32.mxu0 0.0
      %v3328 = vand.u32 %v332, 4294901760
      %3329 = vmatmul.mubr.f32.gmra.mrb[0].mxu0 %v3328
      %v3330 = vpop.f32.mrb[0].mxu0
      %v3331 = vadd.f32 %v2881, %v3330
      %v3332 = vpop.f32.mrb[0].mxu0
      %3333 = vmatprep.mubr.f32.mxu0 0.0
      %v3334 = vand.u32 %v335, 4294901760
      %3335 = vmatmul.mubr.f32.gmra.mrb[0].mxu0 %v3334
      %v3336 = vpop.f32.mrb[0].mxu0
      %v3337 = vadd.f32 %v2887, %v3336
      %v3338 = vpop.f32.mrb[0].mxu0
      %3339 = vmatprep.mubr.f32.mxu0 0.0
      %v3340 = vand.u32 %v338, 4294901760
      %3341 = vmatmul.mubr.f32.gmra.mrb[0].mxu0 %v3340
      %v3342 = vpop.f32.mrb[0].mxu0
      %v3343 = vadd.f32 %v2893, %v3342
      %v3344 = vpop.f32.mrb[0].mxu0
      %3345 = vmatprep.mubr.f32.mxu0 0.0
      %v3346 = vand.u32 %v341, 4294901760
      %3347 = vmatmul.mubr.f32.gmra.mrb[0].mxu0 %v3346
      %v3348 = vpop.f32.mrb[0].mxu0
      %v3349 = vadd.f32 %v2899, %v3348
      %v3350 = vpop.f32.mrb[0].mxu0
      %3351 = vmatprep.mubr.f32.mxu0 0.0
      %v3352 = vand.u32 %v344, 4294901760
      %3353 = vmatmul.mubr.f32.gmra.mrb[0].mxu0 %v3352
      %v3354 = vpop.f32.mrb[0].mxu0
      %v3355 = vadd.f32 %v2905, %v3354
      %v3356 = vpop.f32.mrb[0].mxu0
      %3357 = vmatprep.mubr.f32.mxu0 0.0
      %v3358 = vand.u32 %v347, 4294901760
      %3359 = vmatmul.mubr.f32.gmra.mrb[0].mxu0 %v3358
      %v3360 = vpop.f32.mrb[0].mxu0
      %v3361 = vadd.f32 %v2911, %v3360
      %v3362 = vpop.f32.mrb[0].mxu0
      %3363 = vmatprep.mubr.f32.mxu0 0.0
      %v3364 = vand.u32 %v350, 4294901760
      %3365 = vmatmul.mubr.f32.gmra.mrb[0].mxu0 %v3364
      %v3366 = vpop.f32.mrb[0].mxu0
      %v3367 = vadd.f32 %v2917, %v3366
      %v3368 = vpop.f32.mrb[0].mxu0
      %3369 = vmatprep.mubr.f32.mxu0 0.0
      %v3370 = vand.u32 %v353, 4294901760
      %3371 = vmatmul.mubr.f32.gmra.mrb[0].mxu0 %v3370
      %v3372 = vpop.f32.mrb[0].mxu0
      %v3373 = vadd.f32 %v2923, %v3372
      %v3374 = vpop.f32.mrb[0].mxu0
      %3375 = vmatprep.mubr.f32.mxu0 0.0
      %v3376 = vand.u32 %v356, 4294901760
      %3377 = vmatmul.mubr.f32.gmra.mrb[0].mxu0 %v3376
      %v3378 = vpop.f32.mrb[0].mxu0
      %v3379 = vadd.f32 %v2929, %v3378
      %v3380 = vpop.f32.mrb[0].mxu0
      %3381 = vmatprep.mubr.f32.mxu0 0.0
      %v3382 = vand.u32 %v359, 4294901760
      %3383 = vmatmul.mubr.f32.gmra.mrb[0].mxu0 %v3382
      %v3384 = vpop.f32.mrb[0].mxu0
      %v3385 = vadd.f32 %v2935, %v3384
      %v3386 = vpop.f32.mrb[0].mxu0
      %3387 = vmatprep.mubr.f32.mxu0 0.0
      %v3388 = vand.u32 %v362, 4294901760
      %3389 = vmatmul.mubr.f32.gmra.mrb[0].mxu0 %v3388
      %v3390 = vpop.f32.mrb[0].mxu0
      %v3391 = vadd.f32 %v2941, %v3390
      %v3392 = vpop.f32.mrb[0].mxu0
      %3393 = vmatprep.mubr.f32.mxu0 0.0
      %v3394 = vand.u32 %v365, 4294901760
      %3395 = vmatmul.mubr.f32.gmra.mrb[0].mxu0 %v3394
      %v3396 = vpop.f32.mrb[0].mxu0
      %v3397 = vadd.f32 %v2947, %v3396
      %v3398 = vpop.f32.mrb[0].mxu0
      %3399 = vmatprep.mubr.f32.mxu0 0.0
      %v3400 = vand.u32 %v368, 4294901760
      %3401 = vmatmul.mubr.f32.gmra.mrb[0].mxu0 %v3400
      %v3402 = vpop.f32.mrb[0].mxu0
      %v3403 = vadd.f32 %v2953, %v3402
      %v3404 = vpop.f32.mrb[0].mxu0
      %3405 = vmatprep.mubr.f32.mxu0 0.0
      %v3406 = vand.u32 %v371, 4294901760
      %3407 = vmatmul.mubr.f32.gmra.mrb[0].mxu0 %v3406
      %v3408 = vpop.f32.mrb[0].mxu0
      %v3409 = vadd.f32 %v2959, %v3408
      %v3410 = vpop.f32.mrb[0].mxu0
      %3411 = vmatprep.mubr.f32.mxu0 0.0
      %v3412 = vand.u32 %v374, 4294901760
      %3413 = vmatmul.mubr.f32.gmra.mrb[0].mxu0 %v3412
      %v3414 = vpop.f32.mrb[0].mxu0
      %v3415 = vadd.f32 %v2965, %v3414
      %v3416 = vpop.f32.mrb[0].mxu0
      %3417 = vmatprep.mubr.f32.mxu0 0.0
      %v3418 = vand.u32 %v377, 4294901760
      %3419 = vmatmul.mubr.f32.gmra.mrb[0].mxu0 %v3418
      %v3420 = vpop.f32.mrb[0].mxu0
      %v3421 = vadd.f32 %v2971, %v3420
      %v3422 = vpop.f32.mrb[0].mxu0
      %3423 = vmatprep.mubr.f32.mxu0 0.0
      %v3424 = vand.u32 %v380, 4294901760
      %3425 = vmatmul.mubr.f32.gmra.mrb[0].mxu0 %v3424
      %v3426 = vpop.f32.mrb[0].mxu0
      %v3427 = vadd.f32 %v2977, %v3426
      %v3428 = vpop.f32.mrb[0].mxu0
      %3429 = vmatprep.mubr.f32.mxu0 0.0
      %v3430 = vand.u32 %v383, 4294901760
      %3431 = vmatmul.mubr.f32.gmra.mrb[0].mxu0 %v3430
      %v3432 = vpop.f32.mrb[0].mxu0
      %v3433 = vadd.f32 %v2983, %v3432
      %v3434 = vpop.f32.mrb[0].mxu0
      %3435 = vmatprep.mubr.f32.mxu0 0.0
      %v3436 = vand.u32 %v386, 4294901760
      %3437 = vmatmul.mubr.f32.gmra.mrb[0].mxu0 %v3436
      %v3438 = vpop.f32.mrb[0].mxu0
      %v3439 = vadd.f32 %v2989, %v3438
      %v3440 = vpop.f32.mrb[0].mxu0
      %3441 = vmatprep.mubr.f32.mxu0 0.0
      %v3442 = vand.u32 %v389, 4294901760
      %3443 = vmatmul.mubr.f32.gmra.mrb[0].mxu0 %v3442
      %v3444 = vpop.f32.mrb[0].mxu0
      %v3445 = vadd.f32 %v2995, %v3444
      %v3446 = vpop.f32.mrb[0].mxu0
      %3447 = vmatprep.mubr.f32.mxu0 0.0
      %v3448 = vand.u32 %v392, 4294901760
      %3449 = vmatmul.mubr.f32.gmra.mrb[0].mxu0 %v3448
      %v3450 = vpop.f32.mrb[0].mxu0
      %v3451 = vadd.f32 %v3001, %v3450
      %v3452 = vpop.f32.mrb[0].mxu0
      %3453 = vmatprep.mubr.f32.mxu0 0.0
      %v3454 = vand.u32 %v395, 4294901760
      %3455 = vmatmul.mubr.f32.gmra.mrb[0].mxu0 %v3454
      %v3456 = vpop.f32.mrb[0].mxu0
      %v3457 = vadd.f32 %v3007, %v3456
      %v3458 = vpop.f32.mrb[0].mxu0
      %3459 = vmatprep.mubr.f32.mxu0 0.0
      %v3460 = vand.u32 %v398, 4294901760
      %3461 = vmatmul.mubr.f32.gmra.mrb[0].mxu0 %v3460
      %v3462 = vpop.f32.mrb[0].mxu0
      %v3463 = vadd.f32 %v3013, %v3462
      %v3464 = vpop.f32.mrb[0].mxu0
      %3465 = vmatprep.mubr.f32.mxu0 0.0
      %v3466 = vand.u32 %v401, 4294901760
      %3467 = vmatmul.mubr.f32.gmra.mrb[0].mxu0 %v3466
      %v3468 = vpop.f32.mrb[0].mxu0
      %v3469 = vadd.f32 %v3019, %v3468
      %v3470 = vpop.f32.mrb[0].mxu0
      %3471 = vmatprep.mubr.f32.mxu0 0.0
      %v3472 = vand.u32 %v404, 4294901760
      %3473 = vmatmul.mubr.f32.gmra.mrb[0].mxu0 %v3472
      %v3474 = vpop.f32.mrb[0].mxu0
      %v3475 = vadd.f32 %v3025, %v3474
      %v3476 = vpop.f32.mrb[0].mxu0
      %3477 = vmatprep.mubr.f32.mxu0 0.0
      %v3478 = vand.u32 %v407, 4294901760
      %3479 = vmatmul.mubr.f32.gmra.mrb[0].mxu0 %v3478
      %v3480 = vpop.f32.mrb[0].mxu0
      %v3481 = vadd.f32 %v3031, %v3480
      %v3482 = vpop.f32.mrb[0].mxu0
      %3483 = vmatprep.mubr.f32.mxu0 0.0
      %v3484 = vand.u32 %v410, 4294901760
      %3485 = vmatmul.mubr.f32.gmra.mrb[0].mxu0 %v3484
      %v3486 = vpop.f32.mrb[0].mxu0
      %v3487 = vadd.f32 %v3037, %v3486
      %v3488 = vpop.f32.mrb[0].mxu0
      %3489 = vmatprep.mubr.f32.mxu0 0.0
      %v3490 = vand.u32 %v413, 4294901760
      %3491 = vmatmul.mubr.f32.gmra.mrb[0].mxu0 %v3490
      %v3492 = vpop.f32.mrb[0].mxu0
      %v3493 = vadd.f32 %v3043, %v3492
      %v3494 = vpop.f32.mrb[0].mxu0
      %3495 = vmatprep.mubr.f32.mxu0 0.0
      %v3496 = vand.u32 %v416, 4294901760
      %3497 = vmatmul.mubr.f32.gmra.mrb[0].mxu0 %v3496
      %v3498 = vpop.f32.mrb[0].mxu0
      %v3499 = vadd.f32 %v3049, %v3498
      %v3500 = vpop.f32.mrb[0].mxu0
      %3501 = vmatprep.mubr.f32.mxu0 0.0
      %v3502 = vand.u32 %v419, 4294901760
      %3503 = vmatmul.mubr.f32.gmra.mrb[0].mxu0 %v3502
      %v3504 = vpop.f32.mrb[0].mxu0
      %v3505 = vadd.f32 %v3055, %v3504
      %v3506 = vpop.f32.mrb[0].mxu0
      %3507 = vmatprep.mubr.f32.mxu0 0.0
      %v3508 = vand.u32 %v422, 4294901760
      %3509 = vmatmul.mubr.f32.gmra.mrb[0].mxu0 %v3508
      %v3510 = vpop.f32.mrb[0].mxu0
      %v3511 = vadd.f32 %v3061, %v3510
      %v3512 = vpop.f32.mrb[0].mxu0
      %3513 = vmatprep.mubr.f32.mxu0 0.0
      %v3514 = vand.u32 %v425, 4294901760
      %3515 = vmatmul.mubr.f32.gmra.mrb[0].mxu0 %v3514
      %v3516 = vpop.f32.mrb[0].mxu0
      %v3517 = vadd.f32 %v3067, %v3516
      %v3518 = vpop.f32.mrb[0].mxu0
      %3519 = vmatprep.mubr.f32.mxu0 0.0
      %v3520 = vand.u32 %v428, 4294901760
      %3521 = vmatmul.mubr.f32.gmra.mrb[0].mxu0 %v3520
      %v3522 = vpop.f32.mrb[0].mxu0
      %v3523 = vadd.f32 %v3073, %v3522
      %v3524 = vpop.f32.mrb[0].mxu0
      %3525 = vmatprep.mubr.f32.mxu0 0.0
      %v3526 = vand.u32 %v431, 4294901760
      %3527 = vmatmul.mubr.f32.gmra.mrb[0].mxu0 %v3526
      %v3528 = vpop.f32.mrb[0].mxu0
      %v3529 = vadd.f32 %v3079, %v3528
      %v3530 = vpop.f32.mrb[0].mxu0
      %3531 = vmatprep.mubr.f32.mxu0 0.0
      %v3532 = vand.u32 %v434, 4294901760
      %3533 = vmatmul.mubr.f32.gmra.mrb[0].mxu0 %v3532
      %v3534 = vpop.f32.mrb[0].mxu0
      %v3535 = vadd.f32 %v3085, %v3534
      %v3536 = vpop.f32.mrb[0].mxu0
      %3537 = vmatprep.mubr.f32.mxu0 0.0
      %v3538 = vand.u32 %v437, 4294901760
      %3539 = vmatmul.mubr.f32.gmra.mrb[0].mxu0 %v3538
      %v3540 = vpop.f32.mrb[0].mxu0
      %v3541 = vadd.f32 %v3091, %v3540
      %v3542 = vpop.f32.mrb[0].mxu0
      %3543 = vmatprep.mubr.f32.mxu0 0.0
      %v3544 = vand.u32 %v440, 4294901760
      %3545 = vmatmul.mubr.f32.gmra.mrb[0].mxu0 %v3544
      %v3546 = vpop.f32.mrb[0].mxu0
      %v3547 = vadd.f32 %v3097, %v3546
      %v3548 = vpop.f32.mrb[0].mxu0
      %3549 = vmatprep.mubr.f32.mxu0 0.0
      %v3550 = vand.u32 %v443, 4294901760
      %3551 = vmatmul.mubr.f32.gmra.mrb[0].mxu0 %v3550
      %v3552 = vpop.f32.mrb[0].mxu0
      %v3553 = vadd.f32 %v3103, %v3552
      %v3554 = vpop.f32.mrb[0].mxu0
      %3555 = vmatprep.mubr.f32.mxu0 0.0
      %v3556 = vand.u32 %v446, 4294901760
      %3557 = vmatmul.mubr.f32.gmra.mrb[0].mxu0 %v3556
      %v3558 = vpop.f32.mrb[0].mxu0
      %v3559 = vadd.f32 %v3109, %v3558
      %v3560 = vpop.f32.mrb[0].mxu0
      %3561 = vmatprep.mubr.f32.mxu0 0.0
      %v3562 = vand.u32 %v449, 4294901760
      %3563 = vmatmul.mubr.f32.gmra.mrb[0].mxu0 %v3562
      %v3564 = vpop.f32.mrb[0].mxu0
      %v3565 = vadd.f32 %v3115, %v3564
      %v3566 = vpop.f32.mrb[0].mxu0
      %3567 = vmatprep.mubr.f32.mxu0 0.0
      %v3568 = vand.u32 %v452, 4294901760
      %3569 = vmatmul.mubr.f32.gmra.mrb[0].mxu0 %v3568
      %v3570 = vpop.f32.mrb[0].mxu0
      %v3571 = vadd.f32 %v3121, %v3570
      %v3572 = vpop.f32.mrb[0].mxu0
      %3573 = vmatprep.mubr.f32.mxu0 0.0
      %v3574 = vand.u32 %v455, 4294901760
      %3575 = vmatmul.mubr.f32.gmra.mrb[0].mxu0 %v3574
      %v3576 = vpop.f32.mrb[0].mxu0
      %v3577 = vadd.f32 %v3127, %v3576
      %v3578 = vpop.f32.mrb[0].mxu0
      %3579 = vmatprep.mubr.f32.mxu0 0.0
      %v3580 = vand.u32 %v458, 4294901760
      %3581 = vmatmul.mubr.f32.gmra.mrb[0].mxu0 %v3580
      %v3582 = vpop.f32.mrb[0].mxu0
      %v3583 = vadd.f32 %v3133, %v3582
      %v3584 = vpop.f32.mrb[0].mxu0
      %3585 = vmatprep.mubr.f32.mxu0 0.0
      %v3586 = vand.u32 %v461, 4294901760
      %3587 = vmatmul.mubr.f32.gmra.mrb[0].mxu0 %v3586
      %v3588 = vpop.f32.mrb[0].mxu0
      %v3589 = vadd.f32 %v3139, %v3588
      %v3590 = vpop.f32.mrb[0].mxu0
      %3591 = vmatprep.mubr.f32.mxu0 0.0
      %v3592 = vand.u32 %v464, 4294901760
      %3593 = vmatmul.mubr.f32.gmra.mrb[0].mxu0 %v3592
      %v3594 = vpop.f32.mrb[0].mxu0
      %v3595 = vadd.f32 %v3145, %v3594
      %v3596 = vpop.f32.mrb[0].mxu0
      %3597 = vmatprep.mubr.f32.mxu0 0.0
      %v3598 = vand.u32 %v467, 4294901760
      %3599 = vmatmul.mubr.f32.gmra.mrb[0].mxu0 %v3598
      %v3600 = vpop.f32.mrb[0].mxu0
      %v3601 = vadd.f32 %v3151, %v3600
      %v3602 = vpop.f32.mrb[0].mxu0
      %3603 = vmatprep.mubr.f32.mxu0 0.0
      %v3604 = vand.u32 %v470, 4294901760
      %3605 = vmatmul.mubr.f32.gmra.mrb[0].mxu0 %v3604
      %v3606 = vpop.f32.mrb[0].mxu0
      %v3607 = vadd.f32 %v3157, %v3606
      %v3608 = vpop.f32.mrb[0].mxu0
      %3609 = vmatprep.mubr.f32.mxu0 0.0
      %v3610 = vand.u32 %v473, 4294901760
      %3611 = vmatmul.mubr.f32.gmra.mrb[0].mxu0 %v3610
      %v3612 = vpop.f32.mrb[0].mxu0
      %v3613 = vadd.f32 %v3163, %v3612
      %v3614 = vpop.f32.mrb[0].mxu0
      %3615 = vmatprep.mubr.f32.mxu0 0.0
      %v3616 = vand.u32 %v476, 4294901760
      %3617 = vmatmul.mubr.f32.gmra.mrb[0].mxu0 %v3616
      %v3618 = vpop.f32.mrb[0].mxu0
      %v3619 = vadd.f32 %v3169, %v3618
      %v3620 = vpop.f32.mrb[0].mxu0
      %3621 = vmatprep.mubr.f32.mxu0 0.0
      %v3622 = vand.u32 %v479, 4294901760
      %3623 = vmatmul.mubr.f32.gmra.mrb[0].mxu0 %v3622
      %v3624 = vpop.f32.mrb[0].mxu0
      %v3625 = vadd.f32 %v3175, %v3624
      %v3626 = vpop.f32.mrb[0].mxu0
      %3627 = vmatprep.mubr.f32.mxu0 0.0
      %v3628 = vand.u32 %v482, 4294901760
      %3629 = vmatmul.mubr.f32.gmra.mrb[0].mxu0 %v3628
      %v3630 = vpop.f32.mrb[0].mxu0
      %v3631 = vadd.f32 %v3181, %v3630
      %v3632 = vpop.f32.mrb[0].mxu0
      %3633 = vmatprep.mubr.f32.mxu0 0.0
      %v3634 = vand.u32 %v485, 4294901760
      %3635 = vmatmul.mubr.f32.gmra.mrb[0].mxu0 %v3634
      %v3636 = vpop.f32.mrb[0].mxu0
      %v3637 = vadd.f32 %v3187, %v3636
      %v3638 = vpop.f32.mrb[0].mxu0
      %3639 = vmatprep.mubr.f32.mxu0 0.0
      %v3640 = vand.u32 %v488, 4294901760
      %3641 = vmatmul.mubr.f32.gmra.mrb[0].mxu0 %v3640
      %v3642 = vpop.f32.mrb[0].mxu0
      %v3643 = vadd.f32 %v3193, %v3642
      %v3644 = vpop.f32.mrb[0].mxu0
      %3645 = vmatprep.mubr.f32.mxu0 0.0
      %v3646 = vand.u32 %v491, 4294901760
      %3647 = vmatmul.mubr.f32.gmra.mrb[0].mxu0 %v3646
      %v3648 = vpop.f32.mrb[0].mxu0
      %v3649 = vadd.f32 %v3199, %v3648
      %v3650 = vpop.f32.mrb[0].mxu0
      %3651 = vdwg.mxu0
      %v3652 = vmax.f32 %v3271, 0.0
      %v3653 = vmax.f32 %v3277, 0.0
      %v3654 = vmax.f32 %v3283, 0.0
      %v3655 = vmax.f32 %v3289, 0.0
      %v3656 = vmax.f32 %v3295, 0.0
      %v3657 = vmax.f32 %v3301, 0.0
      %v3658 = vmax.f32 %v3307, 0.0
      %v3659 = vmax.f32 %v3313, 0.0
      %v3660 = vmax.f32 %v3319, 0.0
      %v3661 = vmax.f32 %v3325, 0.0
      %v3662 = vmax.f32 %v3331, 0.0
      %v3663 = vmax.f32 %v3337, 0.0
      %v3664 = vmax.f32 %v3343, 0.0
      %v3665 = vmax.f32 %v3349, 0.0
      %v3666 = vmax.f32 %v3355, 0.0
      %v3667 = vmax.f32 %v3361, 0.0
      %v3668 = vmax.f32 %v3367, 0.0
      %v3669 = vmax.f32 %v3373, 0.0
      %v3670 = vmax.f32 %v3379, 0.0
      %v3671 = vmax.f32 %v3385, 0.0
      %v3672 = vmax.f32 %v3391, 0.0
      %v3673 = vmax.f32 %v3397, 0.0
      %v3674 = vmax.f32 %v3403, 0.0
      %v3675 = vmax.f32 %v3409, 0.0
      %v3676 = vmax.f32 %v3415, 0.0
      %v3677 = vmax.f32 %v3421, 0.0
      %v3678 = vmax.f32 %v3427, 0.0
      %v3679 = vmax.f32 %v3433, 0.0
      %v3680 = vmax.f32 %v3439, 0.0
      %v3681 = vmax.f32 %v3445, 0.0
      %v3682 = vmax.f32 %v3451, 0.0
      %v3683 = vmax.f32 %v3457, 0.0
      %v3684 = vmax.f32 %v3463, 0.0
      %v3685 = vmax.f32 %v3469, 0.0
      %v3686 = vmax.f32 %v3475, 0.0
      %v3687 = vmax.f32 %v3481, 0.0
      %v3688 = vmax.f32 %v3487, 0.0
      %v3689 = vmax.f32 %v3493, 0.0
      %v3690 = vmax.f32 %v3499, 0.0
      %v3691 = vmax.f32 %v3505, 0.0
      %v3692 = vmax.f32 %v3511, 0.0
      %v3693 = vmax.f32 %v3517, 0.0
      %v3694 = vmax.f32 %v3523, 0.0
      %v3695 = vmax.f32 %v3529, 0.0
      %v3696 = vmax.f32 %v3535, 0.0
      %v3697 = vmax.f32 %v3541, 0.0
      %v3698 = vmax.f32 %v3547, 0.0
      %v3699 = vmax.f32 %v3553, 0.0
      %v3700 = vmax.f32 %v3559, 0.0
      %v3701 = vmax.f32 %v3565, 0.0
      %v3702 = vmax.f32 %v3571, 0.0
      %v3703 = vmax.f32 %v3577, 0.0
      %v3704 = vmax.f32 %v3583, 0.0
      %v3705 = vmax.f32 %v3589, 0.0
      %v3706 = vmax.f32 %v3595, 0.0
      %v3707 = vmax.f32 %v3601, 0.0
      %v3708 = vmax.f32 %v3607, 0.0
      %v3709 = vmax.f32 %v3613, 0.0
      %v3710 = vmax.f32 %v3619, 0.0
      %v3711 = vmax.f32 %v3625, 0.0
      %v3712 = vmax.f32 %v3631, 0.0
      %v3713 = vmax.f32 %v3637, 0.0
      %v3714 = vmax.f32 %v3643, 0.0
      %v3715 = vmax.f32 %v3649, 0.0
      %v3716 = vld [vmem:[%s3] sm:$0xff]
      %v3717 = vld [vmem:[%s3 + $0x8] sm:$0xff]
      %v3718 = vld [vmem:[%s4] sm:$0x1]
      %v3720 = vlaneseq
      %v3721 = vshrl.u32 %v3720, 7
      %v3722 = vsub.s32 0, %v3721
      %v3723 = vrot.slane %v3718, %v3722
      %vm3725 = vcmask 130048
      %v3727 = vsel %vm3725, %v3652, 0
      %v3730 = vsel %vm3725, %v3653, 0
      %v3733 = vsel %vm3725, %v3654, 0
      %v3736 = vsel %vm3725, %v3655, 0
      %v3739 = vsel %vm3725, %v3656, 0
      %v3742 = vsel %vm3725, %v3657, 0
      %v3745 = vsel %vm3725, %v3658, 0
      %v3748 = vsel %vm3725, %v3659, 0
      %v3751 = vsel %vm3725, %v3660, 0
      %v3754 = vsel %vm3725, %v3661, 0
      %v3757 = vsel %vm3725, %v3662, 0
      %v3760 = vsel %vm3725, %v3663, 0
      %v3763 = vsel %vm3725, %v3664, 0
      %v3766 = vsel %vm3725, %v3665, 0
      %v3769 = vsel %vm3725, %v3666, 0
      %v3772 = vsel %vm3725, %v3667, 0
      %v3775 = vsel %vm3725, %v3668, 0
      %v3778 = vsel %vm3725, %v3669, 0
      %v3781 = vsel %vm3725, %v3670, 0
      %v3784 = vsel %vm3725, %v3671, 0
      %v3787 = vsel %vm3725, %v3672, 0
      %v3790 = vsel %vm3725, %v3673, 0
      %v3793 = vsel %vm3725, %v3674, 0
      %v3796 = vsel %vm3725, %v3675, 0
      %v3799 = vsel %vm3725, %v3676, 0
      %v3802 = vsel %vm3725, %v3677, 0
      %v3805 = vsel %vm3725, %v3678, 0
      %v3808 = vsel %vm3725, %v3679, 0
      %v3811 = vsel %vm3725, %v3680, 0
      %v3814 = vsel %vm3725, %v3681, 0
      %v3817 = vsel %vm3725, %v3682, 0
      %v3820 = vsel %vm3725, %v3683, 0
      %v3823 = vsel %vm3725, %v3684, 0
      %v3826 = vsel %vm3725, %v3685, 0
      %v3829 = vsel %vm3725, %v3686, 0
      %v3832 = vsel %vm3725, %v3687, 0
      %v3835 = vsel %vm3725, %v3688, 0
      %v3838 = vsel %vm3725, %v3689, 0
      %v3841 = vsel %vm3725, %v3690, 0
      %v3844 = vsel %vm3725, %v3691, 0
      %v3847 = vsel %vm3725, %v3692, 0
      %v3850 = vsel %vm3725, %v3693, 0
      %v3853 = vsel %vm3725, %v3694, 0
      %v3856 = vsel %vm3725, %v3695, 0
      %v3859 = vsel %vm3725, %v3696, 0
      %v3862 = vsel %vm3725, %v3697, 0
      %v3865 = vsel %vm3725, %v3698, 0
      %v3868 = vsel %vm3725, %v3699, 0
      %v3871 = vsel %vm3725, %v3700, 0
      %v3874 = vsel %vm3725, %v3701, 0
      %v3877 = vsel %vm3725, %v3702, 0
      %v3880 = vsel %vm3725, %v3703, 0
      %v3883 = vsel %vm3725, %v3704, 0
      %v3886 = vsel %vm3725, %v3705, 0
      %v3889 = vsel %vm3725, %v3706, 0
      %v3892 = vsel %vm3725, %v3707, 0
      %v3895 = vsel %vm3725, %v3708, 0
      %v3898 = vsel %vm3725, %v3709, 0
      %v3901 = vsel %vm3725, %v3710, 0
      %v3904 = vsel %vm3725, %v3711, 0
      %v3907 = vsel %vm3725, %v3712, 0
      %v3910 = vsel %vm3725, %v3713, 0
      %v3913 = vsel %vm3725, %v3714, 0
      %v3916 = vsel %vm3725, %v3715, 0
      %3918 = vmatprep.subr.mxu0 0.0
      %v3919 = vand.u32 %v3716, 4294901760
      %3920 = vmatpush1.msra.mxu0 %v3919
      %3921 = vmatprep.subr.mxu0 0.0
      %v3922 = vand.u32 %v3717, 4294901760
      %3923 = vmatpush1.msra.mxu0 %v3922
      %3924 = vmatprep.subr.mxu0 0.0
      %3925 = vmatpush1.msra.mxu0 0.0
      %3926 = vmatprep.subr.mxu0 0.0
      %3927 = vmatpush1.msra.mxu0 0.0
      %3928 = vmatprep.subr.mxu0 0.0
      %3929 = vmatpush1.msra.mxu0 0.0
      %3930 = vmatprep.subr.mxu0 0.0
      %3931 = vmatpush1.msra.mxu0 0.0
      %3932 = vmatprep.subr.mxu0 0.0
      %3933 = vmatpush1.msra.mxu0 0.0
      %3934 = vmatprep.subr.mxu0 0.0
      %3935 = vmatpush1.msra.mxu0 0.0
      %3936 = vmatprep.subr.mxu0 0.0
      %3937 = vmatpush1.msra.mxu0 0.0
      %3938 = vmatprep.subr.mxu0 0.0
      %3939 = vmatpush1.msra.mxu0 0.0
      %3940 = vmatprep.subr.mxu0 0.0
      %3941 = vmatpush1.msra.mxu0 0.0
      %3942 = vmatprep.subr.mxu0 0.0
      %3943 = vmatpush1.msra.mxu0 0.0
      %3944 = vmatprep.subr.mxu0 0.0
      %3945 = vmatpush1.msra.mxu0 0.0
      %3946 = vmatprep.subr.mxu0 0.0
      %3947 = vmatpush1.msra.mxu0 0.0
      %3948 = vmatprep.subr.mxu0 0.0
      %3949 = vmatpush1.msra.mxu0 0.0
      %3950 = vmatprep.subr.mxu0 0.0
      %3951 = vmatpush1.msra.mxu0 0.0
      %3952 = vmatprep.subr.mxu0 0.0
      %3953 = vmatpush1.msra.mxu0 0.0
      %3954 = vmatprep.subr.mxu0 0.0
      %3955 = vmatpush1.msra.mxu0 0.0
      %3956 = vmatprep.subr.mxu0 0.0
      %3957 = vmatpush1.msra.mxu0 0.0
      %3958 = vmatprep.subr.mxu0 0.0
      %3959 = vmatpush1.msra.mxu0 0.0
      %3960 = vmatprep.subr.mxu0 0.0
      %3961 = vmatpush1.msra.mxu0 0.0
      %3962 = vmatprep.subr.mxu0 0.0
      %3963 = vmatpush1.msra.mxu0 0.0
      %3964 = vmatprep.subr.mxu0 0.0
      %3965 = vmatpush1.msra.mxu0 0.0
      %3966 = vmatprep.subr.mxu0 0.0
      %3967 = vmatpush1.msra.mxu0 0.0
      %3968 = vmatprep.subr.mxu0 0.0
      %3969 = vmatpush1.msra.mxu0 0.0
      %3970 = vmatprep.subr.mxu0 0.0
      %3971 = vmatpush1.msra.mxu0 0.0
      %3972 = vmatprep.subr.mxu0 0.0
      %3973 = vmatpush1.msra.mxu0 0.0
      %3974 = vmatprep.subr.mxu0 0.0
      %3975 = vmatpush1.msra.mxu0 0.0
      %3976 = vmatprep.subr.mxu0 0.0
      %3977 = vmatpush1.msra.mxu0 0.0
      %3978 = vmatprep.subr.mxu0 0.0
      %3979 = vmatpush1.msra.mxu0 0.0
      %3980 = vmatprep.subr.mxu0 0.0
      %3981 = vmatpush1.msra.mxu0 0.0
      %3982 = vmatprep.subr.mxu0 0.0
      %3983 = vmatpush1.msra.mxu0 0.0
      %3984 = vmatprep.mubr.f32.mxu0 0.0
      %v3985 = vand.u32 %v3727, 4294901760
      %v3986 = vsub.f32 %v3727, %v3985
      %v3987 = vand.u32 %v3986, 4294901760
      %v3988 = vsub.f32 %v3986, %v3987
      %v3989 = vand.u32 %v3988, 4294901760
      %3990 = vmatmul.mubr.f32.gmra.mrb[0].mxu0 %v3989
      %v3991 = vpop.f32.mrb[0].mxu0
      %v3992 = vadd.f32 %v3723, %v3991
      %v3993 = vpop.f32.mrb[0].mxu0
      %3994 = vmatprep.mubr.f32.mxu0 0.0
      %v3995 = vand.u32 %v3730, 4294901760
      %v3996 = vsub.f32 %v3730, %v3995
      %v3997 = vand.u32 %v3996, 4294901760
      %v3998 = vsub.f32 %v3996, %v3997
      %v3999 = vand.u32 %v3998, 4294901760
      %4000 = vmatmul.mubr.f32.gmra.mrb[0].mxu0 %v3999
      %v4001 = vpop.f32.mrb[0].mxu0
      %v4002 = vadd.f32 %v3723, %v4001
      %v4003 = vpop.f32.mrb[0].mxu0
      %4004 = vmatprep.mubr.f32.mxu0 0.0
      %v4005 = vand.u32 %v3733, 4294901760
      %v4006 = vsub.f32 %v3733, %v4005
      %v4007 = vand.u32 %v4006, 4294901760
      %v4008 = vsub.f32 %v4006, %v4007
      %v4009 = vand.u32 %v4008, 4294901760
      %4010 = vmatmul.mubr.f32.gmra.mrb[0].mxu0 %v4009
      %v4011 = vpop.f32.mrb[0].mxu0
      %v4012 = vadd.f32 %v3723, %v4011
      %v4013 = vpop.f32.mrb[0].mxu0
      %4014 = vmatprep.mubr.f32.mxu0 0.0
      %v4015 = vand.u32 %v3736, 4294901760
      %v4016 = vsub.f32 %v3736, %v4015
      %v4017 = vand.u32 %v4016, 4294901760
      %v4018 = vsub.f32 %v4016, %v4017
      %v4019 = vand.u32 %v4018, 4294901760
      %4020 = vmatmul.mubr.f32.gmra.mrb[0].mxu0 %v4019
      %v4021 = vpop.f32.mrb[0].mxu0
      %v4022 = vadd.f32 %v3723, %v4021
      %v4023 = vpop.f32.mrb[0].mxu0
      %4024 = vmatprep.mubr.f32.mxu0 0.0
      %v4025 = vand.u32 %v3739, 4294901760
      %v4026 = vsub.f32 %v3739, %v4025
      %v4027 = vand.u32 %v4026, 4294901760
      %v4028 = vsub.f32 %v4026, %v4027
      %v4029 = vand.u32 %v4028, 4294901760
      %4030 = vmatmul.mubr.f32.gmra.mrb[0].mxu0 %v4029
      %v4031 = vpop.f32.mrb[0].mxu0
      %v4032 = vadd.f32 %v3723, %v4031
      %v4033 = vpop.f32.mrb[0].mxu0
      %4034 = vmatprep.mubr.f32.mxu0 0.0
      %v4035 = vand.u32 %v3742, 4294901760
      %v4036 = vsub.f32 %v3742, %v4035
      %v4037 = vand.u32 %v4036, 4294901760
      %v4038 = vsub.f32 %v4036, %v4037
      %v4039 = vand.u32 %v4038, 4294901760
      %4040 = vmatmul.mubr.f32.gmra.mrb[0].mxu0 %v4039
      %v4041 = vpop.f32.mrb[0].mxu0
      %v4042 = vadd.f32 %v3723, %v4041
      %v4043 = vpop.f32.mrb[0].mxu0
      %4044 = vmatprep.mubr.f32.mxu0 0.0
      %v4045 = vand.u32 %v3745, 4294901760
      %v4046 = vsub.f32 %v3745, %v4045
      %v4047 = vand.u32 %v4046, 4294901760
      %v4048 = vsub.f32 %v4046, %v4047
      %v4049 = vand.u32 %v4048, 4294901760
      %4050 = vmatmul.mubr.f32.gmra.mrb[0].mxu0 %v4049
      %v4051 = vpop.f32.mrb[0].mxu0
      %v4052 = vadd.f32 %v3723, %v4051
      %v4053 = vpop.f32.mrb[0].mxu0
      %4054 = vmatprep.mubr.f32.mxu0 0.0
      %v4055 = vand.u32 %v3748, 4294901760
      %v4056 = vsub.f32 %v3748, %v4055
      %v4057 = vand.u32 %v4056, 4294901760
      %v4058 = vsub.f32 %v4056, %v4057
      %v4059 = vand.u32 %v4058, 4294901760
      %4060 = vmatmul.mubr.f32.gmra.mrb[0].mxu0 %v4059
      %v4061 = vpop.f32.mrb[0].mxu0
      %v4062 = vadd.f32 %v3723, %v4061
      %v4063 = vpop.f32.mrb[0].mxu0
      %4064 = vmatprep.mubr.f32.mxu0 0.0
      %v4065 = vand.u32 %v3751, 4294901760
      %v4066 = vsub.f32 %v3751, %v4065
      %v4067 = vand.u32 %v4066, 4294901760
      %v4068 = vsub.f32 %v4066, %v4067
      %v4069 = vand.u32 %v4068, 4294901760
      %4070 = vmatmul.mubr.f32.gmra.mrb[0].mxu0 %v4069
      %v4071 = vpop.f32.mrb[0].mxu0
      %v4072 = vadd.f32 %v3723, %v4071
      %v4073 = vpop.f32.mrb[0].mxu0
      %4074 = vmatprep.mubr.f32.mxu0 0.0
      %v4075 = vand.u32 %v3754, 4294901760
      %v4076 = vsub.f32 %v3754, %v4075
      %v4077 = vand.u32 %v4076, 4294901760
      %v4078 = vsub.f32 %v4076, %v4077
      %v4079 = vand.u32 %v4078, 4294901760
      %4080 = vmatmul.mubr.f32.gmra.mrb[0].mxu0 %v4079
      %v4081 = vpop.f32.mrb[0].mxu0
      %v4082 = vadd.f32 %v3723, %v4081
      %v4083 = vpop.f32.mrb[0].mxu0
      %4084 = vmatprep.mubr.f32.mxu0 0.0
      %v4085 = vand.u32 %v3757, 4294901760
      %v4086 = vsub.f32 %v3757, %v4085
      %v4087 = vand.u32 %v4086, 4294901760
      %v4088 = vsub.f32 %v4086, %v4087
      %v4089 = vand.u32 %v4088, 4294901760
      %4090 = vmatmul.mubr.f32.gmra.mrb[0].mxu0 %v4089
      %v4091 = vpop.f32.mrb[0].mxu0
      %v4092 = vadd.f32 %v3723, %v4091
      %v4093 = vpop.f32.mrb[0].mxu0
      %4094 = vmatprep.mubr.f32.mxu0 0.0
      %v4095 = vand.u32 %v3760, 4294901760
      %v4096 = vsub.f32 %v3760, %v4095
      %v4097 = vand.u32 %v4096, 4294901760
      %v4098 = vsub.f32 %v4096, %v4097
      %v4099 = vand.u32 %v4098, 4294901760
      %4100 = vmatmul.mubr.f32.gmra.mrb[0].mxu0 %v4099
      %v4101 = vpop.f32.mrb[0].mxu0
      %v4102 = vadd.f32 %v3723, %v4101
      %v4103 = vpop.f32.mrb[0].mxu0
      %4104 = vmatprep.mubr.f32.mxu0 0.0
      %v4105 = vand.u32 %v3763, 4294901760
      %v4106 = vsub.f32 %v3763, %v4105
      %v4107 = vand.u32 %v4106, 4294901760
      %v4108 = vsub.f32 %v4106, %v4107
      %v4109 = vand.u32 %v4108, 4294901760
      %4110 = vmatmul.mubr.f32.gmra.mrb[0].mxu0 %v4109
      %v4111 = vpop.f32.mrb[0].mxu0
      %v4112 = vadd.f32 %v3723, %v4111
      %v4113 = vpop.f32.mrb[0].mxu0
      %4114 = vmatprep.mubr.f32.mxu0 0.0
      %v4115 = vand.u32 %v3766, 4294901760
      %v4116 = vsub.f32 %v3766, %v4115
      %v4117 = vand.u32 %v4116, 4294901760
      %v4118 = vsub.f32 %v4116, %v4117
      %v4119 = vand.u32 %v4118, 4294901760
      %4120 = vmatmul.mubr.f32.gmra.mrb[0].mxu0 %v4119
      %v4121 = vpop.f32.mrb[0].mxu0
      %v4122 = vadd.f32 %v3723, %v4121
      %v4123 = vpop.f32.mrb[0].mxu0
      %4124 = vmatprep.mubr.f32.mxu0 0.0
      %v4125 = vand.u32 %v3769, 4294901760
      %v4126 = vsub.f32 %v3769, %v4125
      %v4127 = vand.u32 %v4126, 4294901760
      %v4128 = vsub.f32 %v4126, %v4127
      %v4129 = vand.u32 %v4128, 4294901760
      %4130 = vmatmul.mubr.f32.gmra.mrb[0].mxu0 %v4129
      %v4131 = vpop.f32.mrb[0].mxu0
      %v4132 = vadd.f32 %v3723, %v4131
      %v4133 = vpop.f32.mrb[0].mxu0
      %4134 = vmatprep.mubr.f32.mxu0 0.0
      %v4135 = vand.u32 %v3772, 4294901760
      %v4136 = vsub.f32 %v3772, %v4135
      %v4137 = vand.u32 %v4136, 4294901760
      %v4138 = vsub.f32 %v4136, %v4137
      %v4139 = vand.u32 %v4138, 4294901760
      %4140 = vmatmul.mubr.f32.gmra.mrb[0].mxu0 %v4139
      %v4141 = vpop.f32.mrb[0].mxu0
      %v4142 = vadd.f32 %v3723, %v4141
      %v4143 = vpop.f32.mrb[0].mxu0
      %4144 = vmatprep.mubr.f32.mxu0 0.0
      %v4145 = vand.u32 %v3775, 4294901760
      %v4146 = vsub.f32 %v3775, %v4145
      %v4147 = vand.u32 %v4146, 4294901760
      %v4148 = vsub.f32 %v4146, %v4147
      %v4149 = vand.u32 %v4148, 4294901760
      %4150 = vmatmul.mubr.f32.gmra.mrb[0].mxu0 %v4149
      %v4151 = vpop.f32.mrb[0].mxu0
      %v4152 = vadd.f32 %v3723, %v4151
      %v4153 = vpop.f32.mrb[0].mxu0
      %4154 = vmatprep.mubr.f32.mxu0 0.0
      %v4155 = vand.u32 %v3778, 4294901760
      %v4156 = vsub.f32 %v3778, %v4155
      %v4157 = vand.u32 %v4156, 4294901760
      %v4158 = vsub.f32 %v4156, %v4157
      %v4159 = vand.u32 %v4158, 4294901760
      %4160 = vmatmul.mubr.f32.gmra.mrb[0].mxu0 %v4159
      %v4161 = vpop.f32.mrb[0].mxu0
      %v4162 = vadd.f32 %v3723, %v4161
      %v4163 = vpop.f32.mrb[0].mxu0
      %4164 = vmatprep.mubr.f32.mxu0 0.0
      %v4165 = vand.u32 %v3781, 4294901760
      %v4166 = vsub.f32 %v3781, %v4165
      %v4167 = vand.u32 %v4166, 4294901760
      %v4168 = vsub.f32 %v4166, %v4167
      %v4169 = vand.u32 %v4168, 4294901760
      %4170 = vmatmul.mubr.f32.gmra.mrb[0].mxu0 %v4169
      %v4171 = vpop.f32.mrb[0].mxu0
      %v4172 = vadd.f32 %v3723, %v4171
      %v4173 = vpop.f32.mrb[0].mxu0
      %4174 = vmatprep.mubr.f32.mxu0 0.0
      %v4175 = vand.u32 %v3784, 4294901760
      %v4176 = vsub.f32 %v3784, %v4175
      %v4177 = vand.u32 %v4176, 4294901760
      %v4178 = vsub.f32 %v4176, %v4177
      %v4179 = vand.u32 %v4178, 4294901760
      %4180 = vmatmul.mubr.f32.gmra.mrb[0].mxu0 %v4179
      %v4181 = vpop.f32.mrb[0].mxu0
      %v4182 = vadd.f32 %v3723, %v4181
      %v4183 = vpop.f32.mrb[0].mxu0
      %4184 = vmatprep.mubr.f32.mxu0 0.0
      %v4185 = vand.u32 %v3787, 4294901760
      %v4186 = vsub.f32 %v3787, %v4185
      %v4187 = vand.u32 %v4186, 4294901760
      %v4188 = vsub.f32 %v4186, %v4187
      %v4189 = vand.u32 %v4188, 4294901760
      %4190 = vmatmul.mubr.f32.gmra.mrb[0].mxu0 %v4189
      %v4191 = vpop.f32.mrb[0].mxu0
      %v4192 = vadd.f32 %v3723, %v4191
      %v4193 = vpop.f32.mrb[0].mxu0
      %4194 = vmatprep.mubr.f32.mxu0 0.0
      %v4195 = vand.u32 %v3790, 4294901760
      %v4196 = vsub.f32 %v3790, %v4195
      %v4197 = vand.u32 %v4196, 4294901760
      %v4198 = vsub.f32 %v4196, %v4197
      %v4199 = vand.u32 %v4198, 4294901760
      %4200 = vmatmul.mubr.f32.gmra.mrb[0].mxu0 %v4199
      %v4201 = vpop.f32.mrb[0].mxu0
      %v4202 = vadd.f32 %v3723, %v4201
      %v4203 = vpop.f32.mrb[0].mxu0
      %4204 = vmatprep.mubr.f32.mxu0 0.0
      %v4205 = vand.u32 %v3793, 4294901760
      %v4206 = vsub.f32 %v3793, %v4205
      %v4207 = vand.u32 %v4206, 4294901760
      %v4208 = vsub.f32 %v4206, %v4207
      %v4209 = vand.u32 %v4208, 4294901760
      %4210 = vmatmul.mubr.f32.gmra.mrb[0].mxu0 %v4209
      %v4211 = vpop.f32.mrb[0].mxu0
      %v4212 = vadd.f32 %v3723, %v4211
      %v4213 = vpop.f32.mrb[0].mxu0
      %4214 = vmatprep.mubr.f32.mxu0 0.0
      %v4215 = vand.u32 %v3796, 4294901760
      %v4216 = vsub.f32 %v3796, %v4215
      %v4217 = vand.u32 %v4216, 4294901760
      %v4218 = vsub.f32 %v4216, %v4217
      %v4219 = vand.u32 %v4218, 4294901760
      %4220 = vmatmul.mubr.f32.gmra.mrb[0].mxu0 %v4219
      %v4221 = vpop.f32.mrb[0].mxu0
      %v4222 = vadd.f32 %v3723, %v4221
      %v4223 = vpop.f32.mrb[0].mxu0
      %4224 = vmatprep.mubr.f32.mxu0 0.0
      %v4225 = vand.u32 %v3799, 4294901760
      %v4226 = vsub.f32 %v3799, %v4225
      %v4227 = vand.u32 %v4226, 4294901760
      %v4228 = vsub.f32 %v4226, %v4227
      %v4229 = vand.u32 %v4228, 4294901760
      %4230 = vmatmul.mubr.f32.gmra.mrb[0].mxu0 %v4229
      %v4231 = vpop.f32.mrb[0].mxu0
      %v4232 = vadd.f32 %v3723, %v4231
      %v4233 = vpop.f32.mrb[0].mxu0
      %4234 = vmatprep.mubr.f32.mxu0 0.0
      %v4235 = vand.u32 %v3802, 4294901760
      %v4236 = vsub.f32 %v3802, %v4235
      %v4237 = vand.u32 %v4236, 4294901760
      %v4238 = vsub.f32 %v4236, %v4237
      %v4239 = vand.u32 %v4238, 4294901760
      %4240 = vmatmul.mubr.f32.gmra.mrb[0].mxu0 %v4239
      %v4241 = vpop.f32.mrb[0].mxu0
      %v4242 = vadd.f32 %v3723, %v4241
      %v4243 = vpop.f32.mrb[0].mxu0
      %4244 = vmatprep.mubr.f32.mxu0 0.0
      %v4245 = vand.u32 %v3805, 4294901760
      %v4246 = vsub.f32 %v3805, %v4245
      %v4247 = vand.u32 %v4246, 4294901760
      %v4248 = vsub.f32 %v4246, %v4247
      %v4249 = vand.u32 %v4248, 4294901760
      %4250 = vmatmul.mubr.f32.gmra.mrb[0].mxu0 %v4249
      %v4251 = vpop.f32.mrb[0].mxu0
      %v4252 = vadd.f32 %v3723, %v4251
      %v4253 = vpop.f32.mrb[0].mxu0
      %4254 = vmatprep.mubr.f32.mxu0 0.0
      %v4255 = vand.u32 %v3808, 4294901760
      %v4256 = vsub.f32 %v3808, %v4255
      %v4257 = vand.u32 %v4256, 4294901760
      %v4258 = vsub.f32 %v4256, %v4257
      %v4259 = vand.u32 %v4258, 4294901760
      %4260 = vmatmul.mubr.f32.gmra.mrb[0].mxu0 %v4259
      %v4261 = vpop.f32.mrb[0].mxu0
      %v4262 = vadd.f32 %v3723, %v4261
      %v4263 = vpop.f32.mrb[0].mxu0
      %4264 = vmatprep.mubr.f32.mxu0 0.0
      %v4265 = vand.u32 %v3811, 4294901760
      %v4266 = vsub.f32 %v3811, %v4265
      %v4267 = vand.u32 %v4266, 4294901760
      %v4268 = vsub.f32 %v4266, %v4267
      %v4269 = vand.u32 %v4268, 4294901760
      %4270 = vmatmul.mubr.f32.gmra.mrb[0].mxu0 %v4269
      %v4271 = vpop.f32.mrb[0].mxu0
      %v4272 = vadd.f32 %v3723, %v4271
      %v4273 = vpop.f32.mrb[0].mxu0
      %4274 = vmatprep.mubr.f32.mxu0 0.0
      %v4275 = vand.u32 %v3814, 4294901760
      %v4276 = vsub.f32 %v3814, %v4275
      %v4277 = vand.u32 %v4276, 4294901760
      %v4278 = vsub.f32 %v4276, %v4277
      %v4279 = vand.u32 %v4278, 4294901760
      %4280 = vmatmul.mubr.f32.gmra.mrb[0].mxu0 %v4279
      %v4281 = vpop.f32.mrb[0].mxu0
      %v4282 = vadd.f32 %v3723, %v4281
      %v4283 = vpop.f32.mrb[0].mxu0
      %4284 = vmatprep.mubr.f32.mxu0 0.0
      %v4285 = vand.u32 %v3817, 4294901760
      %v4286 = vsub.f32 %v3817, %v4285
      %v4287 = vand.u32 %v4286, 4294901760
      %v4288 = vsub.f32 %v4286, %v4287
      %v4289 = vand.u32 %v4288, 4294901760
      %4290 = vmatmul.mubr.f32.gmra.mrb[0].mxu0 %v4289
      %v4291 = vpop.f32.mrb[0].mxu0
      %v4292 = vadd.f32 %v3723, %v4291
      %v4293 = vpop.f32.mrb[0].mxu0
      %4294 = vmatprep.mubr.f32.mxu0 0.0
      %v4295 = vand.u32 %v3820, 4294901760
      %v4296 = vsub.f32 %v3820, %v4295
      %v4297 = vand.u32 %v4296, 4294901760
      %v4298 = vsub.f32 %v4296, %v4297
      %v4299 = vand.u32 %v4298, 4294901760
      %4300 = vmatmul.mubr.f32.gmra.mrb[0].mxu0 %v4299
      %v4301 = vpop.f32.mrb[0].mxu0
      %v4302 = vadd.f32 %v3723, %v4301
      %v4303 = vpop.f32.mrb[0].mxu0
      %4304 = vmatprep.mubr.f32.mxu0 0.0
      %v4305 = vand.u32 %v3823, 4294901760
      %v4306 = vsub.f32 %v3823, %v4305
      %v4307 = vand.u32 %v4306, 4294901760
      %v4308 = vsub.f32 %v4306, %v4307
      %v4309 = vand.u32 %v4308, 4294901760
      %4310 = vmatmul.mubr.f32.gmra.mrb[0].mxu0 %v4309
      %v4311 = vpop.f32.mrb[0].mxu0
      %v4312 = vadd.f32 %v3723, %v4311
      %v4313 = vpop.f32.mrb[0].mxu0
      %4314 = vmatprep.mubr.f32.mxu0 0.0
      %v4315 = vand.u32 %v3826, 4294901760
      %v4316 = vsub.f32 %v3826, %v4315
      %v4317 = vand.u32 %v4316, 4294901760
      %v4318 = vsub.f32 %v4316, %v4317
      %v4319 = vand.u32 %v4318, 4294901760
      %4320 = vmatmul.mubr.f32.gmra.mrb[0].mxu0 %v4319
      %v4321 = vpop.f32.mrb[0].mxu0
      %v4322 = vadd.f32 %v3723, %v4321
      %v4323 = vpop.f32.mrb[0].mxu0
      %4324 = vmatprep.mubr.f32.mxu0 0.0
      %v4325 = vand.u32 %v3829, 4294901760
      %v4326 = vsub.f32 %v3829, %v4325
      %v4327 = vand.u32 %v4326, 4294901760
      %v4328 = vsub.f32 %v4326, %v4327
      %v4329 = vand.u32 %v4328, 4294901760
      %4330 = vmatmul.mubr.f32.gmra.mrb[0].mxu0 %v4329
      %v4331 = vpop.f32.mrb[0].mxu0
      %v4332 = vadd.f32 %v3723, %v4331
      %v4333 = vpop.f32.mrb[0].mxu0
      %4334 = vmatprep.mubr.f32.mxu0 0.0
      %v4335 = vand.u32 %v3832, 4294901760
      %v4336 = vsub.f32 %v3832, %v4335
      %v4337 = vand.u32 %v4336, 4294901760
      %v4338 = vsub.f32 %v4336, %v4337
      %v4339 = vand.u32 %v4338, 4294901760
      %4340 = vmatmul.mubr.f32.gmra.mrb[0].mxu0 %v4339
      %v4341 = vpop.f32.mrb[0].mxu0
      %v4342 = vadd.f32 %v3723, %v4341
      %v4343 = vpop.f32.mrb[0].mxu0
      %4344 = vmatprep.mubr.f32.mxu0 0.0
      %v4345 = vand.u32 %v3835, 4294901760
      %v4346 = vsub.f32 %v3835, %v4345
      %v4347 = vand.u32 %v4346, 4294901760
      %v4348 = vsub.f32 %v4346, %v4347
      %v4349 = vand.u32 %v4348, 4294901760
      %4350 = vmatmul.mubr.f32.gmra.mrb[0].mxu0 %v4349
      %v4351 = vpop.f32.mrb[0].mxu0
      %v4352 = vadd.f32 %v3723, %v4351
      %v4353 = vpop.f32.mrb[0].mxu0
      %4354 = vmatprep.mubr.f32.mxu0 0.0
      %v4355 = vand.u32 %v3838, 4294901760
      %v4356 = vsub.f32 %v3838, %v4355
      %v4357 = vand.u32 %v4356, 4294901760
      %v4358 = vsub.f32 %v4356, %v4357
      %v4359 = vand.u32 %v4358, 4294901760
      %4360 = vmatmul.mubr.f32.gmra.mrb[0].mxu0 %v4359
      %v4361 = vpop.f32.mrb[0].mxu0
      %v4362 = vadd.f32 %v3723, %v4361
      %v4363 = vpop.f32.mrb[0].mxu0
      %4364 = vmatprep.mubr.f32.mxu0 0.0
      %v4365 = vand.u32 %v3841, 4294901760
      %v4366 = vsub.f32 %v3841, %v4365
      %v4367 = vand.u32 %v4366, 4294901760
      %v4368 = vsub.f32 %v4366, %v4367
      %v4369 = vand.u32 %v4368, 4294901760
      %4370 = vmatmul.mubr.f32.gmra.mrb[0].mxu0 %v4369
      %v4371 = vpop.f32.mrb[0].mxu0
      %v4372 = vadd.f32 %v3723, %v4371
      %v4373 = vpop.f32.mrb[0].mxu0
      %4374 = vmatprep.mubr.f32.mxu0 0.0
      %v4375 = vand.u32 %v3844, 4294901760
      %v4376 = vsub.f32 %v3844, %v4375
      %v4377 = vand.u32 %v4376, 4294901760
      %v4378 = vsub.f32 %v4376, %v4377
      %v4379 = vand.u32 %v4378, 4294901760
      %4380 = vmatmul.mubr.f32.gmra.mrb[0].mxu0 %v4379
      %v4381 = vpop.f32.mrb[0].mxu0
      %v4382 = vadd.f32 %v3723, %v4381
      %v4383 = vpop.f32.mrb[0].mxu0
      %4384 = vmatprep.mubr.f32.mxu0 0.0
      %v4385 = vand.u32 %v3847, 4294901760
      %v4386 = vsub.f32 %v3847, %v4385
      %v4387 = vand.u32 %v4386, 4294901760
      %v4388 = vsub.f32 %v4386, %v4387
      %v4389 = vand.u32 %v4388, 4294901760
      %4390 = vmatmul.mubr.f32.gmra.mrb[0].mxu0 %v4389
      %v4391 = vpop.f32.mrb[0].mxu0
      %v4392 = vadd.f32 %v3723, %v4391
      %v4393 = vpop.f32.mrb[0].mxu0
      %4394 = vmatprep.mubr.f32.mxu0 0.0
      %v4395 = vand.u32 %v3850, 4294901760
      %v4396 = vsub.f32 %v3850, %v4395
      %v4397 = vand.u32 %v4396, 4294901760
      %v4398 = vsub.f32 %v4396, %v4397
      %v4399 = vand.u32 %v4398, 4294901760
      %4400 = vmatmul.mubr.f32.gmra.mrb[0].mxu0 %v4399
      %v4401 = vpop.f32.mrb[0].mxu0
      %v4402 = vadd.f32 %v3723, %v4401
      %v4403 = vpop.f32.mrb[0].mxu0
      %4404 = vmatprep.mubr.f32.mxu0 0.0
      %v4405 = vand.u32 %v3853, 4294901760
      %v4406 = vsub.f32 %v3853, %v4405
      %v4407 = vand.u32 %v4406, 4294901760
      %v4408 = vsub.f32 %v4406, %v4407
      %v4409 = vand.u32 %v4408, 4294901760
      %4410 = vmatmul.mubr.f32.gmra.mrb[0].mxu0 %v4409
      %v4411 = vpop.f32.mrb[0].mxu0
      %v4412 = vadd.f32 %v3723, %v4411
      %v4413 = vpop.f32.mrb[0].mxu0
      %4414 = vmatprep.mubr.f32.mxu0 0.0
      %v4415 = vand.u32 %v3856, 4294901760
      %v4416 = vsub.f32 %v3856, %v4415
      %v4417 = vand.u32 %v4416, 4294901760
      %v4418 = vsub.f32 %v4416, %v4417
      %v4419 = vand.u32 %v4418, 4294901760
      %4420 = vmatmul.mubr.f32.gmra.mrb[0].mxu0 %v4419
      %v4421 = vpop.f32.mrb[0].mxu0
      %v4422 = vadd.f32 %v3723, %v4421
      %v4423 = vpop.f32.mrb[0].mxu0
      %4424 = vmatprep.mubr.f32.mxu0 0.0
      %v4425 = vand.u32 %v3859, 4294901760
      %v4426 = vsub.f32 %v3859, %v4425
      %v4427 = vand.u32 %v4426, 4294901760
      %v4428 = vsub.f32 %v4426, %v4427
      %v4429 = vand.u32 %v4428, 4294901760
      %4430 = vmatmul.mubr.f32.gmra.mrb[0].mxu0 %v4429
      %v4431 = vpop.f32.mrb[0].mxu0
      %v4432 = vadd.f32 %v3723, %v4431
      %v4433 = vpop.f32.mrb[0].mxu0
      %4434 = vmatprep.mubr.f32.mxu0 0.0
      %v4435 = vand.u32 %v3862, 4294901760
      %v4436 = vsub.f32 %v3862, %v4435
      %v4437 = vand.u32 %v4436, 4294901760
      %v4438 = vsub.f32 %v4436, %v4437
      %v4439 = vand.u32 %v4438, 4294901760
      %4440 = vmatmul.mubr.f32.gmra.mrb[0].mxu0 %v4439
      %v4441 = vpop.f32.mrb[0].mxu0
      %v4442 = vadd.f32 %v3723, %v4441
      %v4443 = vpop.f32.mrb[0].mxu0
      %4444 = vmatprep.mubr.f32.mxu0 0.0
      %v4445 = vand.u32 %v3865, 4294901760
      %v4446 = vsub.f32 %v3865, %v4445
      %v4447 = vand.u32 %v4446, 4294901760
      %v4448 = vsub.f32 %v4446, %v4447
      %v4449 = vand.u32 %v4448, 4294901760
      %4450 = vmatmul.mubr.f32.gmra.mrb[0].mxu0 %v4449
      %v4451 = vpop.f32.mrb[0].mxu0
      %v4452 = vadd.f32 %v3723, %v4451
      %v4453 = vpop.f32.mrb[0].mxu0
      %4454 = vmatprep.mubr.f32.mxu0 0.0
      %v4455 = vand.u32 %v3868, 4294901760
      %v4456 = vsub.f32 %v3868, %v4455
      %v4457 = vand.u32 %v4456, 4294901760
      %v4458 = vsub.f32 %v4456, %v4457
      %v4459 = vand.u32 %v4458, 4294901760
      %4460 = vmatmul.mubr.f32.gmra.mrb[0].mxu0 %v4459
      %v4461 = vpop.f32.mrb[0].mxu0
      %v4462 = vadd.f32 %v3723, %v4461
      %v4463 = vpop.f32.mrb[0].mxu0
      %4464 = vmatprep.mubr.f32.mxu0 0.0
      %v4465 = vand.u32 %v3871, 4294901760
      %v4466 = vsub.f32 %v3871, %v4465
      %v4467 = vand.u32 %v4466, 4294901760
      %v4468 = vsub.f32 %v4466, %v4467
      %v4469 = vand.u32 %v4468, 4294901760
      %4470 = vmatmul.mubr.f32.gmra.mrb[0].mxu0 %v4469
      %v4471 = vpop.f32.mrb[0].mxu0
      %v4472 = vadd.f32 %v3723, %v4471
      %v4473 = vpop.f32.mrb[0].mxu0
      %4474 = vmatprep.mubr.f32.mxu0 0.0
      %v4475 = vand.u32 %v3874, 4294901760
      %v4476 = vsub.f32 %v3874, %v4475
      %v4477 = vand.u32 %v4476, 4294901760
      %v4478 = vsub.f32 %v4476, %v4477
      %v4479 = vand.u32 %v4478, 4294901760
      %4480 = vmatmul.mubr.f32.gmra.mrb[0].mxu0 %v4479
      %v4481 = vpop.f32.mrb[0].mxu0
      %v4482 = vadd.f32 %v3723, %v4481
      %v4483 = vpop.f32.mrb[0].mxu0
      %4484 = vmatprep.mubr.f32.mxu0 0.0
      %v4485 = vand.u32 %v3877, 4294901760
      %v4486 = vsub.f32 %v3877, %v4485
      %v4487 = vand.u32 %v4486, 4294901760
      %v4488 = vsub.f32 %v4486, %v4487
      %v4489 = vand.u32 %v4488, 4294901760
      %4490 = vmatmul.mubr.f32.gmra.mrb[0].mxu0 %v4489
      %v4491 = vpop.f32.mrb[0].mxu0
      %v4492 = vadd.f32 %v3723, %v4491
      %v4493 = vpop.f32.mrb[0].mxu0
      %4494 = vmatprep.mubr.f32.mxu0 0.0
      %v4495 = vand.u32 %v3880, 4294901760
      %v4496 = vsub.f32 %v3880, %v4495
      %v4497 = vand.u32 %v4496, 4294901760
      %v4498 = vsub.f32 %v4496, %v4497
      %v4499 = vand.u32 %v4498, 4294901760
      %4500 = vmatmul.mubr.f32.gmra.mrb[0].mxu0 %v4499
      %v4501 = vpop.f32.mrb[0].mxu0
      %v4502 = vadd.f32 %v3723, %v4501
      %v4503 = vpop.f32.mrb[0].mxu0
      %4504 = vmatprep.mubr.f32.mxu0 0.0
      %v4505 = vand.u32 %v3883, 4294901760
      %v4506 = vsub.f32 %v3883, %v4505
      %v4507 = vand.u32 %v4506, 4294901760
      %v4508 = vsub.f32 %v4506, %v4507
      %v4509 = vand.u32 %v4508, 4294901760
      %4510 = vmatmul.mubr.f32.gmra.mrb[0].mxu0 %v4509
      %v4511 = vpop.f32.mrb[0].mxu0
      %v4512 = vadd.f32 %v3723, %v4511
      %v4513 = vpop.f32.mrb[0].mxu0
      %4514 = vmatprep.mubr.f32.mxu0 0.0
      %v4515 = vand.u32 %v3886, 4294901760
      %v4516 = vsub.f32 %v3886, %v4515
      %v4517 = vand.u32 %v4516, 4294901760
      %v4518 = vsub.f32 %v4516, %v4517
      %v4519 = vand.u32 %v4518, 4294901760
      %4520 = vmatmul.mubr.f32.gmra.mrb[0].mxu0 %v4519
      %v4521 = vpop.f32.mrb[0].mxu0
      %v4522 = vadd.f32 %v3723, %v4521
      %v4523 = vpop.f32.mrb[0].mxu0
      %4524 = vmatprep.mubr.f32.mxu0 0.0
      %v4525 = vand.u32 %v3889, 4294901760
      %v4526 = vsub.f32 %v3889, %v4525
      %v4527 = vand.u32 %v4526, 4294901760
      %v4528 = vsub.f32 %v4526, %v4527
      %v4529 = vand.u32 %v4528, 4294901760
      %4530 = vmatmul.mubr.f32.gmra.mrb[0].mxu0 %v4529
      %v4531 = vpop.f32.mrb[0].mxu0
      %v4532 = vadd.f32 %v3723, %v4531
      %v4533 = vpop.f32.mrb[0].mxu0
      %4534 = vmatprep.mubr.f32.mxu0 0.0
      %v4535 = vand.u32 %v3892, 4294901760
      %v4536 = vsub.f32 %v3892, %v4535
      %v4537 = vand.u32 %v4536, 4294901760
      %v4538 = vsub.f32 %v4536, %v4537
      %v4539 = vand.u32 %v4538, 4294901760
      %4540 = vmatmul.mubr.f32.gmra.mrb[0].mxu0 %v4539
      %v4541 = vpop.f32.mrb[0].mxu0
      %v4542 = vadd.f32 %v3723, %v4541
      %v4543 = vpop.f32.mrb[0].mxu0
      %4544 = vmatprep.mubr.f32.mxu0 0.0
      %v4545 = vand.u32 %v3895, 4294901760
      %v4546 = vsub.f32 %v3895, %v4545
      %v4547 = vand.u32 %v4546, 4294901760
      %v4548 = vsub.f32 %v4546, %v4547
      %v4549 = vand.u32 %v4548, 4294901760
      %4550 = vmatmul.mubr.f32.gmra.mrb[0].mxu0 %v4549
      %v4551 = vpop.f32.mrb[0].mxu0
      %v4552 = vadd.f32 %v3723, %v4551
      %v4553 = vpop.f32.mrb[0].mxu0
      %4554 = vmatprep.mubr.f32.mxu0 0.0
      %v4555 = vand.u32 %v3898, 4294901760
      %v4556 = vsub.f32 %v3898, %v4555
      %v4557 = vand.u32 %v4556, 4294901760
      %v4558 = vsub.f32 %v4556, %v4557
      %v4559 = vand.u32 %v4558, 4294901760
      %4560 = vmatmul.mubr.f32.gmra.mrb[0].mxu0 %v4559
      %v4561 = vpop.f32.mrb[0].mxu0
      %v4562 = vadd.f32 %v3723, %v4561
      %v4563 = vpop.f32.mrb[0].mxu0
      %4564 = vmatprep.mubr.f32.mxu0 0.0
      %v4565 = vand.u32 %v3901, 4294901760
      %v4566 = vsub.f32 %v3901, %v4565
      %v4567 = vand.u32 %v4566, 4294901760
      %v4568 = vsub.f32 %v4566, %v4567
      %v4569 = vand.u32 %v4568, 4294901760
      %4570 = vmatmul.mubr.f32.gmra.mrb[0].mxu0 %v4569
      %v4571 = vpop.f32.mrb[0].mxu0
      %v4572 = vadd.f32 %v3723, %v4571
      %v4573 = vpop.f32.mrb[0].mxu0
      %4574 = vmatprep.mubr.f32.mxu0 0.0
      %v4575 = vand.u32 %v3904, 4294901760
      %v4576 = vsub.f32 %v3904, %v4575
      %v4577 = vand.u32 %v4576, 4294901760
      %v4578 = vsub.f32 %v4576, %v4577
      %v4579 = vand.u32 %v4578, 4294901760
      %4580 = vmatmul.mubr.f32.gmra.mrb[0].mxu0 %v4579
      %v4581 = vpop.f32.mrb[0].mxu0
      %v4582 = vadd.f32 %v3723, %v4581
      %v4583 = vpop.f32.mrb[0].mxu0
      %4584 = vmatprep.mubr.f32.mxu0 0.0
      %v4585 = vand.u32 %v3907, 4294901760
      %v4586 = vsub.f32 %v3907, %v4585
      %v4587 = vand.u32 %v4586, 4294901760
      %v4588 = vsub.f32 %v4586, %v4587
      %v4589 = vand.u32 %v4588, 4294901760
      %4590 = vmatmul.mubr.f32.gmra.mrb[0].mxu0 %v4589
      %v4591 = vpop.f32.mrb[0].mxu0
      %v4592 = vadd.f32 %v3723, %v4591
      %v4593 = vpop.f32.mrb[0].mxu0
      %4594 = vmatprep.mubr.f32.mxu0 0.0
      %v4595 = vand.u32 %v3910, 4294901760
      %v4596 = vsub.f32 %v3910, %v4595
      %v4597 = vand.u32 %v4596, 4294901760
      %v4598 = vsub.f32 %v4596, %v4597
      %v4599 = vand.u32 %v4598, 4294901760
      %4600 = vmatmul.mubr.f32.gmra.mrb[0].mxu0 %v4599
      %v4601 = vpop.f32.mrb[0].mxu0
      %v4602 = vadd.f32 %v3723, %v4601
      %v4603 = vpop.f32.mrb[0].mxu0
      %4604 = vmatprep.mubr.f32.mxu0 0.0
      %v4605 = vand.u32 %v3913, 4294901760
      %v4606 = vsub.f32 %v3913, %v4605
      %v4607 = vand.u32 %v4606, 4294901760
      %v4608 = vsub.f32 %v4606, %v4607
      %v4609 = vand.u32 %v4608, 4294901760
      %4610 = vmatmul.mubr.f32.gmra.mrb[0].mxu0 %v4609
      %v4611 = vpop.f32.mrb[0].mxu0
      %v4612 = vadd.f32 %v3723, %v4611
      %v4613 = vpop.f32.mrb[0].mxu0
      %4614 = vmatprep.mubr.f32.mxu0 0.0
      %v4615 = vand.u32 %v3916, 4294901760
      %v4616 = vsub.f32 %v3916, %v4615
      %v4617 = vand.u32 %v4616, 4294901760
      %v4618 = vsub.f32 %v4616, %v4617
      %v4619 = vand.u32 %v4618, 4294901760
      %4620 = vmatmul.mubr.f32.gmra.mrb[0].mxu0 %v4619
      %v4621 = vpop.f32.mrb[0].mxu0
      %v4622 = vadd.f32 %v3723, %v4621
      %v4623 = vpop.f32.mrb[0].mxu0
      %4624 = vdwg.mxu0
      %4625 = vmatprep.subr.mxu0 0.0
      %v4626 = vand.u32 %v3716, 4294901760
      %v4627 = vsub.f32 %v3716, %v4626
      %v4628 = vand.u32 %v4627, 4294901760
      %v4629 = vsub.f32 %v4627, %v4628
      %v4630 = vand.u32 %v4629, 4294901760
      %4631 = vmatpush1.msra.mxu0 %v4630
      %4632 = vmatprep.subr.mxu0 0.0
      %v4633 = vand.u32 %v3717, 4294901760
      %v4634 = vsub.f32 %v3717, %v4633
      %v4635 = vand.u32 %v4634, 4294901760
      %v4636 = vsub.f32 %v4634, %v4635
      %v4637 = vand.u32 %v4636, 4294901760
      %4638 = vmatpush1.msra.mxu0 %v4637
      %4639 = vmatprep.subr.mxu0 0.0
      %4640 = vmatpush1.msra.mxu0 0.0
      %4641 = vmatprep.subr.mxu0 0.0
      %4642 = vmatpush1.msra.mxu0 0.0
      %4643 = vmatprep.subr.mxu0 0.0
      %4644 = vmatpush1.msra.mxu0 0.0
      %4645 = vmatprep.subr.mxu0 0.0
      %4646 = vmatpush1.msra.mxu0 0.0
      %4647 = vmatprep.subr.mxu0 0.0
      %4648 = vmatpush1.msra.mxu0 0.0
      %4649 = vmatprep.subr.mxu0 0.0
      %4650 = vmatpush1.msra.mxu0 0.0
      %4651 = vmatprep.subr.mxu0 0.0
      %4652 = vmatpush1.msra.mxu0 0.0
      %4653 = vmatprep.subr.mxu0 0.0
      %4654 = vmatpush1.msra.mxu0 0.0
      %4655 = vmatprep.subr.mxu0 0.0
      %4656 = vmatpush1.msra.mxu0 0.0
      %4657 = vmatprep.subr.mxu0 0.0
      %4658 = vmatpush1.msra.mxu0 0.0
      %4659 = vmatprep.subr.mxu0 0.0
      %4660 = vmatpush1.msra.mxu0 0.0
      %4661 = vmatprep.subr.mxu0 0.0
      %4662 = vmatpush1.msra.mxu0 0.0
      %4663 = vmatprep.subr.mxu0 0.0
      %4664 = vmatpush1.msra.mxu0 0.0
      %4665 = vmatprep.subr.mxu0 0.0
      %4666 = vmatpush1.msra.mxu0 0.0
      %4667 = vmatprep.subr.mxu0 0.0
      %4668 = vmatpush1.msra.mxu0 0.0
      %4669 = vmatprep.subr.mxu0 0.0
      %4670 = vmatpush1.msra.mxu0 0.0
      %4671 = vmatprep.subr.mxu0 0.0
      %4672 = vmatpush1.msra.mxu0 0.0
      %4673 = vmatprep.subr.mxu0 0.0
      %4674 = vmatpush1.msra.mxu0 0.0
      %4675 = vmatprep.subr.mxu0 0.0
      %4676 = vmatpush1.msra.mxu0 0.0
      %4677 = vmatprep.subr.mxu0 0.0
      %4678 = vmatpush1.msra.mxu0 0.0
      %4679 = vmatprep.subr.mxu0 0.0
      %4680 = vmatpush1.msra.mxu0 0.0
      %4681 = vmatprep.subr.mxu0 0.0
      %4682 = vmatpush1.msra.mxu0 0.0
      %4683 = vmatprep.subr.mxu0 0.0
      %4684 = vmatpush1.msra.mxu0 0.0
      %4685 = vmatprep.subr.mxu0 0.0
      %4686 = vmatpush1.msra.mxu0 0.0
      %4687 = vmatprep.subr.mxu0 0.0
      %4688 = vmatpush1.msra.mxu0 0.0
      %4689 = vmatprep.subr.mxu0 0.0
      %4690 = vmatpush1.msra.mxu0 0.0
      %4691 = vmatprep.subr.mxu0 0.0
      %4692 = vmatpush1.msra.mxu0 0.0
      %4693 = vmatprep.subr.mxu0 0.0
      %4694 = vmatpush1.msra.mxu0 0.0
      %4695 = vmatprep.subr.mxu0 0.0
      %4696 = vmatpush1.msra.mxu0 0.0
      %4697 = vmatprep.subr.mxu0 0.0
      %4698 = vmatpush1.msra.mxu0 0.0
      %4699 = vmatprep.mubr.f32.mxu0 0.0
      %v4700 = vand.u32 %v3727, 4294901760
      %4701 = vmatmul.mubr.f32.gmra.mrb[0].mxu0 %v4700
      %v4702 = vpop.f32.mrb[0].mxu0
      %v4703 = vadd.f32 %v3992, %v4702
      %v4704 = vpop.f32.mrb[0].mxu0
      %4705 = vmatprep.mubr.f32.mxu0 0.0
      %v4706 = vand.u32 %v3730, 4294901760
      %4707 = vmatmul.mubr.f32.gmra.mrb[0].mxu0 %v4706
      %v4708 = vpop.f32.mrb[0].mxu0
      %v4709 = vadd.f32 %v4002, %v4708
      %v4710 = vpop.f32.mrb[0].mxu0
      %4711 = vmatprep.mubr.f32.mxu0 0.0
      %v4712 = vand.u32 %v3733, 4294901760
      %4713 = vmatmul.mubr.f32.gmra.mrb[0].mxu0 %v4712
      %v4714 = vpop.f32.mrb[0].mxu0
      %v4715 = vadd.f32 %v4012, %v4714
      %v4716 = vpop.f32.mrb[0].mxu0
      %4717 = vmatprep.mubr.f32.mxu0 0.0
      %v4718 = vand.u32 %v3736, 4294901760
      %4719 = vmatmul.mubr.f32.gmra.mrb[0].mxu0 %v4718
      %v4720 = vpop.f32.mrb[0].mxu0
      %v4721 = vadd.f32 %v4022, %v4720
      %v4722 = vpop.f32.mrb[0].mxu0
      %4723 = vmatprep.mubr.f32.mxu0 0.0
      %v4724 = vand.u32 %v3739, 4294901760
      %4725 = vmatmul.mubr.f32.gmra.mrb[0].mxu0 %v4724
      %v4726 = vpop.f32.mrb[0].mxu0
      %v4727 = vadd.f32 %v4032, %v4726
      %v4728 = vpop.f32.mrb[0].mxu0
      %4729 = vmatprep.mubr.f32.mxu0 0.0
      %v4730 = vand.u32 %v3742, 4294901760
      %4731 = vmatmul.mubr.f32.gmra.mrb[0].mxu0 %v4730
      %v4732 = vpop.f32.mrb[0].mxu0
      %v4733 = vadd.f32 %v4042, %v4732
      %v4734 = vpop.f32.mrb[0].mxu0
      %4735 = vmatprep.mubr.f32.mxu0 0.0
      %v4736 = vand.u32 %v3745, 4294901760
      %4737 = vmatmul.mubr.f32.gmra.mrb[0].mxu0 %v4736
      %v4738 = vpop.f32.mrb[0].mxu0
      %v4739 = vadd.f32 %v4052, %v4738
      %v4740 = vpop.f32.mrb[0].mxu0
      %4741 = vmatprep.mubr.f32.mxu0 0.0
      %v4742 = vand.u32 %v3748, 4294901760
      %4743 = vmatmul.mubr.f32.gmra.mrb[0].mxu0 %v4742
      %v4744 = vpop.f32.mrb[0].mxu0
      %v4745 = vadd.f32 %v4062, %v4744
      %v4746 = vpop.f32.mrb[0].mxu0
      %4747 = vmatprep.mubr.f32.mxu0 0.0
      %v4748 = vand.u32 %v3751, 4294901760
      %4749 = vmatmul.mubr.f32.gmra.mrb[0].mxu0 %v4748
      %v4750 = vpop.f32.mrb[0].mxu0
      %v4751 = vadd.f32 %v4072, %v4750
      %v4752 = vpop.f32.mrb[0].mxu0
      %4753 = vmatprep.mubr.f32.mxu0 0.0
      %v4754 = vand.u32 %v3754, 4294901760
      %4755 = vmatmul.mubr.f32.gmra.mrb[0].mxu0 %v4754
      %v4756 = vpop.f32.mrb[0].mxu0
      %v4757 = vadd.f32 %v4082, %v4756
      %v4758 = vpop.f32.mrb[0].mxu0
      %4759 = vmatprep.mubr.f32.mxu0 0.0
      %v4760 = vand.u32 %v3757, 4294901760
      %4761 = vmatmul.mubr.f32.gmra.mrb[0].mxu0 %v4760
      %v4762 = vpop.f32.mrb[0].mxu0
      %v4763 = vadd.f32 %v4092, %v4762
      %v4764 = vpop.f32.mrb[0].mxu0
      %4765 = vmatprep.mubr.f32.mxu0 0.0
      %v4766 = vand.u32 %v3760, 4294901760
      %4767 = vmatmul.mubr.f32.gmra.mrb[0].mxu0 %v4766
      %v4768 = vpop.f32.mrb[0].mxu0
      %v4769 = vadd.f32 %v4102, %v4768
      %v4770 = vpop.f32.mrb[0].mxu0
      %4771 = vmatprep.mubr.f32.mxu0 0.0
      %v4772 = vand.u32 %v3763, 4294901760
      %4773 = vmatmul.mubr.f32.gmra.mrb[0].mxu0 %v4772
      %v4774 = vpop.f32.mrb[0].mxu0
      %v4775 = vadd.f32 %v4112, %v4774
      %v4776 = vpop.f32.mrb[0].mxu0
      %4777 = vmatprep.mubr.f32.mxu0 0.0
      %v4778 = vand.u32 %v3766, 4294901760
      %4779 = vmatmul.mubr.f32.gmra.mrb[0].mxu0 %v4778
      %v4780 = vpop.f32.mrb[0].mxu0
      %v4781 = vadd.f32 %v4122, %v4780
      %v4782 = vpop.f32.mrb[0].mxu0
      %4783 = vmatprep.mubr.f32.mxu0 0.0
      %v4784 = vand.u32 %v3769, 4294901760
      %4785 = vmatmul.mubr.f32.gmra.mrb[0].mxu0 %v4784
      %v4786 = vpop.f32.mrb[0].mxu0
      %v4787 = vadd.f32 %v4132, %v4786
      %v4788 = vpop.f32.mrb[0].mxu0
      %4789 = vmatprep.mubr.f32.mxu0 0.0
      %v4790 = vand.u32 %v3772, 4294901760
      %4791 = vmatmul.mubr.f32.gmra.mrb[0].mxu0 %v4790
      %v4792 = vpop.f32.mrb[0].mxu0
      %v4793 = vadd.f32 %v4142, %v4792
      %v4794 = vpop.f32.mrb[0].mxu0
      %4795 = vmatprep.mubr.f32.mxu0 0.0
      %v4796 = vand.u32 %v3775, 4294901760
      %4797 = vmatmul.mubr.f32.gmra.mrb[0].mxu0 %v4796
      %v4798 = vpop.f32.mrb[0].mxu0
      %v4799 = vadd.f32 %v4152, %v4798
      %v4800 = vpop.f32.mrb[0].mxu0
      %4801 = vmatprep.mubr.f32.mxu0 0.0
      %v4802 = vand.u32 %v3778, 4294901760
      %4803 = vmatmul.mubr.f32.gmra.mrb[0].mxu0 %v4802
      %v4804 = vpop.f32.mrb[0].mxu0
      %v4805 = vadd.f32 %v4162, %v4804
      %v4806 = vpop.f32.mrb[0].mxu0
      %4807 = vmatprep.mubr.f32.mxu0 0.0
      %v4808 = vand.u32 %v3781, 4294901760
      %4809 = vmatmul.mubr.f32.gmra.mrb[0].mxu0 %v4808
      %v4810 = vpop.f32.mrb[0].mxu0
      %v4811 = vadd.f32 %v4172, %v4810
      %v4812 = vpop.f32.mrb[0].mxu0
      %4813 = vmatprep.mubr.f32.mxu0 0.0
      %v4814 = vand.u32 %v3784, 4294901760
      %4815 = vmatmul.mubr.f32.gmra.mrb[0].mxu0 %v4814
      %v4816 = vpop.f32.mrb[0].mxu0
      %v4817 = vadd.f32 %v4182, %v4816
      %v4818 = vpop.f32.mrb[0].mxu0
      %4819 = vmatprep.mubr.f32.mxu0 0.0
      %v4820 = vand.u32 %v3787, 4294901760
      %4821 = vmatmul.mubr.f32.gmra.mrb[0].mxu0 %v4820
      %v4822 = vpop.f32.mrb[0].mxu0
      %v4823 = vadd.f32 %v4192, %v4822
      %v4824 = vpop.f32.mrb[0].mxu0
      %4825 = vmatprep.mubr.f32.mxu0 0.0
      %v4826 = vand.u32 %v3790, 4294901760
      %4827 = vmatmul.mubr.f32.gmra.mrb[0].mxu0 %v4826
      %v4828 = vpop.f32.mrb[0].mxu0
      %v4829 = vadd.f32 %v4202, %v4828
      %v4830 = vpop.f32.mrb[0].mxu0
      %4831 = vmatprep.mubr.f32.mxu0 0.0
      %v4832 = vand.u32 %v3793, 4294901760
      %4833 = vmatmul.mubr.f32.gmra.mrb[0].mxu0 %v4832
      %v4834 = vpop.f32.mrb[0].mxu0
      %v4835 = vadd.f32 %v4212, %v4834
      %v4836 = vpop.f32.mrb[0].mxu0
      %4837 = vmatprep.mubr.f32.mxu0 0.0
      %v4838 = vand.u32 %v3796, 4294901760
      %4839 = vmatmul.mubr.f32.gmra.mrb[0].mxu0 %v4838
      %v4840 = vpop.f32.mrb[0].mxu0
      %v4841 = vadd.f32 %v4222, %v4840
      %v4842 = vpop.f32.mrb[0].mxu0
      %4843 = vmatprep.mubr.f32.mxu0 0.0
      %v4844 = vand.u32 %v3799, 4294901760
      %4845 = vmatmul.mubr.f32.gmra.mrb[0].mxu0 %v4844
      %v4846 = vpop.f32.mrb[0].mxu0
      %v4847 = vadd.f32 %v4232, %v4846
      %v4848 = vpop.f32.mrb[0].mxu0
      %4849 = vmatprep.mubr.f32.mxu0 0.0
      %v4850 = vand.u32 %v3802, 4294901760
      %4851 = vmatmul.mubr.f32.gmra.mrb[0].mxu0 %v4850
      %v4852 = vpop.f32.mrb[0].mxu0
      %v4853 = vadd.f32 %v4242, %v4852
      %v4854 = vpop.f32.mrb[0].mxu0
      %4855 = vmatprep.mubr.f32.mxu0 0.0
      %v4856 = vand.u32 %v3805, 4294901760
      %4857 = vmatmul.mubr.f32.gmra.mrb[0].mxu0 %v4856
      %v4858 = vpop.f32.mrb[0].mxu0
      %v4859 = vadd.f32 %v4252, %v4858
      %v4860 = vpop.f32.mrb[0].mxu0
      %4861 = vmatprep.mubr.f32.mxu0 0.0
      %v4862 = vand.u32 %v3808, 4294901760
      %4863 = vmatmul.mubr.f32.gmra.mrb[0].mxu0 %v4862
      %v4864 = vpop.f32.mrb[0].mxu0
      %v4865 = vadd.f32 %v4262, %v4864
      %v4866 = vpop.f32.mrb[0].mxu0
      %4867 = vmatprep.mubr.f32.mxu0 0.0
      %v4868 = vand.u32 %v3811, 4294901760
      %4869 = vmatmul.mubr.f32.gmra.mrb[0].mxu0 %v4868
      %v4870 = vpop.f32.mrb[0].mxu0
      %v4871 = vadd.f32 %v4272, %v4870
      %v4872 = vpop.f32.mrb[0].mxu0
      %4873 = vmatprep.mubr.f32.mxu0 0.0
      %v4874 = vand.u32 %v3814, 4294901760
      %4875 = vmatmul.mubr.f32.gmra.mrb[0].mxu0 %v4874
      %v4876 = vpop.f32.mrb[0].mxu0
      %v4877 = vadd.f32 %v4282, %v4876
      %v4878 = vpop.f32.mrb[0].mxu0
      %4879 = vmatprep.mubr.f32.mxu0 0.0
      %v4880 = vand.u32 %v3817, 4294901760
      %4881 = vmatmul.mubr.f32.gmra.mrb[0].mxu0 %v4880
      %v4882 = vpop.f32.mrb[0].mxu0
      %v4883 = vadd.f32 %v4292, %v4882
      %v4884 = vpop.f32.mrb[0].mxu0
      %4885 = vmatprep.mubr.f32.mxu0 0.0
      %v4886 = vand.u32 %v3820, 4294901760
      %4887 = vmatmul.mubr.f32.gmra.mrb[0].mxu0 %v4886
      %v4888 = vpop.f32.mrb[0].mxu0
      %v4889 = vadd.f32 %v4302, %v4888
      %v4890 = vpop.f32.mrb[0].mxu0
      %4891 = vmatprep.mubr.f32.mxu0 0.0
      %v4892 = vand.u32 %v3823, 4294901760
      %4893 = vmatmul.mubr.f32.gmra.mrb[0].mxu0 %v4892
      %v4894 = vpop.f32.mrb[0].mxu0
      %v4895 = vadd.f32 %v4312, %v4894
      %v4896 = vpop.f32.mrb[0].mxu0
      %4897 = vmatprep.mubr.f32.mxu0 0.0
      %v4898 = vand.u32 %v3826, 4294901760
      %4899 = vmatmul.mubr.f32.gmra.mrb[0].mxu0 %v4898
      %v4900 = vpop.f32.mrb[0].mxu0
      %v4901 = vadd.f32 %v4322, %v4900
      %v4902 = vpop.f32.mrb[0].mxu0
      %4903 = vmatprep.mubr.f32.mxu0 0.0
      %v4904 = vand.u32 %v3829, 4294901760
      %4905 = vmatmul.mubr.f32.gmra.mrb[0].mxu0 %v4904
      %v4906 = vpop.f32.mrb[0].mxu0
      %v4907 = vadd.f32 %v4332, %v4906
      %v4908 = vpop.f32.mrb[0].mxu0
      %4909 = vmatprep.mubr.f32.mxu0 0.0
      %v4910 = vand.u32 %v3832, 4294901760
      %4911 = vmatmul.mubr.f32.gmra.mrb[0].mxu0 %v4910
      %v4912 = vpop.f32.mrb[0].mxu0
      %v4913 = vadd.f32 %v4342, %v4912
      %v4914 = vpop.f32.mrb[0].mxu0
      %4915 = vmatprep.mubr.f32.mxu0 0.0
      %v4916 = vand.u32 %v3835, 4294901760
      %4917 = vmatmul.mubr.f32.gmra.mrb[0].mxu0 %v4916
      %v4918 = vpop.f32.mrb[0].mxu0
      %v4919 = vadd.f32 %v4352, %v4918
      %v4920 = vpop.f32.mrb[0].mxu0
      %4921 = vmatprep.mubr.f32.mxu0 0.0
      %v4922 = vand.u32 %v3838, 4294901760
      %4923 = vmatmul.mubr.f32.gmra.mrb[0].mxu0 %v4922
      %v4924 = vpop.f32.mrb[0].mxu0
      %v4925 = vadd.f32 %v4362, %v4924
      %v4926 = vpop.f32.mrb[0].mxu0
      %4927 = vmatprep.mubr.f32.mxu0 0.0
      %v4928 = vand.u32 %v3841, 4294901760
      %4929 = vmatmul.mubr.f32.gmra.mrb[0].mxu0 %v4928
      %v4930 = vpop.f32.mrb[0].mxu0
      %v4931 = vadd.f32 %v4372, %v4930
      %v4932 = vpop.f32.mrb[0].mxu0
      %4933 = vmatprep.mubr.f32.mxu0 0.0
      %v4934 = vand.u32 %v3844, 4294901760
      %4935 = vmatmul.mubr.f32.gmra.mrb[0].mxu0 %v4934
      %v4936 = vpop.f32.mrb[0].mxu0
      %v4937 = vadd.f32 %v4382, %v4936
      %v4938 = vpop.f32.mrb[0].mxu0
      %4939 = vmatprep.mubr.f32.mxu0 0.0
      %v4940 = vand.u32 %v3847, 4294901760
      %4941 = vmatmul.mubr.f32.gmra.mrb[0].mxu0 %v4940
      %v4942 = vpop.f32.mrb[0].mxu0
      %v4943 = vadd.f32 %v4392, %v4942
      %v4944 = vpop.f32.mrb[0].mxu0
      %4945 = vmatprep.mubr.f32.mxu0 0.0
      %v4946 = vand.u32 %v3850, 4294901760
      %4947 = vmatmul.mubr.f32.gmra.mrb[0].mxu0 %v4946
      %v4948 = vpop.f32.mrb[0].mxu0
      %v4949 = vadd.f32 %v4402, %v4948
      %v4950 = vpop.f32.mrb[0].mxu0
      %4951 = vmatprep.mubr.f32.mxu0 0.0
      %v4952 = vand.u32 %v3853, 4294901760
      %4953 = vmatmul.mubr.f32.gmra.mrb[0].mxu0 %v4952
      %v4954 = vpop.f32.mrb[0].mxu0
      %v4955 = vadd.f32 %v4412, %v4954
      %v4956 = vpop.f32.mrb[0].mxu0
      %4957 = vmatprep.mubr.f32.mxu0 0.0
      %v4958 = vand.u32 %v3856, 4294901760
      %4959 = vmatmul.mubr.f32.gmra.mrb[0].mxu0 %v4958
      %v4960 = vpop.f32.mrb[0].mxu0
      %v4961 = vadd.f32 %v4422, %v4960
      %v4962 = vpop.f32.mrb[0].mxu0
      %4963 = vmatprep.mubr.f32.mxu0 0.0
      %v4964 = vand.u32 %v3859, 4294901760
      %4965 = vmatmul.mubr.f32.gmra.mrb[0].mxu0 %v4964
      %v4966 = vpop.f32.mrb[0].mxu0
      %v4967 = vadd.f32 %v4432, %v4966
      %v4968 = vpop.f32.mrb[0].mxu0
      %4969 = vmatprep.mubr.f32.mxu0 0.0
      %v4970 = vand.u32 %v3862, 4294901760
      %4971 = vmatmul.mubr.f32.gmra.mrb[0].mxu0 %v4970
      %v4972 = vpop.f32.mrb[0].mxu0
      %v4973 = vadd.f32 %v4442, %v4972
      %v4974 = vpop.f32.mrb[0].mxu0
      %4975 = vmatprep.mubr.f32.mxu0 0.0
      %v4976 = vand.u32 %v3865, 4294901760
      %4977 = vmatmul.mubr.f32.gmra.mrb[0].mxu0 %v4976
      %v4978 = vpop.f32.mrb[0].mxu0
      %v4979 = vadd.f32 %v4452, %v4978
      %v4980 = vpop.f32.mrb[0].mxu0
      %4981 = vmatprep.mubr.f32.mxu0 0.0
      %v4982 = vand.u32 %v3868, 4294901760
      %4983 = vmatmul.mubr.f32.gmra.mrb[0].mxu0 %v4982
      %v4984 = vpop.f32.mrb[0].mxu0
      %v4985 = vadd.f32 %v4462, %v4984
      %v4986 = vpop.f32.mrb[0].mxu0
      %4987 = vmatprep.mubr.f32.mxu0 0.0
      %v4988 = vand.u32 %v3871, 4294901760
      %4989 = vmatmul.mubr.f32.gmra.mrb[0].mxu0 %v4988
      %v4990 = vpop.f32.mrb[0].mxu0
      %v4991 = vadd.f32 %v4472, %v4990
      %v4992 = vpop.f32.mrb[0].mxu0
      %4993 = vmatprep.mubr.f32.mxu0 0.0
      %v4994 = vand.u32 %v3874, 4294901760
      %4995 = vmatmul.mubr.f32.gmra.mrb[0].mxu0 %v4994
      %v4996 = vpop.f32.mrb[0].mxu0
      %v4997 = vadd.f32 %v4482, %v4996
      %v4998 = vpop.f32.mrb[0].mxu0
      %4999 = vmatprep.mubr.f32.mxu0 0.0
      %v5000 = vand.u32 %v3877, 4294901760
      %5001 = vmatmul.mubr.f32.gmra.mrb[0].mxu0 %v5000
      %v5002 = vpop.f32.mrb[0].mxu0
      %v5003 = vadd.f32 %v4492, %v5002
      %v5004 = vpop.f32.mrb[0].mxu0
      %5005 = vmatprep.mubr.f32.mxu0 0.0
      %v5006 = vand.u32 %v3880, 4294901760
      %5007 = vmatmul.mubr.f32.gmra.mrb[0].mxu0 %v5006
      %v5008 = vpop.f32.mrb[0].mxu0
      %v5009 = vadd.f32 %v4502, %v5008
      %v5010 = vpop.f32.mrb[0].mxu0
      %5011 = vmatprep.mubr.f32.mxu0 0.0
      %v5012 = vand.u32 %v3883, 4294901760
      %5013 = vmatmul.mubr.f32.gmra.mrb[0].mxu0 %v5012
      %v5014 = vpop.f32.mrb[0].mxu0
      %v5015 = vadd.f32 %v4512, %v5014
      %v5016 = vpop.f32.mrb[0].mxu0
      %5017 = vmatprep.mubr.f32.mxu0 0.0
      %v5018 = vand.u32 %v3886, 4294901760
      %5019 = vmatmul.mubr.f32.gmra.mrb[0].mxu0 %v5018
      %v5020 = vpop.f32.mrb[0].mxu0
      %v5021 = vadd.f32 %v4522, %v5020
      %v5022 = vpop.f32.mrb[0].mxu0
      %5023 = vmatprep.mubr.f32.mxu0 0.0
      %v5024 = vand.u32 %v3889, 4294901760
      %5025 = vmatmul.mubr.f32.gmra.mrb[0].mxu0 %v5024
      %v5026 = vpop.f32.mrb[0].mxu0
      %v5027 = vadd.f32 %v4532, %v5026
      %v5028 = vpop.f32.mrb[0].mxu0
      %5029 = vmatprep.mubr.f32.mxu0 0.0
      %v5030 = vand.u32 %v3892, 4294901760
      %5031 = vmatmul.mubr.f32.gmra.mrb[0].mxu0 %v5030
      %v5032 = vpop.f32.mrb[0].mxu0
      %v5033 = vadd.f32 %v4542, %v5032
      %v5034 = vpop.f32.mrb[0].mxu0
      %5035 = vmatprep.mubr.f32.mxu0 0.0
      %v5036 = vand.u32 %v3895, 4294901760
      %5037 = vmatmul.mubr.f32.gmra.mrb[0].mxu0 %v5036
      %v5038 = vpop.f32.mrb[0].mxu0
      %v5039 = vadd.f32 %v4552, %v5038
      %v5040 = vpop.f32.mrb[0].mxu0
      %5041 = vmatprep.mubr.f32.mxu0 0.0
      %v5042 = vand.u32 %v3898, 4294901760
      %5043 = vmatmul.mubr.f32.gmra.mrb[0].mxu0 %v5042
      %v5044 = vpop.f32.mrb[0].mxu0
      %v5045 = vadd.f32 %v4562, %v5044
      %v5046 = vpop.f32.mrb[0].mxu0
      %5047 = vmatprep.mubr.f32.mxu0 0.0
      %v5048 = vand.u32 %v3901, 4294901760
      %5049 = vmatmul.mubr.f32.gmra.mrb[0].mxu0 %v5048
      %v5050 = vpop.f32.mrb[0].mxu0
      %v5051 = vadd.f32 %v4572, %v5050
      %v5052 = vpop.f32.mrb[0].mxu0
      %5053 = vmatprep.mubr.f32.mxu0 0.0
      %v5054 = vand.u32 %v3904, 4294901760
      %5055 = vmatmul.mubr.f32.gmra.mrb[0].mxu0 %v5054
      %v5056 = vpop.f32.mrb[0].mxu0
      %v5057 = vadd.f32 %v4582, %v5056
      %v5058 = vpop.f32.mrb[0].mxu0
      %5059 = vmatprep.mubr.f32.mxu0 0.0
      %v5060 = vand.u32 %v3907, 4294901760
      %5061 = vmatmul.mubr.f32.gmra.mrb[0].mxu0 %v5060
      %v5062 = vpop.f32.mrb[0].mxu0
      %v5063 = vadd.f32 %v4592, %v5062
      %v5064 = vpop.f32.mrb[0].mxu0
      %5065 = vmatprep.mubr.f32.mxu0 0.0
      %v5066 = vand.u32 %v3910, 4294901760
      %5067 = vmatmul.mubr.f32.gmra.mrb[0].mxu0 %v5066
      %v5068 = vpop.f32.mrb[0].mxu0
      %v5069 = vadd.f32 %v4602, %v5068
      %v5070 = vpop.f32.mrb[0].mxu0
      %5071 = vmatprep.mubr.f32.mxu0 0.0
      %v5072 = vand.u32 %v3913, 4294901760
      %5073 = vmatmul.mubr.f32.gmra.mrb[0].mxu0 %v5072
      %v5074 = vpop.f32.mrb[0].mxu0
      %v5075 = vadd.f32 %v4612, %v5074
      %v5076 = vpop.f32.mrb[0].mxu0
      %5077 = vmatprep.mubr.f32.mxu0 0.0
      %v5078 = vand.u32 %v3916, 4294901760
      %5079 = vmatmul.mubr.f32.gmra.mrb[0].mxu0 %v5078
      %v5080 = vpop.f32.mrb[0].mxu0
      %v5081 = vadd.f32 %v4622, %v5080
      %v5082 = vpop.f32.mrb[0].mxu0
      %5083 = vdwg.mxu0
      %5084 = vmatprep.subr.mxu0 0.0
      %v5085 = vand.u32 %v3716, 4294901760
      %v5086 = vsub.f32 %v3716, %v5085
      %5087 = vmatpush1.msra.mxu0 %v5086
      %5088 = vmatprep.subr.mxu0 0.0
      %v5089 = vand.u32 %v3717, 4294901760
      %v5090 = vsub.f32 %v3717, %v5089
      %5091 = vmatpush1.msra.mxu0 %v5090
      %5092 = vmatprep.subr.mxu0 0.0
      %5093 = vmatpush1.msra.mxu0 0.0
      %5094 = vmatprep.subr.mxu0 0.0
      %5095 = vmatpush1.msra.mxu0 0.0
      %5096 = vmatprep.subr.mxu0 0.0
      %5097 = vmatpush1.msra.mxu0 0.0
      %5098 = vmatprep.subr.mxu0 0.0
      %5099 = vmatpush1.msra.mxu0 0.0
      %5100 = vmatprep.subr.mxu0 0.0
      %5101 = vmatpush1.msra.mxu0 0.0
      %5102 = vmatprep.subr.mxu0 0.0
      %5103 = vmatpush1.msra.mxu0 0.0
      %5104 = vmatprep.subr.mxu0 0.0
      %5105 = vmatpush1.msra.mxu0 0.0
      %5106 = vmatprep.subr.mxu0 0.0
      %5107 = vmatpush1.msra.mxu0 0.0
      %5108 = vmatprep.subr.mxu0 0.0
      %5109 = vmatpush1.msra.mxu0 0.0
      %5110 = vmatprep.subr.mxu0 0.0
      %5111 = vmatpush1.msra.mxu0 0.0
      %5112 = vmatprep.subr.mxu0 0.0
      %5113 = vmatpush1.msra.mxu0 0.0
      %5114 = vmatprep.subr.mxu0 0.0
      %5115 = vmatpush1.msra.mxu0 0.0
      %5116 = vmatprep.subr.mxu0 0.0
      %5117 = vmatpush1.msra.mxu0 0.0
      %5118 = vmatprep.subr.mxu0 0.0
      %5119 = vmatpush1.msra.mxu0 0.0
      %5120 = vmatprep.subr.mxu0 0.0
      %5121 = vmatpush1.msra.mxu0 0.0
      %5122 = vmatprep.subr.mxu0 0.0
      %5123 = vmatpush1.msra.mxu0 0.0
      %5124 = vmatprep.subr.mxu0 0.0
      %5125 = vmatpush1.msra.mxu0 0.0
      %5126 = vmatprep.subr.mxu0 0.0
      %5127 = vmatpush1.msra.mxu0 0.0
      %5128 = vmatprep.subr.mxu0 0.0
      %5129 = vmatpush1.msra.mxu0 0.0
      %5130 = vmatprep.subr.mxu0 0.0
      %5131 = vmatpush1.msra.mxu0 0.0
      %5132 = vmatprep.subr.mxu0 0.0
      %5133 = vmatpush1.msra.mxu0 0.0
      %5134 = vmatprep.subr.mxu0 0.0
      %5135 = vmatpush1.msra.mxu0 0.0
      %5136 = vmatprep.subr.mxu0 0.0
      %5137 = vmatpush1.msra.mxu0 0.0
      %5138 = vmatprep.subr.mxu0 0.0
      %5139 = vmatpush1.msra.mxu0 0.0
      %5140 = vmatprep.subr.mxu0 0.0
      %5141 = vmatpush1.msra.mxu0 0.0
      %5142 = vmatprep.subr.mxu0 0.0
      %5143 = vmatpush1.msra.mxu0 0.0
      %5144 = vmatprep.subr.mxu0 0.0
      %5145 = vmatpush1.msra.mxu0 0.0
      %5146 = vmatprep.subr.mxu0 0.0
      %5147 = vmatpush1.msra.mxu0 0.0
      %5148 = vmatprep.subr.mxu0 0.0
      %5149 = vmatpush1.msra.mxu0 0.0
      %5150 = vmatprep.subr.mxu0 0.0
      %5151 = vmatpush1.msra.mxu0 0.0
      %5152 = vmatprep.mubr.f32.mxu0 0.0
      %v5153 = vand.u32 %v3727, 4294901760
      %v5154 = vsub.f32 %v3727, %v5153
      %5155 = vmatmul.mubr.f32.gmra.mrb[0].mxu0 %v5154
      %v5156 = vpop.f32.mrb[0].mxu0
      %v5157 = vadd.f32 %v4703, %v5156
      %v5158 = vpop.f32.mrb[0].mxu0
      %5159 = vmatprep.mubr.f32.mxu0 0.0
      %v5160 = vand.u32 %v3730, 4294901760
      %v5161 = vsub.f32 %v3730, %v5160
      %5162 = vmatmul.mubr.f32.gmra.mrb[0].mxu0 %v5161
      %v5163 = vpop.f32.mrb[0].mxu0
      %v5164 = vadd.f32 %v4709, %v5163
      %v5165 = vpop.f32.mrb[0].mxu0
      %5166 = vmatprep.mubr.f32.mxu0 0.0
      %v5167 = vand.u32 %v3733, 4294901760
      %v5168 = vsub.f32 %v3733, %v5167
      %5169 = vmatmul.mubr.f32.gmra.mrb[0].mxu0 %v5168
      %v5170 = vpop.f32.mrb[0].mxu0
      %v5171 = vadd.f32 %v4715, %v5170
      %v5172 = vpop.f32.mrb[0].mxu0
      %5173 = vmatprep.mubr.f32.mxu0 0.0
      %v5174 = vand.u32 %v3736, 4294901760
      %v5175 = vsub.f32 %v3736, %v5174
      %5176 = vmatmul.mubr.f32.gmra.mrb[0].mxu0 %v5175
      %v5177 = vpop.f32.mrb[0].mxu0
      %v5178 = vadd.f32 %v4721, %v5177
      %v5179 = vpop.f32.mrb[0].mxu0
      %5180 = vmatprep.mubr.f32.mxu0 0.0
      %v5181 = vand.u32 %v3739, 4294901760
      %v5182 = vsub.f32 %v3739, %v5181
      %5183 = vmatmul.mubr.f32.gmra.mrb[0].mxu0 %v5182
      %v5184 = vpop.f32.mrb[0].mxu0
      %v5185 = vadd.f32 %v4727, %v5184
      %v5186 = vpop.f32.mrb[0].mxu0
      %5187 = vmatprep.mubr.f32.mxu0 0.0
      %v5188 = vand.u32 %v3742, 4294901760
      %v5189 = vsub.f32 %v3742, %v5188
      %5190 = vmatmul.mubr.f32.gmra.mrb[0].mxu0 %v5189
      %v5191 = vpop.f32.mrb[0].mxu0
      %v5192 = vadd.f32 %v4733, %v5191
      %v5193 = vpop.f32.mrb[0].mxu0
      %5194 = vmatprep.mubr.f32.mxu0 0.0
      %v5195 = vand.u32 %v3745, 4294901760
      %v5196 = vsub.f32 %v3745, %v5195
      %5197 = vmatmul.mubr.f32.gmra.mrb[0].mxu0 %v5196
      %v5198 = vpop.f32.mrb[0].mxu0
      %v5199 = vadd.f32 %v4739, %v5198
      %v5200 = vpop.f32.mrb[0].mxu0
      %5201 = vmatprep.mubr.f32.mxu0 0.0
      %v5202 = vand.u32 %v3748, 4294901760
      %v5203 = vsub.f32 %v3748, %v5202
      %5204 = vmatmul.mubr.f32.gmra.mrb[0].mxu0 %v5203
      %v5205 = vpop.f32.mrb[0].mxu0
      %v5206 = vadd.f32 %v4745, %v5205
      %v5207 = vpop.f32.mrb[0].mxu0
      %5208 = vmatprep.mubr.f32.mxu0 0.0
      %v5209 = vand.u32 %v3751, 4294901760
      %v5210 = vsub.f32 %v3751, %v5209
      %5211 = vmatmul.mubr.f32.gmra.mrb[0].mxu0 %v5210
      %v5212 = vpop.f32.mrb[0].mxu0
      %v5213 = vadd.f32 %v4751, %v5212
      %v5214 = vpop.f32.mrb[0].mxu0
      %5215 = vmatprep.mubr.f32.mxu0 0.0
      %v5216 = vand.u32 %v3754, 4294901760
      %v5217 = vsub.f32 %v3754, %v5216
      %5218 = vmatmul.mubr.f32.gmra.mrb[0].mxu0 %v5217
      %v5219 = vpop.f32.mrb[0].mxu0
      %v5220 = vadd.f32 %v4757, %v5219
      %v5221 = vpop.f32.mrb[0].mxu0
      %5222 = vmatprep.mubr.f32.mxu0 0.0
      %v5223 = vand.u32 %v3757, 4294901760
      %v5224 = vsub.f32 %v3757, %v5223
      %5225 = vmatmul.mubr.f32.gmra.mrb[0].mxu0 %v5224
      %v5226 = vpop.f32.mrb[0].mxu0
      %v5227 = vadd.f32 %v4763, %v5226
      %v5228 = vpop.f32.mrb[0].mxu0
      %5229 = vmatprep.mubr.f32.mxu0 0.0
      %v5230 = vand.u32 %v3760, 4294901760
      %v5231 = vsub.f32 %v3760, %v5230
      %5232 = vmatmul.mubr.f32.gmra.mrb[0].mxu0 %v5231
      %v5233 = vpop.f32.mrb[0].mxu0
      %v5234 = vadd.f32 %v4769, %v5233
      %v5235 = vpop.f32.mrb[0].mxu0
      %5236 = vmatprep.mubr.f32.mxu0 0.0
      %v5237 = vand.u32 %v3763, 4294901760
      %v5238 = vsub.f32 %v3763, %v5237
      %5239 = vmatmul.mubr.f32.gmra.mrb[0].mxu0 %v5238
      %v5240 = vpop.f32.mrb[0].mxu0
      %v5241 = vadd.f32 %v4775, %v5240
      %v5242 = vpop.f32.mrb[0].mxu0
      %5243 = vmatprep.mubr.f32.mxu0 0.0
      %v5244 = vand.u32 %v3766, 4294901760
      %v5245 = vsub.f32 %v3766, %v5244
      %5246 = vmatmul.mubr.f32.gmra.mrb[0].mxu0 %v5245
      %v5247 = vpop.f32.mrb[0].mxu0
      %v5248 = vadd.f32 %v4781, %v5247
      %v5249 = vpop.f32.mrb[0].mxu0
      %5250 = vmatprep.mubr.f32.mxu0 0.0
      %v5251 = vand.u32 %v3769, 4294901760
      %v5252 = vsub.f32 %v3769, %v5251
      %5253 = vmatmul.mubr.f32.gmra.mrb[0].mxu0 %v5252
      %v5254 = vpop.f32.mrb[0].mxu0
      %v5255 = vadd.f32 %v4787, %v5254
      %v5256 = vpop.f32.mrb[0].mxu0
      %5257 = vmatprep.mubr.f32.mxu0 0.0
      %v5258 = vand.u32 %v3772, 4294901760
      %v5259 = vsub.f32 %v3772, %v5258
      %5260 = vmatmul.mubr.f32.gmra.mrb[0].mxu0 %v5259
      %v5261 = vpop.f32.mrb[0].mxu0
      %v5262 = vadd.f32 %v4793, %v5261
      %v5263 = vpop.f32.mrb[0].mxu0
      %5264 = vmatprep.mubr.f32.mxu0 0.0
      %v5265 = vand.u32 %v3775, 4294901760
      %v5266 = vsub.f32 %v3775, %v5265
      %5267 = vmatmul.mubr.f32.gmra.mrb[0].mxu0 %v5266
      %v5268 = vpop.f32.mrb[0].mxu0
      %v5269 = vadd.f32 %v4799, %v5268
      %v5270 = vpop.f32.mrb[0].mxu0
      %5271 = vmatprep.mubr.f32.mxu0 0.0
      %v5272 = vand.u32 %v3778, 4294901760
      %v5273 = vsub.f32 %v3778, %v5272
      %5274 = vmatmul.mubr.f32.gmra.mrb[0].mxu0 %v5273
      %v5275 = vpop.f32.mrb[0].mxu0
      %v5276 = vadd.f32 %v4805, %v5275
      %v5277 = vpop.f32.mrb[0].mxu0
      %5278 = vmatprep.mubr.f32.mxu0 0.0
      %v5279 = vand.u32 %v3781, 4294901760
      %v5280 = vsub.f32 %v3781, %v5279
      %5281 = vmatmul.mubr.f32.gmra.mrb[0].mxu0 %v5280
      %v5282 = vpop.f32.mrb[0].mxu0
      %v5283 = vadd.f32 %v4811, %v5282
      %v5284 = vpop.f32.mrb[0].mxu0
      %5285 = vmatprep.mubr.f32.mxu0 0.0
      %v5286 = vand.u32 %v3784, 4294901760
      %v5287 = vsub.f32 %v3784, %v5286
      %5288 = vmatmul.mubr.f32.gmra.mrb[0].mxu0 %v5287
      %v5289 = vpop.f32.mrb[0].mxu0
      %v5290 = vadd.f32 %v4817, %v5289
      %v5291 = vpop.f32.mrb[0].mxu0
      %5292 = vmatprep.mubr.f32.mxu0 0.0
      %v5293 = vand.u32 %v3787, 4294901760
      %v5294 = vsub.f32 %v3787, %v5293
      %5295 = vmatmul.mubr.f32.gmra.mrb[0].mxu0 %v5294
      %v5296 = vpop.f32.mrb[0].mxu0
      %v5297 = vadd.f32 %v4823, %v5296
      %v5298 = vpop.f32.mrb[0].mxu0
      %5299 = vmatprep.mubr.f32.mxu0 0.0
      %v5300 = vand.u32 %v3790, 4294901760
      %v5301 = vsub.f32 %v3790, %v5300
      %5302 = vmatmul.mubr.f32.gmra.mrb[0].mxu0 %v5301
      %v5303 = vpop.f32.mrb[0].mxu0
      %v5304 = vadd.f32 %v4829, %v5303
      %v5305 = vpop.f32.mrb[0].mxu0
      %5306 = vmatprep.mubr.f32.mxu0 0.0
      %v5307 = vand.u32 %v3793, 4294901760
      %v5308 = vsub.f32 %v3793, %v5307
      %5309 = vmatmul.mubr.f32.gmra.mrb[0].mxu0 %v5308
      %v5310 = vpop.f32.mrb[0].mxu0
      %v5311 = vadd.f32 %v4835, %v5310
      %v5312 = vpop.f32.mrb[0].mxu0
      %5313 = vmatprep.mubr.f32.mxu0 0.0
      %v5314 = vand.u32 %v3796, 4294901760
      %v5315 = vsub.f32 %v3796, %v5314
      %5316 = vmatmul.mubr.f32.gmra.mrb[0].mxu0 %v5315
      %v5317 = vpop.f32.mrb[0].mxu0
      %v5318 = vadd.f32 %v4841, %v5317
      %v5319 = vpop.f32.mrb[0].mxu0
      %5320 = vmatprep.mubr.f32.mxu0 0.0
      %v5321 = vand.u32 %v3799, 4294901760
      %v5322 = vsub.f32 %v3799, %v5321
      %5323 = vmatmul.mubr.f32.gmra.mrb[0].mxu0 %v5322
      %v5324 = vpop.f32.mrb[0].mxu0
      %v5325 = vadd.f32 %v4847, %v5324
      %v5326 = vpop.f32.mrb[0].mxu0
      %5327 = vmatprep.mubr.f32.mxu0 0.0
      %v5328 = vand.u32 %v3802, 4294901760
      %v5329 = vsub.f32 %v3802, %v5328
      %5330 = vmatmul.mubr.f32.gmra.mrb[0].mxu0 %v5329
      %v5331 = vpop.f32.mrb[0].mxu0
      %v5332 = vadd.f32 %v4853, %v5331
      %v5333 = vpop.f32.mrb[0].mxu0
      %5334 = vmatprep.mubr.f32.mxu0 0.0
      %v5335 = vand.u32 %v3805, 4294901760
      %v5336 = vsub.f32 %v3805, %v5335
      %5337 = vmatmul.mubr.f32.gmra.mrb[0].mxu0 %v5336
      %v5338 = vpop.f32.mrb[0].mxu0
      %v5339 = vadd.f32 %v4859, %v5338
      %v5340 = vpop.f32.mrb[0].mxu0
      %5341 = vmatprep.mubr.f32.mxu0 0.0
      %v5342 = vand.u32 %v3808, 4294901760
      %v5343 = vsub.f32 %v3808, %v5342
      %5344 = vmatmul.mubr.f32.gmra.mrb[0].mxu0 %v5343
      %v5345 = vpop.f32.mrb[0].mxu0
      %v5346 = vadd.f32 %v4865, %v5345
      %v5347 = vpop.f32.mrb[0].mxu0
      %5348 = vmatprep.mubr.f32.mxu0 0.0
      %v5349 = vand.u32 %v3811, 4294901760
      %v5350 = vsub.f32 %v3811, %v5349
      %5351 = vmatmul.mubr.f32.gmra.mrb[0].mxu0 %v5350
      %v5352 = vpop.f32.mrb[0].mxu0
      %v5353 = vadd.f32 %v4871, %v5352
      %v5354 = vpop.f32.mrb[0].mxu0
      %5355 = vmatprep.mubr.f32.mxu0 0.0
      %v5356 = vand.u32 %v3814, 4294901760
      %v5357 = vsub.f32 %v3814, %v5356
      %5358 = vmatmul.mubr.f32.gmra.mrb[0].mxu0 %v5357
      %v5359 = vpop.f32.mrb[0].mxu0
      %v5360 = vadd.f32 %v4877, %v5359
      %v5361 = vpop.f32.mrb[0].mxu0
      %5362 = vmatprep.mubr.f32.mxu0 0.0
      %v5363 = vand.u32 %v3817, 4294901760
      %v5364 = vsub.f32 %v3817, %v5363
      %5365 = vmatmul.mubr.f32.gmra.mrb[0].mxu0 %v5364
      %v5366 = vpop.f32.mrb[0].mxu0
      %v5367 = vadd.f32 %v4883, %v5366
      %v5368 = vpop.f32.mrb[0].mxu0
      %5369 = vmatprep.mubr.f32.mxu0 0.0
      %v5370 = vand.u32 %v3820, 4294901760
      %v5371 = vsub.f32 %v3820, %v5370
      %5372 = vmatmul.mubr.f32.gmra.mrb[0].mxu0 %v5371
      %v5373 = vpop.f32.mrb[0].mxu0
      %v5374 = vadd.f32 %v4889, %v5373
      %v5375 = vpop.f32.mrb[0].mxu0
      %5376 = vmatprep.mubr.f32.mxu0 0.0
      %v5377 = vand.u32 %v3823, 4294901760
      %v5378 = vsub.f32 %v3823, %v5377
      %5379 = vmatmul.mubr.f32.gmra.mrb[0].mxu0 %v5378
      %v5380 = vpop.f32.mrb[0].mxu0
      %v5381 = vadd.f32 %v4895, %v5380
      %v5382 = vpop.f32.mrb[0].mxu0
      %5383 = vmatprep.mubr.f32.mxu0 0.0
      %v5384 = vand.u32 %v3826, 4294901760
      %v5385 = vsub.f32 %v3826, %v5384
      %5386 = vmatmul.mubr.f32.gmra.mrb[0].mxu0 %v5385
      %v5387 = vpop.f32.mrb[0].mxu0
      %v5388 = vadd.f32 %v4901, %v5387
      %v5389 = vpop.f32.mrb[0].mxu0
      %5390 = vmatprep.mubr.f32.mxu0 0.0
      %v5391 = vand.u32 %v3829, 4294901760
      %v5392 = vsub.f32 %v3829, %v5391
      %5393 = vmatmul.mubr.f32.gmra.mrb[0].mxu0 %v5392
      %v5394 = vpop.f32.mrb[0].mxu0
      %v5395 = vadd.f32 %v4907, %v5394
      %v5396 = vpop.f32.mrb[0].mxu0
      %5397 = vmatprep.mubr.f32.mxu0 0.0
      %v5398 = vand.u32 %v3832, 4294901760
      %v5399 = vsub.f32 %v3832, %v5398
      %5400 = vmatmul.mubr.f32.gmra.mrb[0].mxu0 %v5399
      %v5401 = vpop.f32.mrb[0].mxu0
      %v5402 = vadd.f32 %v4913, %v5401
      %v5403 = vpop.f32.mrb[0].mxu0
      %5404 = vmatprep.mubr.f32.mxu0 0.0
      %v5405 = vand.u32 %v3835, 4294901760
      %v5406 = vsub.f32 %v3835, %v5405
      %5407 = vmatmul.mubr.f32.gmra.mrb[0].mxu0 %v5406
      %v5408 = vpop.f32.mrb[0].mxu0
      %v5409 = vadd.f32 %v4919, %v5408
      %v5410 = vpop.f32.mrb[0].mxu0
      %5411 = vmatprep.mubr.f32.mxu0 0.0
      %v5412 = vand.u32 %v3838, 4294901760
      %v5413 = vsub.f32 %v3838, %v5412
      %5414 = vmatmul.mubr.f32.gmra.mrb[0].mxu0 %v5413
      %v5415 = vpop.f32.mrb[0].mxu0
      %v5416 = vadd.f32 %v4925, %v5415
      %v5417 = vpop.f32.mrb[0].mxu0
      %5418 = vmatprep.mubr.f32.mxu0 0.0
      %v5419 = vand.u32 %v3841, 4294901760
      %v5420 = vsub.f32 %v3841, %v5419
      %5421 = vmatmul.mubr.f32.gmra.mrb[0].mxu0 %v5420
      %v5422 = vpop.f32.mrb[0].mxu0
      %v5423 = vadd.f32 %v4931, %v5422
      %v5424 = vpop.f32.mrb[0].mxu0
      %5425 = vmatprep.mubr.f32.mxu0 0.0
      %v5426 = vand.u32 %v3844, 4294901760
      %v5427 = vsub.f32 %v3844, %v5426
      %5428 = vmatmul.mubr.f32.gmra.mrb[0].mxu0 %v5427
      %v5429 = vpop.f32.mrb[0].mxu0
      %v5430 = vadd.f32 %v4937, %v5429
      %v5431 = vpop.f32.mrb[0].mxu0
      %5432 = vmatprep.mubr.f32.mxu0 0.0
      %v5433 = vand.u32 %v3847, 4294901760
      %v5434 = vsub.f32 %v3847, %v5433
      %5435 = vmatmul.mubr.f32.gmra.mrb[0].mxu0 %v5434
      %v5436 = vpop.f32.mrb[0].mxu0
      %v5437 = vadd.f32 %v4943, %v5436
      %v5438 = vpop.f32.mrb[0].mxu0
      %5439 = vmatprep.mubr.f32.mxu0 0.0
      %v5440 = vand.u32 %v3850, 4294901760
      %v5441 = vsub.f32 %v3850, %v5440
      %5442 = vmatmul.mubr.f32.gmra.mrb[0].mxu0 %v5441
      %v5443 = vpop.f32.mrb[0].mxu0
      %v5444 = vadd.f32 %v4949, %v5443
      %v5445 = vpop.f32.mrb[0].mxu0
      %5446 = vmatprep.mubr.f32.mxu0 0.0
      %v5447 = vand.u32 %v3853, 4294901760
      %v5448 = vsub.f32 %v3853, %v5447
      %5449 = vmatmul.mubr.f32.gmra.mrb[0].mxu0 %v5448
      %v5450 = vpop.f32.mrb[0].mxu0
      %v5451 = vadd.f32 %v4955, %v5450
      %v5452 = vpop.f32.mrb[0].mxu0
      %5453 = vmatprep.mubr.f32.mxu0 0.0
      %v5454 = vand.u32 %v3856, 4294901760
      %v5455 = vsub.f32 %v3856, %v5454
      %5456 = vmatmul.mubr.f32.gmra.mrb[0].mxu0 %v5455
      %v5457 = vpop.f32.mrb[0].mxu0
      %v5458 = vadd.f32 %v4961, %v5457
      %v5459 = vpop.f32.mrb[0].mxu0
      %5460 = vmatprep.mubr.f32.mxu0 0.0
      %v5461 = vand.u32 %v3859, 4294901760
      %v5462 = vsub.f32 %v3859, %v5461
      %5463 = vmatmul.mubr.f32.gmra.mrb[0].mxu0 %v5462
      %v5464 = vpop.f32.mrb[0].mxu0
      %v5465 = vadd.f32 %v4967, %v5464
      %v5466 = vpop.f32.mrb[0].mxu0
      %5467 = vmatprep.mubr.f32.mxu0 0.0
      %v5468 = vand.u32 %v3862, 4294901760
      %v5469 = vsub.f32 %v3862, %v5468
      %5470 = vmatmul.mubr.f32.gmra.mrb[0].mxu0 %v5469
      %v5471 = vpop.f32.mrb[0].mxu0
      %v5472 = vadd.f32 %v4973, %v5471
      %v5473 = vpop.f32.mrb[0].mxu0
      %5474 = vmatprep.mubr.f32.mxu0 0.0
      %v5475 = vand.u32 %v3865, 4294901760
      %v5476 = vsub.f32 %v3865, %v5475
      %5477 = vmatmul.mubr.f32.gmra.mrb[0].mxu0 %v5476
      %v5478 = vpop.f32.mrb[0].mxu0
      %v5479 = vadd.f32 %v4979, %v5478
      %v5480 = vpop.f32.mrb[0].mxu0
      %5481 = vmatprep.mubr.f32.mxu0 0.0
      %v5482 = vand.u32 %v3868, 4294901760
      %v5483 = vsub.f32 %v3868, %v5482
      %5484 = vmatmul.mubr.f32.gmra.mrb[0].mxu0 %v5483
      %v5485 = vpop.f32.mrb[0].mxu0
      %v5486 = vadd.f32 %v4985, %v5485
      %v5487 = vpop.f32.mrb[0].mxu0
      %5488 = vmatprep.mubr.f32.mxu0 0.0
      %v5489 = vand.u32 %v3871, 4294901760
      %v5490 = vsub.f32 %v3871, %v5489
      %5491 = vmatmul.mubr.f32.gmra.mrb[0].mxu0 %v5490
      %v5492 = vpop.f32.mrb[0].mxu0
      %v5493 = vadd.f32 %v4991, %v5492
      %v5494 = vpop.f32.mrb[0].mxu0
      %5495 = vmatprep.mubr.f32.mxu0 0.0
      %v5496 = vand.u32 %v3874, 4294901760
      %v5497 = vsub.f32 %v3874, %v5496
      %5498 = vmatmul.mubr.f32.gmra.mrb[0].mxu0 %v5497
      %v5499 = vpop.f32.mrb[0].mxu0
      %v5500 = vadd.f32 %v4997, %v5499
      %v5501 = vpop.f32.mrb[0].mxu0
      %5502 = vmatprep.mubr.f32.mxu0 0.0
      %v5503 = vand.u32 %v3877, 4294901760
      %v5504 = vsub.f32 %v3877, %v5503
      %5505 = vmatmul.mubr.f32.gmra.mrb[0].mxu0 %v5504
      %v5506 = vpop.f32.mrb[0].mxu0
      %v5507 = vadd.f32 %v5003, %v5506
      %v5508 = vpop.f32.mrb[0].mxu0
      %5509 = vmatprep.mubr.f32.mxu0 0.0
      %v5510 = vand.u32 %v3880, 4294901760
      %v5511 = vsub.f32 %v3880, %v5510
      %5512 = vmatmul.mubr.f32.gmra.mrb[0].mxu0 %v5511
      %v5513 = vpop.f32.mrb[0].mxu0
      %v5514 = vadd.f32 %v5009, %v5513
      %v5515 = vpop.f32.mrb[0].mxu0
      %5516 = vmatprep.mubr.f32.mxu0 0.0
      %v5517 = vand.u32 %v3883, 4294901760
      %v5518 = vsub.f32 %v3883, %v5517
      %5519 = vmatmul.mubr.f32.gmra.mrb[0].mxu0 %v5518
      %v5520 = vpop.f32.mrb[0].mxu0
      %v5521 = vadd.f32 %v5015, %v5520
      %v5522 = vpop.f32.mrb[0].mxu0
      %5523 = vmatprep.mubr.f32.mxu0 0.0
      %v5524 = vand.u32 %v3886, 4294901760
      %v5525 = vsub.f32 %v3886, %v5524
      %5526 = vmatmul.mubr.f32.gmra.mrb[0].mxu0 %v5525
      %v5527 = vpop.f32.mrb[0].mxu0
      %v5528 = vadd.f32 %v5021, %v5527
      %v5529 = vpop.f32.mrb[0].mxu0
      %5530 = vmatprep.mubr.f32.mxu0 0.0
      %v5531 = vand.u32 %v3889, 4294901760
      %v5532 = vsub.f32 %v3889, %v5531
      %5533 = vmatmul.mubr.f32.gmra.mrb[0].mxu0 %v5532
      %v5534 = vpop.f32.mrb[0].mxu0
      %v5535 = vadd.f32 %v5027, %v5534
      %v5536 = vpop.f32.mrb[0].mxu0
      %5537 = vmatprep.mubr.f32.mxu0 0.0
      %v5538 = vand.u32 %v3892, 4294901760
      %v5539 = vsub.f32 %v3892, %v5538
      %5540 = vmatmul.mubr.f32.gmra.mrb[0].mxu0 %v5539
      %v5541 = vpop.f32.mrb[0].mxu0
      %v5542 = vadd.f32 %v5033, %v5541
      %v5543 = vpop.f32.mrb[0].mxu0
      %5544 = vmatprep.mubr.f32.mxu0 0.0
      %v5545 = vand.u32 %v3895, 4294901760
      %v5546 = vsub.f32 %v3895, %v5545
      %5547 = vmatmul.mubr.f32.gmra.mrb[0].mxu0 %v5546
      %v5548 = vpop.f32.mrb[0].mxu0
      %v5549 = vadd.f32 %v5039, %v5548
      %v5550 = vpop.f32.mrb[0].mxu0
      %5551 = vmatprep.mubr.f32.mxu0 0.0
      %v5552 = vand.u32 %v3898, 4294901760
      %v5553 = vsub.f32 %v3898, %v5552
      %5554 = vmatmul.mubr.f32.gmra.mrb[0].mxu0 %v5553
      %v5555 = vpop.f32.mrb[0].mxu0
      %v5556 = vadd.f32 %v5045, %v5555
      %v5557 = vpop.f32.mrb[0].mxu0
      %5558 = vmatprep.mubr.f32.mxu0 0.0
      %v5559 = vand.u32 %v3901, 4294901760
      %v5560 = vsub.f32 %v3901, %v5559
      %5561 = vmatmul.mubr.f32.gmra.mrb[0].mxu0 %v5560
      %v5562 = vpop.f32.mrb[0].mxu0
      %v5563 = vadd.f32 %v5051, %v5562
      %v5564 = vpop.f32.mrb[0].mxu0
      %5565 = vmatprep.mubr.f32.mxu0 0.0
      %v5566 = vand.u32 %v3904, 4294901760
      %v5567 = vsub.f32 %v3904, %v5566
      %5568 = vmatmul.mubr.f32.gmra.mrb[0].mxu0 %v5567
      %v5569 = vpop.f32.mrb[0].mxu0
      %v5570 = vadd.f32 %v5057, %v5569
      %v5571 = vpop.f32.mrb[0].mxu0
      %5572 = vmatprep.mubr.f32.mxu0 0.0
      %v5573 = vand.u32 %v3907, 4294901760
      %v5574 = vsub.f32 %v3907, %v5573
      %5575 = vmatmul.mubr.f32.gmra.mrb[0].mxu0 %v5574
      %v5576 = vpop.f32.mrb[0].mxu0
      %v5577 = vadd.f32 %v5063, %v5576
      %v5578 = vpop.f32.mrb[0].mxu0
      %5579 = vmatprep.mubr.f32.mxu0 0.0
      %v5580 = vand.u32 %v3910, 4294901760
      %v5581 = vsub.f32 %v3910, %v5580
      %5582 = vmatmul.mubr.f32.gmra.mrb[0].mxu0 %v5581
      %v5583 = vpop.f32.mrb[0].mxu0
      %v5584 = vadd.f32 %v5069, %v5583
      %v5585 = vpop.f32.mrb[0].mxu0
      %5586 = vmatprep.mubr.f32.mxu0 0.0
      %v5587 = vand.u32 %v3913, 4294901760
      %v5588 = vsub.f32 %v3913, %v5587
      %5589 = vmatmul.mubr.f32.gmra.mrb[0].mxu0 %v5588
      %v5590 = vpop.f32.mrb[0].mxu0
      %v5591 = vadd.f32 %v5075, %v5590
      %v5592 = vpop.f32.mrb[0].mxu0
      %5593 = vmatprep.mubr.f32.mxu0 0.0
      %v5594 = vand.u32 %v3916, 4294901760
      %v5595 = vsub.f32 %v3916, %v5594
      %5596 = vmatmul.mubr.f32.gmra.mrb[0].mxu0 %v5595
      %v5597 = vpop.f32.mrb[0].mxu0
      %v5598 = vadd.f32 %v5081, %v5597
      %v5599 = vpop.f32.mrb[0].mxu0
      %5600 = vdwg.mxu0
      %5601 = vmatprep.subr.mxu0 0.0
      %v5602 = vand.u32 %v3716, 4294901760
      %5603 = vmatpush1.msra.mxu0 %v5602
      %5604 = vmatprep.subr.mxu0 0.0
      %v5605 = vand.u32 %v3717, 4294901760
      %5606 = vmatpush1.msra.mxu0 %v5605
      %5607 = vmatprep.subr.mxu0 0.0
      %5608 = vmatpush1.msra.mxu0 0.0
      %5609 = vmatprep.subr.mxu0 0.0
      %5610 = vmatpush1.msra.mxu0 0.0
      %5611 = vmatprep.subr.mxu0 0.0
      %5612 = vmatpush1.msra.mxu0 0.0
      %5613 = vmatprep.subr.mxu0 0.0
      %5614 = vmatpush1.msra.mxu0 0.0
      %5615 = vmatprep.subr.mxu0 0.0
      %5616 = vmatpush1.msra.mxu0 0.0
      %5617 = vmatprep.subr.mxu0 0.0
      %5618 = vmatpush1.msra.mxu0 0.0
      %5619 = vmatprep.subr.mxu0 0.0
      %5620 = vmatpush1.msra.mxu0 0.0
      %5621 = vmatprep.subr.mxu0 0.0
      %5622 = vmatpush1.msra.mxu0 0.0
      %5623 = vmatprep.subr.mxu0 0.0
      %5624 = vmatpush1.msra.mxu0 0.0
      %5625 = vmatprep.subr.mxu0 0.0
      %5626 = vmatpush1.msra.mxu0 0.0
      %5627 = vmatprep.subr.mxu0 0.0
      %5628 = vmatpush1.msra.mxu0 0.0
      %5629 = vmatprep.subr.mxu0 0.0
      %5630 = vmatpush1.msra.mxu0 0.0
      %5631 = vmatprep.subr.mxu0 0.0
      %5632 = vmatpush1.msra.mxu0 0.0
      %5633 = vmatprep.subr.mxu0 0.0
      %5634 = vmatpush1.msra.mxu0 0.0
      %5635 = vmatprep.subr.mxu0 0.0
      %5636 = vmatpush1.msra.mxu0 0.0
      %5637 = vmatprep.subr.mxu0 0.0
      %5638 = vmatpush1.msra.mxu0 0.0
      %5639 = vmatprep.subr.mxu0 0.0
      %5640 = vmatpush1.msra.mxu0 0.0
      %5641 = vmatprep.subr.mxu0 0.0
      %5642 = vmatpush1.msra.mxu0 0.0
      %5643 = vmatprep.subr.mxu0 0.0
      %5644 = vmatpush1.msra.mxu0 0.0
      %5645 = vmatprep.subr.mxu0 0.0
      %5646 = vmatpush1.msra.mxu0 0.0
      %5647 = vmatprep.subr.mxu0 0.0
      %5648 = vmatpush1.msra.mxu0 0.0
      %5649 = vmatprep.subr.mxu0 0.0
      %5650 = vmatpush1.msra.mxu0 0.0
      %5651 = vmatprep.subr.mxu0 0.0
      %5652 = vmatpush1.msra.mxu0 0.0
      %5653 = vmatprep.subr.mxu0 0.0
      %5654 = vmatpush1.msra.mxu0 0.0
      %5655 = vmatprep.subr.mxu0 0.0
      %5656 = vmatpush1.msra.mxu0 0.0
      %5657 = vmatprep.subr.mxu0 0.0
      %5658 = vmatpush1.msra.mxu0 0.0
      %5659 = vmatprep.subr.mxu0 0.0
      %5660 = vmatpush1.msra.mxu0 0.0
      %5661 = vmatprep.subr.mxu0 0.0
      %5662 = vmatpush1.msra.mxu0 0.0
      %5663 = vmatprep.subr.mxu0 0.0
      %5664 = vmatpush1.msra.mxu0 0.0
      %5665 = vmatprep.subr.mxu0 0.0
      %5666 = vmatpush1.msra.mxu0 0.0
      %5667 = vmatprep.mubr.f32.mxu0 0.0
      %v5668 = vand.u32 %v3727, 4294901760
      %v5669 = vsub.f32 %v3727, %v5668
      %v5670 = vand.u32 %v5669, 4294901760
      %5671 = vmatmul.mubr.f32.gmra.mrb[0].mxu0 %v5670
      %v5672 = vpop.f32.mrb[0].mxu0
      %v5673 = vadd.f32 %v5157, %v5672
      %v5674 = vpop.f32.mrb[0].mxu0
      %5675 = vmatprep.mubr.f32.mxu0 0.0
      %v5676 = vand.u32 %v3730, 4294901760
      %v5677 = vsub.f32 %v3730, %v5676
      %v5678 = vand.u32 %v5677, 4294901760
      %5679 = vmatmul.mubr.f32.gmra.mrb[0].mxu0 %v5678
      %v5680 = vpop.f32.mrb[0].mxu0
      %v5681 = vadd.f32 %v5164, %v5680
      %v5682 = vpop.f32.mrb[0].mxu0
      %5683 = vmatprep.mubr.f32.mxu0 0.0
      %v5684 = vand.u32 %v3733, 4294901760
      %v5685 = vsub.f32 %v3733, %v5684
      %v5686 = vand.u32 %v5685, 4294901760
      %5687 = vmatmul.mubr.f32.gmra.mrb[0].mxu0 %v5686
      %v5688 = vpop.f32.mrb[0].mxu0
      %v5689 = vadd.f32 %v5171, %v5688
      %v5690 = vpop.f32.mrb[0].mxu0
      %5691 = vmatprep.mubr.f32.mxu0 0.0
      %v5692 = vand.u32 %v3736, 4294901760
      %v5693 = vsub.f32 %v3736, %v5692
      %v5694 = vand.u32 %v5693, 4294901760
      %5695 = vmatmul.mubr.f32.gmra.mrb[0].mxu0 %v5694
      %v5696 = vpop.f32.mrb[0].mxu0
      %v5697 = vadd.f32 %v5178, %v5696
      %v5698 = vpop.f32.mrb[0].mxu0
      %5699 = vmatprep.mubr.f32.mxu0 0.0
      %v5700 = vand.u32 %v3739, 4294901760
      %v5701 = vsub.f32 %v3739, %v5700
      %v5702 = vand.u32 %v5701, 4294901760
      %5703 = vmatmul.mubr.f32.gmra.mrb[0].mxu0 %v5702
      %v5704 = vpop.f32.mrb[0].mxu0
      %v5705 = vadd.f32 %v5185, %v5704
      %v5706 = vpop.f32.mrb[0].mxu0
      %5707 = vmatprep.mubr.f32.mxu0 0.0
      %v5708 = vand.u32 %v3742, 4294901760
      %v5709 = vsub.f32 %v3742, %v5708
      %v5710 = vand.u32 %v5709, 4294901760
      %5711 = vmatmul.mubr.f32.gmra.mrb[0].mxu0 %v5710
      %v5712 = vpop.f32.mrb[0].mxu0
      %v5713 = vadd.f32 %v5192, %v5712
      %v5714 = vpop.f32.mrb[0].mxu0
      %5715 = vmatprep.mubr.f32.mxu0 0.0
      %v5716 = vand.u32 %v3745, 4294901760
      %v5717 = vsub.f32 %v3745, %v5716
      %v5718 = vand.u32 %v5717, 4294901760
      %5719 = vmatmul.mubr.f32.gmra.mrb[0].mxu0 %v5718
      %v5720 = vpop.f32.mrb[0].mxu0
      %v5721 = vadd.f32 %v5199, %v5720
      %v5722 = vpop.f32.mrb[0].mxu0
      %5723 = vmatprep.mubr.f32.mxu0 0.0
      %v5724 = vand.u32 %v3748, 4294901760
      %v5725 = vsub.f32 %v3748, %v5724
      %v5726 = vand.u32 %v5725, 4294901760
      %5727 = vmatmul.mubr.f32.gmra.mrb[0].mxu0 %v5726
      %v5728 = vpop.f32.mrb[0].mxu0
      %v5729 = vadd.f32 %v5206, %v5728
      %v5730 = vpop.f32.mrb[0].mxu0
      %5731 = vmatprep.mubr.f32.mxu0 0.0
      %v5732 = vand.u32 %v3751, 4294901760
      %v5733 = vsub.f32 %v3751, %v5732
      %v5734 = vand.u32 %v5733, 4294901760
      %5735 = vmatmul.mubr.f32.gmra.mrb[0].mxu0 %v5734
      %v5736 = vpop.f32.mrb[0].mxu0
      %v5737 = vadd.f32 %v5213, %v5736
      %v5738 = vpop.f32.mrb[0].mxu0
      %5739 = vmatprep.mubr.f32.mxu0 0.0
      %v5740 = vand.u32 %v3754, 4294901760
      %v5741 = vsub.f32 %v3754, %v5740
      %v5742 = vand.u32 %v5741, 4294901760
      %5743 = vmatmul.mubr.f32.gmra.mrb[0].mxu0 %v5742
      %v5744 = vpop.f32.mrb[0].mxu0
      %v5745 = vadd.f32 %v5220, %v5744
      %v5746 = vpop.f32.mrb[0].mxu0
      %5747 = vmatprep.mubr.f32.mxu0 0.0
      %v5748 = vand.u32 %v3757, 4294901760
      %v5749 = vsub.f32 %v3757, %v5748
      %v5750 = vand.u32 %v5749, 4294901760
      %5751 = vmatmul.mubr.f32.gmra.mrb[0].mxu0 %v5750
      %v5752 = vpop.f32.mrb[0].mxu0
      %v5753 = vadd.f32 %v5227, %v5752
      %v5754 = vpop.f32.mrb[0].mxu0
      %5755 = vmatprep.mubr.f32.mxu0 0.0
      %v5756 = vand.u32 %v3760, 4294901760
      %v5757 = vsub.f32 %v3760, %v5756
      %v5758 = vand.u32 %v5757, 4294901760
      %5759 = vmatmul.mubr.f32.gmra.mrb[0].mxu0 %v5758
      %v5760 = vpop.f32.mrb[0].mxu0
      %v5761 = vadd.f32 %v5234, %v5760
      %v5762 = vpop.f32.mrb[0].mxu0
      %5763 = vmatprep.mubr.f32.mxu0 0.0
      %v5764 = vand.u32 %v3763, 4294901760
      %v5765 = vsub.f32 %v3763, %v5764
      %v5766 = vand.u32 %v5765, 4294901760
      %5767 = vmatmul.mubr.f32.gmra.mrb[0].mxu0 %v5766
      %v5768 = vpop.f32.mrb[0].mxu0
      %v5769 = vadd.f32 %v5241, %v5768
      %v5770 = vpop.f32.mrb[0].mxu0
      %5771 = vmatprep.mubr.f32.mxu0 0.0
      %v5772 = vand.u32 %v3766, 4294901760
      %v5773 = vsub.f32 %v3766, %v5772
      %v5774 = vand.u32 %v5773, 4294901760
      %5775 = vmatmul.mubr.f32.gmra.mrb[0].mxu0 %v5774
      %v5776 = vpop.f32.mrb[0].mxu0
      %v5777 = vadd.f32 %v5248, %v5776
      %v5778 = vpop.f32.mrb[0].mxu0
      %5779 = vmatprep.mubr.f32.mxu0 0.0
      %v5780 = vand.u32 %v3769, 4294901760
      %v5781 = vsub.f32 %v3769, %v5780
      %v5782 = vand.u32 %v5781, 4294901760
      %5783 = vmatmul.mubr.f32.gmra.mrb[0].mxu0 %v5782
      %v5784 = vpop.f32.mrb[0].mxu0
      %v5785 = vadd.f32 %v5255, %v5784
      %v5786 = vpop.f32.mrb[0].mxu0
      %5787 = vmatprep.mubr.f32.mxu0 0.0
      %v5788 = vand.u32 %v3772, 4294901760
      %v5789 = vsub.f32 %v3772, %v5788
      %v5790 = vand.u32 %v5789, 4294901760
      %5791 = vmatmul.mubr.f32.gmra.mrb[0].mxu0 %v5790
      %v5792 = vpop.f32.mrb[0].mxu0
      %v5793 = vadd.f32 %v5262, %v5792
      %v5794 = vpop.f32.mrb[0].mxu0
      %5795 = vmatprep.mubr.f32.mxu0 0.0
      %v5796 = vand.u32 %v3775, 4294901760
      %v5797 = vsub.f32 %v3775, %v5796
      %v5798 = vand.u32 %v5797, 4294901760
      %5799 = vmatmul.mubr.f32.gmra.mrb[0].mxu0 %v5798
      %v5800 = vpop.f32.mrb[0].mxu0
      %v5801 = vadd.f32 %v5269, %v5800
      %v5802 = vpop.f32.mrb[0].mxu0
      %5803 = vmatprep.mubr.f32.mxu0 0.0
      %v5804 = vand.u32 %v3778, 4294901760
      %v5805 = vsub.f32 %v3778, %v5804
      %v5806 = vand.u32 %v5805, 4294901760
      %5807 = vmatmul.mubr.f32.gmra.mrb[0].mxu0 %v5806
      %v5808 = vpop.f32.mrb[0].mxu0
      %v5809 = vadd.f32 %v5276, %v5808
      %v5810 = vpop.f32.mrb[0].mxu0
      %5811 = vmatprep.mubr.f32.mxu0 0.0
      %v5812 = vand.u32 %v3781, 4294901760
      %v5813 = vsub.f32 %v3781, %v5812
      %v5814 = vand.u32 %v5813, 4294901760
      %5815 = vmatmul.mubr.f32.gmra.mrb[0].mxu0 %v5814
      %v5816 = vpop.f32.mrb[0].mxu0
      %v5817 = vadd.f32 %v5283, %v5816
      %v5818 = vpop.f32.mrb[0].mxu0
      %5819 = vmatprep.mubr.f32.mxu0 0.0
      %v5820 = vand.u32 %v3784, 4294901760
      %v5821 = vsub.f32 %v3784, %v5820
      %v5822 = vand.u32 %v5821, 4294901760
      %5823 = vmatmul.mubr.f32.gmra.mrb[0].mxu0 %v5822
      %v5824 = vpop.f32.mrb[0].mxu0
      %v5825 = vadd.f32 %v5290, %v5824
      %v5826 = vpop.f32.mrb[0].mxu0
      %5827 = vmatprep.mubr.f32.mxu0 0.0
      %v5828 = vand.u32 %v3787, 4294901760
      %v5829 = vsub.f32 %v3787, %v5828
      %v5830 = vand.u32 %v5829, 4294901760
      %5831 = vmatmul.mubr.f32.gmra.mrb[0].mxu0 %v5830
      %v5832 = vpop.f32.mrb[0].mxu0
      %v5833 = vadd.f32 %v5297, %v5832
      %v5834 = vpop.f32.mrb[0].mxu0
      %5835 = vmatprep.mubr.f32.mxu0 0.0
      %v5836 = vand.u32 %v3790, 4294901760
      %v5837 = vsub.f32 %v3790, %v5836
      %v5838 = vand.u32 %v5837, 4294901760
      %5839 = vmatmul.mubr.f32.gmra.mrb[0].mxu0 %v5838
      %v5840 = vpop.f32.mrb[0].mxu0
      %v5841 = vadd.f32 %v5304, %v5840
      %v5842 = vpop.f32.mrb[0].mxu0
      %5843 = vmatprep.mubr.f32.mxu0 0.0
      %v5844 = vand.u32 %v3793, 4294901760
      %v5845 = vsub.f32 %v3793, %v5844
      %v5846 = vand.u32 %v5845, 4294901760
      %5847 = vmatmul.mubr.f32.gmra.mrb[0].mxu0 %v5846
      %v5848 = vpop.f32.mrb[0].mxu0
      %v5849 = vadd.f32 %v5311, %v5848
      %v5850 = vpop.f32.mrb[0].mxu0
      %5851 = vmatprep.mubr.f32.mxu0 0.0
      %v5852 = vand.u32 %v3796, 4294901760
      %v5853 = vsub.f32 %v3796, %v5852
      %v5854 = vand.u32 %v5853, 4294901760
      %5855 = vmatmul.mubr.f32.gmra.mrb[0].mxu0 %v5854
      %v5856 = vpop.f32.mrb[0].mxu0
      %v5857 = vadd.f32 %v5318, %v5856
      %v5858 = vpop.f32.mrb[0].mxu0
      %5859 = vmatprep.mubr.f32.mxu0 0.0
      %v5860 = vand.u32 %v3799, 4294901760
      %v5861 = vsub.f32 %v3799, %v5860
      %v5862 = vand.u32 %v5861, 4294901760
      %5863 = vmatmul.mubr.f32.gmra.mrb[0].mxu0 %v5862
      %v5864 = vpop.f32.mrb[0].mxu0
      %v5865 = vadd.f32 %v5325, %v5864
      %v5866 = vpop.f32.mrb[0].mxu0
      %5867 = vmatprep.mubr.f32.mxu0 0.0
      %v5868 = vand.u32 %v3802, 4294901760
      %v5869 = vsub.f32 %v3802, %v5868
      %v5870 = vand.u32 %v5869, 4294901760
      %5871 = vmatmul.mubr.f32.gmra.mrb[0].mxu0 %v5870
      %v5872 = vpop.f32.mrb[0].mxu0
      %v5873 = vadd.f32 %v5332, %v5872
      %v5874 = vpop.f32.mrb[0].mxu0
      %5875 = vmatprep.mubr.f32.mxu0 0.0
      %v5876 = vand.u32 %v3805, 4294901760
      %v5877 = vsub.f32 %v3805, %v5876
      %v5878 = vand.u32 %v5877, 4294901760
      %5879 = vmatmul.mubr.f32.gmra.mrb[0].mxu0 %v5878
      %v5880 = vpop.f32.mrb[0].mxu0
      %v5881 = vadd.f32 %v5339, %v5880
      %v5882 = vpop.f32.mrb[0].mxu0
      %5883 = vmatprep.mubr.f32.mxu0 0.0
      %v5884 = vand.u32 %v3808, 4294901760
      %v5885 = vsub.f32 %v3808, %v5884
      %v5886 = vand.u32 %v5885, 4294901760
      %5887 = vmatmul.mubr.f32.gmra.mrb[0].mxu0 %v5886
      %v5888 = vpop.f32.mrb[0].mxu0
      %v5889 = vadd.f32 %v5346, %v5888
      %v5890 = vpop.f32.mrb[0].mxu0
      %5891 = vmatprep.mubr.f32.mxu0 0.0
      %v5892 = vand.u32 %v3811, 4294901760
      %v5893 = vsub.f32 %v3811, %v5892
      %v5894 = vand.u32 %v5893, 4294901760
      %5895 = vmatmul.mubr.f32.gmra.mrb[0].mxu0 %v5894
      %v5896 = vpop.f32.mrb[0].mxu0
      %v5897 = vadd.f32 %v5353, %v5896
      %v5898 = vpop.f32.mrb[0].mxu0
      %5899 = vmatprep.mubr.f32.mxu0 0.0
      %v5900 = vand.u32 %v3814, 4294901760
      %v5901 = vsub.f32 %v3814, %v5900
      %v5902 = vand.u32 %v5901, 4294901760
      %5903 = vmatmul.mubr.f32.gmra.mrb[0].mxu0 %v5902
      %v5904 = vpop.f32.mrb[0].mxu0
      %v5905 = vadd.f32 %v5360, %v5904
      %v5906 = vpop.f32.mrb[0].mxu0
      %5907 = vmatprep.mubr.f32.mxu0 0.0
      %v5908 = vand.u32 %v3817, 4294901760
      %v5909 = vsub.f32 %v3817, %v5908
      %v5910 = vand.u32 %v5909, 4294901760
      %5911 = vmatmul.mubr.f32.gmra.mrb[0].mxu0 %v5910
      %v5912 = vpop.f32.mrb[0].mxu0
      %v5913 = vadd.f32 %v5367, %v5912
      %v5914 = vpop.f32.mrb[0].mxu0
      %5915 = vmatprep.mubr.f32.mxu0 0.0
      %v5916 = vand.u32 %v3820, 4294901760
      %v5917 = vsub.f32 %v3820, %v5916
      %v5918 = vand.u32 %v5917, 4294901760
      %5919 = vmatmul.mubr.f32.gmra.mrb[0].mxu0 %v5918
      %v5920 = vpop.f32.mrb[0].mxu0
      %v5921 = vadd.f32 %v5374, %v5920
      %v5922 = vpop.f32.mrb[0].mxu0
      %5923 = vmatprep.mubr.f32.mxu0 0.0
      %v5924 = vand.u32 %v3823, 4294901760
      %v5925 = vsub.f32 %v3823, %v5924
      %v5926 = vand.u32 %v5925, 4294901760
      %5927 = vmatmul.mubr.f32.gmra.mrb[0].mxu0 %v5926
      %v5928 = vpop.f32.mrb[0].mxu0
      %v5929 = vadd.f32 %v5381, %v5928
      %v5930 = vpop.f32.mrb[0].mxu0
      %5931 = vmatprep.mubr.f32.mxu0 0.0
      %v5932 = vand.u32 %v3826, 4294901760
      %v5933 = vsub.f32 %v3826, %v5932
      %v5934 = vand.u32 %v5933, 4294901760
      %5935 = vmatmul.mubr.f32.gmra.mrb[0].mxu0 %v5934
      %v5936 = vpop.f32.mrb[0].mxu0
      %v5937 = vadd.f32 %v5388, %v5936
      %v5938 = vpop.f32.mrb[0].mxu0
      %5939 = vmatprep.mubr.f32.mxu0 0.0
      %v5940 = vand.u32 %v3829, 4294901760
      %v5941 = vsub.f32 %v3829, %v5940
      %v5942 = vand.u32 %v5941, 4294901760
      %5943 = vmatmul.mubr.f32.gmra.mrb[0].mxu0 %v5942
      %v5944 = vpop.f32.mrb[0].mxu0
      %v5945 = vadd.f32 %v5395, %v5944
      %v5946 = vpop.f32.mrb[0].mxu0
      %5947 = vmatprep.mubr.f32.mxu0 0.0
      %v5948 = vand.u32 %v3832, 4294901760
      %v5949 = vsub.f32 %v3832, %v5948
      %v5950 = vand.u32 %v5949, 4294901760
      %5951 = vmatmul.mubr.f32.gmra.mrb[0].mxu0 %v5950
      %v5952 = vpop.f32.mrb[0].mxu0
      %v5953 = vadd.f32 %v5402, %v5952
      %v5954 = vpop.f32.mrb[0].mxu0
      %5955 = vmatprep.mubr.f32.mxu0 0.0
      %v5956 = vand.u32 %v3835, 4294901760
      %v5957 = vsub.f32 %v3835, %v5956
      %v5958 = vand.u32 %v5957, 4294901760
      %5959 = vmatmul.mubr.f32.gmra.mrb[0].mxu0 %v5958
      %v5960 = vpop.f32.mrb[0].mxu0
      %v5961 = vadd.f32 %v5409, %v5960
      %v5962 = vpop.f32.mrb[0].mxu0
      %5963 = vmatprep.mubr.f32.mxu0 0.0
      %v5964 = vand.u32 %v3838, 4294901760
      %v5965 = vsub.f32 %v3838, %v5964
      %v5966 = vand.u32 %v5965, 4294901760
      %5967 = vmatmul.mubr.f32.gmra.mrb[0].mxu0 %v5966
      %v5968 = vpop.f32.mrb[0].mxu0
      %v5969 = vadd.f32 %v5416, %v5968
      %v5970 = vpop.f32.mrb[0].mxu0
      %5971 = vmatprep.mubr.f32.mxu0 0.0
      %v5972 = vand.u32 %v3841, 4294901760
      %v5973 = vsub.f32 %v3841, %v5972
      %v5974 = vand.u32 %v5973, 4294901760
      %5975 = vmatmul.mubr.f32.gmra.mrb[0].mxu0 %v5974
      %v5976 = vpop.f32.mrb[0].mxu0
      %v5977 = vadd.f32 %v5423, %v5976
      %v5978 = vpop.f32.mrb[0].mxu0
      %5979 = vmatprep.mubr.f32.mxu0 0.0
      %v5980 = vand.u32 %v3844, 4294901760
      %v5981 = vsub.f32 %v3844, %v5980
      %v5982 = vand.u32 %v5981, 4294901760
      %5983 = vmatmul.mubr.f32.gmra.mrb[0].mxu0 %v5982
      %v5984 = vpop.f32.mrb[0].mxu0
      %v5985 = vadd.f32 %v5430, %v5984
      %v5986 = vpop.f32.mrb[0].mxu0
      %5987 = vmatprep.mubr.f32.mxu0 0.0
      %v5988 = vand.u32 %v3847, 4294901760
      %v5989 = vsub.f32 %v3847, %v5988
      %v5990 = vand.u32 %v5989, 4294901760
      %5991 = vmatmul.mubr.f32.gmra.mrb[0].mxu0 %v5990
      %v5992 = vpop.f32.mrb[0].mxu0
      %v5993 = vadd.f32 %v5437, %v5992
      %v5994 = vpop.f32.mrb[0].mxu0
      %5995 = vmatprep.mubr.f32.mxu0 0.0
      %v5996 = vand.u32 %v3850, 4294901760
      %v5997 = vsub.f32 %v3850, %v5996
      %v5998 = vand.u32 %v5997, 4294901760
      %5999 = vmatmul.mubr.f32.gmra.mrb[0].mxu0 %v5998
      %v6000 = vpop.f32.mrb[0].mxu0
      %v6001 = vadd.f32 %v5444, %v6000
      %v6002 = vpop.f32.mrb[0].mxu0
      %6003 = vmatprep.mubr.f32.mxu0 0.0
      %v6004 = vand.u32 %v3853, 4294901760
      %v6005 = vsub.f32 %v3853, %v6004
      %v6006 = vand.u32 %v6005, 4294901760
      %6007 = vmatmul.mubr.f32.gmra.mrb[0].mxu0 %v6006
      %v6008 = vpop.f32.mrb[0].mxu0
      %v6009 = vadd.f32 %v5451, %v6008
      %v6010 = vpop.f32.mrb[0].mxu0
      %6011 = vmatprep.mubr.f32.mxu0 0.0
      %v6012 = vand.u32 %v3856, 4294901760
      %v6013 = vsub.f32 %v3856, %v6012
      %v6014 = vand.u32 %v6013, 4294901760
      %6015 = vmatmul.mubr.f32.gmra.mrb[0].mxu0 %v6014
      %v6016 = vpop.f32.mrb[0].mxu0
      %v6017 = vadd.f32 %v5458, %v6016
      %v6018 = vpop.f32.mrb[0].mxu0
      %6019 = vmatprep.mubr.f32.mxu0 0.0
      %v6020 = vand.u32 %v3859, 4294901760
      %v6021 = vsub.f32 %v3859, %v6020
      %v6022 = vand.u32 %v6021, 4294901760
      %6023 = vmatmul.mubr.f32.gmra.mrb[0].mxu0 %v6022
      %v6024 = vpop.f32.mrb[0].mxu0
      %v6025 = vadd.f32 %v5465, %v6024
      %v6026 = vpop.f32.mrb[0].mxu0
      %6027 = vmatprep.mubr.f32.mxu0 0.0
      %v6028 = vand.u32 %v3862, 4294901760
      %v6029 = vsub.f32 %v3862, %v6028
      %v6030 = vand.u32 %v6029, 4294901760
      %6031 = vmatmul.mubr.f32.gmra.mrb[0].mxu0 %v6030
      %v6032 = vpop.f32.mrb[0].mxu0
      %v6033 = vadd.f32 %v5472, %v6032
      %v6034 = vpop.f32.mrb[0].mxu0
      %6035 = vmatprep.mubr.f32.mxu0 0.0
      %v6036 = vand.u32 %v3865, 4294901760
      %v6037 = vsub.f32 %v3865, %v6036
      %v6038 = vand.u32 %v6037, 4294901760
      %6039 = vmatmul.mubr.f32.gmra.mrb[0].mxu0 %v6038
      %v6040 = vpop.f32.mrb[0].mxu0
      %v6041 = vadd.f32 %v5479, %v6040
      %v6042 = vpop.f32.mrb[0].mxu0
      %6043 = vmatprep.mubr.f32.mxu0 0.0
      %v6044 = vand.u32 %v3868, 4294901760
      %v6045 = vsub.f32 %v3868, %v6044
      %v6046 = vand.u32 %v6045, 4294901760
      %6047 = vmatmul.mubr.f32.gmra.mrb[0].mxu0 %v6046
      %v6048 = vpop.f32.mrb[0].mxu0
      %v6049 = vadd.f32 %v5486, %v6048
      %v6050 = vpop.f32.mrb[0].mxu0
      %6051 = vmatprep.mubr.f32.mxu0 0.0
      %v6052 = vand.u32 %v3871, 4294901760
      %v6053 = vsub.f32 %v3871, %v6052
      %v6054 = vand.u32 %v6053, 4294901760
      %6055 = vmatmul.mubr.f32.gmra.mrb[0].mxu0 %v6054
      %v6056 = vpop.f32.mrb[0].mxu0
      %v6057 = vadd.f32 %v5493, %v6056
      %v6058 = vpop.f32.mrb[0].mxu0
      %6059 = vmatprep.mubr.f32.mxu0 0.0
      %v6060 = vand.u32 %v3874, 4294901760
      %v6061 = vsub.f32 %v3874, %v6060
      %v6062 = vand.u32 %v6061, 4294901760
      %6063 = vmatmul.mubr.f32.gmra.mrb[0].mxu0 %v6062
      %v6064 = vpop.f32.mrb[0].mxu0
      %v6065 = vadd.f32 %v5500, %v6064
      %v6066 = vpop.f32.mrb[0].mxu0
      %6067 = vmatprep.mubr.f32.mxu0 0.0
      %v6068 = vand.u32 %v3877, 4294901760
      %v6069 = vsub.f32 %v3877, %v6068
      %v6070 = vand.u32 %v6069, 4294901760
      %6071 = vmatmul.mubr.f32.gmra.mrb[0].mxu0 %v6070
      %v6072 = vpop.f32.mrb[0].mxu0
      %v6073 = vadd.f32 %v5507, %v6072
      %v6074 = vpop.f32.mrb[0].mxu0
      %6075 = vmatprep.mubr.f32.mxu0 0.0
      %v6076 = vand.u32 %v3880, 4294901760
      %v6077 = vsub.f32 %v3880, %v6076
      %v6078 = vand.u32 %v6077, 4294901760
      %6079 = vmatmul.mubr.f32.gmra.mrb[0].mxu0 %v6078
      %v6080 = vpop.f32.mrb[0].mxu0
      %v6081 = vadd.f32 %v5514, %v6080
      %v6082 = vpop.f32.mrb[0].mxu0
      %6083 = vmatprep.mubr.f32.mxu0 0.0
      %v6084 = vand.u32 %v3883, 4294901760
      %v6085 = vsub.f32 %v3883, %v6084
      %v6086 = vand.u32 %v6085, 4294901760
      %6087 = vmatmul.mubr.f32.gmra.mrb[0].mxu0 %v6086
      %v6088 = vpop.f32.mrb[0].mxu0
      %v6089 = vadd.f32 %v5521, %v6088
      %v6090 = vpop.f32.mrb[0].mxu0
      %6091 = vmatprep.mubr.f32.mxu0 0.0
      %v6092 = vand.u32 %v3886, 4294901760
      %v6093 = vsub.f32 %v3886, %v6092
      %v6094 = vand.u32 %v6093, 4294901760
      %6095 = vmatmul.mubr.f32.gmra.mrb[0].mxu0 %v6094
      %v6096 = vpop.f32.mrb[0].mxu0
      %v6097 = vadd.f32 %v5528, %v6096
      %v6098 = vpop.f32.mrb[0].mxu0
      %6099 = vmatprep.mubr.f32.mxu0 0.0
      %v6100 = vand.u32 %v3889, 4294901760
      %v6101 = vsub.f32 %v3889, %v6100
      %v6102 = vand.u32 %v6101, 4294901760
      %6103 = vmatmul.mubr.f32.gmra.mrb[0].mxu0 %v6102
      %v6104 = vpop.f32.mrb[0].mxu0
      %v6105 = vadd.f32 %v5535, %v6104
      %v6106 = vpop.f32.mrb[0].mxu0
      %6107 = vmatprep.mubr.f32.mxu0 0.0
      %v6108 = vand.u32 %v3892, 4294901760
      %v6109 = vsub.f32 %v3892, %v6108
      %v6110 = vand.u32 %v6109, 4294901760
      %6111 = vmatmul.mubr.f32.gmra.mrb[0].mxu0 %v6110
      %v6112 = vpop.f32.mrb[0].mxu0
      %v6113 = vadd.f32 %v5542, %v6112
      %v6114 = vpop.f32.mrb[0].mxu0
      %6115 = vmatprep.mubr.f32.mxu0 0.0
      %v6116 = vand.u32 %v3895, 4294901760
      %v6117 = vsub.f32 %v3895, %v6116
      %v6118 = vand.u32 %v6117, 4294901760
      %6119 = vmatmul.mubr.f32.gmra.mrb[0].mxu0 %v6118
      %v6120 = vpop.f32.mrb[0].mxu0
      %v6121 = vadd.f32 %v5549, %v6120
      %v6122 = vpop.f32.mrb[0].mxu0
      %6123 = vmatprep.mubr.f32.mxu0 0.0
      %v6124 = vand.u32 %v3898, 4294901760
      %v6125 = vsub.f32 %v3898, %v6124
      %v6126 = vand.u32 %v6125, 4294901760
      %6127 = vmatmul.mubr.f32.gmra.mrb[0].mxu0 %v6126
      %v6128 = vpop.f32.mrb[0].mxu0
      %v6129 = vadd.f32 %v5556, %v6128
      %v6130 = vpop.f32.mrb[0].mxu0
      %6131 = vmatprep.mubr.f32.mxu0 0.0
      %v6132 = vand.u32 %v3901, 4294901760
      %v6133 = vsub.f32 %v3901, %v6132
      %v6134 = vand.u32 %v6133, 4294901760
      %6135 = vmatmul.mubr.f32.gmra.mrb[0].mxu0 %v6134
      %v6136 = vpop.f32.mrb[0].mxu0
      %v6137 = vadd.f32 %v5563, %v6136
      %v6138 = vpop.f32.mrb[0].mxu0
      %6139 = vmatprep.mubr.f32.mxu0 0.0
      %v6140 = vand.u32 %v3904, 4294901760
      %v6141 = vsub.f32 %v3904, %v6140
      %v6142 = vand.u32 %v6141, 4294901760
      %6143 = vmatmul.mubr.f32.gmra.mrb[0].mxu0 %v6142
      %v6144 = vpop.f32.mrb[0].mxu0
      %v6145 = vadd.f32 %v5570, %v6144
      %v6146 = vpop.f32.mrb[0].mxu0
      %6147 = vmatprep.mubr.f32.mxu0 0.0
      %v6148 = vand.u32 %v3907, 4294901760
      %v6149 = vsub.f32 %v3907, %v6148
      %v6150 = vand.u32 %v6149, 4294901760
      %6151 = vmatmul.mubr.f32.gmra.mrb[0].mxu0 %v6150
      %v6152 = vpop.f32.mrb[0].mxu0
      %v6153 = vadd.f32 %v5577, %v6152
      %v6154 = vpop.f32.mrb[0].mxu0
      %6155 = vmatprep.mubr.f32.mxu0 0.0
      %v6156 = vand.u32 %v3910, 4294901760
      %v6157 = vsub.f32 %v3910, %v6156
      %v6158 = vand.u32 %v6157, 4294901760
      %6159 = vmatmul.mubr.f32.gmra.mrb[0].mxu0 %v6158
      %v6160 = vpop.f32.mrb[0].mxu0
      %v6161 = vadd.f32 %v5584, %v6160
      %v6162 = vpop.f32.mrb[0].mxu0
      %6163 = vmatprep.mubr.f32.mxu0 0.0
      %v6164 = vand.u32 %v3913, 4294901760
      %v6165 = vsub.f32 %v3913, %v6164
      %v6166 = vand.u32 %v6165, 4294901760
      %6167 = vmatmul.mubr.f32.gmra.mrb[0].mxu0 %v6166
      %v6168 = vpop.f32.mrb[0].mxu0
      %v6169 = vadd.f32 %v5591, %v6168
      %v6170 = vpop.f32.mrb[0].mxu0
      %6171 = vmatprep.mubr.f32.mxu0 0.0
      %v6172 = vand.u32 %v3916, 4294901760
      %v6173 = vsub.f32 %v3916, %v6172
      %v6174 = vand.u32 %v6173, 4294901760
      %6175 = vmatmul.mubr.f32.gmra.mrb[0].mxu0 %v6174
      %v6176 = vpop.f32.mrb[0].mxu0
      %v6177 = vadd.f32 %v5598, %v6176
      %v6178 = vpop.f32.mrb[0].mxu0
      %6179 = vdwg.mxu0
      %6180 = vmatprep.subr.mxu0 0.0
      %v6181 = vand.u32 %v3716, 4294901760
      %v6182 = vsub.f32 %v3716, %v6181
      %v6183 = vand.u32 %v6182, 4294901760
      %6184 = vmatpush1.msra.mxu0 %v6183
      %6185 = vmatprep.subr.mxu0 0.0
      %v6186 = vand.u32 %v3717, 4294901760
      %v6187 = vsub.f32 %v3717, %v6186
      %v6188 = vand.u32 %v6187, 4294901760
      %6189 = vmatpush1.msra.mxu0 %v6188
      %6190 = vmatprep.subr.mxu0 0.0
      %6191 = vmatpush1.msra.mxu0 0.0
      %6192 = vmatprep.subr.mxu0 0.0
      %6193 = vmatpush1.msra.mxu0 0.0
      %6194 = vmatprep.subr.mxu0 0.0
      %6195 = vmatpush1.msra.mxu0 0.0
      %6196 = vmatprep.subr.mxu0 0.0
      %6197 = vmatpush1.msra.mxu0 0.0
      %6198 = vmatprep.subr.mxu0 0.0
      %6199 = vmatpush1.msra.mxu0 0.0
      %6200 = vmatprep.subr.mxu0 0.0
      %6201 = vmatpush1.msra.mxu0 0.0
      %6202 = vmatprep.subr.mxu0 0.0
      %6203 = vmatpush1.msra.mxu0 0.0
      %6204 = vmatprep.subr.mxu0 0.0
      %6205 = vmatpush1.msra.mxu0 0.0
      %6206 = vmatprep.subr.mxu0 0.0
      %6207 = vmatpush1.msra.mxu0 0.0
      %6208 = vmatprep.subr.mxu0 0.0
      %6209 = vmatpush1.msra.mxu0 0.0
      %6210 = vmatprep.subr.mxu0 0.0
      %6211 = vmatpush1.msra.mxu0 0.0
      %6212 = vmatprep.subr.mxu0 0.0
      %6213 = vmatpush1.msra.mxu0 0.0
      %6214 = vmatprep.subr.mxu0 0.0
      %6215 = vmatpush1.msra.mxu0 0.0
      %6216 = vmatprep.subr.mxu0 0.0
      %6217 = vmatpush1.msra.mxu0 0.0
      %6218 = vmatprep.subr.mxu0 0.0
      %6219 = vmatpush1.msra.mxu0 0.0
      %6220 = vmatprep.subr.mxu0 0.0
      %6221 = vmatpush1.msra.mxu0 0.0
      %6222 = vmatprep.subr.mxu0 0.0
      %6223 = vmatpush1.msra.mxu0 0.0
      %6224 = vmatprep.subr.mxu0 0.0
      %6225 = vmatpush1.msra.mxu0 0.0
      %6226 = vmatprep.subr.mxu0 0.0
      %6227 = vmatpush1.msra.mxu0 0.0
      %6228 = vmatprep.subr.mxu0 0.0
      %6229 = vmatpush1.msra.mxu0 0.0
      %6230 = vmatprep.subr.mxu0 0.0
      %6231 = vmatpush1.msra.mxu0 0.0
      %6232 = vmatprep.subr.mxu0 0.0
      %6233 = vmatpush1.msra.mxu0 0.0
      %6234 = vmatprep.subr.mxu0 0.0
      %6235 = vmatpush1.msra.mxu0 0.0
      %6236 = vmatprep.subr.mxu0 0.0
      %6237 = vmatpush1.msra.mxu0 0.0
      %6238 = vmatprep.subr.mxu0 0.0
      %6239 = vmatpush1.msra.mxu0 0.0
      %6240 = vmatprep.subr.mxu0 0.0
      %6241 = vmatpush1.msra.mxu0 0.0
      %6242 = vmatprep.subr.mxu0 0.0
      %6243 = vmatpush1.msra.mxu0 0.0
      %6244 = vmatprep.subr.mxu0 0.0
      %6245 = vmatpush1.msra.mxu0 0.0
      %6246 = vmatprep.subr.mxu0 0.0
      %6247 = vmatpush1.msra.mxu0 0.0
      %6248 = vmatprep.subr.mxu0 0.0
      %6249 = vmatpush1.msra.mxu0 0.0
      %6250 = vmatprep.mubr.f32.mxu0 0.0
      %v6251 = vand.u32 %v3727, 4294901760
      %6252 = vmatmul.mubr.f32.gmra.mrb[0].mxu0 %v6251
      %v6253 = vpop.f32.mrb[0].mxu0
      %v6254 = vadd.f32 %v5673, %v6253
      %v6255 = vpop.f32.mrb[0].mxu0
      %6256 = vmatprep.mubr.f32.mxu0 0.0
      %v6257 = vand.u32 %v3730, 4294901760
      %6258 = vmatmul.mubr.f32.gmra.mrb[0].mxu0 %v6257
      %v6259 = vpop.f32.mrb[0].mxu0
      %v6260 = vadd.f32 %v5681, %v6259
      %v6261 = vpop.f32.mrb[0].mxu0
      %6262 = vmatprep.mubr.f32.mxu0 0.0
      %v6263 = vand.u32 %v3733, 4294901760
      %6264 = vmatmul.mubr.f32.gmra.mrb[0].mxu0 %v6263
      %v6265 = vpop.f32.mrb[0].mxu0
      %v6266 = vadd.f32 %v5689, %v6265
      %v6267 = vpop.f32.mrb[0].mxu0
      %6268 = vmatprep.mubr.f32.mxu0 0.0
      %v6269 = vand.u32 %v3736, 4294901760
      %6270 = vmatmul.mubr.f32.gmra.mrb[0].mxu0 %v6269
      %v6271 = vpop.f32.mrb[0].mxu0
      %v6272 = vadd.f32 %v5697, %v6271
      %v6273 = vpop.f32.mrb[0].mxu0
      %6274 = vmatprep.mubr.f32.mxu0 0.0
      %v6275 = vand.u32 %v3739, 4294901760
      %6276 = vmatmul.mubr.f32.gmra.mrb[0].mxu0 %v6275
      %v6277 = vpop.f32.mrb[0].mxu0
      %v6278 = vadd.f32 %v5705, %v6277
      %v6279 = vpop.f32.mrb[0].mxu0
      %6280 = vmatprep.mubr.f32.mxu0 0.0
      %v6281 = vand.u32 %v3742, 4294901760
      %6282 = vmatmul.mubr.f32.gmra.mrb[0].mxu0 %v6281
      %v6283 = vpop.f32.mrb[0].mxu0
      %v6284 = vadd.f32 %v5713, %v6283
      %v6285 = vpop.f32.mrb[0].mxu0
      %6286 = vmatprep.mubr.f32.mxu0 0.0
      %v6287 = vand.u32 %v3745, 4294901760
      %6288 = vmatmul.mubr.f32.gmra.mrb[0].mxu0 %v6287
      %v6289 = vpop.f32.mrb[0].mxu0
      %v6290 = vadd.f32 %v5721, %v6289
      %v6291 = vpop.f32.mrb[0].mxu0
      %6292 = vmatprep.mubr.f32.mxu0 0.0
      %v6293 = vand.u32 %v3748, 4294901760
      %6294 = vmatmul.mubr.f32.gmra.mrb[0].mxu0 %v6293
      %v6295 = vpop.f32.mrb[0].mxu0
      %v6296 = vadd.f32 %v5729, %v6295
      %v6297 = vpop.f32.mrb[0].mxu0
      %6298 = vmatprep.mubr.f32.mxu0 0.0
      %v6299 = vand.u32 %v3751, 4294901760
      %6300 = vmatmul.mubr.f32.gmra.mrb[0].mxu0 %v6299
      %v6301 = vpop.f32.mrb[0].mxu0
      %v6302 = vadd.f32 %v5737, %v6301
      %v6303 = vpop.f32.mrb[0].mxu0
      %6304 = vmatprep.mubr.f32.mxu0 0.0
      %v6305 = vand.u32 %v3754, 4294901760
      %6306 = vmatmul.mubr.f32.gmra.mrb[0].mxu0 %v6305
      %v6307 = vpop.f32.mrb[0].mxu0
      %v6308 = vadd.f32 %v5745, %v6307
      %v6309 = vpop.f32.mrb[0].mxu0
      %6310 = vmatprep.mubr.f32.mxu0 0.0
      %v6311 = vand.u32 %v3757, 4294901760
      %6312 = vmatmul.mubr.f32.gmra.mrb[0].mxu0 %v6311
      %v6313 = vpop.f32.mrb[0].mxu0
      %v6314 = vadd.f32 %v5753, %v6313
      %v6315 = vpop.f32.mrb[0].mxu0
      %6316 = vmatprep.mubr.f32.mxu0 0.0
      %v6317 = vand.u32 %v3760, 4294901760
      %6318 = vmatmul.mubr.f32.gmra.mrb[0].mxu0 %v6317
      %v6319 = vpop.f32.mrb[0].mxu0
      %v6320 = vadd.f32 %v5761, %v6319
      %v6321 = vpop.f32.mrb[0].mxu0
      %6322 = vmatprep.mubr.f32.mxu0 0.0
      %v6323 = vand.u32 %v3763, 4294901760
      %6324 = vmatmul.mubr.f32.gmra.mrb[0].mxu0 %v6323
      %v6325 = vpop.f32.mrb[0].mxu0
      %v6326 = vadd.f32 %v5769, %v6325
      %v6327 = vpop.f32.mrb[0].mxu0
      %6328 = vmatprep.mubr.f32.mxu0 0.0
      %v6329 = vand.u32 %v3766, 4294901760
      %6330 = vmatmul.mubr.f32.gmra.mrb[0].mxu0 %v6329
      %v6331 = vpop.f32.mrb[0].mxu0
      %v6332 = vadd.f32 %v5777, %v6331
      %v6333 = vpop.f32.mrb[0].mxu0
      %6334 = vmatprep.mubr.f32.mxu0 0.0
      %v6335 = vand.u32 %v3769, 4294901760
      %6336 = vmatmul.mubr.f32.gmra.mrb[0].mxu0 %v6335
      %v6337 = vpop.f32.mrb[0].mxu0
      %v6338 = vadd.f32 %v5785, %v6337
      %v6339 = vpop.f32.mrb[0].mxu0
      %6340 = vmatprep.mubr.f32.mxu0 0.0
      %v6341 = vand.u32 %v3772, 4294901760
      %6342 = vmatmul.mubr.f32.gmra.mrb[0].mxu0 %v6341
      %v6343 = vpop.f32.mrb[0].mxu0
      %v6344 = vadd.f32 %v5793, %v6343
      %v6345 = vpop.f32.mrb[0].mxu0
      %6346 = vmatprep.mubr.f32.mxu0 0.0
      %v6347 = vand.u32 %v3775, 4294901760
      %6348 = vmatmul.mubr.f32.gmra.mrb[0].mxu0 %v6347
      %v6349 = vpop.f32.mrb[0].mxu0
      %v6350 = vadd.f32 %v5801, %v6349
      %v6351 = vpop.f32.mrb[0].mxu0
      %6352 = vmatprep.mubr.f32.mxu0 0.0
      %v6353 = vand.u32 %v3778, 4294901760
      %6354 = vmatmul.mubr.f32.gmra.mrb[0].mxu0 %v6353
      %v6355 = vpop.f32.mrb[0].mxu0
      %v6356 = vadd.f32 %v5809, %v6355
      %v6357 = vpop.f32.mrb[0].mxu0
      %6358 = vmatprep.mubr.f32.mxu0 0.0
      %v6359 = vand.u32 %v3781, 4294901760
      %6360 = vmatmul.mubr.f32.gmra.mrb[0].mxu0 %v6359
      %v6361 = vpop.f32.mrb[0].mxu0
      %v6362 = vadd.f32 %v5817, %v6361
      %v6363 = vpop.f32.mrb[0].mxu0
      %6364 = vmatprep.mubr.f32.mxu0 0.0
      %v6365 = vand.u32 %v3784, 4294901760
      %6366 = vmatmul.mubr.f32.gmra.mrb[0].mxu0 %v6365
      %v6367 = vpop.f32.mrb[0].mxu0
      %v6368 = vadd.f32 %v5825, %v6367
      %v6369 = vpop.f32.mrb[0].mxu0
      %6370 = vmatprep.mubr.f32.mxu0 0.0
      %v6371 = vand.u32 %v3787, 4294901760
      %6372 = vmatmul.mubr.f32.gmra.mrb[0].mxu0 %v6371
      %v6373 = vpop.f32.mrb[0].mxu0
      %v6374 = vadd.f32 %v5833, %v6373
      %v6375 = vpop.f32.mrb[0].mxu0
      %6376 = vmatprep.mubr.f32.mxu0 0.0
      %v6377 = vand.u32 %v3790, 4294901760
      %6378 = vmatmul.mubr.f32.gmra.mrb[0].mxu0 %v6377
      %v6379 = vpop.f32.mrb[0].mxu0
      %v6380 = vadd.f32 %v5841, %v6379
      %v6381 = vpop.f32.mrb[0].mxu0
      %6382 = vmatprep.mubr.f32.mxu0 0.0
      %v6383 = vand.u32 %v3793, 4294901760
      %6384 = vmatmul.mubr.f32.gmra.mrb[0].mxu0 %v6383
      %v6385 = vpop.f32.mrb[0].mxu0
      %v6386 = vadd.f32 %v5849, %v6385
      %v6387 = vpop.f32.mrb[0].mxu0
      %6388 = vmatprep.mubr.f32.mxu0 0.0
      %v6389 = vand.u32 %v3796, 4294901760
      %6390 = vmatmul.mubr.f32.gmra.mrb[0].mxu0 %v6389
      %v6391 = vpop.f32.mrb[0].mxu0
      %v6392 = vadd.f32 %v5857, %v6391
      %v6393 = vpop.f32.mrb[0].mxu0
      %6394 = vmatprep.mubr.f32.mxu0 0.0
      %v6395 = vand.u32 %v3799, 4294901760
      %6396 = vmatmul.mubr.f32.gmra.mrb[0].mxu0 %v6395
      %v6397 = vpop.f32.mrb[0].mxu0
      %v6398 = vadd.f32 %v5865, %v6397
      %v6399 = vpop.f32.mrb[0].mxu0
      %6400 = vmatprep.mubr.f32.mxu0 0.0
      %v6401 = vand.u32 %v3802, 4294901760
      %6402 = vmatmul.mubr.f32.gmra.mrb[0].mxu0 %v6401
      %v6403 = vpop.f32.mrb[0].mxu0
      %v6404 = vadd.f32 %v5873, %v6403
      %v6405 = vpop.f32.mrb[0].mxu0
      %6406 = vmatprep.mubr.f32.mxu0 0.0
      %v6407 = vand.u32 %v3805, 4294901760
      %6408 = vmatmul.mubr.f32.gmra.mrb[0].mxu0 %v6407
      %v6409 = vpop.f32.mrb[0].mxu0
      %v6410 = vadd.f32 %v5881, %v6409
      %v6411 = vpop.f32.mrb[0].mxu0
      %6412 = vmatprep.mubr.f32.mxu0 0.0
      %v6413 = vand.u32 %v3808, 4294901760
      %6414 = vmatmul.mubr.f32.gmra.mrb[0].mxu0 %v6413
      %v6415 = vpop.f32.mrb[0].mxu0
      %v6416 = vadd.f32 %v5889, %v6415
      %v6417 = vpop.f32.mrb[0].mxu0
      %6418 = vmatprep.mubr.f32.mxu0 0.0
      %v6419 = vand.u32 %v3811, 4294901760
      %6420 = vmatmul.mubr.f32.gmra.mrb[0].mxu0 %v6419
      %v6421 = vpop.f32.mrb[0].mxu0
      %v6422 = vadd.f32 %v5897, %v6421
      %v6423 = vpop.f32.mrb[0].mxu0
      %6424 = vmatprep.mubr.f32.mxu0 0.0
      %v6425 = vand.u32 %v3814, 4294901760
      %6426 = vmatmul.mubr.f32.gmra.mrb[0].mxu0 %v6425
      %v6427 = vpop.f32.mrb[0].mxu0
      %v6428 = vadd.f32 %v5905, %v6427
      %v6429 = vpop.f32.mrb[0].mxu0
      %6430 = vmatprep.mubr.f32.mxu0 0.0
      %v6431 = vand.u32 %v3817, 4294901760
      %6432 = vmatmul.mubr.f32.gmra.mrb[0].mxu0 %v6431
      %v6433 = vpop.f32.mrb[0].mxu0
      %v6434 = vadd.f32 %v5913, %v6433
      %v6435 = vpop.f32.mrb[0].mxu0
      %6436 = vmatprep.mubr.f32.mxu0 0.0
      %v6437 = vand.u32 %v3820, 4294901760
      %6438 = vmatmul.mubr.f32.gmra.mrb[0].mxu0 %v6437
      %v6439 = vpop.f32.mrb[0].mxu0
      %v6440 = vadd.f32 %v5921, %v6439
      %v6441 = vpop.f32.mrb[0].mxu0
      %6442 = vmatprep.mubr.f32.mxu0 0.0
      %v6443 = vand.u32 %v3823, 4294901760
      %6444 = vmatmul.mubr.f32.gmra.mrb[0].mxu0 %v6443
      %v6445 = vpop.f32.mrb[0].mxu0
      %v6446 = vadd.f32 %v5929, %v6445
      %v6447 = vpop.f32.mrb[0].mxu0
      %6448 = vmatprep.mubr.f32.mxu0 0.0
      %v6449 = vand.u32 %v3826, 4294901760
      %6450 = vmatmul.mubr.f32.gmra.mrb[0].mxu0 %v6449
      %v6451 = vpop.f32.mrb[0].mxu0
      %v6452 = vadd.f32 %v5937, %v6451
      %v6453 = vpop.f32.mrb[0].mxu0
      %6454 = vmatprep.mubr.f32.mxu0 0.0
      %v6455 = vand.u32 %v3829, 4294901760
      %6456 = vmatmul.mubr.f32.gmra.mrb[0].mxu0 %v6455
      %v6457 = vpop.f32.mrb[0].mxu0
      %v6458 = vadd.f32 %v5945, %v6457
      %v6459 = vpop.f32.mrb[0].mxu0
      %6460 = vmatprep.mubr.f32.mxu0 0.0
      %v6461 = vand.u32 %v3832, 4294901760
      %6462 = vmatmul.mubr.f32.gmra.mrb[0].mxu0 %v6461
      %v6463 = vpop.f32.mrb[0].mxu0
      %v6464 = vadd.f32 %v5953, %v6463
      %v6465 = vpop.f32.mrb[0].mxu0
      %6466 = vmatprep.mubr.f32.mxu0 0.0
      %v6467 = vand.u32 %v3835, 4294901760
      %6468 = vmatmul.mubr.f32.gmra.mrb[0].mxu0 %v6467
      %v6469 = vpop.f32.mrb[0].mxu0
      %v6470 = vadd.f32 %v5961, %v6469
      %v6471 = vpop.f32.mrb[0].mxu0
      %6472 = vmatprep.mubr.f32.mxu0 0.0
      %v6473 = vand.u32 %v3838, 4294901760
      %6474 = vmatmul.mubr.f32.gmra.mrb[0].mxu0 %v6473
      %v6475 = vpop.f32.mrb[0].mxu0
      %v6476 = vadd.f32 %v5969, %v6475
      %v6477 = vpop.f32.mrb[0].mxu0
      %6478 = vmatprep.mubr.f32.mxu0 0.0
      %v6479 = vand.u32 %v3841, 4294901760
      %6480 = vmatmul.mubr.f32.gmra.mrb[0].mxu0 %v6479
      %v6481 = vpop.f32.mrb[0].mxu0
      %v6482 = vadd.f32 %v5977, %v6481
      %v6483 = vpop.f32.mrb[0].mxu0
      %6484 = vmatprep.mubr.f32.mxu0 0.0
      %v6485 = vand.u32 %v3844, 4294901760
      %6486 = vmatmul.mubr.f32.gmra.mrb[0].mxu0 %v6485
      %v6487 = vpop.f32.mrb[0].mxu0
      %v6488 = vadd.f32 %v5985, %v6487
      %v6489 = vpop.f32.mrb[0].mxu0
      %6490 = vmatprep.mubr.f32.mxu0 0.0
      %v6491 = vand.u32 %v3847, 4294901760
      %6492 = vmatmul.mubr.f32.gmra.mrb[0].mxu0 %v6491
      %v6493 = vpop.f32.mrb[0].mxu0
      %v6494 = vadd.f32 %v5993, %v6493
      %v6495 = vpop.f32.mrb[0].mxu0
      %6496 = vmatprep.mubr.f32.mxu0 0.0
      %v6497 = vand.u32 %v3850, 4294901760
      %6498 = vmatmul.mubr.f32.gmra.mrb[0].mxu0 %v6497
      %v6499 = vpop.f32.mrb[0].mxu0
      %v6500 = vadd.f32 %v6001, %v6499
      %v6501 = vpop.f32.mrb[0].mxu0
      %6502 = vmatprep.mubr.f32.mxu0 0.0
      %v6503 = vand.u32 %v3853, 4294901760
      %6504 = vmatmul.mubr.f32.gmra.mrb[0].mxu0 %v6503
      %v6505 = vpop.f32.mrb[0].mxu0
      %v6506 = vadd.f32 %v6009, %v6505
      %v6507 = vpop.f32.mrb[0].mxu0
      %6508 = vmatprep.mubr.f32.mxu0 0.0
      %v6509 = vand.u32 %v3856, 4294901760
      %6510 = vmatmul.mubr.f32.gmra.mrb[0].mxu0 %v6509
      %v6511 = vpop.f32.mrb[0].mxu0
      %v6512 = vadd.f32 %v6017, %v6511
      %v6513 = vpop.f32.mrb[0].mxu0
      %6514 = vmatprep.mubr.f32.mxu0 0.0
      %v6515 = vand.u32 %v3859, 4294901760
      %6516 = vmatmul.mubr.f32.gmra.mrb[0].mxu0 %v6515
      %v6517 = vpop.f32.mrb[0].mxu0
      %v6518 = vadd.f32 %v6025, %v6517
      %v6519 = vpop.f32.mrb[0].mxu0
      %6520 = vmatprep.mubr.f32.mxu0 0.0
      %v6521 = vand.u32 %v3862, 4294901760
      %6522 = vmatmul.mubr.f32.gmra.mrb[0].mxu0 %v6521
      %v6523 = vpop.f32.mrb[0].mxu0
      %v6524 = vadd.f32 %v6033, %v6523
      %v6525 = vpop.f32.mrb[0].mxu0
      %6526 = vmatprep.mubr.f32.mxu0 0.0
      %v6527 = vand.u32 %v3865, 4294901760
      %6528 = vmatmul.mubr.f32.gmra.mrb[0].mxu0 %v6527
      %v6529 = vpop.f32.mrb[0].mxu0
      %v6530 = vadd.f32 %v6041, %v6529
      %v6531 = vpop.f32.mrb[0].mxu0
      %6532 = vmatprep.mubr.f32.mxu0 0.0
      %v6533 = vand.u32 %v3868, 4294901760
      %6534 = vmatmul.mubr.f32.gmra.mrb[0].mxu0 %v6533
      %v6535 = vpop.f32.mrb[0].mxu0
      %v6536 = vadd.f32 %v6049, %v6535
      %v6537 = vpop.f32.mrb[0].mxu0
      %6538 = vmatprep.mubr.f32.mxu0 0.0
      %v6539 = vand.u32 %v3871, 4294901760
      %6540 = vmatmul.mubr.f32.gmra.mrb[0].mxu0 %v6539
      %v6541 = vpop.f32.mrb[0].mxu0
      %v6542 = vadd.f32 %v6057, %v6541
      %v6543 = vpop.f32.mrb[0].mxu0
      %6544 = vmatprep.mubr.f32.mxu0 0.0
      %v6545 = vand.u32 %v3874, 4294901760
      %6546 = vmatmul.mubr.f32.gmra.mrb[0].mxu0 %v6545
      %v6547 = vpop.f32.mrb[0].mxu0
      %v6548 = vadd.f32 %v6065, %v6547
      %v6549 = vpop.f32.mrb[0].mxu0
      %6550 = vmatprep.mubr.f32.mxu0 0.0
      %v6551 = vand.u32 %v3877, 4294901760
      %6552 = vmatmul.mubr.f32.gmra.mrb[0].mxu0 %v6551
      %v6553 = vpop.f32.mrb[0].mxu0
      %v6554 = vadd.f32 %v6073, %v6553
      %v6555 = vpop.f32.mrb[0].mxu0
      %6556 = vmatprep.mubr.f32.mxu0 0.0
      %v6557 = vand.u32 %v3880, 4294901760
      %6558 = vmatmul.mubr.f32.gmra.mrb[0].mxu0 %v6557
      %v6559 = vpop.f32.mrb[0].mxu0
      %v6560 = vadd.f32 %v6081, %v6559
      %v6561 = vpop.f32.mrb[0].mxu0
      %6562 = vmatprep.mubr.f32.mxu0 0.0
      %v6563 = vand.u32 %v3883, 4294901760
      %6564 = vmatmul.mubr.f32.gmra.mrb[0].mxu0 %v6563
      %v6565 = vpop.f32.mrb[0].mxu0
      %v6566 = vadd.f32 %v6089, %v6565
      %v6567 = vpop.f32.mrb[0].mxu0
      %6568 = vmatprep.mubr.f32.mxu0 0.0
      %v6569 = vand.u32 %v3886, 4294901760
      %6570 = vmatmul.mubr.f32.gmra.mrb[0].mxu0 %v6569
      %v6571 = vpop.f32.mrb[0].mxu0
      %v6572 = vadd.f32 %v6097, %v6571
      %v6573 = vpop.f32.mrb[0].mxu0
      %6574 = vmatprep.mubr.f32.mxu0 0.0
      %v6575 = vand.u32 %v3889, 4294901760
      %6576 = vmatmul.mubr.f32.gmra.mrb[0].mxu0 %v6575
      %v6577 = vpop.f32.mrb[0].mxu0
      %v6578 = vadd.f32 %v6105, %v6577
      %v6579 = vpop.f32.mrb[0].mxu0
      %6580 = vmatprep.mubr.f32.mxu0 0.0
      %v6581 = vand.u32 %v3892, 4294901760
      %6582 = vmatmul.mubr.f32.gmra.mrb[0].mxu0 %v6581
      %v6583 = vpop.f32.mrb[0].mxu0
      %v6584 = vadd.f32 %v6113, %v6583
      %v6585 = vpop.f32.mrb[0].mxu0
      %6586 = vmatprep.mubr.f32.mxu0 0.0
      %v6587 = vand.u32 %v3895, 4294901760
      %6588 = vmatmul.mubr.f32.gmra.mrb[0].mxu0 %v6587
      %v6589 = vpop.f32.mrb[0].mxu0
      %v6590 = vadd.f32 %v6121, %v6589
      %v6591 = vpop.f32.mrb[0].mxu0
      %6592 = vmatprep.mubr.f32.mxu0 0.0
      %v6593 = vand.u32 %v3898, 4294901760
      %6594 = vmatmul.mubr.f32.gmra.mrb[0].mxu0 %v6593
      %v6595 = vpop.f32.mrb[0].mxu0
      %v6596 = vadd.f32 %v6129, %v6595
      %v6597 = vpop.f32.mrb[0].mxu0
      %6598 = vmatprep.mubr.f32.mxu0 0.0
      %v6599 = vand.u32 %v3901, 4294901760
      %6600 = vmatmul.mubr.f32.gmra.mrb[0].mxu0 %v6599
      %v6601 = vpop.f32.mrb[0].mxu0
      %v6602 = vadd.f32 %v6137, %v6601
      %v6603 = vpop.f32.mrb[0].mxu0
      %6604 = vmatprep.mubr.f32.mxu0 0.0
      %v6605 = vand.u32 %v3904, 4294901760
      %6606 = vmatmul.mubr.f32.gmra.mrb[0].mxu0 %v6605
      %v6607 = vpop.f32.mrb[0].mxu0
      %v6608 = vadd.f32 %v6145, %v6607
      %v6609 = vpop.f32.mrb[0].mxu0
      %6610 = vmatprep.mubr.f32.mxu0 0.0
      %v6611 = vand.u32 %v3907, 4294901760
      %6612 = vmatmul.mubr.f32.gmra.mrb[0].mxu0 %v6611
      %v6613 = vpop.f32.mrb[0].mxu0
      %v6614 = vadd.f32 %v6153, %v6613
      %v6615 = vpop.f32.mrb[0].mxu0
      %6616 = vmatprep.mubr.f32.mxu0 0.0
      %v6617 = vand.u32 %v3910, 4294901760
      %6618 = vmatmul.mubr.f32.gmra.mrb[0].mxu0 %v6617
      %v6619 = vpop.f32.mrb[0].mxu0
      %v6620 = vadd.f32 %v6161, %v6619
      %v6621 = vpop.f32.mrb[0].mxu0
      %6622 = vmatprep.mubr.f32.mxu0 0.0
      %v6623 = vand.u32 %v3913, 4294901760
      %6624 = vmatmul.mubr.f32.gmra.mrb[0].mxu0 %v6623
      %v6625 = vpop.f32.mrb[0].mxu0
      %v6626 = vadd.f32 %v6169, %v6625
      %v6627 = vpop.f32.mrb[0].mxu0
      %6628 = vmatprep.mubr.f32.mxu0 0.0
      %v6629 = vand.u32 %v3916, 4294901760
      %6630 = vmatmul.mubr.f32.gmra.mrb[0].mxu0 %v6629
      %v6631 = vpop.f32.mrb[0].mxu0
      %v6632 = vadd.f32 %v6177, %v6631
      %v6633 = vpop.f32.mrb[0].mxu0
      %6634 = vdwg.mxu0
      %6635 = vmatprep.subr.mxu0 0.0
      %v6636 = vand.u32 %v3716, 4294901760
      %6637 = vmatpush1.msra.mxu0 %v6636
      %6638 = vmatprep.subr.mxu0 0.0
      %v6639 = vand.u32 %v3717, 4294901760
      %6640 = vmatpush1.msra.mxu0 %v6639
      %6641 = vmatprep.subr.mxu0 0.0
      %6642 = vmatpush1.msra.mxu0 0.0
      %6643 = vmatprep.subr.mxu0 0.0
      %6644 = vmatpush1.msra.mxu0 0.0
      %6645 = vmatprep.subr.mxu0 0.0
      %6646 = vmatpush1.msra.mxu0 0.0
      %6647 = vmatprep.subr.mxu0 0.0
      %6648 = vmatpush1.msra.mxu0 0.0
      %6649 = vmatprep.subr.mxu0 0.0
      %6650 = vmatpush1.msra.mxu0 0.0
      %6651 = vmatprep.subr.mxu0 0.0
      %6652 = vmatpush1.msra.mxu0 0.0
      %6653 = vmatprep.subr.mxu0 0.0
      %6654 = vmatpush1.msra.mxu0 0.0
      %6655 = vmatprep.subr.mxu0 0.0
      %6656 = vmatpush1.msra.mxu0 0.0
      %6657 = vmatprep.subr.mxu0 0.0
      %6658 = vmatpush1.msra.mxu0 0.0
      %6659 = vmatprep.subr.mxu0 0.0
      %6660 = vmatpush1.msra.mxu0 0.0
      %6661 = vmatprep.subr.mxu0 0.0
      %6662 = vmatpush1.msra.mxu0 0.0
      %6663 = vmatprep.subr.mxu0 0.0
      %6664 = vmatpush1.msra.mxu0 0.0
      %6665 = vmatprep.subr.mxu0 0.0
      %6666 = vmatpush1.msra.mxu0 0.0
      %6667 = vmatprep.subr.mxu0 0.0
      %6668 = vmatpush1.msra.mxu0 0.0
      %6669 = vmatprep.subr.mxu0 0.0
      %6670 = vmatpush1.msra.mxu0 0.0
      %6671 = vmatprep.subr.mxu0 0.0
      %6672 = vmatpush1.msra.mxu0 0.0
      %6673 = vmatprep.subr.mxu0 0.0
      %6674 = vmatpush1.msra.mxu0 0.0
      %6675 = vmatprep.subr.mxu0 0.0
      %6676 = vmatpush1.msra.mxu0 0.0
      %6677 = vmatprep.subr.mxu0 0.0
      %6678 = vmatpush1.msra.mxu0 0.0
      %6679 = vmatprep.subr.mxu0 0.0
      %6680 = vmatpush1.msra.mxu0 0.0
      %6681 = vmatprep.subr.mxu0 0.0
      %6682 = vmatpush1.msra.mxu0 0.0
      %6683 = vmatprep.subr.mxu0 0.0
      %6684 = vmatpush1.msra.mxu0 0.0
      %6685 = vmatprep.subr.mxu0 0.0
      %6686 = vmatpush1.msra.mxu0 0.0
      %6687 = vmatprep.subr.mxu0 0.0
      %6688 = vmatpush1.msra.mxu0 0.0
      %6689 = vmatprep.subr.mxu0 0.0
      %6690 = vmatpush1.msra.mxu0 0.0
      %6691 = vmatprep.subr.mxu0 0.0
      %6692 = vmatpush1.msra.mxu0 0.0
      %6693 = vmatprep.subr.mxu0 0.0
      %6694 = vmatpush1.msra.mxu0 0.0
      %6695 = vmatprep.subr.mxu0 0.0
      %6696 = vmatpush1.msra.mxu0 0.0
      %6697 = vmatprep.subr.mxu0 0.0
      %6698 = vmatpush1.msra.mxu0 0.0
      %6699 = vmatprep.subr.mxu0 0.0
      %6700 = vmatpush1.msra.mxu0 0.0
      %6701 = vmatprep.mubr.f32.mxu0 0.0
      %v6702 = vand.u32 %v3727, 4294901760
      %6703 = vmatmul.mubr.f32.gmra.mrb[0].mxu0 %v6702
      %v6704 = vpop.f32.mrb[0].mxu0
      %v6705 = vadd.f32 %v6254, %v6704
      %v6706 = vpop.f32.mrb[0].mxu0
      %6707 = vmatprep.mubr.f32.mxu0 0.0
      %v6708 = vand.u32 %v3730, 4294901760
      %6709 = vmatmul.mubr.f32.gmra.mrb[0].mxu0 %v6708
      %v6710 = vpop.f32.mrb[0].mxu0
      %v6711 = vadd.f32 %v6260, %v6710
      %v6712 = vpop.f32.mrb[0].mxu0
      %6713 = vmatprep.mubr.f32.mxu0 0.0
      %v6714 = vand.u32 %v3733, 4294901760
      %6715 = vmatmul.mubr.f32.gmra.mrb[0].mxu0 %v6714
      %v6716 = vpop.f32.mrb[0].mxu0
      %v6717 = vadd.f32 %v6266, %v6716
      %v6718 = vpop.f32.mrb[0].mxu0
      %6719 = vmatprep.mubr.f32.mxu0 0.0
      %v6720 = vand.u32 %v3736, 4294901760
      %6721 = vmatmul.mubr.f32.gmra.mrb[0].mxu0 %v6720
      %v6722 = vpop.f32.mrb[0].mxu0
      %v6723 = vadd.f32 %v6272, %v6722
      %v6724 = vpop.f32.mrb[0].mxu0
      %6725 = vmatprep.mubr.f32.mxu0 0.0
      %v6726 = vand.u32 %v3739, 4294901760
      %6727 = vmatmul.mubr.f32.gmra.mrb[0].mxu0 %v6726
      %v6728 = vpop.f32.mrb[0].mxu0
      %v6729 = vadd.f32 %v6278, %v6728
      %v6730 = vpop.f32.mrb[0].mxu0
      %6731 = vmatprep.mubr.f32.mxu0 0.0
      %v6732 = vand.u32 %v3742, 4294901760
      %6733 = vmatmul.mubr.f32.gmra.mrb[0].mxu0 %v6732
      %v6734 = vpop.f32.mrb[0].mxu0
      %v6735 = vadd.f32 %v6284, %v6734
      %v6736 = vpop.f32.mrb[0].mxu0
      %6737 = vmatprep.mubr.f32.mxu0 0.0
      %v6738 = vand.u32 %v3745, 4294901760
      %6739 = vmatmul.mubr.f32.gmra.mrb[0].mxu0 %v6738
      %v6740 = vpop.f32.mrb[0].mxu0
      %v6741 = vadd.f32 %v6290, %v6740
      %v6742 = vpop.f32.mrb[0].mxu0
      %6743 = vmatprep.mubr.f32.mxu0 0.0
      %v6744 = vand.u32 %v3748, 4294901760
      %6745 = vmatmul.mubr.f32.gmra.mrb[0].mxu0 %v6744
      %v6746 = vpop.f32.mrb[0].mxu0
      %v6747 = vadd.f32 %v6296, %v6746
      %v6748 = vpop.f32.mrb[0].mxu0
      %6749 = vmatprep.mubr.f32.mxu0 0.0
      %v6750 = vand.u32 %v3751, 4294901760
      %6751 = vmatmul.mubr.f32.gmra.mrb[0].mxu0 %v6750
      %v6752 = vpop.f32.mrb[0].mxu0
      %v6753 = vadd.f32 %v6302, %v6752
      %v6754 = vpop.f32.mrb[0].mxu0
      %6755 = vmatprep.mubr.f32.mxu0 0.0
      %v6756 = vand.u32 %v3754, 4294901760
      %6757 = vmatmul.mubr.f32.gmra.mrb[0].mxu0 %v6756
      %v6758 = vpop.f32.mrb[0].mxu0
      %v6759 = vadd.f32 %v6308, %v6758
      %v6760 = vpop.f32.mrb[0].mxu0
      %6761 = vmatprep.mubr.f32.mxu0 0.0
      %v6762 = vand.u32 %v3757, 4294901760
      %6763 = vmatmul.mubr.f32.gmra.mrb[0].mxu0 %v6762
      %v6764 = vpop.f32.mrb[0].mxu0
      %v6765 = vadd.f32 %v6314, %v6764
      %v6766 = vpop.f32.mrb[0].mxu0
      %6767 = vmatprep.mubr.f32.mxu0 0.0
      %v6768 = vand.u32 %v3760, 4294901760
      %6769 = vmatmul.mubr.f32.gmra.mrb[0].mxu0 %v6768
      %v6770 = vpop.f32.mrb[0].mxu0
      %v6771 = vadd.f32 %v6320, %v6770
      %v6772 = vpop.f32.mrb[0].mxu0
      %6773 = vmatprep.mubr.f32.mxu0 0.0
      %v6774 = vand.u32 %v3763, 4294901760
      %6775 = vmatmul.mubr.f32.gmra.mrb[0].mxu0 %v6774
      %v6776 = vpop.f32.mrb[0].mxu0
      %v6777 = vadd.f32 %v6326, %v6776
      %v6778 = vpop.f32.mrb[0].mxu0
      %6779 = vmatprep.mubr.f32.mxu0 0.0
      %v6780 = vand.u32 %v3766, 4294901760
      %6781 = vmatmul.mubr.f32.gmra.mrb[0].mxu0 %v6780
      %v6782 = vpop.f32.mrb[0].mxu0
      %v6783 = vadd.f32 %v6332, %v6782
      %v6784 = vpop.f32.mrb[0].mxu0
      %6785 = vmatprep.mubr.f32.mxu0 0.0
      %v6786 = vand.u32 %v3769, 4294901760
      %6787 = vmatmul.mubr.f32.gmra.mrb[0].mxu0 %v6786
      %v6788 = vpop.f32.mrb[0].mxu0
      %v6789 = vadd.f32 %v6338, %v6788
      %v6790 = vpop.f32.mrb[0].mxu0
      %6791 = vmatprep.mubr.f32.mxu0 0.0
      %v6792 = vand.u32 %v3772, 4294901760
      %6793 = vmatmul.mubr.f32.gmra.mrb[0].mxu0 %v6792
      %v6794 = vpop.f32.mrb[0].mxu0
      %v6795 = vadd.f32 %v6344, %v6794
      %v6796 = vpop.f32.mrb[0].mxu0
      %6797 = vmatprep.mubr.f32.mxu0 0.0
      %v6798 = vand.u32 %v3775, 4294901760
      %6799 = vmatmul.mubr.f32.gmra.mrb[0].mxu0 %v6798
      %v6800 = vpop.f32.mrb[0].mxu0
      %v6801 = vadd.f32 %v6350, %v6800
      %v6802 = vpop.f32.mrb[0].mxu0
      %6803 = vmatprep.mubr.f32.mxu0 0.0
      %v6804 = vand.u32 %v3778, 4294901760
      %6805 = vmatmul.mubr.f32.gmra.mrb[0].mxu0 %v6804
      %v6806 = vpop.f32.mrb[0].mxu0
      %v6807 = vadd.f32 %v6356, %v6806
      %v6808 = vpop.f32.mrb[0].mxu0
      %6809 = vmatprep.mubr.f32.mxu0 0.0
      %v6810 = vand.u32 %v3781, 4294901760
      %6811 = vmatmul.mubr.f32.gmra.mrb[0].mxu0 %v6810
      %v6812 = vpop.f32.mrb[0].mxu0
      %v6813 = vadd.f32 %v6362, %v6812
      %v6814 = vpop.f32.mrb[0].mxu0
      %6815 = vmatprep.mubr.f32.mxu0 0.0
      %v6816 = vand.u32 %v3784, 4294901760
      %6817 = vmatmul.mubr.f32.gmra.mrb[0].mxu0 %v6816
      %v6818 = vpop.f32.mrb[0].mxu0
      %v6819 = vadd.f32 %v6368, %v6818
      %v6820 = vpop.f32.mrb[0].mxu0
      %6821 = vmatprep.mubr.f32.mxu0 0.0
      %v6822 = vand.u32 %v3787, 4294901760
      %6823 = vmatmul.mubr.f32.gmra.mrb[0].mxu0 %v6822
      %v6824 = vpop.f32.mrb[0].mxu0
      %v6825 = vadd.f32 %v6374, %v6824
      %v6826 = vpop.f32.mrb[0].mxu0
      %6827 = vmatprep.mubr.f32.mxu0 0.0
      %v6828 = vand.u32 %v3790, 4294901760
      %6829 = vmatmul.mubr.f32.gmra.mrb[0].mxu0 %v6828
      %v6830 = vpop.f32.mrb[0].mxu0
      %v6831 = vadd.f32 %v6380, %v6830
      %v6832 = vpop.f32.mrb[0].mxu0
      %6833 = vmatprep.mubr.f32.mxu0 0.0
      %v6834 = vand.u32 %v3793, 4294901760
      %6835 = vmatmul.mubr.f32.gmra.mrb[0].mxu0 %v6834
      %v6836 = vpop.f32.mrb[0].mxu0
      %v6837 = vadd.f32 %v6386, %v6836
      %v6838 = vpop.f32.mrb[0].mxu0
      %6839 = vmatprep.mubr.f32.mxu0 0.0
      %v6840 = vand.u32 %v3796, 4294901760
      %6841 = vmatmul.mubr.f32.gmra.mrb[0].mxu0 %v6840
      %v6842 = vpop.f32.mrb[0].mxu0
      %v6843 = vadd.f32 %v6392, %v6842
      %v6844 = vpop.f32.mrb[0].mxu0
      %6845 = vmatprep.mubr.f32.mxu0 0.0
      %v6846 = vand.u32 %v3799, 4294901760
      %6847 = vmatmul.mubr.f32.gmra.mrb[0].mxu0 %v6846
      %v6848 = vpop.f32.mrb[0].mxu0
      %v6849 = vadd.f32 %v6398, %v6848
      %v6850 = vpop.f32.mrb[0].mxu0
      %6851 = vmatprep.mubr.f32.mxu0 0.0
      %v6852 = vand.u32 %v3802, 4294901760
      %6853 = vmatmul.mubr.f32.gmra.mrb[0].mxu0 %v6852
      %v6854 = vpop.f32.mrb[0].mxu0
      %v6855 = vadd.f32 %v6404, %v6854
      %v6856 = vpop.f32.mrb[0].mxu0
      %6857 = vmatprep.mubr.f32.mxu0 0.0
      %v6858 = vand.u32 %v3805, 4294901760
      %6859 = vmatmul.mubr.f32.gmra.mrb[0].mxu0 %v6858
      %v6860 = vpop.f32.mrb[0].mxu0
      %v6861 = vadd.f32 %v6410, %v6860
      %v6862 = vpop.f32.mrb[0].mxu0
      %6863 = vmatprep.mubr.f32.mxu0 0.0
      %v6864 = vand.u32 %v3808, 4294901760
      %6865 = vmatmul.mubr.f32.gmra.mrb[0].mxu0 %v6864
      %v6866 = vpop.f32.mrb[0].mxu0
      %v6867 = vadd.f32 %v6416, %v6866
      %v6868 = vpop.f32.mrb[0].mxu0
      %6869 = vmatprep.mubr.f32.mxu0 0.0
      %v6870 = vand.u32 %v3811, 4294901760
      %6871 = vmatmul.mubr.f32.gmra.mrb[0].mxu0 %v6870
      %v6872 = vpop.f32.mrb[0].mxu0
      %v6873 = vadd.f32 %v6422, %v6872
      %v6874 = vpop.f32.mrb[0].mxu0
      %6875 = vmatprep.mubr.f32.mxu0 0.0
      %v6876 = vand.u32 %v3814, 4294901760
      %6877 = vmatmul.mubr.f32.gmra.mrb[0].mxu0 %v6876
      %v6878 = vpop.f32.mrb[0].mxu0
      %v6879 = vadd.f32 %v6428, %v6878
      %v6880 = vpop.f32.mrb[0].mxu0
      %6881 = vmatprep.mubr.f32.mxu0 0.0
      %v6882 = vand.u32 %v3817, 4294901760
      %6883 = vmatmul.mubr.f32.gmra.mrb[0].mxu0 %v6882
      %v6884 = vpop.f32.mrb[0].mxu0
      %v6885 = vadd.f32 %v6434, %v6884
      %v6886 = vpop.f32.mrb[0].mxu0
      %6887 = vmatprep.mubr.f32.mxu0 0.0
      %v6888 = vand.u32 %v3820, 4294901760
      %6889 = vmatmul.mubr.f32.gmra.mrb[0].mxu0 %v6888
      %v6890 = vpop.f32.mrb[0].mxu0
      %v6891 = vadd.f32 %v6440, %v6890
      %v6892 = vpop.f32.mrb[0].mxu0
      %6893 = vmatprep.mubr.f32.mxu0 0.0
      %v6894 = vand.u32 %v3823, 4294901760
      %6895 = vmatmul.mubr.f32.gmra.mrb[0].mxu0 %v6894
      %v6896 = vpop.f32.mrb[0].mxu0
      %v6897 = vadd.f32 %v6446, %v6896
      %v6898 = vpop.f32.mrb[0].mxu0
      %6899 = vmatprep.mubr.f32.mxu0 0.0
      %v6900 = vand.u32 %v3826, 4294901760
      %6901 = vmatmul.mubr.f32.gmra.mrb[0].mxu0 %v6900
      %v6902 = vpop.f32.mrb[0].mxu0
      %v6903 = vadd.f32 %v6452, %v6902
      %v6904 = vpop.f32.mrb[0].mxu0
      %6905 = vmatprep.mubr.f32.mxu0 0.0
      %v6906 = vand.u32 %v3829, 4294901760
      %6907 = vmatmul.mubr.f32.gmra.mrb[0].mxu0 %v6906
      %v6908 = vpop.f32.mrb[0].mxu0
      %v6909 = vadd.f32 %v6458, %v6908
      %v6910 = vpop.f32.mrb[0].mxu0
      %6911 = vmatprep.mubr.f32.mxu0 0.0
      %v6912 = vand.u32 %v3832, 4294901760
      %6913 = vmatmul.mubr.f32.gmra.mrb[0].mxu0 %v6912
      %v6914 = vpop.f32.mrb[0].mxu0
      %v6915 = vadd.f32 %v6464, %v6914
      %v6916 = vpop.f32.mrb[0].mxu0
      %6917 = vmatprep.mubr.f32.mxu0 0.0
      %v6918 = vand.u32 %v3835, 4294901760
      %6919 = vmatmul.mubr.f32.gmra.mrb[0].mxu0 %v6918
      %v6920 = vpop.f32.mrb[0].mxu0
      %v6921 = vadd.f32 %v6470, %v6920
      %v6922 = vpop.f32.mrb[0].mxu0
      %6923 = vmatprep.mubr.f32.mxu0 0.0
      %v6924 = vand.u32 %v3838, 4294901760
      %6925 = vmatmul.mubr.f32.gmra.mrb[0].mxu0 %v6924
      %v6926 = vpop.f32.mrb[0].mxu0
      %v6927 = vadd.f32 %v6476, %v6926
      %v6928 = vpop.f32.mrb[0].mxu0
      %6929 = vmatprep.mubr.f32.mxu0 0.0
      %v6930 = vand.u32 %v3841, 4294901760
      %6931 = vmatmul.mubr.f32.gmra.mrb[0].mxu0 %v6930
      %v6932 = vpop.f32.mrb[0].mxu0
      %v6933 = vadd.f32 %v6482, %v6932
      %v6934 = vpop.f32.mrb[0].mxu0
      %6935 = vmatprep.mubr.f32.mxu0 0.0
      %v6936 = vand.u32 %v3844, 4294901760
      %6937 = vmatmul.mubr.f32.gmra.mrb[0].mxu0 %v6936
      %v6938 = vpop.f32.mrb[0].mxu0
      %v6939 = vadd.f32 %v6488, %v6938
      %v6940 = vpop.f32.mrb[0].mxu0
      %6941 = vmatprep.mubr.f32.mxu0 0.0
      %v6942 = vand.u32 %v3847, 4294901760
      %6943 = vmatmul.mubr.f32.gmra.mrb[0].mxu0 %v6942
      %v6944 = vpop.f32.mrb[0].mxu0
      %v6945 = vadd.f32 %v6494, %v6944
      %v6946 = vpop.f32.mrb[0].mxu0
      %6947 = vmatprep.mubr.f32.mxu0 0.0
      %v6948 = vand.u32 %v3850, 4294901760
      %6949 = vmatmul.mubr.f32.gmra.mrb[0].mxu0 %v6948
      %v6950 = vpop.f32.mrb[0].mxu0
      %v6951 = vadd.f32 %v6500, %v6950
      %v6952 = vpop.f32.mrb[0].mxu0
      %6953 = vmatprep.mubr.f32.mxu0 0.0
      %v6954 = vand.u32 %v3853, 4294901760
      %6955 = vmatmul.mubr.f32.gmra.mrb[0].mxu0 %v6954
      %v6956 = vpop.f32.mrb[0].mxu0
      %v6957 = vadd.f32 %v6506, %v6956
      %v6958 = vpop.f32.mrb[0].mxu0
      %6959 = vmatprep.mubr.f32.mxu0 0.0
      %v6960 = vand.u32 %v3856, 4294901760
      %6961 = vmatmul.mubr.f32.gmra.mrb[0].mxu0 %v6960
      %v6962 = vpop.f32.mrb[0].mxu0
      %v6963 = vadd.f32 %v6512, %v6962
      %v6964 = vpop.f32.mrb[0].mxu0
      %6965 = vmatprep.mubr.f32.mxu0 0.0
      %v6966 = vand.u32 %v3859, 4294901760
      %6967 = vmatmul.mubr.f32.gmra.mrb[0].mxu0 %v6966
      %v6968 = vpop.f32.mrb[0].mxu0
      %v6969 = vadd.f32 %v6518, %v6968
      %v6970 = vpop.f32.mrb[0].mxu0
      %6971 = vmatprep.mubr.f32.mxu0 0.0
      %v6972 = vand.u32 %v3862, 4294901760
      %6973 = vmatmul.mubr.f32.gmra.mrb[0].mxu0 %v6972
      %v6974 = vpop.f32.mrb[0].mxu0
      %v6975 = vadd.f32 %v6524, %v6974
      %v6976 = vpop.f32.mrb[0].mxu0
      %6977 = vmatprep.mubr.f32.mxu0 0.0
      %v6978 = vand.u32 %v3865, 4294901760
      %6979 = vmatmul.mubr.f32.gmra.mrb[0].mxu0 %v6978
      %v6980 = vpop.f32.mrb[0].mxu0
      %v6981 = vadd.f32 %v6530, %v6980
      %v6982 = vpop.f32.mrb[0].mxu0
      %6983 = vmatprep.mubr.f32.mxu0 0.0
      %v6984 = vand.u32 %v3868, 4294901760
      %6985 = vmatmul.mubr.f32.gmra.mrb[0].mxu0 %v6984
      %v6986 = vpop.f32.mrb[0].mxu0
      %v6987 = vadd.f32 %v6536, %v6986
      %v6988 = vpop.f32.mrb[0].mxu0
      %6989 = vmatprep.mubr.f32.mxu0 0.0
      %v6990 = vand.u32 %v3871, 4294901760
      %6991 = vmatmul.mubr.f32.gmra.mrb[0].mxu0 %v6990
      %v6992 = vpop.f32.mrb[0].mxu0
      %v6993 = vadd.f32 %v6542, %v6992
      %v6994 = vpop.f32.mrb[0].mxu0
      %6995 = vmatprep.mubr.f32.mxu0 0.0
      %v6996 = vand.u32 %v3874, 4294901760
      %6997 = vmatmul.mubr.f32.gmra.mrb[0].mxu0 %v6996
      %v6998 = vpop.f32.mrb[0].mxu0
      %v6999 = vadd.f32 %v6548, %v6998
      %v7000 = vpop.f32.mrb[0].mxu0
      %7001 = vmatprep.mubr.f32.mxu0 0.0
      %v7002 = vand.u32 %v3877, 4294901760
      %7003 = vmatmul.mubr.f32.gmra.mrb[0].mxu0 %v7002
      %v7004 = vpop.f32.mrb[0].mxu0
      %v7005 = vadd.f32 %v6554, %v7004
      %v7006 = vpop.f32.mrb[0].mxu0
      %7007 = vmatprep.mubr.f32.mxu0 0.0
      %v7008 = vand.u32 %v3880, 4294901760
      %7009 = vmatmul.mubr.f32.gmra.mrb[0].mxu0 %v7008
      %v7010 = vpop.f32.mrb[0].mxu0
      %v7011 = vadd.f32 %v6560, %v7010
      %v7012 = vpop.f32.mrb[0].mxu0
      %7013 = vmatprep.mubr.f32.mxu0 0.0
      %v7014 = vand.u32 %v3883, 4294901760
      %7015 = vmatmul.mubr.f32.gmra.mrb[0].mxu0 %v7014
      %v7016 = vpop.f32.mrb[0].mxu0
      %v7017 = vadd.f32 %v6566, %v7016
      %v7018 = vpop.f32.mrb[0].mxu0
      %7019 = vmatprep.mubr.f32.mxu0 0.0
      %v7020 = vand.u32 %v3886, 4294901760
      %7021 = vmatmul.mubr.f32.gmra.mrb[0].mxu0 %v7020
      %v7022 = vpop.f32.mrb[0].mxu0
      %v7023 = vadd.f32 %v6572, %v7022
      %v7024 = vpop.f32.mrb[0].mxu0
      %7025 = vmatprep.mubr.f32.mxu0 0.0
      %v7026 = vand.u32 %v3889, 4294901760
      %7027 = vmatmul.mubr.f32.gmra.mrb[0].mxu0 %v7026
      %v7028 = vpop.f32.mrb[0].mxu0
      %v7029 = vadd.f32 %v6578, %v7028
      %v7030 = vpop.f32.mrb[0].mxu0
      %7031 = vmatprep.mubr.f32.mxu0 0.0
      %v7032 = vand.u32 %v3892, 4294901760
      %7033 = vmatmul.mubr.f32.gmra.mrb[0].mxu0 %v7032
      %v7034 = vpop.f32.mrb[0].mxu0
      %v7035 = vadd.f32 %v6584, %v7034
      %v7036 = vpop.f32.mrb[0].mxu0
      %7037 = vmatprep.mubr.f32.mxu0 0.0
      %v7038 = vand.u32 %v3895, 4294901760
      %7039 = vmatmul.mubr.f32.gmra.mrb[0].mxu0 %v7038
      %v7040 = vpop.f32.mrb[0].mxu0
      %v7041 = vadd.f32 %v6590, %v7040
      %v7042 = vpop.f32.mrb[0].mxu0
      %7043 = vmatprep.mubr.f32.mxu0 0.0
      %v7044 = vand.u32 %v3898, 4294901760
      %7045 = vmatmul.mubr.f32.gmra.mrb[0].mxu0 %v7044
      %v7046 = vpop.f32.mrb[0].mxu0
      %v7047 = vadd.f32 %v6596, %v7046
      %v7048 = vpop.f32.mrb[0].mxu0
      %7049 = vmatprep.mubr.f32.mxu0 0.0
      %v7050 = vand.u32 %v3901, 4294901760
      %7051 = vmatmul.mubr.f32.gmra.mrb[0].mxu0 %v7050
      %v7052 = vpop.f32.mrb[0].mxu0
      %v7053 = vadd.f32 %v6602, %v7052
      %v7054 = vpop.f32.mrb[0].mxu0
      %7055 = vmatprep.mubr.f32.mxu0 0.0
      %v7056 = vand.u32 %v3904, 4294901760
      %7057 = vmatmul.mubr.f32.gmra.mrb[0].mxu0 %v7056
      %v7058 = vpop.f32.mrb[0].mxu0
      %v7059 = vadd.f32 %v6608, %v7058
      %v7060 = vpop.f32.mrb[0].mxu0
      %7061 = vmatprep.mubr.f32.mxu0 0.0
      %v7062 = vand.u32 %v3907, 4294901760
      %7063 = vmatmul.mubr.f32.gmra.mrb[0].mxu0 %v7062
      %v7064 = vpop.f32.mrb[0].mxu0
      %v7065 = vadd.f32 %v6614, %v7064
      %v7066 = vpop.f32.mrb[0].mxu0
      %7067 = vmatprep.mubr.f32.mxu0 0.0
      %v7068 = vand.u32 %v3910, 4294901760
      %7069 = vmatmul.mubr.f32.gmra.mrb[0].mxu0 %v7068
      %v7070 = vpop.f32.mrb[0].mxu0
      %v7071 = vadd.f32 %v6620, %v7070
      %v7072 = vpop.f32.mrb[0].mxu0
      %7073 = vmatprep.mubr.f32.mxu0 0.0
      %v7074 = vand.u32 %v3913, 4294901760
      %7075 = vmatmul.mubr.f32.gmra.mrb[0].mxu0 %v7074
      %v7076 = vpop.f32.mrb[0].mxu0
      %v7077 = vadd.f32 %v6626, %v7076
      %v7078 = vpop.f32.mrb[0].mxu0
      %7079 = vmatprep.mubr.f32.mxu0 0.0
      %v7080 = vand.u32 %v3916, 4294901760
      %7081 = vmatmul.mubr.f32.gmra.mrb[0].mxu0 %v7080
      %v7082 = vpop.f32.mrb[0].mxu0
      %v7083 = vadd.f32 %v6632, %v7082
      %v7084 = vpop.f32.mrb[0].mxu0
      %7085 = vdwg.mxu0
      %vm7086 = vcmask 31744
      %7087 = vst.msk [vmem:[%s226] sm:$0xff] %vm7086, %v6705
      %7088 = vst.msk [vmem:[%s226 + $0x8] sm:$0xff] %vm7086, %v6711
      %7089 = vst.msk [vmem:[%s226 + $0x10] sm:$0xff] %vm7086, %v6717
      %7090 = vst.msk [vmem:[%s226 + $0x18] sm:$0xff] %vm7086, %v6723
      %7091 = vst.msk [vmem:[%s226 + $0x20] sm:$0xff] %vm7086, %v6729
      %7092 = vst.msk [vmem:[%s226 + $0x28] sm:$0xff] %vm7086, %v6735
      %7093 = vst.msk [vmem:[%s226 + $0x30] sm:$0xff] %vm7086, %v6741
      %7094 = vst.msk [vmem:[%s226 + $0x38] sm:$0xff] %vm7086, %v6747
      %7095 = vst.msk [vmem:[%s226 + $0x40] sm:$0xff] %vm7086, %v6753
      %7096 = vst.msk [vmem:[%s226 + $0x48] sm:$0xff] %vm7086, %v6759
      %7097 = vst.msk [vmem:[%s226 + $0x50] sm:$0xff] %vm7086, %v6765
      %7098 = vst.msk [vmem:[%s226 + $0x58] sm:$0xff] %vm7086, %v6771
      %7099 = vst.msk [vmem:[%s226 + $0x60] sm:$0xff] %vm7086, %v6777
      %7100 = vst.msk [vmem:[%s226 + $0x68] sm:$0xff] %vm7086, %v6783
      %7101 = vst.msk [vmem:[%s226 + $0x70] sm:$0xff] %vm7086, %v6789
      %7102 = vst.msk [vmem:[%s226 + $0x78] sm:$0xff] %vm7086, %v6795
      %7103 = vst.msk [vmem:[%s226 + $0x80] sm:$0xff] %vm7086, %v6801
      %7104 = vst.msk [vmem:[%s226 + $0x88] sm:$0xff] %vm7086, %v6807
      %7105 = vst.msk [vmem:[%s226 + $0x90] sm:$0xff] %vm7086, %v6813
      %7106 = vst.msk [vmem:[%s226 + $0x98] sm:$0xff] %vm7086, %v6819
      %7107 = vst.msk [vmem:[%s226 + $0xa0] sm:$0xff] %vm7086, %v6825
      %7108 = vst.msk [vmem:[%s226 + $0xa8] sm:$0xff] %vm7086, %v6831
      %7109 = vst.msk [vmem:[%s226 + $0xb0] sm:$0xff] %vm7086, %v6837
      %7110 = vst.msk [vmem:[%s226 + $0xb8] sm:$0xff] %vm7086, %v6843
      %7111 = vst.msk [vmem:[%s226 + $0xc0] sm:$0xff] %vm7086, %v6849
      %7112 = vst.msk [vmem:[%s226 + $0xc8] sm:$0xff] %vm7086, %v6855
      %7113 = vst.msk [vmem:[%s226 + $0xd0] sm:$0xff] %vm7086, %v6861
      %7114 = vst.msk [vmem:[%s226 + $0xd8] sm:$0xff] %vm7086, %v6867
      %7115 = vst.msk [vmem:[%s226 + $0xe0] sm:$0xff] %vm7086, %v6873
      %7116 = vst.msk [vmem:[%s226 + $0xe8] sm:$0xff] %vm7086, %v6879
      %7117 = vst.msk [vmem:[%s226 + $0xf0] sm:$0xff] %vm7086, %v6885
      %7118 = vst.msk [vmem:[%s226 + $0xf8] sm:$0xff] %vm7086, %v6891
      %7119 = vst.msk [vmem:[%s226 + $0x100] sm:$0xff] %vm7086, %v6897
      %7120 = vst.msk [vmem:[%s226 + $0x108] sm:$0xff] %vm7086, %v6903
      %7121 = vst.msk [vmem:[%s226 + $0x110] sm:$0xff] %vm7086, %v6909
      %7122 = vst.msk [vmem:[%s226 + $0x118] sm:$0xff] %vm7086, %v6915
      %7123 = vst.msk [vmem:[%s226 + $0x120] sm:$0xff] %vm7086, %v6921
      %7124 = vst.msk [vmem:[%s226 + $0x128] sm:$0xff] %vm7086, %v6927
      %7125 = vst.msk [vmem:[%s226 + $0x130] sm:$0xff] %vm7086, %v6933
      %7126 = vst.msk [vmem:[%s226 + $0x138] sm:$0xff] %vm7086, %v6939
      %7127 = vst.msk [vmem:[%s226 + $0x140] sm:$0xff] %vm7086, %v6945
      %7128 = vst.msk [vmem:[%s226 + $0x148] sm:$0xff] %vm7086, %v6951
      %7129 = vst.msk [vmem:[%s226 + $0x150] sm:$0xff] %vm7086, %v6957
      %7130 = vst.msk [vmem:[%s226 + $0x158] sm:$0xff] %vm7086, %v6963
      %7131 = vst.msk [vmem:[%s226 + $0x160] sm:$0xff] %vm7086, %v6969
      %7132 = vst.msk [vmem:[%s226 + $0x168] sm:$0xff] %vm7086, %v6975
      %7133 = vst.msk [vmem:[%s226 + $0x170] sm:$0xff] %vm7086, %v6981
      %7134 = vst.msk [vmem:[%s226 + $0x178] sm:$0xff] %vm7086, %v6987
      %7135 = vst.msk [vmem:[%s226 + $0x180] sm:$0xff] %vm7086, %v6993
      %7136 = vst.msk [vmem:[%s226 + $0x188] sm:$0xff] %vm7086, %v6999
      %7137 = vst.msk [vmem:[%s226 + $0x190] sm:$0xff] %vm7086, %v7005
      %7138 = vst.msk [vmem:[%s226 + $0x198] sm:$0xff] %vm7086, %v7011
      %7139 = vst.msk [vmem:[%s226 + $0x1a0] sm:$0xff] %vm7086, %v7017
      %7140 = vst.msk [vmem:[%s226 + $0x1a8] sm:$0xff] %vm7086, %v7023
      %7141 = vst.msk [vmem:[%s226 + $0x1b0] sm:$0xff] %vm7086, %v7029
      %7142 = vst.msk [vmem:[%s226 + $0x1b8] sm:$0xff] %vm7086, %v7035
      %7143 = vst.msk [vmem:[%s226 + $0x1c0] sm:$0xff] %vm7086, %v7041
      %7144 = vst.msk [vmem:[%s226 + $0x1c8] sm:$0xff] %vm7086, %v7047
      %7145 = vst.msk [vmem:[%s226 + $0x1d0] sm:$0xff] %vm7086, %v7053
      %7146 = vst.msk [vmem:[%s226 + $0x1d8] sm:$0xff] %vm7086, %v7059
      %7147 = vst.msk [vmem:[%s226 + $0x1e0] sm:$0xff] %vm7086, %v7065
      %7148 = vst.msk [vmem:[%s226 + $0x1e8] sm:$0xff] %vm7086, %v7071
      %7149 = vst.msk [vmem:[%s226 + $0x1f0] sm:$0xff] %vm7086, %v7077
      %7150 = vst.msk [vmem:[%s226 + $0x1f8] sm:$0xff] %vm7086, %v7083
      %s7151 = smul.u32 64, %s16
      %p7152 = scmp.lt.s32.totalorder %s7151, 255
      %s7153 = scalar_select %p7152, %s7151, 255
      %s7154 = smul.addr %s7153, 8
      %s7155 = scalar_lea.vmem %s5, %s7154
      // Predicated region
      $region41: #{chipmunk_slice_nn_forward.1} parent=39 // pred_check
        %p7156 = pneg %p144
      $region42: #{chipmunk_slice_nn_forward.1} parent=39 // pred_check_branch
        %7158 = sbr.rel (%p7156) target = $region44
      $region43: #{chipmunk_slice_nn_forward.1} parent=39 // pred_region
        %s7159 = smul.u32 64, %s16
      $region44: #{chipmunk_slice_nn_forward.1} parent=39 // pred_fallthru
        _
    $region40: #{chipmunk_slice_nn_forward.1} parent=5 // pred_fallthru
      _
    %p7160 = scmp.le.s32.totalorder 2, %s11
    // Predicated region
    $region45: #{chipmunk_slice_nn_forward.1} parent=5 // pred_check
      %p7161 = pneg %p7160
    $region46: #{chipmunk_slice_nn_forward.1} parent=5 // pred_check_branch
      %7163 = sbr.rel (%p7161) target = $region48
    $region47: #{chipmunk_slice_nn_forward.1} parent=5 // pred_region
      %s7164 = ssub.s32 %s11, 2
      // Predicated region
      $region49: #{chipmunk_slice_nn_forward.1} parent=47 // pred_check
        %p7165 = pneg %p150
      $region50: #{chipmunk_slice_nn_forward.1} parent=47 // pred_check_branch
        %7167 = sbr.rel (%p7165) target = $region52
      $region51: #{chipmunk_slice_nn_forward.1} parent=47 // pred_region
        %s7168 = smul.u32 64, %s17
        %p7169 = scmp.lt.s32.totalorder %s7168, 255
        %s7170 = scalar_select %p7169, %s7168, 255
        %s7171 = smul.addr %s7170, 8
        %s7172 = scalar_lea.vmem %s5, %s7171
      $region52: #{chipmunk_slice_nn_forward.1} parent=47 // pred_fallthru
        _
    $region48: #{chipmunk_slice_nn_forward.1} parent=5 // pred_fallthru
      _
  $region6: #{chipmunk_slice_nn_forward.1} parent=0 // loop_footer
    %s15 = sadd.s32 1, %s11
  $region7: #{chipmunk_slice_nn_forward.1} parent=0 // loop_footer_branch
    %10 = sbr.rel target = $region3
  $region8: #{chipmunk_slice_nn_forward.1} parent=0 // loop_exit
    _

</llo_original>
